<compile_context>
chip_gen: v6e
topology: v6e:2x2x1
jax: 0.10.0
libtpu: 0.0.40
codegen_flags: <defaults>
</compile_context>

<pallas_src>
import functools
import math

import jax
import jax.numpy as jnp
from jax.experimental import pallas as pl
from jax.experimental.pallas import tpu as pltpu


def _choose_tn(n, target=512):
    """Pick a token-tile length that divides n (multiple of 128 when possible)."""
    if n <= target or n % 128 != 0:
        return n
    tn = (target // 128) * 128
    while n % tn != 0:
        tn -= 128
    return tn


# ----------------------------- 1x1 convs (channels-major matmuls) -----------------------------
def _mm_kernel(x_ref, w_ref, o_ref, *, relu):
    y = jnp.dot(w_ref[...], x_ref[0], preferred_element_type=jnp.float32)
    if relu:
        y = jnp.maximum(y, 0.0)
    o_ref[0] = y


def _mm_res_kernel(x_ref, w_ref, r_ref, o_ref):
    o_ref[0] = (jnp.dot(w_ref[...], x_ref[0], preferred_element_type=jnp.float32)
                + r_ref[0])


def conv1x1(x, w, relu=False):
    """x: (B, Cin, N) channels-major; w: (Cout, Cin) -> (B, Cout, N)."""
    B, Cin, N = x.shape
    Cout = w.shape[0]
    tn = _choose_tn(N)
    return pl.pallas_call(
        functools.partial(_mm_kernel, relu=relu),
        out_shape=jax.ShapeDtypeStruct((B, Cout, N), jnp.float32),
        grid=(B, N // tn),
        in_specs=[pl.BlockSpec((1, Cin, tn), lambda b, t: (b, 0, t)),
                  pl.BlockSpec((Cout, Cin), lambda b, t: (0, 0))],
        out_specs=pl.BlockSpec((1, Cout, tn), lambda b, t: (b, 0, t)),
        compiler_params=pltpu.CompilerParams(
            dimension_semantics=("parallel", "parallel")),
    )(x, w)


def conv1x1_residual(x, w, res):
    """w @ x + res, fused (used for the final out-conv + global residual)."""
    B, Cin, N = x.shape
    Cout = w.shape[0]
    tn = _choose_tn(N)
    return pl.pallas_call(
        _mm_res_kernel,
        out_shape=jax.ShapeDtypeStruct((B, Cout, N), jnp.float32),
        grid=(B, N // tn),
        in_specs=[pl.BlockSpec((1, Cin, tn), lambda b, t: (b, 0, t)),
                  pl.BlockSpec((Cout, Cin), lambda b, t: (0, 0)),
                  pl.BlockSpec((1, Cout, tn), lambda b, t: (b, 0, t))],
        out_specs=pl.BlockSpec((1, Cout, tn), lambda b, t: (b, 0, t)),
        compiler_params=pltpu.CompilerParams(
            dimension_semantics=("parallel", "parallel")),
    )(x, w, res)


# ----------------------------- fused WithBias channel-LayerNorm + 1x1 convs -------------------
def _ln_mm_kernel(x_ref, g_ref, b_ref, *rest):
    n = len(rest) // 2                                   # rest = (w_0..w_{n-1}, o_0..o_{n-1})
    x = x_ref[0]                                         # (C, TN)
    mu = jnp.mean(x, axis=0, keepdims=True)
    var = jnp.mean(jnp.square(x - mu), axis=0, keepdims=True)
    xn = (x - mu) * jax.lax.rsqrt(var + 1e-5) * g_ref[...] + b_ref[...]
    for i in range(n):
        rest[n + i][0] = jnp.dot(rest[i][...], xn,
                                 preferred_element_type=jnp.float32)


def layernorm_conv1x1(x, gamma, beta, weights):
    """WithBias LayerNorm over channels followed by several 1x1 convs, all in one kernel."""
    B, C, N = x.shape
    tn = _choose_tn(N)
    couts = [w.shape[0] for w in weights]
    in_specs = [pl.BlockSpec((1, C, tn), lambda b, t: (b, 0, t)),
                pl.BlockSpec((C, 1), lambda b, t: (0, 0)),
                pl.BlockSpec((C, 1), lambda b, t: (0, 0))]
    in_specs += [pl.BlockSpec((co, C), lambda b, t: (0, 0)) for co in couts]
    out_specs = tuple(pl.BlockSpec((1, co, tn), lambda b, t: (b, 0, t)) for co in couts)
    out_shape = tuple(jax.ShapeDtypeStruct((B, co, N), jnp.float32) for co in couts)
    return pl.pallas_call(
        _ln_mm_kernel,
        out_shape=out_shape,
        grid=(B, N // tn),
        in_specs=in_specs,
        out_specs=out_specs,
        compiler_params=pltpu.CompilerParams(
            dimension_semantics=("parallel", "parallel")),
    )(x, gamma, beta, *weights)


# ----------------------------- in-kernel depthwise 3x3 conv (zero padding) --------------------
def _dwconv3x3_cm(x, w_ref, edge_l, edge_r, W):
    """Depthwise 3x3 conv on channels-major x: (C, N), N = H*W row-major, zero padded."""
    Cc, N = x.shape
    P = W + 1                                            # covers max |shift| = W + 1
    zpad = jnp.zeros((Cc, P), x.dtype)
    xp = jnp.concatenate([zpad, x, zpad], axis=1)        # VMEM-only zero halo
    acc = x * w_ref[:, 4:5]                              # center tap (di=0, dj=0)
    for di in (-1, 0, 1):
        for dj in (-1, 0, 1):
            if di == 0 and dj == 0:
                continue
            idx = (di + 1) * 3 + (dj + 1)
            s = di * W + dj
            tap = xp[:, P + s:P + s + N]                 # x shifted by s, zero filled
            if dj == 1:
                tap = tap * edge_r                       # kill col (W-1) -> col 0 wrap
            elif dj == -1:
                tap = tap * edge_l                       # kill col 0 -> col (W-1) wrap
            acc = acc + tap * w_ref[:, idx:idx + 1]
    return acc


# ----------------------------- MDTA attention block (dwconv + attn + proj + residual) ---------
def _attn_block_kernel(q_ref, k_ref, v_ref, x_ref, wqd_ref, wkd_ref, wvd_ref,
                       temp_ref, bias_ref, wo_ref, el_ref, er_ref, o_ref, *, W):
    el = el_ref[...]
    er = er_ref[...]
    q = _dwconv3x3_cm(q_ref[0], wqd_ref, el, er, W)      # (C, N)
    k = _dwconv3x3_cm(k_ref[0], wkd_ref, el, er, W)
    v = _dwconv3x3_cm(v_ref[0], wvd_ref, el, er, W)
    # F.normalize(q, dim=-1) over the spatial axis; 1e-24 = (1e-12)^2 so rsqrt(max(ss, eps^2))
    qn = q * jax.lax.rsqrt(jnp.maximum(jnp.sum(q * q, axis=1, keepdims=True), 1e-24))
    kn = k * jax.lax.rsqrt(jnp.maximum(jnp.sum(k * k, axis=1, keepdims=True), 1e-24))
    # all heads at once: (C, C) channel-channel attention, masked to the block diagonal
    attn = jax.lax.dot_general(qn, kn, (((1,), (1,)), ((), ())),
                               preferred_element_type=jnp.float32)
    attn = attn * temp_ref[...] + bias_ref[...]          # per-head temperature + head mask
    attn = attn - jnp.max(attn, axis=-1, keepdims=True)
    e = jnp.exp(attn)
    p = e * pl.reciprocal(jnp.sum(e, axis=-1, keepdims=True), approx=True)
    out = jnp.dot(p, v, preferred_element_type=jnp.float32)            # (C, N)
    o_ref[0] = x_ref[0] + jnp.dot(wo_ref[...], out,
                                  preferred_element_type=jnp.float32)  # proj + residual


def mdta_attention_block(q, k, v, x, wq_dw, wk_dw, wv_dw, temp_col, head_bias,
                         w_out, edge_l, edge_r, W):
    B, C, N = x.shape
    act = pl.BlockSpec((1, C, N), lambda b: (b, 0, 0))
    full2 = lambda shape: pl.BlockSpec(shape, lambda b: (0, 0))
    return pl.pallas_call(
        functools.partial(_attn_block_kernel, W=W),
        out_shape=jax.ShapeDtypeStruct((B, C, N), jnp.float32),
        grid=(B,),
        in_specs=[act, act, act, act,
                  full2((C, 9)), full2((C, 9)), full2((C, 9)),
                  full2((C, 1)), full2((C, C)), full2((C, C)),
                  full2((1, N)), full2((1, N))],
        out_specs=act,
        input_output_aliases={3: 0},                     # residual input buffer -> output
        compiler_params=pltpu.CompilerParams(dimension_semantics=("parallel",)),
    )(q, k, v, x, wq_dw, wk_dw, wv_dw, temp_col, head_bias, w_out, edge_l, edge_r)


# ----------------------------- GDFN block (dwconv + gelu-gate + proj + residual) --------------
def _ffn_block_kernel(h1_ref, h2_ref, x_ref, w1d_ref, w2d_ref, wo_ref,
                      el_ref, er_ref, o_ref, *, W):
    el = el_ref[...]
    er = er_ref[...]
    a = _dwconv3x3_cm(h1_ref[0], w1d_ref, el, er, W)
    b = _dwconv3x3_cm(h2_ref[0], w2d_ref, el, er, W)
    g = 0.5 * a * (1.0 + jax.lax.erf(a * (1.0 / math.sqrt(2.0)))) * b   # exact gelu(a) * b
    o_ref[0] = x_ref[0] + jnp.dot(wo_ref[...], g, preferred_element_type=jnp.float32)


def gdfn_block(h1, h2, x, w1_dw, w2_dw, w_out, edge_l, edge_r, W):
    B, C, N = x.shape
    hid = h1.shape[1]
    act_c = pl.BlockSpec((1, C, N), lambda b: (b, 0, 0))
    act_h = pl.BlockSpec((1, hid, N), lambda b: (b, 0, 0))
    full2 = lambda shape: pl.BlockSpec(shape, lambda b: (0, 0))
    return pl.pallas_call(
        functools.partial(_ffn_block_kernel, W=W),
        out_shape=jax.ShapeDtypeStruct((B, C, N), jnp.float32),
        grid=(B,),
        in_specs=[act_h, act_h, act_c,
                  full2((hid, 9)), full2((hid, 9)), full2((C, hid)),
                  full2((1, N)), full2((1, N))],
        out_specs=act_c,
        input_output_aliases={2: 0},
        compiler_params=pltpu.CompilerParams(dimension_semantics=("parallel",)),
    )(h1, h2, x, w1_dw, w2_dw, w_out, edge_l, edge_r)


# ----------------------------- parameters -----------------------------------------------------
def init_params(key, in_channels=3, dim=32, num_heads=4,
                ffn_expansion_factor=2.66, num_blocks=10):
    hidden = int(dim * ffn_expansion_factor)             # 85

    def mat(k, cout, cin):                               # (Cout, Cin) channels-major conv1x1
        return jax.random.normal(k, (cout, cin), jnp.float32) / math.sqrt(cin)

    def dw(k, c):                                        # depthwise 3x3, (C, 3, 3)
        return jax.random.normal(k, (c, 3, 3), jnp.float32) / 3.0

    keys = jax.random.split(key, 2 + num_blocks)
    params = {"inconv": mat(keys[0], dim, in_channels),
              "outconv": mat(keys[1], in_channels, dim),
              "blocks": []}
    for i in range(num_blocks):
        bk = jax.random.split(keys[2 + i], 12)
        params["blocks"].append({
            "norm1_w": jnp.ones((dim, 1), jnp.float32),
            "norm1_b": jnp.zeros((dim, 1), jnp.float32),
            "wq": mat(bk[0], dim, dim),
            "wk": mat(bk[1], dim, dim),
            "wv": mat(bk[2], dim, dim),
            "dwq": dw(bk[3], dim),
            "dwk": dw(bk[4], dim),
            "dwv": dw(bk[5], dim),
            "temperature": jnp.ones((num_heads,), jnp.float32),
            "wo": mat(bk[6], dim, dim),
            "norm2_w": jnp.ones((dim, 1), jnp.float32),
            "norm2_b": jnp.zeros((dim, 1), jnp.float32),
            "w1": mat(bk[7], hidden, dim),
            "w2": mat(bk[8], hidden, dim),
            "dw1": dw(bk[9], hidden),
            "dw2": dw(bk[10], hidden),
            "wf": mat(bk[11], dim, hidden),
        })
    return params


# ----------------------------- Trans10 forward ------------------------------------------------
def trans10_forward(params, x_nchw, num_heads=4):
    x = x_nchw.astype(jnp.float32)
    B, Cin, H, W = x.shape
    N = H * W
    x = x.reshape(B, Cin, N)                             # NCHW is already channels-major
    inp = x

    h = conv1x1(x, params["inconv"], relu=True)          # inconv1 + ReLU -> (B, dim, N)
    dim = h.shape[1]
    c_head = dim // num_heads

    # constants shared by all 10 blocks (computed once, tiny)
    head_id = jnp.arange(dim, dtype=jnp.int32) // c_head
    head_bias = jnp.where(head_id[:, None] == head_id[None, :],
                          0.0, -1e30).astype(jnp.float32)          # block-diag softmax mask
    col = jnp.arange(N, dtype=jnp.int32) % W
    edge_l = (col > 0).astype(jnp.float32).reshape(1, N)           # valid for dj = -1 taps
    edge_r = (col < W - 1).astype(jnp.float32).reshape(1, N)       # valid for dj = +1 taps

    for p in params["blocks"]:
        # --- MDTA attention branch: h = h + proj(attn(dwconv(qkv(LN(h))))) ---
        q, k, v = layernorm_conv1x1(h, p["norm1_w"], p["norm1_b"],
                                    [p["wq"], p["wk"], p["wv"]])
        temp_col = jnp.repeat(p["temperature"], c_head).reshape(dim, 1)
        h = mdta_attention_block(q, k, v, h,
                                 p["dwq"].reshape(dim, 9),
                                 p["dwk"].reshape(dim, 9),
                                 p["dwv"].reshape(dim, 9),
                                 temp_col, head_bias, p["wo"],
                                 edge_l, edge_r, W)
        # --- GDFN feed-forward branch: h = h + proj(gelu(x1) * x2) ---
        h1, h2 = layernorm_conv1x1(h, p["norm2_w"], p["norm2_b"],
                                   [p["w1"], p["w2"]])
        hid = h1.shape[1]
        h = gdfn_block(h1, h2, h,
                       p["dw1"].reshape(hid, 9), p["dw2"].reshape(hid, 9),
                       p["wf"], edge_l, edge_r, W)

    out = conv1x1_residual(h, params["outconv"], inp)    # outconv1 + global residual
    return out.reshape(B, Cin, H, W)


# ----------------------------- pure-JAX reference (numerical self-check) ----------------------
def reference_forward(params, x_nchw, num_heads=4):
    prec = jax.lax.Precision.HIGHEST
    x = x_nchw.astype(jnp.float32)
    B, Cin, H, W = x.shape
    N = H * W

    def conv1(t, w):
        return jnp.einsum("oc,bchw->bohw", w, t, precision=prec)

    def dwconv(t, w):
        return jax.lax.conv_general_dilated(
            t, w[:, None, :, :], window_strides=(1, 1), padding=((1, 1), (1, 1)),
            dimension_numbers=("NCHW", "OIHW", "NCHW"),
            feature_group_count=t.shape[1], precision=prec)

    def layernorm(t, g, b):
        mu = jnp.mean(t, axis=1, keepdims=True)
        var = jnp.mean(jnp.square(t - mu), axis=1, keepdims=True)
        return ((t - mu) / jnp.sqrt(var + 1e-5) * g.reshape(1, -1, 1, 1)
                + b.reshape(1, -1, 1, 1))

    h = jnp.maximum(conv1(x, params["inconv"]), 0.0)
    dim = h.shape[1]
    ch = dim // num_heads
    for p in params["blocks"]:
        xn = layernorm(h, p["norm1_w"], p["norm1_b"])
        q = dwconv(conv1(xn, p["wq"]), p["dwq"]).reshape(B, num_heads, ch, N)
        k = dwconv(conv1(xn, p["wk"]), p["dwk"]).reshape(B, num_heads, ch, N)
        v = dwconv(conv1(xn, p["wv"]), p["dwv"]).reshape(B, num_heads, ch, N)
        q = q / jnp.maximum(jnp.linalg.norm(q, axis=-1, keepdims=True), 1e-12)
        k = k / jnp.maximum(jnp.linalg.norm(k, axis=-1, keepdims=True), 1e-12)
        attn = jnp.einsum("bhcn,bhdn->bhcd", q, k, precision=prec)
        attn = attn * p["temperature"].reshape(1, num_heads, 1, 1)
        attn = jax.nn.softmax(attn, axis=-1)
        out = jnp.einsum("bhcd,bhdn->bhcn", attn, v,
                         precision=prec).reshape(B, dim, H, W)
        h = h + conv1(out, p["wo"])

        xn = layernorm(h, p["norm2_w"], p["norm2_b"])
        a = dwconv(conv1(xn, p["w1"]), p["dw1"])
        bgate = dwconv(conv1(xn, p["w2"]), p["dw2"])
        g = 0.5 * a * (1.0 + jax.lax.erf(a / jnp.sqrt(2.0))) * bgate
        h = h + conv1(g, p["wf"])

    return conv1(h, params["outconv"]) + x


if __name__ == "__main__":
    key = jax.random.PRNGKey(0)
    kx, kp = jax.random.split(key)
    x = jax.random.normal(kx, (2, 3, 16, 16), jnp.float32)   # NCHW like the PyTorch module
    params = init_params(kp, in_channels=3, dim=32, num_heads=4,
                         ffn_expansion_factor=2.66, num_blocks=10)

    fwd = jax.jit(functools.partial(trans10_forward, num_heads=4))
    y = fwd(params, x)
    jax.block_until_ready(y)
    assert y.shape == x.shape and y.dtype == jnp.float32
    assert bool(jnp.all(jnp.isfinite(y)))

    # loose numerical self-check against a pure-JAX reference of the same forward pass
    y_ref = reference_forward(params, x, num_heads=4)
    err = float(jnp.max(jnp.abs(y - y_ref)))
    scale = float(jnp.max(jnp.abs(y_ref))) + 1e-6
    assert err / scale < 5e-2, f"mismatch vs reference: rel err {err / scale:.3e}"

    print("KERNEL_OK")
</pallas_src>

<mosaic_0001>
module attributes {stable_mosaic.version = 11 : i64} {
  func.func @_mm_kernel(%arg0: i32, %arg1: i32, %arg2: memref<1x3x256xf32, #tpu.memory_space<vmem>>, %arg3: memref<32x3xf32, #tpu.memory_space<vmem>>, %arg4: memref<1x32x256xf32, #tpu.memory_space<vmem>>) attributes {dimension_semantics = [#tpu.dimension_semantics<parallel>, #tpu.dimension_semantics<parallel>], iteration_bounds = array<i64: 2, 1>, scalar_prefetch = 0 : i64, scratch_operands = 0 : i64, tpu.core_type = #tpu.core_type<tc>, window_params = [{transform_indices = @transform_0, window_bounds = array<i64: 1, 3, 256>}, {pipeline_mode = #tpu.pipeline_mode<synchronous>, transform_indices = @transform_1, window_bounds = array<i64: 32, 3>}, {transform_indices = @transform_2, window_bounds = array<i64: 1, 32, 256>}]} {
    %c0 = arith.constant 0 : index
    %c0_0 = arith.constant 0 : index
    %0 = vector.load %arg3[%c0, %c0_0] : memref<32x3xf32, #tpu.memory_space<vmem>>, vector<32x3xf32>
    %c0_1 = arith.constant 0 : index
    %c0_2 = arith.constant 0 : index
    %c0_3 = arith.constant 0 : index
    %1 = vector.load %arg2[%c0_1, %c0_2, %c0_3] : memref<1x3x256xf32, #tpu.memory_space<vmem>>, vector<1x3x256xf32>
    %2 = vector.shape_cast %1 : vector<1x3x256xf32> to vector<3x256xf32>
    %cst = arith.constant dense<0.000000e+00> : vector<32x256xf32>
    %3 = tpu.matmul %0, %2, %cst {dimension_numbers = #tpu.dot_dimension_numbers<[1], [0], [0], [1], [0, 0, 1, 1], [], []>} : vector<32x3xf32>, vector<3x256xf32>, vector<32x256xf32> -> vector<32x256xf32>
    %cst_4 = arith.constant 0.000000e+00 : f32
    %4 = vector.broadcast %cst_4 : f32 to vector<32x256xf32>
    %5 = arith.maximumf %3, %4 : vector<32x256xf32>
    %c0_5 = arith.constant 0 : index
    %c0_6 = arith.constant 0 : index
    %c0_7 = arith.constant 0 : index
    %6 = vector.load %arg4[%c0_5, %c0_6, %c0_7] : memref<1x32x256xf32, #tpu.memory_space<vmem>>, vector<1x32x256xf32>
    %7 = vector.shape_cast %6 : vector<1x32x256xf32> to vector<32x256xf32>
    %8 = vector.shape_cast %5 : vector<32x256xf32> to vector<1x32x256xf32>
    tpu.vector_store %arg4[%c0_5, %c0_6, %c0_7], %8 {strides = array<i32>} : memref<1x32x256xf32, #tpu.memory_space<vmem>>, vector<1x32x256xf32>,
    return
  }
  func.func @transform_0(%arg0: i32, %arg1: i32) -> (i32, i32, i32) {
    %c0_i32 = arith.constant 0 : i32
    %c0_i32_0 = arith.constant 0 : i32
    return %arg0, %c0_i32, %arg1 : i32, i32, i32
  }
  func.func @transform_1(%arg0: i32, %arg1: i32) -> (i32, i32) {
    %c0_i32 = arith.constant 0 : i32
    %c0_i32_0 = arith.constant 0 : i32
    %c0_i32_1 = arith.constant 0 : i32
    return %c0_i32, %c0_i32_0 : i32, i32
  }
  func.func @transform_2(%arg0: i32, %arg1: i32) -> (i32, i32, i32) {
    %c0_i32 = arith.constant 0 : i32
    %c0_i32_0 = arith.constant 0 : i32
    return %arg0, %c0_i32, %arg1 : i32, i32, i32
  }
}

module attributes {stable_mosaic.version = 11 : i64} {
  func.func @_ln_mm_kernel(%arg0: i32, %arg1: i32, %arg2: memref<1x32x256xf32, #tpu.memory_space<vmem>>, %arg3: memref<32x1xf32, #tpu.memory_space<vmem>>, %arg4: memref<32x1xf32, #tpu.memory_space<vmem>>, %arg5: memref<32x32xf32, #tpu.memory_space<vmem>>, %arg6: memref<32x32xf32, #tpu.memory_space<vmem>>, %arg7: memref<32x32xf32, #tpu.memory_space<vmem>>, %arg8: memref<1x32x256xf32, #tpu.memory_space<vmem>>, %arg9: memref<1x32x256xf32, #tpu.memory_space<vmem>>, %arg10: memref<1x32x256xf32, #tpu.memory_space<vmem>>) attributes {dimension_semantics = [#tpu.dimension_semantics<parallel>, #tpu.dimension_semantics<parallel>], iteration_bounds = array<i64: 2, 1>, scalar_prefetch = 0 : i64, scratch_operands = 0 : i64, tpu.core_type = #tpu.core_type<tc>, window_params = [{transform_indices = @transform_0, window_bounds = array<i64: 1, 32, 256>}, {pipeline_mode = #tpu.pipeline_mode<synchronous>, transform_indices = @transform_1, window_bounds = array<i64: 32, 1>}, {pipeline_mode = #tpu.pipeline_mode<synchronous>, transform_indices = @transform_2, window_bounds = array<i64: 32, 1>}, {pipeline_mode = #tpu.pipeline_mode<synchronous>, transform_indices = @transform_3, window_bounds = array<i64: 32, 32>}, {pipeline_mode = #tpu.pipeline_mode<synchronous>, transform_indices = @transform_4, window_bounds = array<i64: 32, 32>}, {pipeline_mode = #tpu.pipeline_mode<synchronous>, transform_indices = @transform_5, window_bounds = array<i64: 32, 32>}, {transform_indices = @transform_6, window_bounds = array<i64: 1, 32, 256>}, {transform_indices = @transform_7, window_bounds = array<i64: 1, 32, 256>}, {transform_indices = @transform_8, window_bounds = array<i64: 1, 32, 256>}]} {
    %c0 = arith.constant 0 : index
    %c0_0 = arith.constant 0 : index
    %c0_1 = arith.constant 0 : index
    %0 = vector.load %arg2[%c0, %c0_0, %c0_1] : memref<1x32x256xf32, #tpu.memory_space<vmem>>, vector<1x32x256xf32>
    %1 = vector.shape_cast %0 : vector<1x32x256xf32> to vector<32x256xf32>
    %cst = arith.constant dense<0.000000e+00> : vector<256xf32>
    %2 = vector.multi_reduction <add>, %1, %cst [0] : vector<32x256xf32> to vector<256xf32>
    %3 = vector.shape_cast %2 : vector<256xf32> to vector<1x256xf32>
    %cst_2 = arith.constant 3.200000e+01 : f32
    %4 = vector.broadcast %cst_2 : f32 to vector<1x256xf32>
    %5 = arith.divf %3, %4 : vector<1x256xf32>
    %6 = vector.broadcast %5 : vector<1x256xf32> to vector<32x256xf32>
    %7 = arith.subf %1, %6 : vector<32x256xf32>
    %8 = arith.mulf %7, %7 : vector<32x256xf32>
    %cst_3 = arith.constant dense<0.000000e+00> : vector<256xf32>
    %9 = vector.multi_reduction <add>, %8, %cst_3 [0] : vector<32x256xf32> to vector<256xf32>
    %10 = vector.shape_cast %9 : vector<256xf32> to vector<1x256xf32>
    %cst_4 = arith.constant 3.200000e+01 : f32
    %11 = vector.broadcast %cst_4 : f32 to vector<1x256xf32>
    %12 = arith.divf %10, %11 : vector<1x256xf32>
    %13 = vector.broadcast %5 : vector<1x256xf32> to vector<32x256xf32>
    %14 = arith.subf %1, %13 : vector<32x256xf32>
    %cst_5 = arith.constant 9.99999974E-6 : f32
    %15 = vector.broadcast %cst_5 : f32 to vector<1x256xf32>
    %16 = arith.addf %12, %15 : vector<1x256xf32>
    %17 = math.rsqrt %16 : vector<1x256xf32>
    %18 = vector.broadcast %17 : vector<1x256xf32> to vector<32x256xf32>
    %19 = arith.mulf %14, %18 : vector<32x256xf32>
    %c0_6 = arith.constant 0 : index
    %c0_7 = arith.constant 0 : index
    %20 = vector.load %arg3[%c0_6, %c0_7] : memref<32x1xf32, #tpu.memory_space<vmem>>, vector<32x1xf32>
    %21 = vector.broadcast %20 : vector<32x1xf32> to vector<32x256xf32>
    %22 = arith.mulf %19, %21 : vector<32x256xf32>
    %c0_8 = arith.constant 0 : index
    %c0_9 = arith.constant 0 : index
    %23 = vector.load %arg4[%c0_8, %c0_9] : memref<32x1xf32, #tpu.memory_space<vmem>>, vector<32x1xf32>
    %24 = vector.broadcast %23 : vector<32x1xf32> to vector<32x256xf32>
    %25 = arith.addf %22, %24 : vector<32x256xf32>
    %c0_10 = arith.constant 0 : index
    %c0_11 = arith.constant 0 : index
    %26 = vector.load %arg5[%c0_10, %c0_11] : memref<32x32xf32, #tpu.memory_space<vmem>>, vector<32x32xf32>
    %cst_12 = arith.constant dense<0.000000e+00> : vector<32x256xf32>
    %27 = tpu.matmul %26, %25, %cst_12 {dimension_numbers = #tpu.dot_dimension_numbers<[1], [0], [0], [1], [0, 0, 1, 1], [], []>} : vector<32x32xf32>, vector<32x256xf32>, vector<32x256xf32> -> vector<32x256xf32>
    %c0_13 = arith.constant 0 : index
    %c0_14 = arith.constant 0 : index
    %c0_15 = arith.constant 0 : index
    %28 = vector.load %arg8[%c0_13, %c0_14, %c0_15] : memref<1x32x256xf32, #tpu.memory_space<vmem>>, vector<1x32x256xf32>
    %29 = vector.shape_cast %28 : vector<1x32x256xf32> to vector<32x256xf32>
    %30 = vector.shape_cast %27 : vector<32x256xf32> to vector<1x32x256xf32>
    tpu.vector_store %arg8[%c0_13, %c0_14, %c0_15], %30 {strides = array<i32>} : memref<1x32x256xf32, #tpu.memory_space<vmem>>, vector<1x32x256xf32>,
    %c0_16 = arith.constant 0 : index
    %c0_17 = arith.constant 0 : index
    %31 = vector.load %arg6[%c0_16, %c0_17] : memref<32x32xf32, #tpu.memory_space<vmem>>, vector<32x32xf32>
    %cst_18 = arith.constant dense<0.000000e+00> : vector<32x256xf32>
    %32 = tpu.matmul %31, %25, %cst_18 {dimension_numbers = #tpu.dot_dimension_numbers<[1], [0], [0], [1], [0, 0, 1, 1], [], []>} : vector<32x32xf32>, vector<32x256xf32>, vector<32x256xf32> -> vector<32x256xf32>
    %c0_19 = arith.constant 0 : index
    %c0_20 = arith.constant 0 : index
    %c0_21 = arith.constant 0 : index
    %33 = vector.load %arg9[%c0_19, %c0_20, %c0_21] : memref<1x32x256xf32, #tpu.memory_space<vmem>>, vector<1x32x256xf32>
    %34 = vector.shape_cast %33 : vector<1x32x256xf32> to vector<32x256xf32>
    %35 = vector.shape_cast %32 : vector<32x256xf32> to vector<1x32x256xf32>
    tpu.vector_store %arg9[%c0_19, %c0_20, %c0_21], %35 {strides = array<i32>} : memref<1x32x256xf32, #tpu.memory_space<vmem>>, vector<1x32x256xf32>,
    %c0_22 = arith.constant 0 : index
    %c0_23 = arith.constant 0 : index
    %36 = vector.load %arg7[%c0_22, %c0_23] : memref<32x32xf32, #tpu.memory_space<vmem>>, vector<32x32xf32>
    %cst_24 = arith.constant dense<0.000000e+00> : vector<32x256xf32>
    %37 = tpu.matmul %36, %25, %cst_24 {dimension_numbers = #tpu.dot_dimension_numbers<[1], [0], [0], [1], [0, 0, 1, 1], [], []>} : vector<32x32xf32>, vector<32x256xf32>, vector<32x256xf32> -> vector<32x256xf32>
    %c0_25 = arith.constant 0 : index
    %c0_26 = arith.constant 0 : index
    %c0_27 = arith.constant 0 : index
    %38 = vector.load %arg10[%c0_25, %c0_26, %c0_27] : memref<1x32x256xf32, #tpu.memory_space<vmem>>, vector<1x32x256xf32>
    %39 = vector.shape_cast %38 : vector<1x32x256xf32> to vector<32x256xf32>
    %40 = vector.shape_cast %37 : vector<32x256xf32> to vector<1x32x256xf32>
    tpu.vector_store %arg10[%c0_25, %c0_26, %c0_27], %40 {strides = array<i32>} : memref<1x32x256xf32, #tpu.memory_space<vmem>>, vector<1x32x256xf32>,
    return
  }
  func.func @transform_0(%arg0: i32, %arg1: i32) -> (i32, i32, i32) {
    %c0_i32 = arith.constant 0 : i32
    %c0_i32_0 = arith.constant 0 : i32
    return %arg0, %c0_i32, %arg1 : i32, i32, i32
  }
  func.func @transform_1(%arg0: i32, %arg1: i32) -> (i32, i32) {
    %c0_i32 = arith.constant 0 : i32
    %c0_i32_0 = arith.constant 0 : i32
    %c0_i32_1 = arith.constant 0 : i32
    return %c0_i32, %c0_i32_0 : i32, i32
  }
  func.func @transform_2(%arg0: i32, %arg1: i32) -> (i32, i32) {
    %c0_i32 = arith.constant 0 : i32
    %c0_i32_0 = arith.constant 0 : i32
    %c0_i32_1 = arith.constant 0 : i32
    return %c0_i32, %c0_i32_0 : i32, i32
  }
  func.func @transform_3(%arg0: i32, %arg1: i32) -> (i32, i32) {
    %c0_i32 = arith.constant 0 : i32
    %c0_i32_0 = arith.constant 0 : i32
    %c0_i32_1 = arith.constant 0 : i32
    return %c0_i32, %c0_i32_0 : i32, i32
  }
  func.func @transform_4(%arg0: i32, %arg1: i32) -> (i32, i32) {
    %c0_i32 = arith.constant 0 : i32
    %c0_i32_0 = arith.constant 0 : i32
    %c0_i32_1 = arith.constant 0 : i32
    return %c0_i32, %c0_i32_0 : i32, i32
  }
  func.func @transform_5(%arg0: i32, %arg1: i32) -> (i32, i32) {
    %c0_i32 = arith.constant 0 : i32
    %c0_i32_0 = arith.constant 0 : i32
    %c0_i32_1 = arith.constant 0 : i32
    return %c0_i32, %c0_i32_0 : i32, i32
  }
  func.func @transform_6(%arg0: i32, %arg1: i32) -> (i32, i32, i32) {
    %c0_i32 = arith.constant 0 : i32
    %c0_i32_0 = arith.constant 0 : i32
    return %arg0, %c0_i32, %arg1 : i32, i32, i32
  }
  func.func @transform_7(%arg0: i32, %arg1: i32) -> (i32, i32, i32) {
    %c0_i32 = arith.constant 0 : i32
    %c0_i32_0 = arith.constant 0 : i32
    return %arg0, %c0_i32, %arg1 : i32, i32, i32
  }
  func.func @transform_8(%arg0: i32, %arg1: i32) -> (i32, i32, i32) {
    %c0_i32 = arith.constant 0 : i32
    %c0_i32_0 = arith.constant 0 : i32
    return %arg0, %c0_i32, %arg1 : i32, i32, i32
  }
}

module attributes {stable_mosaic.version = 11 : i64} {
  func.func @_attn_block_kernel(%arg0: i32, %arg1: memref<1x32x256xf32, #tpu.memory_space<vmem>>, %arg2: memref<1x32x256xf32, #tpu.memory_space<vmem>>, %arg3: memref<1x32x256xf32, #tpu.memory_space<vmem>>, %arg4: memref<1x32x256xf32, #tpu.memory_space<vmem>>, %arg5: memref<32x9xf32, #tpu.memory_space<vmem>>, %arg6: memref<32x9xf32, #tpu.memory_space<vmem>>, %arg7: memref<32x9xf32, #tpu.memory_space<vmem>>, %arg8: memref<32x1xf32, #tpu.memory_space<vmem>>, %arg9: memref<32x32xf32, #tpu.memory_space<vmem>>, %arg10: memref<32x32xf32, #tpu.memory_space<vmem>>, %arg11: memref<1x256xf32, #tpu.memory_space<vmem>>, %arg12: memref<1x256xf32, #tpu.memory_space<vmem>>, %arg13: memref<1x32x256xf32, #tpu.memory_space<vmem>>) attributes {dimension_semantics = [#tpu.dimension_semantics<parallel>], iteration_bounds = array<i64: 2>, scalar_prefetch = 0 : i64, scratch_operands = 0 : i64, tpu.core_type = #tpu.core_type<tc>, window_params = [{transform_indices = @transform_0, window_bounds = array<i64: 1, 32, 256>}, {transform_indices = @transform_1, window_bounds = array<i64: 1, 32, 256>}, {transform_indices = @transform_2, window_bounds = array<i64: 1, 32, 256>}, {transform_indices = @transform_3, window_bounds = array<i64: 1, 32, 256>}, {pipeline_mode = #tpu.pipeline_mode<synchronous>, transform_indices = @transform_4, window_bounds = array<i64: 32, 9>}, {pipeline_mode = #tpu.pipeline_mode<synchronous>, transform_indices = @transform_5, window_bounds = array<i64: 32, 9>}, {pipeline_mode = #tpu.pipeline_mode<synchronous>, transform_indices = @transform_6, window_bounds = array<i64: 32, 9>}, {pipeline_mode = #tpu.pipeline_mode<synchronous>, transform_indices = @transform_7, window_bounds = array<i64: 32, 1>}, {pipeline_mode = #tpu.pipeline_mode<synchronous>, transform_indices = @transform_8, window_bounds = array<i64: 32, 32>}, {pipeline_mode = #tpu.pipeline_mode<synchronous>, transform_indices = @transform_9, window_bounds = array<i64: 32, 32>}, {pipeline_mode = #tpu.pipeline_mode<synchronous>, transform_indices = @transform_10, window_bounds = array<i64: 1, 256>}, {pipeline_mode = #tpu.pipeline_mode<synchronous>, transform_indices = @transform_11, window_bounds = array<i64: 1, 256>}, {transform_indices = @transform_12, window_bounds = array<i64: 1, 32, 256>}]} {
    %c0 = arith.constant 0 : index
    %c0_0 = arith.constant 0 : index
    %0 = vector.load %arg11[%c0, %c0_0] : memref<1x256xf32, #tpu.memory_space<vmem>>, vector<1x256xf32>
    %c0_1 = arith.constant 0 : index
    %c0_2 = arith.constant 0 : index
    %1 = vector.load %arg12[%c0_1, %c0_2] : memref<1x256xf32, #tpu.memory_space<vmem>>, vector<1x256xf32>
    %c0_3 = arith.constant 0 : index
    %c0_4 = arith.constant 0 : index
    %c0_5 = arith.constant 0 : index
    %2 = vector.load %arg1[%c0_3, %c0_4, %c0_5] : memref<1x32x256xf32, #tpu.memory_space<vmem>>, vector<1x32x256xf32>
    %3 = vector.shape_cast %2 : vector<1x32x256xf32> to vector<32x256xf32>
    %cst = arith.constant 0.000000e+00 : f32
    %4 = vector.broadcast %cst : f32 to vector<32x17xf32>
    %5 = tpu.concatenate %4, %3, %4 in 1 : vector<32x17xf32>, vector<32x256xf32>, vector<32x17xf32> -> vector<32x290xf32>
    %c0_6 = arith.constant 0 : index
    %c4 = arith.constant 4 : index
    %6 = vector.load %arg5[%c0_6, %c4] : memref<32x9xf32, #tpu.memory_space<vmem>>, vector<32x1xf32>
    %7 = vector.broadcast %6 : vector<32x1xf32> to vector<32x256xf32>
    %8 = arith.mulf %3, %7 : vector<32x256xf32>
    %9 = vector.extract_strided_slice %5 {offsets = [0, 0], sizes = [32, 256], strides = [1, 1]} : vector<32x290xf32> to vector<32x256xf32>
    %10 = vector.broadcast %0 : vector<1x256xf32> to vector<32x256xf32>
    %11 = arith.mulf %9, %10 : vector<32x256xf32>
    %c0_7 = arith.constant 0 : index
    %c0_8 = arith.constant 0 : index
    %12 = vector.load %arg5[%c0_7, %c0_8] : memref<32x9xf32, #tpu.memory_space<vmem>>, vector<32x1xf32>
    %13 = vector.broadcast %12 : vector<32x1xf32> to vector<32x256xf32>
    %14 = arith.mulf %11, %13 : vector<32x256xf32>
    %15 = arith.addf %8, %14 : vector<32x256xf32>
    %16 = vector.extract_strided_slice %5 {offsets = [0, 1], sizes = [32, 256], strides = [1, 1]} : vector<32x290xf32> to vector<32x256xf32>
    %c0_9 = arith.constant 0 : index
    %c1 = arith.constant 1 : index
    %17 = vector.load %arg5[%c0_9, %c1] : memref<32x9xf32, #tpu.memory_space<vmem>>, vector<32x1xf32>
    %18 = vector.broadcast %17 : vector<32x1xf32> to vector<32x256xf32>
    %19 = arith.mulf %16, %18 : vector<32x256xf32>
    %20 = arith.addf %15, %19 : vector<32x256xf32>
    %21 = vector.extract_strided_slice %5 {offsets = [0, 2], sizes = [32, 256], strides = [1, 1]} : vector<32x290xf32> to vector<32x256xf32>
    %22 = vector.broadcast %1 : vector<1x256xf32> to vector<32x256xf32>
    %23 = arith.mulf %21, %22 : vector<32x256xf32>
    %c0_10 = arith.constant 0 : index
    %c2 = arith.constant 2 : index
    %24 = vector.load %arg5[%c0_10, %c2] : memref<32x9xf32, #tpu.memory_space<vmem>>, vector<32x1xf32>
    %25 = vector.broadcast %24 : vector<32x1xf32> to vector<32x256xf32>
    %26 = arith.mulf %23, %25 : vector<32x256xf32>
    %27 = arith.addf %20, %26 : vector<32x256xf32>
    %28 = vector.extract_strided_slice %5 {offsets = [0, 16], sizes = [32, 256], strides = [1, 1]} : vector<32x290xf32> to vector<32x256xf32>
    %29 = vector.broadcast %0 : vector<1x256xf32> to vector<32x256xf32>
    %30 = arith.mulf %28, %29 : vector<32x256xf32>
    %c0_11 = arith.constant 0 : index
    %c3 = arith.constant 3 : index
    %31 = vector.load %arg5[%c0_11, %c3] : memref<32x9xf32, #tpu.memory_space<vmem>>, vector<32x1xf32>
    %32 = vector.broadcast %31 : vector<32x1xf32> to vector<32x256xf32>
    %33 = arith.mulf %30, %32 : vector<32x256xf32>
    %34 = arith.addf %27, %33 : vector<32x256xf32>
    %35 = vector.extract_strided_slice %5 {offsets = [0, 18], sizes = [32, 256], strides = [1, 1]} : vector<32x290xf32> to vector<32x256xf32>
    %36 = vector.broadcast %1 : vector<1x256xf32> to vector<32x256xf32>
    %37 = arith.mulf %35, %36 : vector<32x256xf32>
    %c0_12 = arith.constant 0 : index
    %c5 = arith.constant 5 : index
    %38 = vector.load %arg5[%c0_12, %c5] : memref<32x9xf32, #tpu.memory_space<vmem>>, vector<32x1xf32>
    %39 = vector.broadcast %38 : vector<32x1xf32> to vector<32x256xf32>
    %40 = arith.mulf %37, %39 : vector<32x256xf32>
    %41 = arith.addf %34, %40 : vector<32x256xf32>
    %42 = vector.extract_strided_slice %5 {offsets = [0, 32], sizes = [32, 256], strides = [1, 1]} : vector<32x290xf32> to vector<32x256xf32>
    %43 = vector.broadcast %0 : vector<1x256xf32> to vector<32x256xf32>
    %44 = arith.mulf %42, %43 : vector<32x256xf32>
    %c0_13 = arith.constant 0 : index
    %c6 = arith.constant 6 : index
    %45 = vector.load %arg5[%c0_13, %c6] : memref<32x9xf32, #tpu.memory_space<vmem>>, vector<32x1xf32>
    %46 = vector.broadcast %45 : vector<32x1xf32> to vector<32x256xf32>
    %47 = arith.mulf %44, %46 : vector<32x256xf32>
    %48 = arith.addf %41, %47 : vector<32x256xf32>
    %49 = vector.extract_strided_slice %5 {offsets = [0, 33], sizes = [32, 256], strides = [1, 1]} : vector<32x290xf32> to vector<32x256xf32>
    %c0_14 = arith.constant 0 : index
    %c7 = arith.constant 7 : index
    %50 = vector.load %arg5[%c0_14, %c7] : memref<32x9xf32, #tpu.memory_space<vmem>>, vector<32x1xf32>
    %51 = vector.broadcast %50 : vector<32x1xf32> to vector<32x256xf32>
    %52 = arith.mulf %49, %51 : vector<32x256xf32>
    %53 = arith.addf %48, %52 : vector<32x256xf32>
    %54 = vector.extract_strided_slice %5 {offsets = [0, 34], sizes = [32, 256], strides = [1, 1]} : vector<32x290xf32> to vector<32x256xf32>
    %55 = vector.broadcast %1 : vector<1x256xf32> to vector<32x256xf32>
    %56 = arith.mulf %54, %55 : vector<32x256xf32>
    %c0_15 = arith.constant 0 : index
    %c8 = arith.constant 8 : index
    %57 = vector.load %arg5[%c0_15, %c8] : memref<32x9xf32, #tpu.memory_space<vmem>>, vector<32x1xf32>
    %58 = vector.broadcast %57 : vector<32x1xf32> to vector<32x256xf32>
    %59 = arith.mulf %56, %58 : vector<32x256xf32>
    %60 = arith.addf %53, %59 : vector<32x256xf32>
    %c0_16 = arith.constant 0 : index
    %c0_17 = arith.constant 0 : index
    %c0_18 = arith.constant 0 : index
    %61 = vector.load %arg2[%c0_16, %c0_17, %c0_18] : memref<1x32x256xf32, #tpu.memory_space<vmem>>, vector<1x32x256xf32>
    %62 = vector.shape_cast %61 : vector<1x32x256xf32> to vector<32x256xf32>
    %cst_19 = arith.constant 0.000000e+00 : f32
    %63 = vector.broadcast %cst_19 : f32 to vector<32x17xf32>
    %64 = tpu.concatenate %63, %62, %63 in 1 : vector<32x17xf32>, vector<32x256xf32>, vector<32x17xf32> -> vector<32x290xf32>
    %c0_20 = arith.constant 0 : index
    %c4_21 = arith.constant 4 : index
    %65 = vector.load %arg6[%c0_20, %c4_21] : memref<32x9xf32, #tpu.memory_space<vmem>>, vector<32x1xf32>
    %66 = vector.broadcast %65 : vector<32x1xf32> to vector<32x256xf32>
    %67 = arith.mulf %62, %66 : vector<32x256xf32>
    %68 = vector.extract_strided_slice %64 {offsets = [0, 0], sizes = [32, 256], strides = [1, 1]} : vector<32x290xf32> to vector<32x256xf32>
    %69 = vector.broadcast %0 : vector<1x256xf32> to vector<32x256xf32>
    %70 = arith.mulf %68, %69 : vector<32x256xf32>
    %c0_22 = arith.constant 0 : index
    %c0_23 = arith.constant 0 : index
    %71 = vector.load %arg6[%c0_22, %c0_23] : memref<32x9xf32, #tpu.memory_space<vmem>>, vector<32x1xf32>
    %72 = vector.broadcast %71 : vector<32x1xf32> to vector<32x256xf32>
    %73 = arith.mulf %70, %72 : vector<32x256xf32>
    %74 = arith.addf %67, %73 : vector<32x256xf32>
    %75 = vector.extract_strided_slice %64 {offsets = [0, 1], sizes = [32, 256], strides = [1, 1]} : vector<32x290xf32> to vector<32x256xf32>
    %c0_24 = arith.constant 0 : index
    %c1_25 = arith.constant 1 : index
    %76 = vector.load %arg6[%c0_24, %c1_25] : memref<32x9xf32, #tpu.memory_space<vmem>>, vector<32x1xf32>
    %77 = vector.broadcast %76 : vector<32x1xf32> to vector<32x256xf32>
    %78 = arith.mulf %75, %77 : vector<32x256xf32>
    %79 = arith.addf %74, %78 : vector<32x256xf32>
    %80 = vector.extract_strided_slice %64 {offsets = [0, 2], sizes = [32, 256], strides = [1, 1]} : vector<32x290xf32> to vector<32x256xf32>
    %81 = vector.broadcast %1 : vector<1x256xf32> to vector<32x256xf32>
    %82 = arith.mulf %80, %81 : vector<32x256xf32>
    %c0_26 = arith.constant 0 : index
    %c2_27 = arith.constant 2 : index
    %83 = vector.load %arg6[%c0_26, %c2_27] : memref<32x9xf32, #tpu.memory_space<vmem>>, vector<32x1xf32>
    %84 = vector.broadcast %83 : vector<32x1xf32> to vector<32x256xf32>
    %85 = arith.mulf %82, %84 : vector<32x256xf32>
    %86 = arith.addf %79, %85 : vector<32x256xf32>
    %87 = vector.extract_strided_slice %64 {offsets = [0, 16], sizes = [32, 256], strides = [1, 1]} : vector<32x290xf32> to vector<32x256xf32>
    %88 = vector.broadcast %0 : vector<1x256xf32> to vector<32x256xf32>
    %89 = arith.mulf %87, %88 : vector<32x256xf32>
    %c0_28 = arith.constant 0 : index
    %c3_29 = arith.constant 3 : index
    %90 = vector.load %arg6[%c0_28, %c3_29] : memref<32x9xf32, #tpu.memory_space<vmem>>, vector<32x1xf32>
    %91 = vector.broadcast %90 : vector<32x1xf32> to vector<32x256xf32>
    %92 = arith.mulf %89, %91 : vector<32x256xf32>
    %93 = arith.addf %86, %92 : vector<32x256xf32>
    %94 = vector.extract_strided_slice %64 {offsets = [0, 18], sizes = [32, 256], strides = [1, 1]} : vector<32x290xf32> to vector<32x256xf32>
    %95 = vector.broadcast %1 : vector<1x256xf32> to vector<32x256xf32>
    %96 = arith.mulf %94, %95 : vector<32x256xf32>
    %c0_30 = arith.constant 0 : index
    %c5_31 = arith.constant 5 : index
    %97 = vector.load %arg6[%c0_30, %c5_31] : memref<32x9xf32, #tpu.memory_space<vmem>>, vector<32x1xf32>
    %98 = vector.broadcast %97 : vector<32x1xf32> to vector<32x256xf32>
    %99 = arith.mulf %96, %98 : vector<32x256xf32>
    %100 = arith.addf %93, %99 : vector<32x256xf32>
    %101 = vector.extract_strided_slice %64 {offsets = [0, 32], sizes = [32, 256], strides = [1, 1]} : vector<32x290xf32> to vector<32x256xf32>
    %102 = vector.broadcast %0 : vector<1x256xf32> to vector<32x256xf32>
    %103 = arith.mulf %101, %102 : vector<32x256xf32>
    %c0_32 = arith.constant 0 : index
    %c6_33 = arith.constant 6 : index
    %104 = vector.load %arg6[%c0_32, %c6_33] : memref<32x9xf32, #tpu.memory_space<vmem>>, vector<32x1xf32>
    %105 = vector.broadcast %104 : vector<32x1xf32> to vector<32x256xf32>
    %106 = arith.mulf %103, %105 : vector<32x256xf32>
    %107 = arith.addf %100, %106 : vector<32x256xf32>
    %108 = vector.extract_strided_slice %64 {offsets = [0, 33], sizes = [32, 256], strides = [1, 1]} : vector<32x290xf32> to vector<32x256xf32>
    %c0_34 = arith.constant 0 : index
    %c7_35 = arith.constant 7 : index
    %109 = vector.load %arg6[%c0_34, %c7_35] : memref<32x9xf32, #tpu.memory_space<vmem>>, vector<32x1xf32>
    %110 = vector.broadcast %109 : vector<32x1xf32> to vector<32x256xf32>
    %111 = arith.mulf %108, %110 : vector<32x256xf32>
    %112 = arith.addf %107, %111 : vector<32x256xf32>
    %113 = vector.extract_strided_slice %64 {offsets = [0, 34], sizes = [32, 256], strides = [1, 1]} : vector<32x290xf32> to vector<32x256xf32>
    %114 = vector.broadcast %1 : vector<1x256xf32> to vector<32x256xf32>
    %115 = arith.mulf %113, %114 : vector<32x256xf32>
    %c0_36 = arith.constant 0 : index
    %c8_37 = arith.constant 8 : index
    %116 = vector.load %arg6[%c0_36, %c8_37] : memref<32x9xf32, #tpu.memory_space<vmem>>, vector<32x1xf32>
    %117 = vector.broadcast %116 : vector<32x1xf32> to vector<32x256xf32>
    %118 = arith.mulf %115, %117 : vector<32x256xf32>
    %119 = arith.addf %112, %118 : vector<32x256xf32>
    %c0_38 = arith.constant 0 : index
    %c0_39 = arith.constant 0 : index
    %c0_40 = arith.constant 0 : index
    %120 = vector.load %arg3[%c0_38, %c0_39, %c0_40] : memref<1x32x256xf32, #tpu.memory_space<vmem>>, vector<1x32x256xf32>
    %121 = vector.shape_cast %120 : vector<1x32x256xf32> to vector<32x256xf32>
    %cst_41 = arith.constant 0.000000e+00 : f32
    %122 = vector.broadcast %cst_41 : f32 to vector<32x17xf32>
    %123 = tpu.concatenate %122, %121, %122 in 1 : vector<32x17xf32>, vector<32x256xf32>, vector<32x17xf32> -> vector<32x290xf32>
    %c0_42 = arith.constant 0 : index
    %c4_43 = arith.constant 4 : index
    %124 = vector.load %arg7[%c0_42, %c4_43] : memref<32x9xf32, #tpu.memory_space<vmem>>, vector<32x1xf32>
    %125 = vector.broadcast %124 : vector<32x1xf32> to vector<32x256xf32>
    %126 = arith.mulf %121, %125 : vector<32x256xf32>
    %127 = vector.extract_strided_slice %123 {offsets = [0, 0], sizes = [32, 256], strides = [1, 1]} : vector<32x290xf32> to vector<32x256xf32>
    %128 = vector.broadcast %0 : vector<1x256xf32> to vector<32x256xf32>
    %129 = arith.mulf %127, %128 : vector<32x256xf32>
    %c0_44 = arith.constant 0 : index
    %c0_45 = arith.constant 0 : index
    %130 = vector.load %arg7[%c0_44, %c0_45] : memref<32x9xf32, #tpu.memory_space<vmem>>, vector<32x1xf32>
    %131 = vector.broadcast %130 : vector<32x1xf32> to vector<32x256xf32>
    %132 = arith.mulf %129, %131 : vector<32x256xf32>
    %133 = arith.addf %126, %132 : vector<32x256xf32>
    %134 = vector.extract_strided_slice %123 {offsets = [0, 1], sizes = [32, 256], strides = [1, 1]} : vector<32x290xf32> to vector<32x256xf32>
    %c0_46 = arith.constant 0 : index
    %c1_47 = arith.constant 1 : index
    %135 = vector.load %arg7[%c0_46, %c1_47] : memref<32x9xf32, #tpu.memory_space<vmem>>, vector<32x1xf32>
    %136 = vector.broadcast %135 : vector<32x1xf32> to vector<32x256xf32>
    %137 = arith.mulf %134, %136 : vector<32x256xf32>
    %138 = arith.addf %133, %137 : vector<32x256xf32>
    %139 = vector.extract_strided_slice %123 {offsets = [0, 2], sizes = [32, 256], strides = [1, 1]} : vector<32x290xf32> to vector<32x256xf32>
    %140 = vector.broadcast %1 : vector<1x256xf32> to vector<32x256xf32>
    %141 = arith.mulf %139, %140 : vector<32x256xf32>
    %c0_48 = arith.constant 0 : index
    %c2_49 = arith.constant 2 : index
    %142 = vector.load %arg7[%c0_48, %c2_49] : memref<32x9xf32, #tpu.memory_space<vmem>>, vector<32x1xf32>
    %143 = vector.broadcast %142 : vector<32x1xf32> to vector<32x256xf32>
    %144 = arith.mulf %141, %143 : vector<32x256xf32>
    %145 = arith.addf %138, %144 : vector<32x256xf32>
    %146 = vector.extract_strided_slice %123 {offsets = [0, 16], sizes = [32, 256], strides = [1, 1]} : vector<32x290xf32> to vector<32x256xf32>
    %147 = vector.broadcast %0 : vector<1x256xf32> to vector<32x256xf32>
    %148 = arith.mulf %146, %147 : vector<32x256xf32>
    %c0_50 = arith.constant 0 : index
    %c3_51 = arith.constant 3 : index
    %149 = vector.load %arg7[%c0_50, %c3_51] : memref<32x9xf32, #tpu.memory_space<vmem>>, vector<32x1xf32>
    %150 = vector.broadcast %149 : vector<32x1xf32> to vector<32x256xf32>
    %151 = arith.mulf %148, %150 : vector<32x256xf32>
    %152 = arith.addf %145, %151 : vector<32x256xf32>
    %153 = vector.extract_strided_slice %123 {offsets = [0, 18], sizes = [32, 256], strides = [1, 1]} : vector<32x290xf32> to vector<32x256xf32>
    %154 = vector.broadcast %1 : vector<1x256xf32> to vector<32x256xf32>
    %155 = arith.mulf %153, %154 : vector<32x256xf32>
    %c0_52 = arith.constant 0 : index
    %c5_53 = arith.constant 5 : index
    %156 = vector.load %arg7[%c0_52, %c5_53] : memref<32x9xf32, #tpu.memory_space<vmem>>, vector<32x1xf32>
    %157 = vector.broadcast %156 : vector<32x1xf32> to vector<32x256xf32>
    %158 = arith.mulf %155, %157 : vector<32x256xf32>
    %159 = arith.addf %152, %158 : vector<32x256xf32>
    %160 = vector.extract_strided_slice %123 {offsets = [0, 32], sizes = [32, 256], strides = [1, 1]} : vector<32x290xf32> to vector<32x256xf32>
    %161 = vector.broadcast %0 : vector<1x256xf32> to vector<32x256xf32>
    %162 = arith.mulf %160, %161 : vector<32x256xf32>
    %c0_54 = arith.constant 0 : index
    %c6_55 = arith.constant 6 : index
    %163 = vector.load %arg7[%c0_54, %c6_55] : memref<32x9xf32, #tpu.memory_space<vmem>>, vector<32x1xf32>
    %164 = vector.broadcast %163 : vector<32x1xf32> to vector<32x256xf32>
    %165 = arith.mulf %162, %164 : vector<32x256xf32>
    %166 = arith.addf %159, %165 : vector<32x256xf32>
    %167 = vector.extract_strided_slice %123 {offsets = [0, 33], sizes = [32, 256], strides = [1, 1]} : vector<32x290xf32> to vector<32x256xf32>
    %c0_56 = arith.constant 0 : index
    %c7_57 = arith.constant 7 : index
    %168 = vector.load %arg7[%c0_56, %c7_57] : memref<32x9xf32, #tpu.memory_space<vmem>>, vector<32x1xf32>
    %169 = vector.broadcast %168 : vector<32x1xf32> to vector<32x256xf32>
    %170 = arith.mulf %167, %169 : vector<32x256xf32>
    %171 = arith.addf %166, %170 : vector<32x256xf32>
    %172 = vector.extract_strided_slice %123 {offsets = [0, 34], sizes = [32, 256], strides = [1, 1]} : vector<32x290xf32> to vector<32x256xf32>
    %173 = vector.broadcast %1 : vector<1x256xf32> to vector<32x256xf32>
    %174 = arith.mulf %172, %173 : vector<32x256xf32>
    %c0_58 = arith.constant 0 : index
    %c8_59 = arith.constant 8 : index
    %175 = vector.load %arg7[%c0_58, %c8_59] : memref<32x9xf32, #tpu.memory_space<vmem>>, vector<32x1xf32>
    %176 = vector.broadcast %175 : vector<32x1xf32> to vector<32x256xf32>
    %177 = arith.mulf %174, %176 : vector<32x256xf32>
    %178 = arith.addf %171, %177 : vector<32x256xf32>
    %179 = arith.mulf %60, %60 : vector<32x256xf32>
    %cst_60 = arith.constant dense<0.000000e+00> : vector<32xf32>
    %180 = vector.multi_reduction <add>, %179, %cst_60 [1] : vector<32x256xf32> to vector<32xf32>
    %181 = vector.shape_cast %180 : vector<32xf32> to vector<32x1xf32>
    %cst_61 = arith.constant 1.000000e-24 : f32
    %182 = vector.broadcast %cst_61 : f32 to vector<32x1xf32>
    %183 = arith.maximumf %181, %182 : vector<32x1xf32>
    %184 = math.rsqrt %183 : vector<32x1xf32>
    %185 = vector.broadcast %184 : vector<32x1xf32> to vector<32x256xf32>
    %186 = arith.mulf %60, %185 : vector<32x256xf32>
    %187 = arith.mulf %119, %119 : vector<32x256xf32>
    %cst_62 = arith.constant dense<0.000000e+00> : vector<32xf32>
    %188 = vector.multi_reduction <add>, %187, %cst_62 [1] : vector<32x256xf32> to vector<32xf32>
    %189 = vector.shape_cast %188 : vector<32xf32> to vector<32x1xf32>
    %cst_63 = arith.constant 1.000000e-24 : f32
    %190 = vector.broadcast %cst_63 : f32 to vector<32x1xf32>
    %191 = arith.maximumf %189, %190 : vector<32x1xf32>
    %192 = math.rsqrt %191 : vector<32x1xf32>
    %193 = vector.broadcast %192 : vector<32x1xf32> to vector<32x256xf32>
    %194 = arith.mulf %119, %193 : vector<32x256xf32>
    %cst_64 = arith.constant dense<0.000000e+00> : vector<32x32xf32>
    %195 = tpu.matmul %186, %194, %cst_64 {dimension_numbers = #tpu.dot_dimension_numbers<[1], [1], [0], [0], [0, 0, 1, 0], [], []>} : vector<32x256xf32>, vector<32x256xf32>, vector<32x32xf32> -> vector<32x32xf32>
    %c0_65 = arith.constant 0 : index
    %c0_66 = arith.constant 0 : index
    %196 = vector.load %arg8[%c0_65, %c0_66] : memref<32x1xf32, #tpu.memory_space<vmem>>, vector<32x1xf32>
    %197 = vector.broadcast %196 : vector<32x1xf32> to vector<32x32xf32>
    %198 = arith.mulf %195, %197 : vector<32x32xf32>
    %c0_67 = arith.constant 0 : index
    %c0_68 = arith.constant 0 : index
    %199 = vector.load %arg9[%c0_67, %c0_68] : memref<32x32xf32, #tpu.memory_space<vmem>>, vector<32x32xf32>
    %200 = arith.addf %198, %199 : vector<32x32xf32>
    %cst_69 = arith.constant dense<0xFF800000> : vector<32xf32>
    %201 = vector.multi_reduction <maximumf>, %200, %cst_69 [1] : vector<32x32xf32> to vector<32xf32>
    %202 = vector.shape_cast %201 : vector<32xf32> to vector<32x1xf32>
    %203 = vector.broadcast %202 : vector<32x1xf32> to vector<32x32xf32>
    %204 = arith.subf %200, %203 : vector<32x32xf32>
    %205 = math.exp %204 : vector<32x32xf32>
    %cst_70 = arith.constant dense<0.000000e+00> : vector<32xf32>
    %206 = vector.multi_reduction <add>, %205, %cst_70 [1] : vector<32x32xf32> to vector<32xf32>
    %207 = vector.shape_cast %206 : vector<32xf32> to vector<32x1xf32>
    %208 = tpu.reciprocal %207 {approx = true} : vector<32x1xf32> -> vector<32x1xf32>
    %209 = vector.broadcast %208 : vector<32x1xf32> to vector<32x32xf32>
    %210 = arith.mulf %205, %209 : vector<32x32xf32>
    %cst_71 = arith.constant dense<0.000000e+00> : vector<32x256xf32>
    %211 = tpu.matmul %210, %178, %cst_71 {dimension_numbers = #tpu.dot_dimension_numbers<[1], [0], [0], [1], [0, 0, 1, 1], [], []>} : vector<32x32xf32>, vector<32x256xf32>, vector<32x256xf32> -> vector<32x256xf32>
    %c0_72 = arith.constant 0 : index
    %c0_73 = arith.constant 0 : index
    %c0_74 = arith.constant 0 : index
    %212 = vector.load %arg4[%c0_72, %c0_73, %c0_74] : memref<1x32x256xf32, #tpu.memory_space<vmem>>, vector<1x32x256xf32>
    %213 = vector.shape_cast %212 : vector<1x32x256xf32> to vector<32x256xf32>
    %c0_75 = arith.constant 0 : index
    %c0_76 = arith.constant 0 : index
    %214 = vector.load %arg10[%c0_75, %c0_76] : memref<32x32xf32, #tpu.memory_space<vmem>>, vector<32x32xf32>
    %cst_77 = arith.constant dense<0.000000e+00> : vector<32x256xf32>
    %215 = tpu.matmul %214, %211, %cst_77 {dimension_numbers = #tpu.dot_dimension_numbers<[1], [0], [0], [1], [0, 0, 1, 1], [], []>} : vector<32x32xf32>, vector<32x256xf32>, vector<32x256xf32> -> vector<32x256xf32>
    %216 = arith.addf %213, %215 : vector<32x256xf32>
    %c0_78 = arith.constant 0 : index
    %c0_79 = arith.constant 0 : index
    %c0_80 = arith.constant 0 : index
    %217 = vector.load %arg13[%c0_78, %c0_79, %c0_80] : memref<1x32x256xf32, #tpu.memory_space<vmem>>, vector<1x32x256xf32>
    %218 = vector.shape_cast %217 : vector<1x32x256xf32> to vector<32x256xf32>
    %219 = vector.shape_cast %216 : vector<32x256xf32> to vector<1x32x256xf32>
    tpu.vector_store %arg13[%c0_78, %c0_79, %c0_80], %219 {strides = array<i32>} : memref<1x32x256xf32, #tpu.memory_space<vmem>>, vector<1x32x256xf32>,
    return
  }
  func.func @transform_0(%arg0: i32) -> (i32, i32, i32) {
    %c0_i32 = arith.constant 0 : i32
    %c0_i32_0 = arith.constant 0 : i32
    %c0_i32_1 = arith.constant 0 : i32
    return %arg0, %c0_i32, %c0_i32_0 : i32, i32, i32
  }
  func.func @transform_1(%arg0: i32) -> (i32, i32, i32) {
    %c0_i32 = arith.constant 0 : i32
    %c0_i32_0 = arith.constant 0 : i32
    %c0_i32_1 = arith.constant 0 : i32
    return %arg0, %c0_i32, %c0_i32_0 : i32, i32, i32
  }
  func.func @transform_2(%arg0: i32) -> (i32, i32, i32) {
    %c0_i32 = arith.constant 0 : i32
    %c0_i32_0 = arith.constant 0 : i32
    %c0_i32_1 = arith.constant 0 : i32
    return %arg0, %c0_i32, %c0_i32_0 : i32, i32, i32
  }
  func.func @transform_3(%arg0: i32) -> (i32, i32, i32) {
    %c0_i32 = arith.constant 0 : i32
    %c0_i32_0 = arith.constant 0 : i32
    %c0_i32_1 = arith.constant 0 : i32
    return %arg0, %c0_i32, %c0_i32_0 : i32, i32, i32
  }
  func.func @transform_4(%arg0: i32) -> (i32, i32) {
    %c0_i32 = arith.constant 0 : i32
    %c0_i32_0 = arith.constant 0 : i32
    %c0_i32_1 = arith.constant 0 : i32
    return %c0_i32, %c0_i32_0 : i32, i32
  }
  func.func @transform_5(%arg0: i32) -> (i32, i32) {
    %c0_i32 = arith.constant 0 : i32
    %c0_i32_0 = arith.constant 0 : i32
    %c0_i32_1 = arith.constant 0 : i32
    return %c0_i32, %c0_i32_0 : i32, i32
  }
  func.func @transform_6(%arg0: i32) -> (i32, i32) {
    %c0_i32 = arith.constant 0 : i32
    %c0_i32_0 = arith.constant 0 : i32
    %c0_i32_1 = arith.constant 0 : i32
    return %c0_i32, %c0_i32_0 : i32, i32
  }
  func.func @transform_7(%arg0: i32) -> (i32, i32) {
    %c0_i32 = arith.constant 0 : i32
    %c0_i32_0 = arith.constant 0 : i32
    %c0_i32_1 = arith.constant 0 : i32
    return %c0_i32, %c0_i32_0 : i32, i32
  }
  func.func @transform_8(%arg0: i32) -> (i32, i32) {
    %c0_i32 = arith.constant 0 : i32
    %c0_i32_0 = arith.constant 0 : i32
    %c0_i32_1 = arith.constant 0 : i32
    return %c0_i32, %c0_i32_0 : i32, i32
  }
  func.func @transform_9(%arg0: i32) -> (i32, i32) {
    %c0_i32 = arith.constant 0 : i32
    %c0_i32_0 = arith.constant 0 : i32
    %c0_i32_1 = arith.constant 0 : i32
    return %c0_i32, %c0_i32_0 : i32, i32
  }
  func.func @transform_10(%arg0: i32) -> (i32, i32) {
    %c0_i32 = arith.constant 0 : i32
    %c0_i32_0 = arith.constant 0 : i32
    %c0_i32_1 = arith.constant 0 : i32
    return %c0_i32, %c0_i32_0 : i32, i32
  }
  func.func @transform_11(%arg0: i32) -> (i32, i32) {
    %c0_i32 = arith.constant 0 : i32
    %c0_i32_0 = arith.constant 0 : i32
    %c0_i32_1 = arith.constant 0 : i32
    return %c0_i32, %c0_i32_0 : i32, i32
  }
  func.func @transform_12(%arg0: i32) -> (i32, i32, i32) {
    %c0_i32 = arith.constant 0 : i32
    %c0_i32_0 = arith.constant 0 : i32
    %c0_i32_1 = arith.constant 0 : i32
    return %arg0, %c0_i32, %c0_i32_0 : i32, i32, i32
  }
}

module attributes {stable_mosaic.version = 11 : i64} {
  func.func @_ln_mm_kernel(%arg0: i32, %arg1: i32, %arg2: memref<1x32x256xf32, #tpu.memory_space<vmem>>, %arg3: memref<32x1xf32, #tpu.memory_space<vmem>>, %arg4: memref<32x1xf32, #tpu.memory_space<vmem>>, %arg5: memref<85x32xf32, #tpu.memory_space<vmem>>, %arg6: memref<85x32xf32, #tpu.memory_space<vmem>>, %arg7: memref<1x85x256xf32, #tpu.memory_space<vmem>>, %arg8: memref<1x85x256xf32, #tpu.memory_space<vmem>>) attributes {dimension_semantics = [#tpu.dimension_semantics<parallel>, #tpu.dimension_semantics<parallel>], iteration_bounds = array<i64: 2, 1>, scalar_prefetch = 0 : i64, scratch_operands = 0 : i64, tpu.core_type = #tpu.core_type<tc>, window_params = [{transform_indices = @transform_0, window_bounds = array<i64: 1, 32, 256>}, {pipeline_mode = #tpu.pipeline_mode<synchronous>, transform_indices = @transform_1, window_bounds = array<i64: 32, 1>}, {pipeline_mode = #tpu.pipeline_mode<synchronous>, transform_indices = @transform_2, window_bounds = array<i64: 32, 1>}, {pipeline_mode = #tpu.pipeline_mode<synchronous>, transform_indices = @transform_3, window_bounds = array<i64: 85, 32>}, {pipeline_mode = #tpu.pipeline_mode<synchronous>, transform_indices = @transform_4, window_bounds = array<i64: 85, 32>}, {transform_indices = @transform_5, window_bounds = array<i64: 1, 85, 256>}, {transform_indices = @transform_6, window_bounds = array<i64: 1, 85, 256>}]} {
    %c0 = arith.constant 0 : index
    %c0_0 = arith.constant 0 : index
    %c0_1 = arith.constant 0 : index
    %0 = vector.load %arg2[%c0, %c0_0, %c0_1] : memref<1x32x256xf32, #tpu.memory_space<vmem>>, vector<1x32x256xf32>
    %1 = vector.shape_cast %0 : vector<1x32x256xf32> to vector<32x256xf32>
    %cst = arith.constant dense<0.000000e+00> : vector<256xf32>
    %2 = vector.multi_reduction <add>, %1, %cst [0] : vector<32x256xf32> to vector<256xf32>
    %3 = vector.shape_cast %2 : vector<256xf32> to vector<1x256xf32>
    %cst_2 = arith.constant 3.200000e+01 : f32
    %4 = vector.broadcast %cst_2 : f32 to vector<1x256xf32>
    %5 = arith.divf %3, %4 : vector<1x256xf32>
    %6 = vector.broadcast %5 : vector<1x256xf32> to vector<32x256xf32>
    %7 = arith.subf %1, %6 : vector<32x256xf32>
    %8 = arith.mulf %7, %7 : vector<32x256xf32>
    %cst_3 = arith.constant dense<0.000000e+00> : vector<256xf32>
    %9 = vector.multi_reduction <add>, %8, %cst_3 [0] : vector<32x256xf32> to vector<256xf32>
    %10 = vector.shape_cast %9 : vector<256xf32> to vector<1x256xf32>
    %cst_4 = arith.constant 3.200000e+01 : f32
    %11 = vector.broadcast %cst_4 : f32 to vector<1x256xf32>
    %12 = arith.divf %10, %11 : vector<1x256xf32>
    %13 = vector.broadcast %5 : vector<1x256xf32> to vector<32x256xf32>
    %14 = arith.subf %1, %13 : vector<32x256xf32>
    %cst_5 = arith.constant 9.99999974E-6 : f32
    %15 = vector.broadcast %cst_5 : f32 to vector<1x256xf32>
    %16 = arith.addf %12, %15 : vector<1x256xf32>
    %17 = math.rsqrt %16 : vector<1x256xf32>
    %18 = vector.broadcast %17 : vector<1x256xf32> to vector<32x256xf32>
    %19 = arith.mulf %14, %18 : vector<32x256xf32>
    %c0_6 = arith.constant 0 : index
    %c0_7 = arith.constant 0 : index
    %20 = vector.load %arg3[%c0_6, %c0_7] : memref<32x1xf32, #tpu.memory_space<vmem>>, vector<32x1xf32>
    %21 = vector.broadcast %20 : vector<32x1xf32> to vector<32x256xf32>
    %22 = arith.mulf %19, %21 : vector<32x256xf32>
    %c0_8 = arith.constant 0 : index
    %c0_9 = arith.constant 0 : index
    %23 = vector.load %arg4[%c0_8, %c0_9] : memref<32x1xf32, #tpu.memory_space<vmem>>, vector<32x1xf32>
    %24 = vector.broadcast %23 : vector<32x1xf32> to vector<32x256xf32>
    %25 = arith.addf %22, %24 : vector<32x256xf32>
    %c0_10 = arith.constant 0 : index
    %c0_11 = arith.constant 0 : index
    %26 = vector.load %arg5[%c0_10, %c0_11] : memref<85x32xf32, #tpu.memory_space<vmem>>, vector<85x32xf32>
    %cst_12 = arith.constant dense<0.000000e+00> : vector<85x256xf32>
    %27 = tpu.matmul %26, %25, %cst_12 {dimension_numbers = #tpu.dot_dimension_numbers<[1], [0], [0], [1], [0, 0, 1, 1], [], []>} : vector<85x32xf32>, vector<32x256xf32>, vector<85x256xf32> -> vector<85x256xf32>
    %c0_13 = arith.constant 0 : index
    %c0_14 = arith.constant 0 : index
    %c0_15 = arith.constant 0 : index
    %28 = vector.load %arg7[%c0_13, %c0_14, %c0_15] : memref<1x85x256xf32, #tpu.memory_space<vmem>>, vector<1x85x256xf32>
    %29 = vector.shape_cast %28 : vector<1x85x256xf32> to vector<85x256xf32>
    %30 = vector.shape_cast %27 : vector<85x256xf32> to vector<1x85x256xf32>
    tpu.vector_store %arg7[%c0_13, %c0_14, %c0_15], %30 {strides = array<i32>} : memref<1x85x256xf32, #tpu.memory_space<vmem>>, vector<1x85x256xf32>,
    %c0_16 = arith.constant 0 : index
    %c0_17 = arith.constant 0 : index
    %31 = vector.load %arg6[%c0_16, %c0_17] : memref<85x32xf32, #tpu.memory_space<vmem>>, vector<85x32xf32>
    %cst_18 = arith.constant dense<0.000000e+00> : vector<85x256xf32>
    %32 = tpu.matmul %31, %25, %cst_18 {dimension_numbers = #tpu.dot_dimension_numbers<[1], [0], [0], [1], [0, 0, 1, 1], [], []>} : vector<85x32xf32>, vector<32x256xf32>, vector<85x256xf32> -> vector<85x256xf32>
    %c0_19 = arith.constant 0 : index
    %c0_20 = arith.constant 0 : index
    %c0_21 = arith.constant 0 : index
    %33 = vector.load %arg8[%c0_19, %c0_20, %c0_21] : memref<1x85x256xf32, #tpu.memory_space<vmem>>, vector<1x85x256xf32>
    %34 = vector.shape_cast %33 : vector<1x85x256xf32> to vector<85x256xf32>
    %35 = vector.shape_cast %32 : vector<85x256xf32> to vector<1x85x256xf32>
    tpu.vector_store %arg8[%c0_19, %c0_20, %c0_21], %35 {strides = array<i32>} : memref<1x85x256xf32, #tpu.memory_space<vmem>>, vector<1x85x256xf32>,
    return
  }
  func.func @transform_0(%arg0: i32, %arg1: i32) -> (i32, i32, i32) {
    %c0_i32 = arith.constant 0 : i32
    %c0_i32_0 = arith.constant 0 : i32
    return %arg0, %c0_i32, %arg1 : i32, i32, i32
  }
  func.func @transform_1(%arg0: i32, %arg1: i32) -> (i32, i32) {
    %c0_i32 = arith.constant 0 : i32
    %c0_i32_0 = arith.constant 0 : i32
    %c0_i32_1 = arith.constant 0 : i32
    return %c0_i32, %c0_i32_0 : i32, i32
  }
  func.func @transform_2(%arg0: i32, %arg1: i32) -> (i32, i32) {
    %c0_i32 = arith.constant 0 : i32
    %c0_i32_0 = arith.constant 0 : i32
    %c0_i32_1 = arith.constant 0 : i32
    return %c0_i32, %c0_i32_0 : i32, i32
  }
  func.func @transform_3(%arg0: i32, %arg1: i32) -> (i32, i32) {
    %c0_i32 = arith.constant 0 : i32
    %c0_i32_0 = arith.constant 0 : i32
    %c0_i32_1 = arith.constant 0 : i32
    return %c0_i32, %c0_i32_0 : i32, i32
  }
  func.func @transform_4(%arg0: i32, %arg1: i32) -> (i32, i32) {
    %c0_i32 = arith.constant 0 : i32
    %c0_i32_0 = arith.constant 0 : i32
    %c0_i32_1 = arith.constant 0 : i32
    return %c0_i32, %c0_i32_0 : i32, i32
  }
  func.func @transform_5(%arg0: i32, %arg1: i32) -> (i32, i32, i32) {
    %c0_i32 = arith.constant 0 : i32
    %c0_i32_0 = arith.constant 0 : i32
    return %arg0, %c0_i32, %arg1 : i32, i32, i32
  }
  func.func @transform_6(%arg0: i32, %arg1: i32) -> (i32, i32, i32) {
    %c0_i32 = arith.constant 0 : i32
    %c0_i32_0 = arith.constant 0 : i32
    return %arg0, %c0_i32, %arg1 : i32, i32, i32
  }
}

module attributes {stable_mosaic.version = 11 : i64} {
  func.func @_mm_res_kernel(%arg0: i32, %arg1: i32, %arg2: memref<1x32x256xf32, #tpu.memory_space<vmem>>, %arg3: memref<3x32xf32, #tpu.memory_space<vmem>>, %arg4: memref<1x3x256xf32, #tpu.memory_space<vmem>>, %arg5: memref<1x3x256xf32, #tpu.memory_space<vmem>>) attributes {dimension_semantics = [#tpu.dimension_semantics<parallel>, #tpu.dimension_semantics<parallel>], iteration_bounds = array<i64: 2, 1>, scalar_prefetch = 0 : i64, scratch_operands = 0 : i64, tpu.core_type = #tpu.core_type<tc>, window_params = [{transform_indices = @transform_0, window_bounds = array<i64: 1, 32, 256>}, {pipeline_mode = #tpu.pipeline_mode<synchronous>, transform_indices = @transform_1, window_bounds = array<i64: 3, 32>}, {transform_indices = @transform_2, window_bounds = array<i64: 1, 3, 256>}, {transform_indices = @transform_3, window_bounds = array<i64: 1, 3, 256>}]} {
    %c0 = arith.constant 0 : index
    %c0_0 = arith.constant 0 : index
    %0 = vector.load %arg3[%c0, %c0_0] : memref<3x32xf32, #tpu.memory_space<vmem>>, vector<3x32xf32>
    %c0_1 = arith.constant 0 : index
    %c0_2 = arith.constant 0 : index
    %c0_3 = arith.constant 0 : index
    %1 = vector.load %arg2[%c0_1, %c0_2, %c0_3] : memref<1x32x256xf32, #tpu.memory_space<vmem>>, vector<1x32x256xf32>
    %2 = vector.shape_cast %1 : vector<1x32x256xf32> to vector<32x256xf32>
    %cst = arith.constant dense<0.000000e+00> : vector<3x256xf32>
    %3 = tpu.matmul %0, %2, %cst {dimension_numbers = #tpu.dot_dimension_numbers<[1], [0], [0], [1], [0, 0, 1, 1], [], []>} : vector<3x32xf32>, vector<32x256xf32>, vector<3x256xf32> -> vector<3x256xf32>
    %c0_4 = arith.constant 0 : index
    %c0_5 = arith.constant 0 : index
    %c0_6 = arith.constant 0 : index
    %4 = vector.load %arg4[%c0_4, %c0_5, %c0_6] : memref<1x3x256xf32, #tpu.memory_space<vmem>>, vector<1x3x256xf32>
    %5 = vector.shape_cast %4 : vector<1x3x256xf32> to vector<3x256xf32>
    %6 = arith.addf %3, %5 : vector<3x256xf32>
    %c0_7 = arith.constant 0 : index
    %c0_8 = arith.constant 0 : index
    %c0_9 = arith.constant 0 : index
    %7 = vector.load %arg5[%c0_7, %c0_8, %c0_9] : memref<1x3x256xf32, #tpu.memory_space<vmem>>, vector<1x3x256xf32>
    %8 = vector.shape_cast %7 : vector<1x3x256xf32> to vector<3x256xf32>
    %9 = vector.shape_cast %6 : vector<3x256xf32> to vector<1x3x256xf32>
    tpu.vector_store %arg5[%c0_7, %c0_8, %c0_9], %9 {strides = array<i32>} : memref<1x3x256xf32, #tpu.memory_space<vmem>>, vector<1x3x256xf32>,
    return
  }
  func.func @transform_0(%arg0: i32, %arg1: i32) -> (i32, i32, i32) {
    %c0_i32 = arith.constant 0 : i32
    %c0_i32_0 = arith.constant 0 : i32
    return %arg0, %c0_i32, %arg1 : i32, i32, i32
  }
  func.func @transform_1(%arg0: i32, %arg1: i32) -> (i32, i32) {
    %c0_i32 = arith.constant 0 : i32
    %c0_i32_0 = arith.constant 0 : i32
    %c0_i32_1 = arith.constant 0 : i32
    return %c0_i32, %c0_i32_0 : i32, i32
  }
  func.func @transform_2(%arg0: i32, %arg1: i32) -> (i32, i32, i32) {
    %c0_i32 = arith.constant 0 : i32
    %c0_i32_0 = arith.constant 0 : i32
    return %arg0, %c0_i32, %arg1 : i32, i32, i32
  }
  func.func @transform_3(%arg0: i32, %arg1: i32) -> (i32, i32, i32) {
    %c0_i32 = arith.constant 0 : i32
    %c0_i32_0 = arith.constant 0 : i32
    return %arg0, %c0_i32, %arg1 : i32, i32, i32
  }
}

module attributes {stable_mosaic.version = 11 : i64} {
  func.func @_ffn_block_kernel(%arg0: i32, %arg1: memref<1x85x256xf32, #tpu.memory_space<vmem>>, %arg2: memref<1x85x256xf32, #tpu.memory_space<vmem>>, %arg3: memref<1x32x256xf32, #tpu.memory_space<vmem>>, %arg4: memref<85x9xf32, #tpu.memory_space<vmem>>, %arg5: memref<85x9xf32, #tpu.memory_space<vmem>>, %arg6: memref<32x85xf32, #tpu.memory_space<vmem>>, %arg7: memref<1x256xf32, #tpu.memory_space<vmem>>, %arg8: memref<1x256xf32, #tpu.memory_space<vmem>>, %arg9: memref<1x32x256xf32, #tpu.memory_space<vmem>>) attributes {dimension_semantics = [#tpu.dimension_semantics<parallel>], iteration_bounds = array<i64: 2>, scalar_prefetch = 0 : i64, scratch_operands = 0 : i64, tpu.core_type = #tpu.core_type<tc>, window_params = [{transform_indices = @transform_0, window_bounds = array<i64: 1, 85, 256>}, {transform_indices = @transform_1, window_bounds = array<i64: 1, 85, 256>}, {transform_indices = @transform_2, window_bounds = array<i64: 1, 32, 256>}, {pipeline_mode = #tpu.pipeline_mode<synchronous>, transform_indices = @transform_3, window_bounds = array<i64: 85, 9>}, {pipeline_mode = #tpu.pipeline_mode<synchronous>, transform_indices = @transform_4, window_bounds = array<i64: 85, 9>}, {pipeline_mode = #tpu.pipeline_mode<synchronous>, transform_indices = @transform_5, window_bounds = array<i64: 32, 85>}, {pipeline_mode = #tpu.pipeline_mode<synchronous>, transform_indices = @transform_6, window_bounds = array<i64: 1, 256>}, {pipeline_mode = #tpu.pipeline_mode<synchronous>, transform_indices = @transform_7, window_bounds = array<i64: 1, 256>}, {transform_indices = @transform_8, window_bounds = array<i64: 1, 32, 256>}]} {
    %c0 = arith.constant 0 : index
    %c0_0 = arith.constant 0 : index
    %0 = vector.load %arg7[%c0, %c0_0] : memref<1x256xf32, #tpu.memory_space<vmem>>, vector<1x256xf32>
    %c0_1 = arith.constant 0 : index
    %c0_2 = arith.constant 0 : index
    %1 = vector.load %arg8[%c0_1, %c0_2] : memref<1x256xf32, #tpu.memory_space<vmem>>, vector<1x256xf32>
    %c0_3 = arith.constant 0 : index
    %c0_4 = arith.constant 0 : index
    %c0_5 = arith.constant 0 : index
    %2 = vector.load %arg1[%c0_3, %c0_4, %c0_5] : memref<1x85x256xf32, #tpu.memory_space<vmem>>, vector<1x85x256xf32>
    %3 = vector.shape_cast %2 : vector<1x85x256xf32> to vector<85x256xf32>
    %cst = arith.constant 0.000000e+00 : f32
    %4 = vector.broadcast %cst : f32 to vector<85x17xf32>
    %5 = tpu.concatenate %4, %3, %4 in 1 : vector<85x17xf32>, vector<85x256xf32>, vector<85x17xf32> -> vector<85x290xf32>
    %c0_6 = arith.constant 0 : index
    %c4 = arith.constant 4 : index
    %6 = vector.load %arg4[%c0_6, %c4] : memref<85x9xf32, #tpu.memory_space<vmem>>, vector<85x1xf32>
    %7 = vector.broadcast %6 : vector<85x1xf32> to vector<85x256xf32>
    %8 = arith.mulf %3, %7 : vector<85x256xf32>
    %9 = vector.extract_strided_slice %5 {offsets = [0, 0], sizes = [85, 256], strides = [1, 1]} : vector<85x290xf32> to vector<85x256xf32>
    %10 = vector.broadcast %0 : vector<1x256xf32> to vector<85x256xf32>
    %11 = arith.mulf %9, %10 : vector<85x256xf32>
    %c0_7 = arith.constant 0 : index
    %c0_8 = arith.constant 0 : index
    %12 = vector.load %arg4[%c0_7, %c0_8] : memref<85x9xf32, #tpu.memory_space<vmem>>, vector<85x1xf32>
    %13 = vector.broadcast %12 : vector<85x1xf32> to vector<85x256xf32>
    %14 = arith.mulf %11, %13 : vector<85x256xf32>
    %15 = arith.addf %8, %14 : vector<85x256xf32>
    %16 = vector.extract_strided_slice %5 {offsets = [0, 1], sizes = [85, 256], strides = [1, 1]} : vector<85x290xf32> to vector<85x256xf32>
    %c0_9 = arith.constant 0 : index
    %c1 = arith.constant 1 : index
    %17 = vector.load %arg4[%c0_9, %c1] : memref<85x9xf32, #tpu.memory_space<vmem>>, vector<85x1xf32>
    %18 = vector.broadcast %17 : vector<85x1xf32> to vector<85x256xf32>
    %19 = arith.mulf %16, %18 : vector<85x256xf32>
    %20 = arith.addf %15, %19 : vector<85x256xf32>
    %21 = vector.extract_strided_slice %5 {offsets = [0, 2], sizes = [85, 256], strides = [1, 1]} : vector<85x290xf32> to vector<85x256xf32>
    %22 = vector.broadcast %1 : vector<1x256xf32> to vector<85x256xf32>
    %23 = arith.mulf %21, %22 : vector<85x256xf32>
    %c0_10 = arith.constant 0 : index
    %c2 = arith.constant 2 : index
    %24 = vector.load %arg4[%c0_10, %c2] : memref<85x9xf32, #tpu.memory_space<vmem>>, vector<85x1xf32>
    %25 = vector.broadcast %24 : vector<85x1xf32> to vector<85x256xf32>
    %26 = arith.mulf %23, %25 : vector<85x256xf32>
    %27 = arith.addf %20, %26 : vector<85x256xf32>
    %28 = vector.extract_strided_slice %5 {offsets = [0, 16], sizes = [85, 256], strides = [1, 1]} : vector<85x290xf32> to vector<85x256xf32>
    %29 = vector.broadcast %0 : vector<1x256xf32> to vector<85x256xf32>
    %30 = arith.mulf %28, %29 : vector<85x256xf32>
    %c0_11 = arith.constant 0 : index
    %c3 = arith.constant 3 : index
    %31 = vector.load %arg4[%c0_11, %c3] : memref<85x9xf32, #tpu.memory_space<vmem>>, vector<85x1xf32>
    %32 = vector.broadcast %31 : vector<85x1xf32> to vector<85x256xf32>
    %33 = arith.mulf %30, %32 : vector<85x256xf32>
    %34 = arith.addf %27, %33 : vector<85x256xf32>
    %35 = vector.extract_strided_slice %5 {offsets = [0, 18], sizes = [85, 256], strides = [1, 1]} : vector<85x290xf32> to vector<85x256xf32>
    %36 = vector.broadcast %1 : vector<1x256xf32> to vector<85x256xf32>
    %37 = arith.mulf %35, %36 : vector<85x256xf32>
    %c0_12 = arith.constant 0 : index
    %c5 = arith.constant 5 : index
    %38 = vector.load %arg4[%c0_12, %c5] : memref<85x9xf32, #tpu.memory_space<vmem>>, vector<85x1xf32>
    %39 = vector.broadcast %38 : vector<85x1xf32> to vector<85x256xf32>
    %40 = arith.mulf %37, %39 : vector<85x256xf32>
    %41 = arith.addf %34, %40 : vector<85x256xf32>
    %42 = vector.extract_strided_slice %5 {offsets = [0, 32], sizes = [85, 256], strides = [1, 1]} : vector<85x290xf32> to vector<85x256xf32>
    %43 = vector.broadcast %0 : vector<1x256xf32> to vector<85x256xf32>
    %44 = arith.mulf %42, %43 : vector<85x256xf32>
    %c0_13 = arith.constant 0 : index
    %c6 = arith.constant 6 : index
    %45 = vector.load %arg4[%c0_13, %c6] : memref<85x9xf32, #tpu.memory_space<vmem>>, vector<85x1xf32>
    %46 = vector.broadcast %45 : vector<85x1xf32> to vector<85x256xf32>
    %47 = arith.mulf %44, %46 : vector<85x256xf32>
    %48 = arith.addf %41, %47 : vector<85x256xf32>
    %49 = vector.extract_strided_slice %5 {offsets = [0, 33], sizes = [85, 256], strides = [1, 1]} : vector<85x290xf32> to vector<85x256xf32>
    %c0_14 = arith.constant 0 : index
    %c7 = arith.constant 7 : index
    %50 = vector.load %arg4[%c0_14, %c7] : memref<85x9xf32, #tpu.memory_space<vmem>>, vector<85x1xf32>
    %51 = vector.broadcast %50 : vector<85x1xf32> to vector<85x256xf32>
    %52 = arith.mulf %49, %51 : vector<85x256xf32>
    %53 = arith.addf %48, %52 : vector<85x256xf32>
    %54 = vector.extract_strided_slice %5 {offsets = [0, 34], sizes = [85, 256], strides = [1, 1]} : vector<85x290xf32> to vector<85x256xf32>
    %55 = vector.broadcast %1 : vector<1x256xf32> to vector<85x256xf32>
    %56 = arith.mulf %54, %55 : vector<85x256xf32>
    %c0_15 = arith.constant 0 : index
    %c8 = arith.constant 8 : index
    %57 = vector.load %arg4[%c0_15, %c8] : memref<85x9xf32, #tpu.memory_space<vmem>>, vector<85x1xf32>
    %58 = vector.broadcast %57 : vector<85x1xf32> to vector<85x256xf32>
    %59 = arith.mulf %56, %58 : vector<85x256xf32>
    %60 = arith.addf %53, %59 : vector<85x256xf32>
    %c0_16 = arith.constant 0 : index
    %c0_17 = arith.constant 0 : index
    %c0_18 = arith.constant 0 : index
    %61 = vector.load %arg2[%c0_16, %c0_17, %c0_18] : memref<1x85x256xf32, #tpu.memory_space<vmem>>, vector<1x85x256xf32>
    %62 = vector.shape_cast %61 : vector<1x85x256xf32> to vector<85x256xf32>
    %cst_19 = arith.constant 0.000000e+00 : f32
    %63 = vector.broadcast %cst_19 : f32 to vector<85x17xf32>
    %64 = tpu.concatenate %63, %62, %63 in 1 : vector<85x17xf32>, vector<85x256xf32>, vector<85x17xf32> -> vector<85x290xf32>
    %c0_20 = arith.constant 0 : index
    %c4_21 = arith.constant 4 : index
    %65 = vector.load %arg5[%c0_20, %c4_21] : memref<85x9xf32, #tpu.memory_space<vmem>>, vector<85x1xf32>
    %66 = vector.broadcast %65 : vector<85x1xf32> to vector<85x256xf32>
    %67 = arith.mulf %62, %66 : vector<85x256xf32>
    %68 = vector.extract_strided_slice %64 {offsets = [0, 0], sizes = [85, 256], strides = [1, 1]} : vector<85x290xf32> to vector<85x256xf32>
    %69 = vector.broadcast %0 : vector<1x256xf32> to vector<85x256xf32>
    %70 = arith.mulf %68, %69 : vector<85x256xf32>
    %c0_22 = arith.constant 0 : index
    %c0_23 = arith.constant 0 : index
    %71 = vector.load %arg5[%c0_22, %c0_23] : memref<85x9xf32, #tpu.memory_space<vmem>>, vector<85x1xf32>
    %72 = vector.broadcast %71 : vector<85x1xf32> to vector<85x256xf32>
    %73 = arith.mulf %70, %72 : vector<85x256xf32>
    %74 = arith.addf %67, %73 : vector<85x256xf32>
    %75 = vector.extract_strided_slice %64 {offsets = [0, 1], sizes = [85, 256], strides = [1, 1]} : vector<85x290xf32> to vector<85x256xf32>
    %c0_24 = arith.constant 0 : index
    %c1_25 = arith.constant 1 : index
    %76 = vector.load %arg5[%c0_24, %c1_25] : memref<85x9xf32, #tpu.memory_space<vmem>>, vector<85x1xf32>
    %77 = vector.broadcast %76 : vector<85x1xf32> to vector<85x256xf32>
    %78 = arith.mulf %75, %77 : vector<85x256xf32>
    %79 = arith.addf %74, %78 : vector<85x256xf32>
    %80 = vector.extract_strided_slice %64 {offsets = [0, 2], sizes = [85, 256], strides = [1, 1]} : vector<85x290xf32> to vector<85x256xf32>
    %81 = vector.broadcast %1 : vector<1x256xf32> to vector<85x256xf32>
    %82 = arith.mulf %80, %81 : vector<85x256xf32>
    %c0_26 = arith.constant 0 : index
    %c2_27 = arith.constant 2 : index
    %83 = vector.load %arg5[%c0_26, %c2_27] : memref<85x9xf32, #tpu.memory_space<vmem>>, vector<85x1xf32>
    %84 = vector.broadcast %83 : vector<85x1xf32> to vector<85x256xf32>
    %85 = arith.mulf %82, %84 : vector<85x256xf32>
    %86 = arith.addf %79, %85 : vector<85x256xf32>
    %87 = vector.extract_strided_slice %64 {offsets = [0, 16], sizes = [85, 256], strides = [1, 1]} : vector<85x290xf32> to vector<85x256xf32>
    %88 = vector.broadcast %0 : vector<1x256xf32> to vector<85x256xf32>
    %89 = arith.mulf %87, %88 : vector<85x256xf32>
    %c0_28 = arith.constant 0 : index
    %c3_29 = arith.constant 3 : index
    %90 = vector.load %arg5[%c0_28, %c3_29] : memref<85x9xf32, #tpu.memory_space<vmem>>, vector<85x1xf32>
    %91 = vector.broadcast %90 : vector<85x1xf32> to vector<85x256xf32>
    %92 = arith.mulf %89, %91 : vector<85x256xf32>
    %93 = arith.addf %86, %92 : vector<85x256xf32>
    %94 = vector.extract_strided_slice %64 {offsets = [0, 18], sizes = [85, 256], strides = [1, 1]} : vector<85x290xf32> to vector<85x256xf32>
    %95 = vector.broadcast %1 : vector<1x256xf32> to vector<85x256xf32>
    %96 = arith.mulf %94, %95 : vector<85x256xf32>
    %c0_30 = arith.constant 0 : index
    %c5_31 = arith.constant 5 : index
    %97 = vector.load %arg5[%c0_30, %c5_31] : memref<85x9xf32, #tpu.memory_space<vmem>>, vector<85x1xf32>
    %98 = vector.broadcast %97 : vector<85x1xf32> to vector<85x256xf32>
    %99 = arith.mulf %96, %98 : vector<85x256xf32>
    %100 = arith.addf %93, %99 : vector<85x256xf32>
    %101 = vector.extract_strided_slice %64 {offsets = [0, 32], sizes = [85, 256], strides = [1, 1]} : vector<85x290xf32> to vector<85x256xf32>
    %102 = vector.broadcast %0 : vector<1x256xf32> to vector<85x256xf32>
    %103 = arith.mulf %101, %102 : vector<85x256xf32>
    %c0_32 = arith.constant 0 : index
    %c6_33 = arith.constant 6 : index
    %104 = vector.load %arg5[%c0_32, %c6_33] : memref<85x9xf32, #tpu.memory_space<vmem>>, vector<85x1xf32>
    %105 = vector.broadcast %104 : vector<85x1xf32> to vector<85x256xf32>
    %106 = arith.mulf %103, %105 : vector<85x256xf32>
    %107 = arith.addf %100, %106 : vector<85x256xf32>
    %108 = vector.extract_strided_slice %64 {offsets = [0, 33], sizes = [85, 256], strides = [1, 1]} : vector<85x290xf32> to vector<85x256xf32>
    %c0_34 = arith.constant 0 : index
    %c7_35 = arith.constant 7 : index
    %109 = vector.load %arg5[%c0_34, %c7_35] : memref<85x9xf32, #tpu.memory_space<vmem>>, vector<85x1xf32>
    %110 = vector.broadcast %109 : vector<85x1xf32> to vector<85x256xf32>
    %111 = arith.mulf %108, %110 : vector<85x256xf32>
    %112 = arith.addf %107, %111 : vector<85x256xf32>
    %113 = vector.extract_strided_slice %64 {offsets = [0, 34], sizes = [85, 256], strides = [1, 1]} : vector<85x290xf32> to vector<85x256xf32>
    %114 = vector.broadcast %1 : vector<1x256xf32> to vector<85x256xf32>
    %115 = arith.mulf %113, %114 : vector<85x256xf32>
    %c0_36 = arith.constant 0 : index
    %c8_37 = arith.constant 8 : index
    %116 = vector.load %arg5[%c0_36, %c8_37] : memref<85x9xf32, #tpu.memory_space<vmem>>, vector<85x1xf32>
    %117 = vector.broadcast %116 : vector<85x1xf32> to vector<85x256xf32>
    %118 = arith.mulf %115, %117 : vector<85x256xf32>
    %119 = arith.addf %112, %118 : vector<85x256xf32>
    %cst_38 = arith.constant 5.000000e-01 : f32
    %120 = vector.broadcast %cst_38 : f32 to vector<85x256xf32>
    %121 = arith.mulf %120, %60 : vector<85x256xf32>
    %cst_39 = arith.constant 0.707106769 : f32
    %122 = vector.broadcast %cst_39 : f32 to vector<85x256xf32>
    %123 = arith.mulf %60, %122 : vector<85x256xf32>
    %124 = math.erf %123 : vector<85x256xf32>
    %cst_40 = arith.constant 1.000000e+00 : f32
    %125 = vector.broadcast %cst_40 : f32 to vector<85x256xf32>
    %126 = arith.addf %125, %124 : vector<85x256xf32>
    %127 = arith.mulf %121, %126 : vector<85x256xf32>
    %128 = arith.mulf %127, %119 : vector<85x256xf32>
    %c0_41 = arith.constant 0 : index
    %c0_42 = arith.constant 0 : index
    %c0_43 = arith.constant 0 : index
    %129 = vector.load %arg3[%c0_41, %c0_42, %c0_43] : memref<1x32x256xf32, #tpu.memory_space<vmem>>, vector<1x32x256xf32>
    %130 = vector.shape_cast %129 : vector<1x32x256xf32> to vector<32x256xf32>
    %c0_44 = arith.constant 0 : index
    %c0_45 = arith.constant 0 : index
    %131 = vector.load %arg6[%c0_44, %c0_45] : memref<32x85xf32, #tpu.memory_space<vmem>>, vector<32x85xf32>
    %cst_46 = arith.constant dense<0.000000e+00> : vector<32x256xf32>
    %132 = tpu.matmul %131, %128, %cst_46 {dimension_numbers = #tpu.dot_dimension_numbers<[1], [0], [0], [1], [0, 0, 1, 1], [], []>} : vector<32x85xf32>, vector<85x256xf32>, vector<32x256xf32> -> vector<32x256xf32>
    %133 = arith.addf %130, %132 : vector<32x256xf32>
    %c0_47 = arith.constant 0 : index
    %c0_48 = arith.constant 0 : index
    %c0_49 = arith.constant 0 : index
    %134 = vector.load %arg9[%c0_47, %c0_48, %c0_49] : memref<1x32x256xf32, #tpu.memory_space<vmem>>, vector<1x32x256xf32>
    %135 = vector.shape_cast %134 : vector<1x32x256xf32> to vector<32x256xf32>
    %136 = vector.shape_cast %133 : vector<32x256xf32> to vector<1x32x256xf32>
    tpu.vector_store %arg9[%c0_47, %c0_48, %c0_49], %136 {strides = array<i32>} : memref<1x32x256xf32, #tpu.memory_space<vmem>>, vector<1x32x256xf32>,
    return
  }
  func.func @transform_0(%arg0: i32) -> (i32, i32, i32) {
    %c0_i32 = arith.constant 0 : i32
    %c0_i32_0 = arith.constant 0 : i32
    %c0_i32_1 = arith.constant 0 : i32
    return %arg0, %c0_i32, %c0_i32_0 : i32, i32, i32
  }
  func.func @transform_1(%arg0: i32) -> (i32, i32, i32) {
    %c0_i32 = arith.constant 0 : i32
    %c0_i32_0 = arith.constant 0 : i32
    %c0_i32_1 = arith.constant 0 : i32
    return %arg0, %c0_i32, %c0_i32_0 : i32, i32, i32
  }
  func.func @transform_2(%arg0: i32) -> (i32, i32, i32) {
    %c0_i32 = arith.constant 0 : i32
    %c0_i32_0 = arith.constant 0 : i32
    %c0_i32_1 = arith.constant 0 : i32
    return %arg0, %c0_i32, %c0_i32_0 : i32, i32, i32
  }
  func.func @transform_3(%arg0: i32) -> (i32, i32) {
    %c0_i32 = arith.constant 0 : i32
    %c0_i32_0 = arith.constant 0 : i32
    %c0_i32_1 = arith.constant 0 : i32
    return %c0_i32, %c0_i32_0 : i32, i32
  }
  func.func @transform_4(%arg0: i32) -> (i32, i32) {
    %c0_i32 = arith.constant 0 : i32
    %c0_i32_0 = arith.constant 0 : i32
    %c0_i32_1 = arith.constant 0 : i32
    return %c0_i32, %c0_i32_0 : i32, i32
  }
  func.func @transform_5(%arg0: i32) -> (i32, i32) {
    %c0_i32 = arith.constant 0 : i32
    %c0_i32_0 = arith.constant 0 : i32
    %c0_i32_1 = arith.constant 0 : i32
    return %c0_i32, %c0_i32_0 : i32, i32
  }
  func.func @transform_6(%arg0: i32) -> (i32, i32) {
    %c0_i32 = arith.constant 0 : i32
    %c0_i32_0 = arith.constant 0 : i32
    %c0_i32_1 = arith.constant 0 : i32
    return %c0_i32, %c0_i32_0 : i32, i32
  }
  func.func @transform_7(%arg0: i32) -> (i32, i32) {
    %c0_i32 = arith.constant 0 : i32
    %c0_i32_0 = arith.constant 0 : i32
    %c0_i32_1 = arith.constant 0 : i32
    return %c0_i32, %c0_i32_0 : i32, i32
  }
  func.func @transform_8(%arg0: i32) -> (i32, i32, i32) {
    %c0_i32 = arith.constant 0 : i32
    %c0_i32_0 = arith.constant 0 : i32
    %c0_i32_1 = arith.constant 0 : i32
    return %arg0, %c0_i32, %c0_i32_0 : i32, i32, i32
  }
}

</mosaic_0001>

<llo_original>
// kernel: trans10_forward.42
$region0: #{trans10_forward.42}
  #allocation0 [shape = 'u32[]', space=smem, size = 0x4, offset = 0x4, fixed_abs, tag = 'smem constant byte address 0x4 - core index']
  #allocation1 [shape = 'u32[144,128]{1,0:T(1,128)}', space=vmem, size = 0x12000, scoped, tag = 'internal scratch']
  %s0 = inlined_call_operand.vmem [shape: f32[2,3,256], index: 0, kind: input, shape index: {}]
  %s1 = inlined_call_operand.vmem [shape: f32[32,3], index: 1, kind: input, shape index: {}]
  %s2 = inlined_call_operand.vmem [shape: f32[2,32,256], index: 2, kind: output, shape index: {}]
  %s3 = sld [smem:[#allocation0]]
  $region41: #{trans10_forward.42} parent=0
    _
  %s5 = ssub.s32 1, %s3
  %s6 = scalar_select 0, %s5, %s3
  loop: start=0, step=1, limit=4
  $region2: #{trans10_forward.42} parent=0 // loop_pre_header
    _
  $region3: #{trans10_forward.42} parent=0 // loop_header
    %s8 = sphi 0, %s12
    %p9 = scmp.ge.s32.totalorder %s8, 4
    %s15 = sphi 0, %s27
    %s16 = sphi 0, %s23
    %s17 = sphi 0, %s15
    %s18 = sphi 0, %s16
    %s19 = sphi 0, %s17
    %s20 = sphi 0, %s18
    %s32 = sphi 0, %s34
    %s35 = sphi 0, %s32
    %s36 = sphi 0, %s35
    %s52 = sphi 0, %s36
    %s56 = sphi 0, %s56
    %s58 = sphi 0, %s56
    %s59 = sphi 0, %s58
    %s73 = sphi 0, %s59
    %s81 = sphi 0, %s83
    %s84 = sphi 0, %s81
    %s85 = sphi 0, %s84
    %s101 = sphi 0, %s85
  $region4: #{trans10_forward.42} parent=0 // loop_header_branch
    %11 = sbr.rel (%p9) target = $region8
  $region5: #{trans10_forward.42} parent=0 // loop_body
    %s13 = ssub.s32 %s8, 1
    %s14 = ssub.s32 %s8, 2
    %s21 = sadd.s32 1, %s16
    %p22 = scmp.ge.s32.totalorder %s21, 1
    %s23 = scalar_select %p22, 0, %s21
    %s24 = sadd.s32 1, %s15
    %s25 = scalar_select %p22, %s24, %s15
    %p26 = scmp.ge.s32.totalorder %s25, 2
    %s27 = scalar_select %p26, 0, %s25
    %s28 = ssub.s32 %s15, %s27
    %s29 = ssub.s32 %s16, %s23
    %s30 = sor.u32 %s28, %s29
    %p31 = scmp.eq.s32.totalorder %s30, 0
    %s33 = sadd.s32 %s32, 1
    %s34 = scalar_select %p31, %s32, %s33
    %p37 = pneg %p31
    %p38 = scmp.eq.s32.totalorder %s8, 1
    %p39 = por %p37, %p38
    %p40 = scmp.ne.s32.totalorder %s32, %s35
    %p41 = scmp.eq.s32.totalorder %s8, 0
    %p42 = por %p40, %p41
    %p43 = scmp.ne.s32.totalorder %s32, %s35
    %p44 = scmp.eq.s32.totalorder %s13, 1
    %p45 = por %p43, %p44
    %p46 = scmp.ne.s32.totalorder %s35, %s36
    %p47 = scmp.eq.s32.totalorder %s13, 0
    %p48 = por %p46, %p47
    %p49 = scmp.ne.s32.totalorder %s35, %s36
    %p50 = scmp.eq.s32.totalorder %s14, 1
    %p51 = por %p49, %p50
    %p53 = scmp.ne.s32.totalorder %s36, %s52
    %p54 = scmp.eq.s32.totalorder %s14, 0
    %p55 = por %p53, %p54
    %s57 = sadd.s32 %s56, 1
    %p60 = scmp.eq.s32.totalorder %s8, 1
    %p61 = scmp.ne.s32.totalorder %s56, %s58
    %p62 = scmp.eq.s32.totalorder %s8, 0
    %p63 = por %p61, %p62
    %p64 = scmp.ne.s32.totalorder %s56, %s58
    %p65 = scmp.eq.s32.totalorder %s13, 1
    %p66 = por %p64, %p65
    %p67 = scmp.ne.s32.totalorder %s58, %s59
    %p68 = scmp.eq.s32.totalorder %s13, 0
    %p69 = por %p67, %p68
    %p70 = scmp.ne.s32.totalorder %s58, %s59
    %p71 = scmp.eq.s32.totalorder %s14, 1
    %p72 = por %p70, %p71
    %p74 = scmp.ne.s32.totalorder %s59, %s73
    %p75 = scmp.eq.s32.totalorder %s14, 0
    %p76 = por %p74, %p75
    %s77 = ssub.s32 %s15, %s27
    %s78 = ssub.s32 %s16, %s23
    %s79 = sor.u32 %s77, %s78
    %p80 = scmp.eq.s32.totalorder %s79, 0
    %s82 = sadd.s32 %s81, 1
    %s83 = scalar_select %p80, %s81, %s82
    %p86 = pneg %p80
    %p87 = scmp.eq.s32.totalorder %s8, 1
    %p88 = por %p86, %p87
    %p89 = scmp.ne.s32.totalorder %s81, %s84
    %p90 = scmp.eq.s32.totalorder %s8, 0
    %p91 = por %p89, %p90
    %p92 = scmp.ne.s32.totalorder %s81, %s84
    %p93 = scmp.eq.s32.totalorder %s13, 1
    %p94 = por %p92, %p93
    %p95 = scmp.ne.s32.totalorder %s84, %s85
    %p96 = scmp.eq.s32.totalorder %s13, 0
    %p97 = por %p95, %p96
    %p98 = scmp.ne.s32.totalorder %s84, %s85
    %p99 = scmp.eq.s32.totalorder %s14, 1
    %p100 = por %p98, %p99
    %p102 = scmp.ne.s32.totalorder %s85, %s101
    %p103 = scmp.eq.s32.totalorder %s14, 0
    %p104 = por %p102, %p103
    %p105 = scmp.le.s32.totalorder 1, %s8
    %p106 = scmp.lt.s32.totalorder %s8, 3
    %p107 = pnand %p105, %p106
    %p108 = pneg %p107
    // Predicated region
    $region9: #{trans10_forward.42} parent=5 // pred_check
      _
    $region10: #{trans10_forward.42} parent=5 // pred_check_branch
      %110 = sbr.rel (%p107) target = $region12
    $region11: #{trans10_forward.42} parent=5 // pred_region
      %s111 = ssub.s32 %s8, 1
      // Predicated region
      $region13: #{trans10_forward.42} parent=11 // pred_check
        %p112 = pneg %p69
      $region14: #{trans10_forward.42} parent=11 // pred_check_branch
        %114 = sbr.rel (%p112) target = $region16
      $region15: #{trans10_forward.42} parent=11 // pred_region
        _
      $region16: #{trans10_forward.42} parent=11 // pred_fallthru
        _
    $region12: #{trans10_forward.42} parent=5 // pred_fallthru
      _
    %p115 = scmp.lt.s32.totalorder %s8, 2
    // Predicated region
    $region17: #{trans10_forward.42} parent=5 // pred_check
      %p116 = pneg %p115
    $region18: #{trans10_forward.42} parent=5 // pred_check_branch
      %118 = sbr.rel (%p116) target = $region20
    $region19: #{trans10_forward.42} parent=5 // pred_region
      // Predicated region
      $region21: #{trans10_forward.42} parent=19 // pred_check
        %p119 = pneg %p42
      $region22: #{trans10_forward.42} parent=19 // pred_check_branch
        %121 = sbr.rel (%p119) target = $region24
      $region23: #{trans10_forward.42} parent=19 // pred_region
        %s122 = smul.u32 2, %s16
        %p123 = scmp.lt.s32.totalorder %s15, 1
        %s124 = scalar_select %p123, %s15, 1
        %p125 = scmp.lt.s32.totalorder %s122, 1
        %s126 = scalar_select %p125, %s122, 1
        %s127 = smul.addr %s124, 2
        %s128 = sadd.s32 %s126, %s127
        %s129 = smul.addr %s128, 4
        %s130 = scalar_lea.vmem %s0, %s129
        %s131 = smul.u32 2, %s16
      $region24: #{trans10_forward.42} parent=19 // pred_fallthru
        _
    $region20: #{trans10_forward.42} parent=5 // pred_fallthru
      _
    %p132 = scmp.le.s32.totalorder 1, %s8
    %p133 = scmp.lt.s32.totalorder %s8, 3
    %p134 = pnand %p132, %p133
    %p135 = pneg %p134
    // Predicated region
    $region25: #{trans10_forward.42} parent=5 // pred_check
      _
    $region26: #{trans10_forward.42} parent=5 // pred_check_branch
      %137 = sbr.rel (%p134) target = $region28
    $region27: #{trans10_forward.42} parent=5 // pred_region
      %s138 = ssub.s32 %s8, 1
      %s139 = smul.u32 2, %s18
      %p140 = scmp.lt.s32.totalorder %s17, 1
      %s141 = scalar_select %p140, %s17, 1
      %p142 = scmp.lt.s32.totalorder %s139, 1
      %s143 = scalar_select %p142, %s139, 1
      %s144 = smul.addr %s141, 2
      %s145 = sadd.s32 %s143, %s144
      %s146 = smul.addr %s145, 4
      %s147 = scalar_lea.vmem %s0, %s146
      %p148 = pneg %p48
      %p149 = pneg %p45
      %p150 = pneg %p69
      %p151 = pneg %p66
      %p152 = pneg %p97
      %p153 = pneg %p94
      %s154 = smul.u32 2, %s18
      %p155 = scmp.lt.s32.totalorder %s17, 1
      %s156 = scalar_select %p155, %s17, 1
      %p157 = scmp.lt.s32.totalorder %s154, 1
      %s158 = scalar_select %p157, %s154, 1
      %s159 = smul.addr %s156, 8
      %s160 = sadd.s32 %s158, %s159
      %s161 = smul.addr %s160, 8
      %s162 = scalar_lea.vmem %s2, %s161
      %s163 = smul.u32 2, %s18
      %p164 = scmp.lt.s32.totalorder %s17, 1
      %s165 = scalar_select %p164, %s17, 1
      %p166 = scmp.lt.s32.totalorder %s163, 1
      %s167 = scalar_select %p166, %s163, 1
      %s168 = smul.addr %s165, 2
      %s169 = sadd.s32 %s167, %s168
      %s170 = smul.addr %s169, 4
      %s171 = scalar_lea.vmem %s0, %s170
      %s172 = smul.u32 2, %s18
      %s173 = smul.u32 2, %s18
      %p174 = scmp.lt.s32.totalorder %s17, 1
      %s175 = scalar_select %p174, %s17, 1
      %p176 = scmp.lt.s32.totalorder %s173, 1
      %s177 = scalar_select %p176, %s173, 1
      %s178 = smul.addr %s175, 8
      %s179 = sadd.s32 %s177, %s178
      %s180 = smul.addr %s179, 8
      %s181 = scalar_lea.vmem %s2, %s180
      %s182 = smul.u32 2, %s18
      %v183 = vld [vmem:[%s1] sm:$0xff]
      %v184 = vld [vmem:[%s1 + $0x8] sm:$0xff]
      %v185 = vld [vmem:[%s1 + $0x10] sm:$0xff]
      %v186 = vld [vmem:[%s1 + $0x18] sm:$0xff]
      %v187 = vld [vmem:[%s171] sm:$0x77]
      %v189 = vcombine.high %v187, %v187
      %vm190 = vcmask 23552
      %v192 = vsel %vm190, %v183, 0
      %v195 = vsel %vm190, %v184, 0
      %v198 = vsel %vm190, %v185, 0
      %v201 = vsel %vm190, %v186, 0
      %vm203 = vcmask 1042432
      %v204 = vsel %vm203, %v187, 0
      %v206 = vsel %vm203, %v189, 0
      %208 = vmatprep.subr.mxu0 0.0
      %209 = vmatpush1.msra.mxu0 0.0
      %210 = vmatprep.subr.mxu0 0.0
      %211 = vmatpush1.msra.mxu0 0.0
      %212 = vmatprep.subr.mxu0 0.0
      %213 = vmatpush1.msra.mxu0 0.0
      %214 = vmatprep.subr.mxu0 0.0
      %215 = vmatpush1.msra.mxu0 0.0
      %216 = vmatprep.subr.mxu0 0.0
      %217 = vmatpush1.msra.mxu0 0.0
      %218 = vmatprep.subr.mxu0 0.0
      %219 = vmatpush1.msra.mxu0 0.0
      %220 = vmatprep.subr.mxu0 0.0
      %221 = vmatpush1.msra.mxu0 0.0
      %222 = vmatprep.subr.mxu0 0.0
      %223 = vmatpush1.msra.mxu0 0.0
      %224 = vmatprep.subr.mxu0 0.0
      %225 = vmatpush1.msra.mxu0 0.0
      %226 = vmatprep.subr.mxu0 0.0
      %227 = vmatpush1.msra.mxu0 0.0
      %228 = vmatprep.subr.mxu0 0.0
      %229 = vmatpush1.msra.mxu0 0.0
      %230 = vmatprep.subr.mxu0 0.0
      %231 = vmatpush1.msra.mxu0 0.0
      %232 = vmatprep.subr.mxu0 0.0
      %233 = vmatpush1.msra.mxu0 0.0
      %234 = vmatprep.subr.mxu0 0.0
      %235 = vmatpush1.msra.mxu0 0.0
      %236 = vmatprep.subr.mxu0 0.0
      %237 = vmatpush1.msra.mxu0 0.0
      %238 = vmatprep.subr.mxu0 %v206
      %239 = vmatpush1.msra.mxu0 %v204
      %240 = vmatprep.subr.mxu0 0.0
      %241 = vmatpush2.msra.mxu0 0.0
      %242 = vmatprep.subr.mxu0 0.0
      %243 = vmatpush2.msra.mxu0 0.0
      %244 = vmatprep.subr.mxu0 0.0
      %245 = vmatpush2.msra.mxu0 0.0
      %246 = vmatprep.subr.mxu0 0.0
      %247 = vmatpush2.msra.mxu0 0.0
      %248 = vmatprep.subr.mxu0 0.0
      %249 = vmatpush2.msra.mxu0 0.0
      %250 = vmatprep.subr.mxu0 0.0
      %251 = vmatpush2.msra.mxu0 0.0
      %252 = vmatprep.subr.mxu0 0.0
      %253 = vmatpush2.msra.mxu0 0.0
      %254 = vmatprep.subr.mxu0 0.0
      %255 = vmatpush2.msra.mxu0 0.0
      %256 = vmatprep.subr.mxu0 0.0
      %257 = vmatpush2.msra.mxu0 0.0
      %258 = vmatprep.subr.mxu0 0.0
      %259 = vmatpush2.msra.mxu0 0.0
      %260 = vmatprep.subr.mxu0 0.0
      %261 = vmatpush2.msra.mxu0 0.0
      %262 = vmatprep.subr.mxu0 0.0
      %263 = vmatpush2.msra.mxu0 0.0
      %264 = vmatprep.subr.mxu0 0.0
      %265 = vmatpush2.msra.mxu0 0.0
      %266 = vmatprep.subr.mxu0 0.0
      %267 = vmatpush2.msra.mxu0 0.0
      %268 = vmatprep.subr.mxu0 0.0
      %269 = vmatpush2.msra.mxu0 0.0
      %270 = vmatprep.subr.mxu0 0.0
      %271 = vmatpush2.msra.mxu0 0.0
      %272 = vmatprep.mubr.f32.mxu0 0.0
      %273 = vmatmul.mubr.f32.gmra.mxu0 %v192
      %v274 = vpop.f32.mrf.mxu0
      %v275 = vadd.f32 0.0, %v274
      %v276 = vpop.f32.mrf.mxu0
      %v277 = vadd.f32 0.0, %v276
      %278 = vmatprep.mubr.f32.mxu0 0.0
      %279 = vmatmul.mubr.f32.gmra.mxu0 %v195
      %v280 = vpop.f32.mrf.mxu0
      %v281 = vadd.f32 0.0, %v280
      %v282 = vpop.f32.mrf.mxu0
      %v283 = vadd.f32 0.0, %v282
      %284 = vmatprep.mubr.f32.mxu0 0.0
      %285 = vmatmul.mubr.f32.gmra.mxu0 %v198
      %v286 = vpop.f32.mrf.mxu0
      %v287 = vadd.f32 0.0, %v286
      %v288 = vpop.f32.mrf.mxu0
      %v289 = vadd.f32 0.0, %v288
      %290 = vmatprep.mubr.f32.mxu0 0.0
      %291 = vmatmul.mubr.f32.gmra.mxu0 %v201
      %v292 = vpop.f32.mrf.mxu0
      %v293 = vadd.f32 0.0, %v292
      %v294 = vpop.f32.mrf.mxu0
      %v295 = vadd.f32 0.0, %v294
      %296 = vdwg.mxu0
      %v297 = vmax.f32 %v275, 0.0
      %v298 = vmax.f32 %v277, 0.0
      %v299 = vmax.f32 %v281, 0.0
      %v300 = vmax.f32 %v283, 0.0
      %v301 = vmax.f32 %v287, 0.0
      %v302 = vmax.f32 %v289, 0.0
      %v303 = vmax.f32 %v293, 0.0
      %v304 = vmax.f32 %v295, 0.0
      %305 = vst [vmem:[%s181] sm:$0xff] %v297
      %306 = vst [vmem:[%s181 + $0x8] sm:$0xff] %v298
      %307 = vst [vmem:[%s181 + $0x10] sm:$0xff] %v299
      %308 = vst [vmem:[%s181 + $0x18] sm:$0xff] %v300
      %309 = vst [vmem:[%s181 + $0x20] sm:$0xff] %v301
      %310 = vst [vmem:[%s181 + $0x28] sm:$0xff] %v302
      %311 = vst [vmem:[%s181 + $0x30] sm:$0xff] %v303
      %312 = vst [vmem:[%s181 + $0x38] sm:$0xff] %v304
      %s313 = smul.u32 2, %s18
      %p314 = scmp.lt.s32.totalorder %s17, 1
      %s315 = scalar_select %p314, %s17, 1
      %p316 = scmp.lt.s32.totalorder %s313, 1
      %s317 = scalar_select %p316, %s313, 1
      %s318 = smul.addr %s315, 8
      %s319 = sadd.s32 %s317, %s318
      %s320 = smul.addr %s319, 8
      %s321 = scalar_lea.vmem %s2, %s320
      // Predicated region
      $region29: #{trans10_forward.42} parent=27 // pred_check
        %p322 = pneg %p94
      $region30: #{trans10_forward.42} parent=27 // pred_check_branch
        %324 = sbr.rel (%p322) target = $region32
      $region31: #{trans10_forward.42} parent=27 // pred_region
        %s325 = smul.u32 2, %s18
      $region32: #{trans10_forward.42} parent=27 // pred_fallthru
        _
    $region28: #{trans10_forward.42} parent=5 // pred_fallthru
      _
    %p326 = scmp.le.s32.totalorder 2, %s8
    // Predicated region
    $region33: #{trans10_forward.42} parent=5 // pred_check
      %p327 = pneg %p326
    $region34: #{trans10_forward.42} parent=5 // pred_check_branch
      %329 = sbr.rel (%p327) target = $region36
    $region35: #{trans10_forward.42} parent=5 // pred_region
      %s330 = ssub.s32 %s8, 2
      // Predicated region
      $region37: #{trans10_forward.42} parent=35 // pred_check
        %p331 = pneg %p100
      $region38: #{trans10_forward.42} parent=35 // pred_check_branch
        %333 = sbr.rel (%p331) target = $region40
      $region39: #{trans10_forward.42} parent=35 // pred_region
        %s334 = smul.u32 2, %s20
        %p335 = scmp.lt.s32.totalorder %s19, 1
        %s336 = scalar_select %p335, %s19, 1
        %p337 = scmp.lt.s32.totalorder %s334, 1
        %s338 = scalar_select %p337, %s334, 1
        %s339 = smul.addr %s336, 8
        %s340 = sadd.s32 %s338, %s339
        %s341 = smul.addr %s340, 8
        %s342 = scalar_lea.vmem %s2, %s341
      $region40: #{trans10_forward.42} parent=35 // pred_fallthru
        _
    $region36: #{trans10_forward.42} parent=5 // pred_fallthru
      _
  $region6: #{trans10_forward.42} parent=0 // loop_footer
    %s12 = sadd.s32 1, %s8
  $region7: #{trans10_forward.42} parent=0 // loop_footer_branch
    %7 = sbr.rel target = $region3
  $region8: #{trans10_forward.42} parent=0 // loop_exit
    _

// kernel: trans10_forward.43
$region0: #{trans10_forward.43}
  #allocation0 [shape = 'u32[]', space=smem, size = 0x4, offset = 0x4, fixed_abs, tag = 'smem constant byte address 0x4 - core index']
  #allocation1 [shape = 'u32[144,128]{1,0:T(1,128)}', space=vmem, size = 0x12000, scoped, tag = 'internal scratch']
  %s0 = inlined_call_operand.vmem [shape: f32[2,32,256], index: 0, kind: input, shape index: {}]
  %s1 = inlined_call_operand.vmem [shape: f32[32,1], index: 1, kind: input, shape index: {}]
  %s2 = inlined_call_operand.vmem [shape: f32[32,1], index: 2, kind: input, shape index: {}]
  %s3 = inlined_call_operand.vmem [shape: f32[32,32], index: 3, kind: input, shape index: {}]
  %s4 = inlined_call_operand.vmem [shape: f32[32,32], index: 4, kind: input, shape index: {}]
  %s5 = inlined_call_operand.vmem [shape: f32[32,32], index: 5, kind: input, shape index: {}]
  %s6 = inlined_call_operand.vmem [shape: f32[2,32,256], index: 6, kind: output, shape index: {0}]
  %s7 = inlined_call_operand.vmem [shape: f32[2,32,256], index: 7, kind: output, shape index: {1}]
  %s8 = inlined_call_operand.vmem [shape: f32[2,32,256], index: 8, kind: output, shape index: {2}]
  %9 = xla_tuple %s6, %s7, %s8
  %s10 = sld [smem:[#allocation0]]
  $region73: #{trans10_forward.43} parent=0
    _
  %s12 = ssub.s32 1, %s10
  %s13 = scalar_select 0, %s12, %s10
  loop: start=0, step=1, limit=4
  $region2: #{trans10_forward.43} parent=0 // loop_pre_header
    _
  $region3: #{trans10_forward.43} parent=0 // loop_header
    %s15 = sphi 0, %s19
    %p16 = scmp.ge.s32.totalorder %s15, 4
    %s22 = sphi 0, %s34
    %s23 = sphi 0, %s30
    %s24 = sphi 0, %s22
    %s25 = sphi 0, %s23
    %s26 = sphi 0, %s24
    %s27 = sphi 0, %s25
    %s39 = sphi 0, %s41
    %s42 = sphi 0, %s39
    %s43 = sphi 0, %s42
    %s59 = sphi 0, %s43
    %s63 = sphi 0, %s63
    %s65 = sphi 0, %s63
    %s66 = sphi 0, %s65
    %s80 = sphi 0, %s66
    %s84 = sphi 0, %s84
    %s86 = sphi 0, %s84
    %s87 = sphi 0, %s86
    %s101 = sphi 0, %s87
    %s105 = sphi 0, %s105
    %s107 = sphi 0, %s105
    %s108 = sphi 0, %s107
    %s122 = sphi 0, %s108
    %s126 = sphi 0, %s126
    %s128 = sphi 0, %s126
    %s129 = sphi 0, %s128
    %s143 = sphi 0, %s129
    %s147 = sphi 0, %s147
    %s149 = sphi 0, %s147
    %s150 = sphi 0, %s149
    %s164 = sphi 0, %s150
    %s172 = sphi 0, %s174
    %s175 = sphi 0, %s172
    %s176 = sphi 0, %s175
    %s192 = sphi 0, %s176
    %s200 = sphi 0, %s202
    %s203 = sphi 0, %s200
    %s204 = sphi 0, %s203
    %s220 = sphi 0, %s204
    %s228 = sphi 0, %s230
    %s231 = sphi 0, %s228
    %s232 = sphi 0, %s231
    %s248 = sphi 0, %s232
  $region4: #{trans10_forward.43} parent=0 // loop_header_branch
    %18 = sbr.rel (%p16) target = $region8
  $region5: #{trans10_forward.43} parent=0 // loop_body
    %s20 = ssub.s32 %s15, 1
    %s21 = ssub.s32 %s15, 2
    %s28 = sadd.s32 1, %s23
    %p29 = scmp.ge.s32.totalorder %s28, 1
    %s30 = scalar_select %p29, 0, %s28
    %s31 = sadd.s32 1, %s22
    %s32 = scalar_select %p29, %s31, %s22
    %p33 = scmp.ge.s32.totalorder %s32, 2
    %s34 = scalar_select %p33, 0, %s32
    %s35 = ssub.s32 %s22, %s34
    %s36 = ssub.s32 %s23, %s30
    %s37 = sor.u32 %s35, %s36
    %p38 = scmp.eq.s32.totalorder %s37, 0
    %s40 = sadd.s32 %s39, 1
    %s41 = scalar_select %p38, %s39, %s40
    %p44 = pneg %p38
    %p45 = scmp.eq.s32.totalorder %s15, 1
    %p46 = por %p44, %p45
    %p47 = scmp.ne.s32.totalorder %s39, %s42
    %p48 = scmp.eq.s32.totalorder %s15, 0
    %p49 = por %p47, %p48
    %p50 = scmp.ne.s32.totalorder %s39, %s42
    %p51 = scmp.eq.s32.totalorder %s20, 1
    %p52 = por %p50, %p51
    %p53 = scmp.ne.s32.totalorder %s42, %s43
    %p54 = scmp.eq.s32.totalorder %s20, 0
    %p55 = por %p53, %p54
    %p56 = scmp.ne.s32.totalorder %s42, %s43
    %p57 = scmp.eq.s32.totalorder %s21, 1
    %p58 = por %p56, %p57
    %p60 = scmp.ne.s32.totalorder %s43, %s59
    %p61 = scmp.eq.s32.totalorder %s21, 0
    %p62 = por %p60, %p61
    %s64 = sadd.s32 %s63, 1
    %p67 = scmp.eq.s32.totalorder %s15, 1
    %p68 = scmp.ne.s32.totalorder %s63, %s65
    %p69 = scmp.eq.s32.totalorder %s15, 0
    %p70 = por %p68, %p69
    %p71 = scmp.ne.s32.totalorder %s63, %s65
    %p72 = scmp.eq.s32.totalorder %s20, 1
    %p73 = por %p71, %p72
    %p74 = scmp.ne.s32.totalorder %s65, %s66
    %p75 = scmp.eq.s32.totalorder %s20, 0
    %p76 = por %p74, %p75
    %p77 = scmp.ne.s32.totalorder %s65, %s66
    %p78 = scmp.eq.s32.totalorder %s21, 1
    %p79 = por %p77, %p78
    %p81 = scmp.ne.s32.totalorder %s66, %s80
    %p82 = scmp.eq.s32.totalorder %s21, 0
    %p83 = por %p81, %p82
    %s85 = sadd.s32 %s84, 1
    %p88 = scmp.eq.s32.totalorder %s15, 1
    %p89 = scmp.ne.s32.totalorder %s84, %s86
    %p90 = scmp.eq.s32.totalorder %s15, 0
    %p91 = por %p89, %p90
    %p92 = scmp.ne.s32.totalorder %s84, %s86
    %p93 = scmp.eq.s32.totalorder %s20, 1
    %p94 = por %p92, %p93
    %p95 = scmp.ne.s32.totalorder %s86, %s87
    %p96 = scmp.eq.s32.totalorder %s20, 0
    %p97 = por %p95, %p96
    %p98 = scmp.ne.s32.totalorder %s86, %s87
    %p99 = scmp.eq.s32.totalorder %s21, 1
    %p100 = por %p98, %p99
    %p102 = scmp.ne.s32.totalorder %s87, %s101
    %p103 = scmp.eq.s32.totalorder %s21, 0
    %p104 = por %p102, %p103
    %s106 = sadd.s32 %s105, 1
    %p109 = scmp.eq.s32.totalorder %s15, 1
    %p110 = scmp.ne.s32.totalorder %s105, %s107
    %p111 = scmp.eq.s32.totalorder %s15, 0
    %p112 = por %p110, %p111
    %p113 = scmp.ne.s32.totalorder %s105, %s107
    %p114 = scmp.eq.s32.totalorder %s20, 1
    %p115 = por %p113, %p114
    %p116 = scmp.ne.s32.totalorder %s107, %s108
    %p117 = scmp.eq.s32.totalorder %s20, 0
    %p118 = por %p116, %p117
    %p119 = scmp.ne.s32.totalorder %s107, %s108
    %p120 = scmp.eq.s32.totalorder %s21, 1
    %p121 = por %p119, %p120
    %p123 = scmp.ne.s32.totalorder %s108, %s122
    %p124 = scmp.eq.s32.totalorder %s21, 0
    %p125 = por %p123, %p124
    %s127 = sadd.s32 %s126, 1
    %p130 = scmp.eq.s32.totalorder %s15, 1
    %p131 = scmp.ne.s32.totalorder %s126, %s128
    %p132 = scmp.eq.s32.totalorder %s15, 0
    %p133 = por %p131, %p132
    %p134 = scmp.ne.s32.totalorder %s126, %s128
    %p135 = scmp.eq.s32.totalorder %s20, 1
    %p136 = por %p134, %p135
    %p137 = scmp.ne.s32.totalorder %s128, %s129
    %p138 = scmp.eq.s32.totalorder %s20, 0
    %p139 = por %p137, %p138
    %p140 = scmp.ne.s32.totalorder %s128, %s129
    %p141 = scmp.eq.s32.totalorder %s21, 1
    %p142 = por %p140, %p141
    %p144 = scmp.ne.s32.totalorder %s129, %s143
    %p145 = scmp.eq.s32.totalorder %s21, 0
    %p146 = por %p144, %p145
    %s148 = sadd.s32 %s147, 1
    %p151 = scmp.eq.s32.totalorder %s15, 1
    %p152 = scmp.ne.s32.totalorder %s147, %s149
    %p153 = scmp.eq.s32.totalorder %s15, 0
    %p154 = por %p152, %p153
    %p155 = scmp.ne.s32.totalorder %s147, %s149
    %p156 = scmp.eq.s32.totalorder %s20, 1
    %p157 = por %p155, %p156
    %p158 = scmp.ne.s32.totalorder %s149, %s150
    %p159 = scmp.eq.s32.totalorder %s20, 0
    %p160 = por %p158, %p159
    %p161 = scmp.ne.s32.totalorder %s149, %s150
    %p162 = scmp.eq.s32.totalorder %s21, 1
    %p163 = por %p161, %p162
    %p165 = scmp.ne.s32.totalorder %s150, %s164
    %p166 = scmp.eq.s32.totalorder %s21, 0
    %p167 = por %p165, %p166
    %s168 = ssub.s32 %s22, %s34
    %s169 = ssub.s32 %s23, %s30
    %s170 = sor.u32 %s168, %s169
    %p171 = scmp.eq.s32.totalorder %s170, 0
    %s173 = sadd.s32 %s172, 1
    %s174 = scalar_select %p171, %s172, %s173
    %p177 = pneg %p171
    %p178 = scmp.eq.s32.totalorder %s15, 1
    %p179 = por %p177, %p178
    %p180 = scmp.ne.s32.totalorder %s172, %s175
    %p181 = scmp.eq.s32.totalorder %s15, 0
    %p182 = por %p180, %p181
    %p183 = scmp.ne.s32.totalorder %s172, %s175
    %p184 = scmp.eq.s32.totalorder %s20, 1
    %p185 = por %p183, %p184
    %p186 = scmp.ne.s32.totalorder %s175, %s176
    %p187 = scmp.eq.s32.totalorder %s20, 0
    %p188 = por %p186, %p187
    %p189 = scmp.ne.s32.totalorder %s175, %s176
    %p190 = scmp.eq.s32.totalorder %s21, 1
    %p191 = por %p189, %p190
    %p193 = scmp.ne.s32.totalorder %s176, %s192
    %p194 = scmp.eq.s32.totalorder %s21, 0
    %p195 = por %p193, %p194
    %s196 = ssub.s32 %s22, %s34
    %s197 = ssub.s32 %s23, %s30
    %s198 = sor.u32 %s196, %s197
    %p199 = scmp.eq.s32.totalorder %s198, 0
    %s201 = sadd.s32 %s200, 1
    %s202 = scalar_select %p199, %s200, %s201
    %p205 = pneg %p199
    %p206 = scmp.eq.s32.totalorder %s15, 1
    %p207 = por %p205, %p206
    %p208 = scmp.ne.s32.totalorder %s200, %s203
    %p209 = scmp.eq.s32.totalorder %s15, 0
    %p210 = por %p208, %p209
    %p211 = scmp.ne.s32.totalorder %s200, %s203
    %p212 = scmp.eq.s32.totalorder %s20, 1
    %p213 = por %p211, %p212
    %p214 = scmp.ne.s32.totalorder %s203, %s204
    %p215 = scmp.eq.s32.totalorder %s20, 0
    %p216 = por %p214, %p215
    %p217 = scmp.ne.s32.totalorder %s203, %s204
    %p218 = scmp.eq.s32.totalorder %s21, 1
    %p219 = por %p217, %p218
    %p221 = scmp.ne.s32.totalorder %s204, %s220
    %p222 = scmp.eq.s32.totalorder %s21, 0
    %p223 = por %p221, %p222
    %s224 = ssub.s32 %s22, %s34
    %s225 = ssub.s32 %s23, %s30
    %s226 = sor.u32 %s224, %s225
    %p227 = scmp.eq.s32.totalorder %s226, 0
    %s229 = sadd.s32 %s228, 1
    %s230 = scalar_select %p227, %s228, %s229
    %p233 = pneg %p227
    %p234 = scmp.eq.s32.totalorder %s15, 1
    %p235 = por %p233, %p234
    %p236 = scmp.ne.s32.totalorder %s228, %s231
    %p237 = scmp.eq.s32.totalorder %s15, 0
    %p238 = por %p236, %p237
    %p239 = scmp.ne.s32.totalorder %s228, %s231
    %p240 = scmp.eq.s32.totalorder %s20, 1
    %p241 = por %p239, %p240
    %p242 = scmp.ne.s32.totalorder %s231, %s232
    %p243 = scmp.eq.s32.totalorder %s20, 0
    %p244 = por %p242, %p243
    %p245 = scmp.ne.s32.totalorder %s231, %s232
    %p246 = scmp.eq.s32.totalorder %s21, 1
    %p247 = por %p245, %p246
    %p249 = scmp.ne.s32.totalorder %s232, %s248
    %p250 = scmp.eq.s32.totalorder %s21, 0
    %p251 = por %p249, %p250
    %p252 = scmp.le.s32.totalorder 1, %s15
    %p253 = scmp.lt.s32.totalorder %s15, 3
    %p254 = pnand %p252, %p253
    %p255 = pneg %p254
    // Predicated region
    $region9: #{trans10_forward.43} parent=5 // pred_check
      _
    $region10: #{trans10_forward.43} parent=5 // pred_check_branch
      %257 = sbr.rel (%p254) target = $region12
    $region11: #{trans10_forward.43} parent=5 // pred_region
      %s258 = ssub.s32 %s15, 1
      // Predicated region
      $region13: #{trans10_forward.43} parent=11 // pred_check
        %p259 = pneg %p76
      $region14: #{trans10_forward.43} parent=11 // pred_check_branch
        %261 = sbr.rel (%p259) target = $region16
      $region15: #{trans10_forward.43} parent=11 // pred_region
        _
      $region16: #{trans10_forward.43} parent=11 // pred_fallthru
        _
      // Predicated region
      $region17: #{trans10_forward.43} parent=11 // pred_check
        %p262 = pneg %p97
      $region18: #{trans10_forward.43} parent=11 // pred_check_branch
        %264 = sbr.rel (%p262) target = $region20
      $region19: #{trans10_forward.43} parent=11 // pred_region
        _
      $region20: #{trans10_forward.43} parent=11 // pred_fallthru
        _
      // Predicated region
      $region21: #{trans10_forward.43} parent=11 // pred_check
        %p265 = pneg %p118
      $region22: #{trans10_forward.43} parent=11 // pred_check_branch
        %267 = sbr.rel (%p265) target = $region24
      $region23: #{trans10_forward.43} parent=11 // pred_region
        _
      $region24: #{trans10_forward.43} parent=11 // pred_fallthru
        _
      // Predicated region
      $region25: #{trans10_forward.43} parent=11 // pred_check
        %p268 = pneg %p139
      $region26: #{trans10_forward.43} parent=11 // pred_check_branch
        %270 = sbr.rel (%p268) target = $region28
      $region27: #{trans10_forward.43} parent=11 // pred_region
        _
      $region28: #{trans10_forward.43} parent=11 // pred_fallthru
        _
      // Predicated region
      $region29: #{trans10_forward.43} parent=11 // pred_check
        %p271 = pneg %p160
      $region30: #{trans10_forward.43} parent=11 // pred_check_branch
        %273 = sbr.rel (%p271) target = $region32
      $region31: #{trans10_forward.43} parent=11 // pred_region
        _
      $region32: #{trans10_forward.43} parent=11 // pred_fallthru
        _
    $region12: #{trans10_forward.43} parent=5 // pred_fallthru
      _
    %p274 = scmp.lt.s32.totalorder %s15, 2
    // Predicated region
    $region33: #{trans10_forward.43} parent=5 // pred_check
      %p275 = pneg %p274
    $region34: #{trans10_forward.43} parent=5 // pred_check_branch
      %277 = sbr.rel (%p275) target = $region36
    $region35: #{trans10_forward.43} parent=5 // pred_region
      // Predicated region
      $region37: #{trans10_forward.43} parent=35 // pred_check
        %p278 = pneg %p49
      $region38: #{trans10_forward.43} parent=35 // pred_check_branch
        %280 = sbr.rel (%p278) target = $region40
      $region39: #{trans10_forward.43} parent=35 // pred_region
        %s281 = smul.u32 2, %s23
        %p282 = scmp.lt.s32.totalorder %s22, 1
        %s283 = scalar_select %p282, %s22, 1
        %p284 = scmp.lt.s32.totalorder %s281, 1
        %s285 = scalar_select %p284, %s281, 1
        %s286 = smul.addr %s283, 8
        %s287 = sadd.s32 %s285, %s286
        %s288 = smul.addr %s287, 8
        %s289 = scalar_lea.vmem %s0, %s288
        %s290 = smul.u32 2, %s23
      $region40: #{trans10_forward.43} parent=35 // pred_fallthru
        _
    $region36: #{trans10_forward.43} parent=5 // pred_fallthru
      _
    %p291 = scmp.le.s32.totalorder 1, %s15
    %p292 = scmp.lt.s32.totalorder %s15, 3
    %p293 = pnand %p291, %p292
    %p294 = pneg %p293
    // Predicated region
    $region41: #{trans10_forward.43} parent=5 // pred_check
      _
    $region42: #{trans10_forward.43} parent=5 // pred_check_branch
      %296 = sbr.rel (%p293) target = $region44
    $region43: #{trans10_forward.43} parent=5 // pred_region
      %s297 = ssub.s32 %s15, 1
      %s298 = smul.u32 2, %s25
      %p299 = scmp.lt.s32.totalorder %s24, 1
      %s300 = scalar_select %p299, %s24, 1
      %p301 = scmp.lt.s32.totalorder %s298, 1
      %s302 = scalar_select %p301, %s298, 1
      %s303 = smul.addr %s300, 8
      %s304 = sadd.s32 %s302, %s303
      %s305 = smul.addr %s304, 8
      %s306 = scalar_lea.vmem %s0, %s305
      %p307 = pneg %p55
      %p308 = pneg %p52
      %p309 = pneg %p76
      %p310 = pneg %p73
      %p311 = pneg %p97
      %p312 = pneg %p94
      %p313 = pneg %p118
      %p314 = pneg %p115
      %p315 = pneg %p139
      %p316 = pneg %p136
      %p317 = pneg %p160
      %p318 = pneg %p157
      %p319 = pneg %p188
      %p320 = pneg %p185
      %s321 = smul.u32 2, %s25
      %p322 = scmp.lt.s32.totalorder %s24, 1
      %s323 = scalar_select %p322, %s24, 1
      %p324 = scmp.lt.s32.totalorder %s321, 1
      %s325 = scalar_select %p324, %s321, 1
      %s326 = smul.addr %s323, 8
      %s327 = sadd.s32 %s325, %s326
      %s328 = smul.addr %s327, 8
      %s329 = scalar_lea.vmem %s6, %s328
      %p330 = pneg %p216
      %p331 = pneg %p213
      %s332 = smul.u32 2, %s25
      %p333 = scmp.lt.s32.totalorder %s24, 1
      %s334 = scalar_select %p333, %s24, 1
      %p335 = scmp.lt.s32.totalorder %s332, 1
      %s336 = scalar_select %p335, %s332, 1
      %s337 = smul.addr %s334, 8
      %s338 = sadd.s32 %s336, %s337
      %s339 = smul.addr %s338, 8
      %s340 = scalar_lea.vmem %s7, %s339
      %p341 = pneg %p244
      %p342 = pneg %p241
      %s343 = smul.u32 2, %s25
      %p344 = scmp.lt.s32.totalorder %s24, 1
      %s345 = scalar_select %p344, %s24, 1
      %p346 = scmp.lt.s32.totalorder %s343, 1
      %s347 = scalar_select %p346, %s343, 1
      %s348 = smul.addr %s345, 8
      %s349 = sadd.s32 %s347, %s348
      %s350 = smul.addr %s349, 8
      %s351 = scalar_lea.vmem %s8, %s350
      %s352 = smul.u32 2, %s25
      %p353 = scmp.lt.s32.totalorder %s24, 1
      %s354 = scalar_select %p353, %s24, 1
      %p355 = scmp.lt.s32.totalorder %s352, 1
      %s356 = scalar_select %p355, %s352, 1
      %s357 = smul.addr %s354, 8
      %s358 = sadd.s32 %s356, %s357
      %s359 = smul.addr %s358, 8
      %s360 = scalar_lea.vmem %s0, %s359
      %s361 = smul.u32 2, %s25
      %s362 = smul.u32 2, %s25
      %p363 = scmp.lt.s32.totalorder %s24, 1
      %s364 = scalar_select %p363, %s24, 1
      %p365 = scmp.lt.s32.totalorder %s362, 1
      %s366 = scalar_select %p365, %s362, 1
      %s367 = smul.addr %s364, 8
      %s368 = sadd.s32 %s366, %s367
      %s369 = smul.addr %s368, 8
      %s370 = scalar_lea.vmem %s6, %s369
      %s371 = smul.u32 2, %s25
      %s372 = smul.u32 2, %s25
      %p373 = scmp.lt.s32.totalorder %s24, 1
      %s374 = scalar_select %p373, %s24, 1
      %p375 = scmp.lt.s32.totalorder %s372, 1
      %s376 = scalar_select %p375, %s372, 1
      %s377 = smul.addr %s374, 8
      %s378 = sadd.s32 %s376, %s377
      %s379 = smul.addr %s378, 8
      %s380 = scalar_lea.vmem %s7, %s379
      %s381 = smul.u32 2, %s25
      %s382 = smul.u32 2, %s25
      %p383 = scmp.lt.s32.totalorder %s24, 1
      %s384 = scalar_select %p383, %s24, 1
      %p385 = scmp.lt.s32.totalorder %s382, 1
      %s386 = scalar_select %p385, %s382, 1
      %s387 = smul.addr %s384, 8
      %s388 = sadd.s32 %s386, %s387
      %s389 = smul.addr %s388, 8
      %s390 = scalar_lea.vmem %s8, %s389
      %s391 = smul.u32 2, %s25
      %v392 = vld [vmem:[%s360] sm:$0xff]
      %v393 = vld [vmem:[%s360 + $0x8] sm:$0xff]
      %v394 = vld [vmem:[%s360 + $0x10] sm:$0xff]
      %v395 = vld [vmem:[%s360 + $0x18] sm:$0xff]
      %v396 = vld [vmem:[%s360 + $0x20] sm:$0xff]
      %v397 = vld [vmem:[%s360 + $0x28] sm:$0xff]
      %v398 = vld [vmem:[%s360 + $0x30] sm:$0xff]
      %v399 = vld [vmem:[%s360 + $0x38] sm:$0xff]
      %v400 = vadd.f32 %v392, %v394
      %v401 = vadd.f32 %v400, %v396
      %v402 = vadd.f32 %v401, %v398
      %v403 = vrot.slane %v402, 4
      %v404 = vadd.f32 %v402, %v403
      %v405 = vrot.slane %v404, 2
      %v406 = vadd.f32 %v404, %v405
      %v407 = vrot.slane %v406, 1
      %v408 = vadd.f32 %v406, %v407
      %v409 = vadd.f32 %v393, %v395
      %v410 = vadd.f32 %v409, %v397
      %v411 = vadd.f32 %v410, %v399
      %v412 = vrot.slane %v411, 4
      %v413 = vadd.f32 %v411, %v412
      %v414 = vrot.slane %v413, 2
      %v415 = vadd.f32 %v413, %v414
      %v416 = vrot.slane %v415, 1
      %v417 = vadd.f32 %v415, %v416
      %v418 = vrcp.pop 32.0
      %v419 = vmul.f32 %v408, %v418
      %v420 = vmul.f32 %v417, %v418
      %v421 = vsub.f32 %v392, %v419
      %v422 = vsub.f32 %v393, %v420
      %v423 = vsub.f32 %v394, %v419
      %v424 = vsub.f32 %v395, %v420
      %v425 = vsub.f32 %v396, %v419
      %v426 = vsub.f32 %v397, %v420
      %v427 = vsub.f32 %v398, %v419
      %v428 = vsub.f32 %v399, %v420
      %v429 = vmul.f32 %v421, %v421
      %v430 = vmul.f32 %v422, %v422
      %v431 = vmul.f32 %v423, %v423
      %v432 = vmul.f32 %v424, %v424
      %v433 = vmul.f32 %v425, %v425
      %v434 = vmul.f32 %v426, %v426
      %v435 = vmul.f32 %v427, %v427
      %v436 = vmul.f32 %v428, %v428
      %v437 = vadd.f32 %v429, %v431
      %v438 = vadd.f32 %v437, %v433
      %v439 = vadd.f32 %v438, %v435
      %v440 = vrot.slane %v439, 4
      %v441 = vadd.f32 %v439, %v440
      %v442 = vrot.slane %v441, 2
      %v443 = vadd.f32 %v441, %v442
      %v444 = vrot.slane %v443, 1
      %v445 = vadd.f32 %v443, %v444
      %v446 = vadd.f32 %v430, %v432
      %v447 = vadd.f32 %v446, %v434
      %v448 = vadd.f32 %v447, %v436
      %v449 = vrot.slane %v448, 4
      %v450 = vadd.f32 %v448, %v449
      %v451 = vrot.slane %v450, 2
      %v452 = vadd.f32 %v450, %v451
      %v453 = vrot.slane %v452, 1
      %v454 = vadd.f32 %v452, %v453
      %v455 = vmul.f32 %v445, %v418
      %v456 = vmul.f32 %v454, %v418
      %v457 = vadd.f32 %v455, 1e-05
      %v458 = vadd.f32 %v456, 1e-05
      %v459 = vrsqrt.pop %v457
      %v460 = vrsqrt.pop %v458
      %v461 = vmul.f32 %v421, %v459
      %v462 = vmul.f32 %v422, %v460
      %v463 = vmul.f32 %v423, %v459
      %v464 = vmul.f32 %v424, %v460
      %v465 = vmul.f32 %v425, %v459
      %v466 = vmul.f32 %v426, %v460
      %v467 = vmul.f32 %v427, %v459
      %v468 = vmul.f32 %v428, %v460
      %v469 = vld [vmem:[%s1] sm:$0xff]
      %v470 = vld [vmem:[%s1 + $0x8] sm:$0xff]
      %v471 = vld [vmem:[%s1 + $0x10] sm:$0xff]
      %v472 = vld [vmem:[%s1 + $0x18] sm:$0xff]
      %474 = vset.pattern.permute.xlu0 0
      %475 = vperm.xlu0 %474, %v469
      %v476 = vpop.permute.xlu0 %475
      %479 = vset.pattern.permute.xlu0 0
      %480 = vperm.xlu0 %479, %v470
      %v481 = vpop.permute.xlu0 %480
      %484 = vset.pattern.permute.xlu0 0
      %485 = vperm.xlu0 %484, %v471
      %v486 = vpop.permute.xlu0 %485
      %489 = vset.pattern.permute.xlu0 0
      %490 = vperm.xlu0 %489, %v472
      %v491 = vpop.permute.xlu0 %490
      %v493 = vmul.f32 %v461, %v476
      %v494 = vmul.f32 %v462, %v476
      %v495 = vmul.f32 %v463, %v481
      %v496 = vmul.f32 %v464, %v481
      %v497 = vmul.f32 %v465, %v486
      %v498 = vmul.f32 %v466, %v486
      %v499 = vmul.f32 %v467, %v491
      %v500 = vmul.f32 %v468, %v491
      %v501 = vld [vmem:[%s2] sm:$0xff]
      %v502 = vld [vmem:[%s2 + $0x8] sm:$0xff]
      %v503 = vld [vmem:[%s2 + $0x10] sm:$0xff]
      %v504 = vld [vmem:[%s2 + $0x18] sm:$0xff]
      %506 = vset.pattern.permute.xlu0 0
      %507 = vperm.xlu0 %506, %v501
      %v508 = vpop.permute.xlu0 %507
      %511 = vset.pattern.permute.xlu0 0
      %512 = vperm.xlu0 %511, %v502
      %v513 = vpop.permute.xlu0 %512
      %516 = vset.pattern.permute.xlu0 0
      %517 = vperm.xlu0 %516, %v503
      %v518 = vpop.permute.xlu0 %517
      %521 = vset.pattern.permute.xlu0 0
      %522 = vperm.xlu0 %521, %v504
      %v523 = vpop.permute.xlu0 %522
      %v525 = vadd.f32 %v493, %v508
      %v526 = vadd.f32 %v494, %v508
      %v527 = vadd.f32 %v495, %v513
      %v528 = vadd.f32 %v496, %v513
      %v529 = vadd.f32 %v497, %v518
      %v530 = vadd.f32 %v498, %v518
      %v531 = vadd.f32 %v499, %v523
      %v532 = vadd.f32 %v500, %v523
      %v533 = vld [vmem:[%s3] sm:$0xff]
      %v534 = vld [vmem:[%s3 + $0x8] sm:$0xff]
      %v535 = vld [vmem:[%s3 + $0x10] sm:$0xff]
      %v536 = vld [vmem:[%s3 + $0x18] sm:$0xff]
      %vm537 = vcmask 261120
      %v539 = vsel %vm537, %v533, 0
      %v542 = vsel %vm537, %v534, 0
      %v545 = vsel %vm537, %v535, 0
      %v548 = vsel %vm537, %v536, 0
      %550 = vmatprep.subr.mxu0 0.0
      %551 = vmatpush1.msra.mxu0 0.0
      %552 = vmatprep.subr.mxu0 0.0
      %553 = vmatpush1.msra.mxu0 0.0
      %554 = vmatprep.subr.mxu0 0.0
      %555 = vmatpush1.msra.mxu0 0.0
      %556 = vmatprep.subr.mxu0 0.0
      %557 = vmatpush1.msra.mxu0 0.0
      %558 = vmatprep.subr.mxu0 0.0
      %559 = vmatpush1.msra.mxu0 0.0
      %560 = vmatprep.subr.mxu0 0.0
      %561 = vmatpush1.msra.mxu0 0.0
      %562 = vmatprep.subr.mxu0 0.0
      %563 = vmatpush1.msra.mxu0 0.0
      %564 = vmatprep.subr.mxu0 0.0
      %565 = vmatpush1.msra.mxu0 0.0
      %566 = vmatprep.subr.mxu0 0.0
      %567 = vmatpush1.msra.mxu0 0.0
      %568 = vmatprep.subr.mxu0 0.0
      %569 = vmatpush1.msra.mxu0 0.0
      %570 = vmatprep.subr.mxu0 0.0
      %571 = vmatpush1.msra.mxu0 0.0
      %572 = vmatprep.subr.mxu0 0.0
      %573 = vmatpush1.msra.mxu0 0.0
      %574 = vmatprep.subr.mxu0 %v532
      %575 = vmatpush1.msra.mxu0 %v531
      %576 = vmatprep.subr.mxu0 %v530
      %577 = vmatpush1.msra.mxu0 %v529
      %578 = vmatprep.subr.mxu0 %v528
      %579 = vmatpush1.msra.mxu0 %v527
      %580 = vmatprep.subr.mxu0 %v526
      %581 = vmatpush1.msra.mxu0 %v525
      %582 = vmatprep.subr.mxu0 0.0
      %583 = vmatpush2.msra.mxu0 0.0
      %584 = vmatprep.subr.mxu0 0.0
      %585 = vmatpush2.msra.mxu0 0.0
      %586 = vmatprep.subr.mxu0 0.0
      %587 = vmatpush2.msra.mxu0 0.0
      %588 = vmatprep.subr.mxu0 0.0
      %589 = vmatpush2.msra.mxu0 0.0
      %590 = vmatprep.subr.mxu0 0.0
      %591 = vmatpush2.msra.mxu0 0.0
      %592 = vmatprep.subr.mxu0 0.0
      %593 = vmatpush2.msra.mxu0 0.0
      %594 = vmatprep.subr.mxu0 0.0
      %595 = vmatpush2.msra.mxu0 0.0
      %596 = vmatprep.subr.mxu0 0.0
      %597 = vmatpush2.msra.mxu0 0.0
      %598 = vmatprep.subr.mxu0 0.0
      %599 = vmatpush2.msra.mxu0 0.0
      %600 = vmatprep.subr.mxu0 0.0
      %601 = vmatpush2.msra.mxu0 0.0
      %602 = vmatprep.subr.mxu0 0.0
      %603 = vmatpush2.msra.mxu0 0.0
      %604 = vmatprep.subr.mxu0 0.0
      %605 = vmatpush2.msra.mxu0 0.0
      %606 = vmatprep.subr.mxu0 0.0
      %607 = vmatpush2.msra.mxu0 0.0
      %608 = vmatprep.subr.mxu0 0.0
      %609 = vmatpush2.msra.mxu0 0.0
      %610 = vmatprep.subr.mxu0 0.0
      %611 = vmatpush2.msra.mxu0 0.0
      %612 = vmatprep.subr.mxu0 0.0
      %613 = vmatpush2.msra.mxu0 0.0
      %614 = vmatprep.mubr.f32.mxu0 0.0
      %615 = vmatmul.mubr.f32.gmra.mxu0 %v539
      %v616 = vpop.f32.mrf.mxu0
      %v617 = vadd.f32 0.0, %v616
      %v618 = vpop.f32.mrf.mxu0
      %v619 = vadd.f32 0.0, %v618
      %620 = vmatprep.mubr.f32.mxu0 0.0
      %621 = vmatmul.mubr.f32.gmra.mxu0 %v542
      %v622 = vpop.f32.mrf.mxu0
      %v623 = vadd.f32 0.0, %v622
      %v624 = vpop.f32.mrf.mxu0
      %v625 = vadd.f32 0.0, %v624
      %626 = vmatprep.mubr.f32.mxu0 0.0
      %627 = vmatmul.mubr.f32.gmra.mxu0 %v545
      %v628 = vpop.f32.mrf.mxu0
      %v629 = vadd.f32 0.0, %v628
      %v630 = vpop.f32.mrf.mxu0
      %v631 = vadd.f32 0.0, %v630
      %632 = vmatprep.mubr.f32.mxu0 0.0
      %633 = vmatmul.mubr.f32.gmra.mxu0 %v548
      %v634 = vpop.f32.mrf.mxu0
      %v635 = vadd.f32 0.0, %v634
      %v636 = vpop.f32.mrf.mxu0
      %v637 = vadd.f32 0.0, %v636
      %638 = vdwg.mxu0
      %639 = vst [vmem:[%s370] sm:$0xff] %v617
      %640 = vst [vmem:[%s370 + $0x8] sm:$0xff] %v619
      %641 = vst [vmem:[%s370 + $0x10] sm:$0xff] %v623
      %642 = vst [vmem:[%s370 + $0x18] sm:$0xff] %v625
      %643 = vst [vmem:[%s370 + $0x20] sm:$0xff] %v629
      %644 = vst [vmem:[%s370 + $0x28] sm:$0xff] %v631
      %645 = vst [vmem:[%s370 + $0x30] sm:$0xff] %v635
      %646 = vst [vmem:[%s370 + $0x38] sm:$0xff] %v637
      %v647 = vld [vmem:[%s4] sm:$0xff]
      %v648 = vld [vmem:[%s4 + $0x8] sm:$0xff]
      %v649 = vld [vmem:[%s4 + $0x10] sm:$0xff]
      %v650 = vld [vmem:[%s4 + $0x18] sm:$0xff]
      %v652 = vsel %vm537, %v647, 0
      %v655 = vsel %vm537, %v648, 0
      %v658 = vsel %vm537, %v649, 0
      %v661 = vsel %vm537, %v650, 0
      %663 = vmatprep.subr.mxu0 0.0
      %664 = vmatpush1.msra.mxu0 0.0
      %665 = vmatprep.subr.mxu0 0.0
      %666 = vmatpush1.msra.mxu0 0.0
      %667 = vmatprep.subr.mxu0 0.0
      %668 = vmatpush1.msra.mxu0 0.0
      %669 = vmatprep.subr.mxu0 0.0
      %670 = vmatpush1.msra.mxu0 0.0
      %671 = vmatprep.subr.mxu0 0.0
      %672 = vmatpush1.msra.mxu0 0.0
      %673 = vmatprep.subr.mxu0 0.0
      %674 = vmatpush1.msra.mxu0 0.0
      %675 = vmatprep.subr.mxu0 0.0
      %676 = vmatpush1.msra.mxu0 0.0
      %677 = vmatprep.subr.mxu0 0.0
      %678 = vmatpush1.msra.mxu0 0.0
      %679 = vmatprep.subr.mxu0 0.0
      %680 = vmatpush1.msra.mxu0 0.0
      %681 = vmatprep.subr.mxu0 0.0
      %682 = vmatpush1.msra.mxu0 0.0
      %683 = vmatprep.subr.mxu0 0.0
      %684 = vmatpush1.msra.mxu0 0.0
      %685 = vmatprep.subr.mxu0 0.0
      %686 = vmatpush1.msra.mxu0 0.0
      %687 = vmatprep.subr.mxu0 %v532
      %688 = vmatpush1.msra.mxu0 %v531
      %689 = vmatprep.subr.mxu0 %v530
      %690 = vmatpush1.msra.mxu0 %v529
      %691 = vmatprep.subr.mxu0 %v528
      %692 = vmatpush1.msra.mxu0 %v527
      %693 = vmatprep.subr.mxu0 %v526
      %694 = vmatpush1.msra.mxu0 %v525
      %695 = vmatprep.subr.mxu0 0.0
      %696 = vmatpush2.msra.mxu0 0.0
      %697 = vmatprep.subr.mxu0 0.0
      %698 = vmatpush2.msra.mxu0 0.0
      %699 = vmatprep.subr.mxu0 0.0
      %700 = vmatpush2.msra.mxu0 0.0
      %701 = vmatprep.subr.mxu0 0.0
      %702 = vmatpush2.msra.mxu0 0.0
      %703 = vmatprep.subr.mxu0 0.0
      %704 = vmatpush2.msra.mxu0 0.0
      %705 = vmatprep.subr.mxu0 0.0
      %706 = vmatpush2.msra.mxu0 0.0
      %707 = vmatprep.subr.mxu0 0.0
      %708 = vmatpush2.msra.mxu0 0.0
      %709 = vmatprep.subr.mxu0 0.0
      %710 = vmatpush2.msra.mxu0 0.0
      %711 = vmatprep.subr.mxu0 0.0
      %712 = vmatpush2.msra.mxu0 0.0
      %713 = vmatprep.subr.mxu0 0.0
      %714 = vmatpush2.msra.mxu0 0.0
      %715 = vmatprep.subr.mxu0 0.0
      %716 = vmatpush2.msra.mxu0 0.0
      %717 = vmatprep.subr.mxu0 0.0
      %718 = vmatpush2.msra.mxu0 0.0
      %719 = vmatprep.subr.mxu0 0.0
      %720 = vmatpush2.msra.mxu0 0.0
      %721 = vmatprep.subr.mxu0 0.0
      %722 = vmatpush2.msra.mxu0 0.0
      %723 = vmatprep.subr.mxu0 0.0
      %724 = vmatpush2.msra.mxu0 0.0
      %725 = vmatprep.subr.mxu0 0.0
      %726 = vmatpush2.msra.mxu0 0.0
      %727 = vmatprep.mubr.f32.mxu0 0.0
      %728 = vmatmul.mubr.f32.gmra.mxu0 %v652
      %v729 = vpop.f32.mrf.mxu0
      %v730 = vadd.f32 0.0, %v729
      %v731 = vpop.f32.mrf.mxu0
      %v732 = vadd.f32 0.0, %v731
      %733 = vmatprep.mubr.f32.mxu0 0.0
      %734 = vmatmul.mubr.f32.gmra.mxu0 %v655
      %v735 = vpop.f32.mrf.mxu0
      %v736 = vadd.f32 0.0, %v735
      %v737 = vpop.f32.mrf.mxu0
      %v738 = vadd.f32 0.0, %v737
      %739 = vmatprep.mubr.f32.mxu0 0.0
      %740 = vmatmul.mubr.f32.gmra.mxu0 %v658
      %v741 = vpop.f32.mrf.mxu0
      %v742 = vadd.f32 0.0, %v741
      %v743 = vpop.f32.mrf.mxu0
      %v744 = vadd.f32 0.0, %v743
      %745 = vmatprep.mubr.f32.mxu0 0.0
      %746 = vmatmul.mubr.f32.gmra.mxu0 %v661
      %v747 = vpop.f32.mrf.mxu0
      %v748 = vadd.f32 0.0, %v747
      %v749 = vpop.f32.mrf.mxu0
      %v750 = vadd.f32 0.0, %v749
      %751 = vdwg.mxu0
      %752 = vst [vmem:[%s380] sm:$0xff] %v730
      %753 = vst [vmem:[%s380 + $0x8] sm:$0xff] %v732
      %754 = vst [vmem:[%s380 + $0x10] sm:$0xff] %v736
      %755 = vst [vmem:[%s380 + $0x18] sm:$0xff] %v738
      %756 = vst [vmem:[%s380 + $0x20] sm:$0xff] %v742
      %757 = vst [vmem:[%s380 + $0x28] sm:$0xff] %v744
      %758 = vst [vmem:[%s380 + $0x30] sm:$0xff] %v748
      %759 = vst [vmem:[%s380 + $0x38] sm:$0xff] %v750
      %v760 = vld [vmem:[%s5] sm:$0xff]
      %v761 = vld [vmem:[%s5 + $0x8] sm:$0xff]
      %v762 = vld [vmem:[%s5 + $0x10] sm:$0xff]
      %v763 = vld [vmem:[%s5 + $0x18] sm:$0xff]
      %v765 = vsel %vm537, %v760, 0
      %v768 = vsel %vm537, %v761, 0
      %v771 = vsel %vm537, %v762, 0
      %v774 = vsel %vm537, %v763, 0
      %776 = vmatprep.subr.mxu0 0.0
      %777 = vmatpush1.msra.mxu0 0.0
      %778 = vmatprep.subr.mxu0 0.0
      %779 = vmatpush1.msra.mxu0 0.0
      %780 = vmatprep.subr.mxu0 0.0
      %781 = vmatpush1.msra.mxu0 0.0
      %782 = vmatprep.subr.mxu0 0.0
      %783 = vmatpush1.msra.mxu0 0.0
      %784 = vmatprep.subr.mxu0 0.0
      %785 = vmatpush1.msra.mxu0 0.0
      %786 = vmatprep.subr.mxu0 0.0
      %787 = vmatpush1.msra.mxu0 0.0
      %788 = vmatprep.subr.mxu0 0.0
      %789 = vmatpush1.msra.mxu0 0.0
      %790 = vmatprep.subr.mxu0 0.0
      %791 = vmatpush1.msra.mxu0 0.0
      %792 = vmatprep.subr.mxu0 0.0
      %793 = vmatpush1.msra.mxu0 0.0
      %794 = vmatprep.subr.mxu0 0.0
      %795 = vmatpush1.msra.mxu0 0.0
      %796 = vmatprep.subr.mxu0 0.0
      %797 = vmatpush1.msra.mxu0 0.0
      %798 = vmatprep.subr.mxu0 0.0
      %799 = vmatpush1.msra.mxu0 0.0
      %800 = vmatprep.subr.mxu0 %v532
      %801 = vmatpush1.msra.mxu0 %v531
      %802 = vmatprep.subr.mxu0 %v530
      %803 = vmatpush1.msra.mxu0 %v529
      %804 = vmatprep.subr.mxu0 %v528
      %805 = vmatpush1.msra.mxu0 %v527
      %806 = vmatprep.subr.mxu0 %v526
      %807 = vmatpush1.msra.mxu0 %v525
      %808 = vmatprep.subr.mxu0 0.0
      %809 = vmatpush2.msra.mxu0 0.0
      %810 = vmatprep.subr.mxu0 0.0
      %811 = vmatpush2.msra.mxu0 0.0
      %812 = vmatprep.subr.mxu0 0.0
      %813 = vmatpush2.msra.mxu0 0.0
      %814 = vmatprep.subr.mxu0 0.0
      %815 = vmatpush2.msra.mxu0 0.0
      %816 = vmatprep.subr.mxu0 0.0
      %817 = vmatpush2.msra.mxu0 0.0
      %818 = vmatprep.subr.mxu0 0.0
      %819 = vmatpush2.msra.mxu0 0.0
      %820 = vmatprep.subr.mxu0 0.0
      %821 = vmatpush2.msra.mxu0 0.0
      %822 = vmatprep.subr.mxu0 0.0
      %823 = vmatpush2.msra.mxu0 0.0
      %824 = vmatprep.subr.mxu0 0.0
      %825 = vmatpush2.msra.mxu0 0.0
      %826 = vmatprep.subr.mxu0 0.0
      %827 = vmatpush2.msra.mxu0 0.0
      %828 = vmatprep.subr.mxu0 0.0
      %829 = vmatpush2.msra.mxu0 0.0
      %830 = vmatprep.subr.mxu0 0.0
      %831 = vmatpush2.msra.mxu0 0.0
      %832 = vmatprep.subr.mxu0 0.0
      %833 = vmatpush2.msra.mxu0 0.0
      %834 = vmatprep.subr.mxu0 0.0
      %835 = vmatpush2.msra.mxu0 0.0
      %836 = vmatprep.subr.mxu0 0.0
      %837 = vmatpush2.msra.mxu0 0.0
      %838 = vmatprep.subr.mxu0 0.0
      %839 = vmatpush2.msra.mxu0 0.0
      %840 = vmatprep.mubr.f32.mxu0 0.0
      %841 = vmatmul.mubr.f32.gmra.mxu0 %v765
      %v842 = vpop.f32.mrf.mxu0
      %v843 = vadd.f32 0.0, %v842
      %v844 = vpop.f32.mrf.mxu0
      %v845 = vadd.f32 0.0, %v844
      %846 = vmatprep.mubr.f32.mxu0 0.0
      %847 = vmatmul.mubr.f32.gmra.mxu0 %v768
      %v848 = vpop.f32.mrf.mxu0
      %v849 = vadd.f32 0.0, %v848
      %v850 = vpop.f32.mrf.mxu0
      %v851 = vadd.f32 0.0, %v850
      %852 = vmatprep.mubr.f32.mxu0 0.0
      %853 = vmatmul.mubr.f32.gmra.mxu0 %v771
      %v854 = vpop.f32.mrf.mxu0
      %v855 = vadd.f32 0.0, %v854
      %v856 = vpop.f32.mrf.mxu0
      %v857 = vadd.f32 0.0, %v856
      %858 = vmatprep.mubr.f32.mxu0 0.0
      %859 = vmatmul.mubr.f32.gmra.mxu0 %v774
      %v860 = vpop.f32.mrf.mxu0
      %v861 = vadd.f32 0.0, %v860
      %v862 = vpop.f32.mrf.mxu0
      %v863 = vadd.f32 0.0, %v862
      %864 = vdwg.mxu0
      %865 = vst [vmem:[%s390] sm:$0xff] %v843
      %866 = vst [vmem:[%s390 + $0x8] sm:$0xff] %v845
      %867 = vst [vmem:[%s390 + $0x10] sm:$0xff] %v849
      %868 = vst [vmem:[%s390 + $0x18] sm:$0xff] %v851
      %869 = vst [vmem:[%s390 + $0x20] sm:$0xff] %v855
      %870 = vst [vmem:[%s390 + $0x28] sm:$0xff] %v857
      %871 = vst [vmem:[%s390 + $0x30] sm:$0xff] %v861
      %872 = vst [vmem:[%s390 + $0x38] sm:$0xff] %v863
      %s873 = smul.u32 2, %s25
      %p874 = scmp.lt.s32.totalorder %s24, 1
      %s875 = scalar_select %p874, %s24, 1
      %p876 = scmp.lt.s32.totalorder %s873, 1
      %s877 = scalar_select %p876, %s873, 1
      %s878 = smul.addr %s875, 8
      %s879 = sadd.s32 %s877, %s878
      %s880 = smul.addr %s879, 8
      %s881 = scalar_lea.vmem %s6, %s880
      %s882 = smul.u32 2, %s25
      %p883 = scmp.lt.s32.totalorder %s24, 1
      %s884 = scalar_select %p883, %s24, 1
      %p885 = scmp.lt.s32.totalorder %s882, 1
      %s886 = scalar_select %p885, %s882, 1
      %s887 = smul.addr %s884, 8
      %s888 = sadd.s32 %s886, %s887
      %s889 = smul.addr %s888, 8
      %s890 = scalar_lea.vmem %s7, %s889
      %s891 = smul.u32 2, %s25
      %p892 = scmp.lt.s32.totalorder %s24, 1
      %s893 = scalar_select %p892, %s24, 1
      %p894 = scmp.lt.s32.totalorder %s891, 1
      %s895 = scalar_select %p894, %s891, 1
      %s896 = smul.addr %s893, 8
      %s897 = sadd.s32 %s895, %s896
      %s898 = smul.addr %s897, 8
      %s899 = scalar_lea.vmem %s8, %s898
      // Predicated region
      $region45: #{trans10_forward.43} parent=43 // pred_check
        %p900 = pneg %p185
      $region46: #{trans10_forward.43} parent=43 // pred_check_branch
        %902 = sbr.rel (%p900) target = $region48
      $region47: #{trans10_forward.43} parent=43 // pred_region
        %s903 = smul.u32 2, %s25
      $region48: #{trans10_forward.43} parent=43 // pred_fallthru
        _
      // Predicated region
      $region49: #{trans10_forward.43} parent=43 // pred_check
        %p904 = pneg %p213
      $region50: #{trans10_forward.43} parent=43 // pred_check_branch
        %906 = sbr.rel (%p904) target = $region52
      $region51: #{trans10_forward.43} parent=43 // pred_region
        %s907 = smul.u32 2, %s25
      $region52: #{trans10_forward.43} parent=43 // pred_fallthru
        _
      // Predicated region
      $region53: #{trans10_forward.43} parent=43 // pred_check
        %p908 = pneg %p241
      $region54: #{trans10_forward.43} parent=43 // pred_check_branch
        %910 = sbr.rel (%p908) target = $region56
      $region55: #{trans10_forward.43} parent=43 // pred_region
        %s911 = smul.u32 2, %s25
      $region56: #{trans10_forward.43} parent=43 // pred_fallthru
        _
    $region44: #{trans10_forward.43} parent=5 // pred_fallthru
      _
    %p912 = scmp.le.s32.totalorder 2, %s15
    // Predicated region
    $region57: #{trans10_forward.43} parent=5 // pred_check
      %p913 = pneg %p912
    $region58: #{trans10_forward.43} parent=5 // pred_check_branch
      %915 = sbr.rel (%p913) target = $region60
    $region59: #{trans10_forward.43} parent=5 // pred_region
      %s916 = ssub.s32 %s15, 2
      // Predicated region
      $region61: #{trans10_forward.43} parent=59 // pred_check
        %p917 = pneg %p191
      $region62: #{trans10_forward.43} parent=59 // pred_check_branch
        %919 = sbr.rel (%p917) target = $region64
      $region63: #{trans10_forward.43} parent=59 // pred_region
        %s920 = smul.u32 2, %s27
        %p921 = scmp.lt.s32.totalorder %s26, 1
        %s922 = scalar_select %p921, %s26, 1
        %p923 = scmp.lt.s32.totalorder %s920, 1
        %s924 = scalar_select %p923, %s920, 1
        %s925 = smul.addr %s922, 8
        %s926 = sadd.s32 %s924, %s925
        %s927 = smul.addr %s926, 8
        %s928 = scalar_lea.vmem %s6, %s927
      $region64: #{trans10_forward.43} parent=59 // pred_fallthru
        _
      // Predicated region
      $region65: #{trans10_forward.43} parent=59 // pred_check
        %p929 = pneg %p219
      $region66: #{trans10_forward.43} parent=59 // pred_check_branch
        %931 = sbr.rel (%p929) target = $region68
      $region67: #{trans10_forward.43} parent=59 // pred_region
        %s932 = smul.u32 2, %s27
        %p933 = scmp.lt.s32.totalorder %s26, 1
        %s934 = scalar_select %p933, %s26, 1
        %p935 = scmp.lt.s32.totalorder %s932, 1
        %s936 = scalar_select %p935, %s932, 1
        %s937 = smul.addr %s934, 8
        %s938 = sadd.s32 %s936, %s937
        %s939 = smul.addr %s938, 8
        %s940 = scalar_lea.vmem %s7, %s939
      $region68: #{trans10_forward.43} parent=59 // pred_fallthru
        _
      // Predicated region
      $region69: #{trans10_forward.43} parent=59 // pred_check
        %p941 = pneg %p247
      $region70: #{trans10_forward.43} parent=59 // pred_check_branch
        %943 = sbr.rel (%p941) target = $region72
      $region71: #{trans10_forward.43} parent=59 // pred_region
        %s944 = smul.u32 2, %s27
        %p945 = scmp.lt.s32.totalorder %s26, 1
        %s946 = scalar_select %p945, %s26, 1
        %p947 = scmp.lt.s32.totalorder %s944, 1
        %s948 = scalar_select %p947, %s944, 1
        %s949 = smul.addr %s946, 8
        %s950 = sadd.s32 %s948, %s949
        %s951 = smul.addr %s950, 8
        %s952 = scalar_lea.vmem %s8, %s951
      $region72: #{trans10_forward.43} parent=59 // pred_fallthru
        _
    $region60: #{trans10_forward.43} parent=5 // pred_fallthru
      _
  $region6: #{trans10_forward.43} parent=0 // loop_footer
    %s19 = sadd.s32 1, %s15
  $region7: #{trans10_forward.43} parent=0 // loop_footer_branch
    %14 = sbr.rel target = $region3
  $region8: #{trans10_forward.43} parent=0 // loop_exit
    _

// kernel: trans10_forward.45
$region0: #{trans10_forward.45}
  #allocation0 [shape = 'u32[]', space=smem, size = 0x4, offset = 0x4, fixed_abs, tag = 'smem constant byte address 0x4 - core index']
  #allocation1 [shape = 'u32[144,128]{1,0:T(1,128)}', space=vmem, size = 0x12000, scoped, tag = 'internal scratch']
  %s0 = inlined_call_operand.vmem [shape: f32[2,32,256], index: 0, kind: input, shape index: {}]
  %s1 = inlined_call_operand.vmem [shape: f32[32,1], index: 1, kind: input, shape index: {}]
  %s2 = inlined_call_operand.vmem [shape: f32[32,1], index: 2, kind: input, shape index: {}]
  %s3 = inlined_call_operand.vmem [shape: f32[85,32], index: 3, kind: input, shape index: {}]
  %s4 = inlined_call_operand.vmem [shape: f32[85,32], index: 4, kind: input, shape index: {}]
  %s5 = inlined_call_operand.vmem [shape: f32[2,85,256], index: 5, kind: output, shape index: {0}]
  %s6 = inlined_call_operand.vmem [shape: f32[2,85,256], index: 6, kind: output, shape index: {1}]
  %7 = xla_tuple %s5, %s6
  %s8 = sld [smem:[#allocation0]]
  $region61: #{trans10_forward.45} parent=0
    _
  %s10 = ssub.s32 1, %s8
  %s11 = scalar_select 0, %s10, %s8
  loop: start=0, step=1, limit=4
  $region2: #{trans10_forward.45} parent=0 // loop_pre_header
    _
  $region3: #{trans10_forward.45} parent=0 // loop_header
    %s13 = sphi 0, %s17
    %p14 = scmp.ge.s32.totalorder %s13, 4
    %s20 = sphi 0, %s32
    %s21 = sphi 0, %s28
    %s22 = sphi 0, %s20
    %s23 = sphi 0, %s21
    %s24 = sphi 0, %s22
    %s25 = sphi 0, %s23
    %s37 = sphi 0, %s39
    %s40 = sphi 0, %s37
    %s41 = sphi 0, %s40
    %s57 = sphi 0, %s41
    %s61 = sphi 0, %s61
    %s63 = sphi 0, %s61
    %s64 = sphi 0, %s63
    %s78 = sphi 0, %s64
    %s82 = sphi 0, %s82
    %s84 = sphi 0, %s82
    %s85 = sphi 0, %s84
    %s99 = sphi 0, %s85
    %s103 = sphi 0, %s103
    %s105 = sphi 0, %s103
    %s106 = sphi 0, %s105
    %s120 = sphi 0, %s106
    %s124 = sphi 0, %s124
    %s126 = sphi 0, %s124
    %s127 = sphi 0, %s126
    %s141 = sphi 0, %s127
    %s149 = sphi 0, %s151
    %s152 = sphi 0, %s149
    %s153 = sphi 0, %s152
    %s169 = sphi 0, %s153
    %s177 = sphi 0, %s179
    %s180 = sphi 0, %s177
    %s181 = sphi 0, %s180
    %s197 = sphi 0, %s181
  $region4: #{trans10_forward.45} parent=0 // loop_header_branch
    %16 = sbr.rel (%p14) target = $region8
  $region5: #{trans10_forward.45} parent=0 // loop_body
    %s18 = ssub.s32 %s13, 1
    %s19 = ssub.s32 %s13, 2
    %s26 = sadd.s32 1, %s21
    %p27 = scmp.ge.s32.totalorder %s26, 1
    %s28 = scalar_select %p27, 0, %s26
    %s29 = sadd.s32 1, %s20
    %s30 = scalar_select %p27, %s29, %s20
    %p31 = scmp.ge.s32.totalorder %s30, 2
    %s32 = scalar_select %p31, 0, %s30
    %s33 = ssub.s32 %s20, %s32
    %s34 = ssub.s32 %s21, %s28
    %s35 = sor.u32 %s33, %s34
    %p36 = scmp.eq.s32.totalorder %s35, 0
    %s38 = sadd.s32 %s37, 1
    %s39 = scalar_select %p36, %s37, %s38
    %p42 = pneg %p36
    %p43 = scmp.eq.s32.totalorder %s13, 1
    %p44 = por %p42, %p43
    %p45 = scmp.ne.s32.totalorder %s37, %s40
    %p46 = scmp.eq.s32.totalorder %s13, 0
    %p47 = por %p45, %p46
    %p48 = scmp.ne.s32.totalorder %s37, %s40
    %p49 = scmp.eq.s32.totalorder %s18, 1
    %p50 = por %p48, %p49
    %p51 = scmp.ne.s32.totalorder %s40, %s41
    %p52 = scmp.eq.s32.totalorder %s18, 0
    %p53 = por %p51, %p52
    %p54 = scmp.ne.s32.totalorder %s40, %s41
    %p55 = scmp.eq.s32.totalorder %s19, 1
    %p56 = por %p54, %p55
    %p58 = scmp.ne.s32.totalorder %s41, %s57
    %p59 = scmp.eq.s32.totalorder %s19, 0
    %p60 = por %p58, %p59
    %s62 = sadd.s32 %s61, 1
    %p65 = scmp.eq.s32.totalorder %s13, 1
    %p66 = scmp.ne.s32.totalorder %s61, %s63
    %p67 = scmp.eq.s32.totalorder %s13, 0
    %p68 = por %p66, %p67
    %p69 = scmp.ne.s32.totalorder %s61, %s63
    %p70 = scmp.eq.s32.totalorder %s18, 1
    %p71 = por %p69, %p70
    %p72 = scmp.ne.s32.totalorder %s63, %s64
    %p73 = scmp.eq.s32.totalorder %s18, 0
    %p74 = por %p72, %p73
    %p75 = scmp.ne.s32.totalorder %s63, %s64
    %p76 = scmp.eq.s32.totalorder %s19, 1
    %p77 = por %p75, %p76
    %p79 = scmp.ne.s32.totalorder %s64, %s78
    %p80 = scmp.eq.s32.totalorder %s19, 0
    %p81 = por %p79, %p80
    %s83 = sadd.s32 %s82, 1
    %p86 = scmp.eq.s32.totalorder %s13, 1
    %p87 = scmp.ne.s32.totalorder %s82, %s84
    %p88 = scmp.eq.s32.totalorder %s13, 0
    %p89 = por %p87, %p88
    %p90 = scmp.ne.s32.totalorder %s82, %s84
    %p91 = scmp.eq.s32.totalorder %s18, 1
    %p92 = por %p90, %p91
    %p93 = scmp.ne.s32.totalorder %s84, %s85
    %p94 = scmp.eq.s32.totalorder %s18, 0
    %p95 = por %p93, %p94
    %p96 = scmp.ne.s32.totalorder %s84, %s85
    %p97 = scmp.eq.s32.totalorder %s19, 1
    %p98 = por %p96, %p97
    %p100 = scmp.ne.s32.totalorder %s85, %s99
    %p101 = scmp.eq.s32.totalorder %s19, 0
    %p102 = por %p100, %p101
    %s104 = sadd.s32 %s103, 1
    %p107 = scmp.eq.s32.totalorder %s13, 1
    %p108 = scmp.ne.s32.totalorder %s103, %s105
    %p109 = scmp.eq.s32.totalorder %s13, 0
    %p110 = por %p108, %p109
    %p111 = scmp.ne.s32.totalorder %s103, %s105
    %p112 = scmp.eq.s32.totalorder %s18, 1
    %p113 = por %p111, %p112
    %p114 = scmp.ne.s32.totalorder %s105, %s106
    %p115 = scmp.eq.s32.totalorder %s18, 0
    %p116 = por %p114, %p115
    %p117 = scmp.ne.s32.totalorder %s105, %s106
    %p118 = scmp.eq.s32.totalorder %s19, 1
    %p119 = por %p117, %p118
    %p121 = scmp.ne.s32.totalorder %s106, %s120
    %p122 = scmp.eq.s32.totalorder %s19, 0
    %p123 = por %p121, %p122
    %s125 = sadd.s32 %s124, 1
    %p128 = scmp.eq.s32.totalorder %s13, 1
    %p129 = scmp.ne.s32.totalorder %s124, %s126
    %p130 = scmp.eq.s32.totalorder %s13, 0
    %p131 = por %p129, %p130
    %p132 = scmp.ne.s32.totalorder %s124, %s126
    %p133 = scmp.eq.s32.totalorder %s18, 1
    %p134 = por %p132, %p133
    %p135 = scmp.ne.s32.totalorder %s126, %s127
    %p136 = scmp.eq.s32.totalorder %s18, 0
    %p137 = por %p135, %p136
    %p138 = scmp.ne.s32.totalorder %s126, %s127
    %p139 = scmp.eq.s32.totalorder %s19, 1
    %p140 = por %p138, %p139
    %p142 = scmp.ne.s32.totalorder %s127, %s141
    %p143 = scmp.eq.s32.totalorder %s19, 0
    %p144 = por %p142, %p143
    %s145 = ssub.s32 %s20, %s32
    %s146 = ssub.s32 %s21, %s28
    %s147 = sor.u32 %s145, %s146
    %p148 = scmp.eq.s32.totalorder %s147, 0
    %s150 = sadd.s32 %s149, 1
    %s151 = scalar_select %p148, %s149, %s150
    %p154 = pneg %p148
    %p155 = scmp.eq.s32.totalorder %s13, 1
    %p156 = por %p154, %p155
    %p157 = scmp.ne.s32.totalorder %s149, %s152
    %p158 = scmp.eq.s32.totalorder %s13, 0
    %p159 = por %p157, %p158
    %p160 = scmp.ne.s32.totalorder %s149, %s152
    %p161 = scmp.eq.s32.totalorder %s18, 1
    %p162 = por %p160, %p161
    %p163 = scmp.ne.s32.totalorder %s152, %s153
    %p164 = scmp.eq.s32.totalorder %s18, 0
    %p165 = por %p163, %p164
    %p166 = scmp.ne.s32.totalorder %s152, %s153
    %p167 = scmp.eq.s32.totalorder %s19, 1
    %p168 = por %p166, %p167
    %p170 = scmp.ne.s32.totalorder %s153, %s169
    %p171 = scmp.eq.s32.totalorder %s19, 0
    %p172 = por %p170, %p171
    %s173 = ssub.s32 %s20, %s32
    %s174 = ssub.s32 %s21, %s28
    %s175 = sor.u32 %s173, %s174
    %p176 = scmp.eq.s32.totalorder %s175, 0
    %s178 = sadd.s32 %s177, 1
    %s179 = scalar_select %p176, %s177, %s178
    %p182 = pneg %p176
    %p183 = scmp.eq.s32.totalorder %s13, 1
    %p184 = por %p182, %p183
    %p185 = scmp.ne.s32.totalorder %s177, %s180
    %p186 = scmp.eq.s32.totalorder %s13, 0
    %p187 = por %p185, %p186
    %p188 = scmp.ne.s32.totalorder %s177, %s180
    %p189 = scmp.eq.s32.totalorder %s18, 1
    %p190 = por %p188, %p189
    %p191 = scmp.ne.s32.totalorder %s180, %s181
    %p192 = scmp.eq.s32.totalorder %s18, 0
    %p193 = por %p191, %p192
    %p194 = scmp.ne.s32.totalorder %s180, %s181
    %p195 = scmp.eq.s32.totalorder %s19, 1
    %p196 = por %p194, %p195
    %p198 = scmp.ne.s32.totalorder %s181, %s197
    %p199 = scmp.eq.s32.totalorder %s19, 0
    %p200 = por %p198, %p199
    %p201 = scmp.le.s32.totalorder 1, %s13
    %p202 = scmp.lt.s32.totalorder %s13, 3
    %p203 = pnand %p201, %p202
    %p204 = pneg %p203
    // Predicated region
    $region9: #{trans10_forward.45} parent=5 // pred_check
      _
    $region10: #{trans10_forward.45} parent=5 // pred_check_branch
      %206 = sbr.rel (%p203) target = $region12
    $region11: #{trans10_forward.45} parent=5 // pred_region
      %s207 = ssub.s32 %s13, 1
      // Predicated region
      $region13: #{trans10_forward.45} parent=11 // pred_check
        %p208 = pneg %p74
      $region14: #{trans10_forward.45} parent=11 // pred_check_branch
        %210 = sbr.rel (%p208) target = $region16
      $region15: #{trans10_forward.45} parent=11 // pred_region
        _
      $region16: #{trans10_forward.45} parent=11 // pred_fallthru
        _
      // Predicated region
      $region17: #{trans10_forward.45} parent=11 // pred_check
        %p211 = pneg %p95
      $region18: #{trans10_forward.45} parent=11 // pred_check_branch
        %213 = sbr.rel (%p211) target = $region20
      $region19: #{trans10_forward.45} parent=11 // pred_region
        _
      $region20: #{trans10_forward.45} parent=11 // pred_fallthru
        _
      // Predicated region
      $region21: #{trans10_forward.45} parent=11 // pred_check
        %p214 = pneg %p116
      $region22: #{trans10_forward.45} parent=11 // pred_check_branch
        %216 = sbr.rel (%p214) target = $region24
      $region23: #{trans10_forward.45} parent=11 // pred_region
        _
      $region24: #{trans10_forward.45} parent=11 // pred_fallthru
        _
      // Predicated region
      $region25: #{trans10_forward.45} parent=11 // pred_check
        %p217 = pneg %p137
      $region26: #{trans10_forward.45} parent=11 // pred_check_branch
        %219 = sbr.rel (%p217) target = $region28
      $region27: #{trans10_forward.45} parent=11 // pred_region
        _
      $region28: #{trans10_forward.45} parent=11 // pred_fallthru
        _
    $region12: #{trans10_forward.45} parent=5 // pred_fallthru
      _
    %p220 = scmp.lt.s32.totalorder %s13, 2
    // Predicated region
    $region29: #{trans10_forward.45} parent=5 // pred_check
      %p221 = pneg %p220
    $region30: #{trans10_forward.45} parent=5 // pred_check_branch
      %223 = sbr.rel (%p221) target = $region32
    $region31: #{trans10_forward.45} parent=5 // pred_region
      // Predicated region
      $region33: #{trans10_forward.45} parent=31 // pred_check
        %p224 = pneg %p47
      $region34: #{trans10_forward.45} parent=31 // pred_check_branch
        %226 = sbr.rel (%p224) target = $region36
      $region35: #{trans10_forward.45} parent=31 // pred_region
        %s227 = smul.u32 2, %s21
        %p228 = scmp.lt.s32.totalorder %s20, 1
        %s229 = scalar_select %p228, %s20, 1
        %p230 = scmp.lt.s32.totalorder %s227, 1
        %s231 = scalar_select %p230, %s227, 1
        %s232 = smul.addr %s229, 8
        %s233 = sadd.s32 %s231, %s232
        %s234 = smul.addr %s233, 8
        %s235 = scalar_lea.vmem %s0, %s234
        %s236 = smul.u32 2, %s21
      $region36: #{trans10_forward.45} parent=31 // pred_fallthru
        _
    $region32: #{trans10_forward.45} parent=5 // pred_fallthru
      _
    %p237 = scmp.le.s32.totalorder 1, %s13
    %p238 = scmp.lt.s32.totalorder %s13, 3
    %p239 = pnand %p237, %p238
    %p240 = pneg %p239
    // Predicated region
    $region37: #{trans10_forward.45} parent=5 // pred_check
      _
    $region38: #{trans10_forward.45} parent=5 // pred_check_branch
      %242 = sbr.rel (%p239) target = $region40
    $region39: #{trans10_forward.45} parent=5 // pred_region
      %s243 = ssub.s32 %s13, 1
      %s244 = smul.u32 2, %s23
      %p245 = scmp.lt.s32.totalorder %s22, 1
      %s246 = scalar_select %p245, %s22, 1
      %p247 = scmp.lt.s32.totalorder %s244, 1
      %s248 = scalar_select %p247, %s244, 1
      %s249 = smul.addr %s246, 8
      %s250 = sadd.s32 %s248, %s249
      %s251 = smul.addr %s250, 8
      %s252 = scalar_lea.vmem %s0, %s251
      %p253 = pneg %p53
      %p254 = pneg %p50
      %p255 = pneg %p74
      %p256 = pneg %p71
      %p257 = pneg %p95
      %p258 = pneg %p92
      %p259 = pneg %p116
      %p260 = pneg %p113
      %p261 = pneg %p137
      %p262 = pneg %p134
      %p263 = pneg %p165
      %p264 = pneg %p162
      %s265 = smul.u32 2, %s23
      %p266 = scmp.lt.s32.totalorder %s22, 1
      %s267 = scalar_select %p266, %s22, 1
      %p268 = scmp.lt.s32.totalorder %s265, 1
      %s269 = scalar_select %p268, %s265, 1
      %s270 = smul.addr %s267, 22
      %s271 = sadd.s32 %s269, %s270
      %s272 = smul.addr %s271, 8
      %s273 = scalar_lea.vmem %s5, %s272
      %p274 = pneg %p193
      %p275 = pneg %p190
      %s276 = smul.u32 2, %s23
      %p277 = scmp.lt.s32.totalorder %s22, 1
      %s278 = scalar_select %p277, %s22, 1
      %p279 = scmp.lt.s32.totalorder %s276, 1
      %s280 = scalar_select %p279, %s276, 1
      %s281 = smul.addr %s278, 22
      %s282 = sadd.s32 %s280, %s281
      %s283 = smul.addr %s282, 8
      %s284 = scalar_lea.vmem %s6, %s283
      %s285 = smul.u32 2, %s23
      %p286 = scmp.lt.s32.totalorder %s22, 1
      %s287 = scalar_select %p286, %s22, 1
      %p288 = scmp.lt.s32.totalorder %s285, 1
      %s289 = scalar_select %p288, %s285, 1
      %s290 = smul.addr %s287, 8
      %s291 = sadd.s32 %s289, %s290
      %s292 = smul.addr %s291, 8
      %s293 = scalar_lea.vmem %s0, %s292
      %s294 = smul.u32 2, %s23
      %s295 = smul.u32 2, %s23
      %p296 = scmp.lt.s32.totalorder %s22, 1
      %s297 = scalar_select %p296, %s22, 1
      %p298 = scmp.lt.s32.totalorder %s295, 1
      %s299 = scalar_select %p298, %s295, 1
      %s300 = smul.addr %s297, 22
      %s301 = sadd.s32 %s299, %s300
      %s302 = smul.addr %s301, 8
      %s303 = scalar_lea.vmem %s5, %s302
      %s304 = smul.u32 2, %s23
      %s305 = smul.u32 2, %s23
      %p306 = scmp.lt.s32.totalorder %s22, 1
      %s307 = scalar_select %p306, %s22, 1
      %p308 = scmp.lt.s32.totalorder %s305, 1
      %s309 = scalar_select %p308, %s305, 1
      %s310 = smul.addr %s307, 22
      %s311 = sadd.s32 %s309, %s310
      %s312 = smul.addr %s311, 8
      %s313 = scalar_lea.vmem %s6, %s312
      %s314 = smul.u32 2, %s23
      %v315 = vld [vmem:[%s293] sm:$0xff]
      %v316 = vld [vmem:[%s293 + $0x8] sm:$0xff]
      %v317 = vld [vmem:[%s293 + $0x10] sm:$0xff]
      %v318 = vld [vmem:[%s293 + $0x18] sm:$0xff]
      %v319 = vld [vmem:[%s293 + $0x20] sm:$0xff]
      %v320 = vld [vmem:[%s293 + $0x28] sm:$0xff]
      %v321 = vld [vmem:[%s293 + $0x30] sm:$0xff]
      %v322 = vld [vmem:[%s293 + $0x38] sm:$0xff]
      %v323 = vadd.f32 %v315, %v317
      %v324 = vadd.f32 %v323, %v319
      %v325 = vadd.f32 %v324, %v321
      %v326 = vrot.slane %v325, 4
      %v327 = vadd.f32 %v325, %v326
      %v328 = vrot.slane %v327, 2
      %v329 = vadd.f32 %v327, %v328
      %v330 = vrot.slane %v329, 1
      %v331 = vadd.f32 %v329, %v330
      %v332 = vadd.f32 %v316, %v318
      %v333 = vadd.f32 %v332, %v320
      %v334 = vadd.f32 %v333, %v322
      %v335 = vrot.slane %v334, 4
      %v336 = vadd.f32 %v334, %v335
      %v337 = vrot.slane %v336, 2
      %v338 = vadd.f32 %v336, %v337
      %v339 = vrot.slane %v338, 1
      %v340 = vadd.f32 %v338, %v339
      %v341 = vrcp.pop 32.0
      %v342 = vmul.f32 %v331, %v341
      %v343 = vmul.f32 %v340, %v341
      %v344 = vsub.f32 %v315, %v342
      %v345 = vsub.f32 %v316, %v343
      %v346 = vsub.f32 %v317, %v342
      %v347 = vsub.f32 %v318, %v343
      %v348 = vsub.f32 %v319, %v342
      %v349 = vsub.f32 %v320, %v343
      %v350 = vsub.f32 %v321, %v342
      %v351 = vsub.f32 %v322, %v343
      %v352 = vmul.f32 %v344, %v344
      %v353 = vmul.f32 %v345, %v345
      %v354 = vmul.f32 %v346, %v346
      %v355 = vmul.f32 %v347, %v347
      %v356 = vmul.f32 %v348, %v348
      %v357 = vmul.f32 %v349, %v349
      %v358 = vmul.f32 %v350, %v350
      %v359 = vmul.f32 %v351, %v351
      %v360 = vadd.f32 %v352, %v354
      %v361 = vadd.f32 %v360, %v356
      %v362 = vadd.f32 %v361, %v358
      %v363 = vrot.slane %v362, 4
      %v364 = vadd.f32 %v362, %v363
      %v365 = vrot.slane %v364, 2
      %v366 = vadd.f32 %v364, %v365
      %v367 = vrot.slane %v366, 1
      %v368 = vadd.f32 %v366, %v367
      %v369 = vadd.f32 %v353, %v355
      %v370 = vadd.f32 %v369, %v357
      %v371 = vadd.f32 %v370, %v359
      %v372 = vrot.slane %v371, 4
      %v373 = vadd.f32 %v371, %v372
      %v374 = vrot.slane %v373, 2
      %v375 = vadd.f32 %v373, %v374
      %v376 = vrot.slane %v375, 1
      %v377 = vadd.f32 %v375, %v376
      %v378 = vmul.f32 %v368, %v341
      %v379 = vmul.f32 %v377, %v341
      %v380 = vadd.f32 %v378, 1e-05
      %v381 = vadd.f32 %v379, 1e-05
      %v382 = vrsqrt.pop %v380
      %v383 = vrsqrt.pop %v381
      %v384 = vmul.f32 %v344, %v382
      %v385 = vmul.f32 %v345, %v383
      %v386 = vmul.f32 %v346, %v382
      %v387 = vmul.f32 %v347, %v383
      %v388 = vmul.f32 %v348, %v382
      %v389 = vmul.f32 %v349, %v383
      %v390 = vmul.f32 %v350, %v382
      %v391 = vmul.f32 %v351, %v383
      %v392 = vld [vmem:[%s1] sm:$0xff]
      %v393 = vld [vmem:[%s1 + $0x8] sm:$0xff]
      %v394 = vld [vmem:[%s1 + $0x10] sm:$0xff]
      %v395 = vld [vmem:[%s1 + $0x18] sm:$0xff]
      %397 = vset.pattern.permute.xlu0 0
      %398 = vperm.xlu0 %397, %v392
      %v399 = vpop.permute.xlu0 %398
      %402 = vset.pattern.permute.xlu0 0
      %403 = vperm.xlu0 %402, %v393
      %v404 = vpop.permute.xlu0 %403
      %407 = vset.pattern.permute.xlu0 0
      %408 = vperm.xlu0 %407, %v394
      %v409 = vpop.permute.xlu0 %408
      %412 = vset.pattern.permute.xlu0 0
      %413 = vperm.xlu0 %412, %v395
      %v414 = vpop.permute.xlu0 %413
      %v416 = vmul.f32 %v384, %v399
      %v417 = vmul.f32 %v385, %v399
      %v418 = vmul.f32 %v386, %v404
      %v419 = vmul.f32 %v387, %v404
      %v420 = vmul.f32 %v388, %v409
      %v421 = vmul.f32 %v389, %v409
      %v422 = vmul.f32 %v390, %v414
      %v423 = vmul.f32 %v391, %v414
      %v424 = vld [vmem:[%s2] sm:$0xff]
      %v425 = vld [vmem:[%s2 + $0x8] sm:$0xff]
      %v426 = vld [vmem:[%s2 + $0x10] sm:$0xff]
      %v427 = vld [vmem:[%s2 + $0x18] sm:$0xff]
      %429 = vset.pattern.permute.xlu0 0
      %430 = vperm.xlu0 %429, %v424
      %v431 = vpop.permute.xlu0 %430
      %434 = vset.pattern.permute.xlu0 0
      %435 = vperm.xlu0 %434, %v425
      %v436 = vpop.permute.xlu0 %435
      %439 = vset.pattern.permute.xlu0 0
      %440 = vperm.xlu0 %439, %v426
      %v441 = vpop.permute.xlu0 %440
      %444 = vset.pattern.permute.xlu0 0
      %445 = vperm.xlu0 %444, %v427
      %v446 = vpop.permute.xlu0 %445
      %v448 = vadd.f32 %v416, %v431
      %v449 = vadd.f32 %v417, %v431
      %v450 = vadd.f32 %v418, %v436
      %v451 = vadd.f32 %v419, %v436
      %v452 = vadd.f32 %v420, %v441
      %v453 = vadd.f32 %v421, %v441
      %v454 = vadd.f32 %v422, %v446
      %v455 = vadd.f32 %v423, %v446
      %v456 = vld [vmem:[%s3] sm:$0xff]
      %v457 = vld [vmem:[%s3 + $0x8] sm:$0xff]
      %v458 = vld [vmem:[%s3 + $0x10] sm:$0xff]
      %v459 = vld [vmem:[%s3 + $0x18] sm:$0xff]
      %v460 = vld [vmem:[%s3 + $0x20] sm:$0xff]
      %v461 = vld [vmem:[%s3 + $0x28] sm:$0xff]
      %v462 = vld [vmem:[%s3 + $0x30] sm:$0xff]
      %v463 = vld [vmem:[%s3 + $0x38] sm:$0xff]
      %v464 = vld [vmem:[%s3 + $0x40] sm:$0xff]
      %v465 = vld [vmem:[%s3 + $0x48] sm:$0xff]
      %v466 = vld [vmem:[%s3 + $0x50] sm:$0x1f]
      %vm467 = vcmask 261120
      %v469 = vsel %vm467, %v456, 0
      %v472 = vsel %vm467, %v457, 0
      %v475 = vsel %vm467, %v458, 0
      %v478 = vsel %vm467, %v459, 0
      %v481 = vsel %vm467, %v460, 0
      %v484 = vsel %vm467, %v461, 0
      %v487 = vsel %vm467, %v462, 0
      %v490 = vsel %vm467, %v463, 0
      %v493 = vsel %vm467, %v464, 0
      %v496 = vsel %vm467, %v465, 0
      %v499 = vsel %vm467, %v466, 0
      %501 = vmatprep.subr.mxu0 0.0
      %502 = vmatpush1.msra.mxu0 0.0
      %503 = vmatprep.subr.mxu0 0.0
      %504 = vmatpush1.msra.mxu0 0.0
      %505 = vmatprep.subr.mxu0 0.0
      %506 = vmatpush1.msra.mxu0 0.0
      %507 = vmatprep.subr.mxu0 0.0
      %508 = vmatpush1.msra.mxu0 0.0
      %509 = vmatprep.subr.mxu0 0.0
      %510 = vmatpush1.msra.mxu0 0.0
      %511 = vmatprep.subr.mxu0 0.0
      %512 = vmatpush1.msra.mxu0 0.0
      %513 = vmatprep.subr.mxu0 0.0
      %514 = vmatpush1.msra.mxu0 0.0
      %515 = vmatprep.subr.mxu0 0.0
      %516 = vmatpush1.msra.mxu0 0.0
      %517 = vmatprep.subr.mxu0 0.0
      %518 = vmatpush1.msra.mxu0 0.0
      %519 = vmatprep.subr.mxu0 0.0
      %520 = vmatpush1.msra.mxu0 0.0
      %521 = vmatprep.subr.mxu0 0.0
      %522 = vmatpush1.msra.mxu0 0.0
      %523 = vmatprep.subr.mxu0 0.0
      %524 = vmatpush1.msra.mxu0 0.0
      %525 = vmatprep.subr.mxu0 %v455
      %526 = vmatpush1.msra.mxu0 %v454
      %527 = vmatprep.subr.mxu0 %v453
      %528 = vmatpush1.msra.mxu0 %v452
      %529 = vmatprep.subr.mxu0 %v451
      %530 = vmatpush1.msra.mxu0 %v450
      %531 = vmatprep.subr.mxu0 %v449
      %532 = vmatpush1.msra.mxu0 %v448
      %533 = vmatprep.subr.mxu0 0.0
      %534 = vmatpush2.msra.mxu0 0.0
      %535 = vmatprep.subr.mxu0 0.0
      %536 = vmatpush2.msra.mxu0 0.0
      %537 = vmatprep.subr.mxu0 0.0
      %538 = vmatpush2.msra.mxu0 0.0
      %539 = vmatprep.subr.mxu0 0.0
      %540 = vmatpush2.msra.mxu0 0.0
      %541 = vmatprep.subr.mxu0 0.0
      %542 = vmatpush2.msra.mxu0 0.0
      %543 = vmatprep.subr.mxu0 0.0
      %544 = vmatpush2.msra.mxu0 0.0
      %545 = vmatprep.subr.mxu0 0.0
      %546 = vmatpush2.msra.mxu0 0.0
      %547 = vmatprep.subr.mxu0 0.0
      %548 = vmatpush2.msra.mxu0 0.0
      %549 = vmatprep.subr.mxu0 0.0
      %550 = vmatpush2.msra.mxu0 0.0
      %551 = vmatprep.subr.mxu0 0.0
      %552 = vmatpush2.msra.mxu0 0.0
      %553 = vmatprep.subr.mxu0 0.0
      %554 = vmatpush2.msra.mxu0 0.0
      %555 = vmatprep.subr.mxu0 0.0
      %556 = vmatpush2.msra.mxu0 0.0
      %557 = vmatprep.subr.mxu0 0.0
      %558 = vmatpush2.msra.mxu0 0.0
      %559 = vmatprep.subr.mxu0 0.0
      %560 = vmatpush2.msra.mxu0 0.0
      %561 = vmatprep.subr.mxu0 0.0
      %562 = vmatpush2.msra.mxu0 0.0
      %563 = vmatprep.subr.mxu0 0.0
      %564 = vmatpush2.msra.mxu0 0.0
      %565 = vmatprep.mubr.f32.mxu0 0.0
      %566 = vmatmul.mubr.f32.gmra.mxu0 %v469
      %v567 = vpop.f32.mrf.mxu0
      %v568 = vadd.f32 0.0, %v567
      %v569 = vpop.f32.mrf.mxu0
      %v570 = vadd.f32 0.0, %v569
      %571 = vmatprep.mubr.f32.mxu0 0.0
      %572 = vmatmul.mubr.f32.gmra.mxu0 %v472
      %v573 = vpop.f32.mrf.mxu0
      %v574 = vadd.f32 0.0, %v573
      %v575 = vpop.f32.mrf.mxu0
      %v576 = vadd.f32 0.0, %v575
      %577 = vmatprep.mubr.f32.mxu0 0.0
      %578 = vmatmul.mubr.f32.gmra.mxu0 %v475
      %v579 = vpop.f32.mrf.mxu0
      %v580 = vadd.f32 0.0, %v579
      %v581 = vpop.f32.mrf.mxu0
      %v582 = vadd.f32 0.0, %v581
      %583 = vmatprep.mubr.f32.mxu0 0.0
      %584 = vmatmul.mubr.f32.gmra.mxu0 %v478
      %v585 = vpop.f32.mrf.mxu0
      %v586 = vadd.f32 0.0, %v585
      %v587 = vpop.f32.mrf.mxu0
      %v588 = vadd.f32 0.0, %v587
      %589 = vmatprep.mubr.f32.mxu0 0.0
      %590 = vmatmul.mubr.f32.gmra.mxu0 %v481
      %v591 = vpop.f32.mrf.mxu0
      %v592 = vadd.f32 0.0, %v591
      %v593 = vpop.f32.mrf.mxu0
      %v594 = vadd.f32 0.0, %v593
      %595 = vmatprep.mubr.f32.mxu0 0.0
      %596 = vmatmul.mubr.f32.gmra.mxu0 %v484
      %v597 = vpop.f32.mrf.mxu0
      %v598 = vadd.f32 0.0, %v597
      %v599 = vpop.f32.mrf.mxu0
      %v600 = vadd.f32 0.0, %v599
      %601 = vmatprep.mubr.f32.mxu0 0.0
      %602 = vmatmul.mubr.f32.gmra.mxu0 %v487
      %v603 = vpop.f32.mrf.mxu0
      %v604 = vadd.f32 0.0, %v603
      %v605 = vpop.f32.mrf.mxu0
      %v606 = vadd.f32 0.0, %v605
      %607 = vmatprep.mubr.f32.mxu0 0.0
      %608 = vmatmul.mubr.f32.gmra.mxu0 %v490
      %v609 = vpop.f32.mrf.mxu0
      %v610 = vadd.f32 0.0, %v609
      %v611 = vpop.f32.mrf.mxu0
      %v612 = vadd.f32 0.0, %v611
      %613 = vmatprep.mubr.f32.mxu0 0.0
      %614 = vmatmul.mubr.f32.gmra.mxu0 %v493
      %v615 = vpop.f32.mrf.mxu0
      %v616 = vadd.f32 0.0, %v615
      %v617 = vpop.f32.mrf.mxu0
      %v618 = vadd.f32 0.0, %v617
      %619 = vmatprep.mubr.f32.mxu0 0.0
      %620 = vmatmul.mubr.f32.gmra.mxu0 %v496
      %v621 = vpop.f32.mrf.mxu0
      %v622 = vadd.f32 0.0, %v621
      %v623 = vpop.f32.mrf.mxu0
      %v624 = vadd.f32 0.0, %v623
      %625 = vmatprep.mubr.f32.mxu0 0.0
      %626 = vmatmul.mubr.f32.gmra.mxu0 %v499
      %v627 = vpop.f32.mrf.mxu0
      %v628 = vadd.f32 0.0, %v627
      %v629 = vpop.f32.mrf.mxu0
      %v630 = vadd.f32 0.0, %v629
      %631 = vdwg.mxu0
      %632 = vst [vmem:[%s303] sm:$0xff] %v568
      %633 = vst [vmem:[%s303 + $0x8] sm:$0xff] %v570
      %634 = vst [vmem:[%s303 + $0x10] sm:$0xff] %v574
      %635 = vst [vmem:[%s303 + $0x18] sm:$0xff] %v576
      %636 = vst [vmem:[%s303 + $0x20] sm:$0xff] %v580
      %637 = vst [vmem:[%s303 + $0x28] sm:$0xff] %v582
      %638 = vst [vmem:[%s303 + $0x30] sm:$0xff] %v586
      %639 = vst [vmem:[%s303 + $0x38] sm:$0xff] %v588
      %640 = vst [vmem:[%s303 + $0x40] sm:$0xff] %v592
      %641 = vst [vmem:[%s303 + $0x48] sm:$0xff] %v594
      %642 = vst [vmem:[%s303 + $0x50] sm:$0xff] %v598
      %643 = vst [vmem:[%s303 + $0x58] sm:$0xff] %v600
      %644 = vst [vmem:[%s303 + $0x60] sm:$0xff] %v604
      %645 = vst [vmem:[%s303 + $0x68] sm:$0xff] %v606
      %646 = vst [vmem:[%s303 + $0x70] sm:$0xff] %v610
      %647 = vst [vmem:[%s303 + $0x78] sm:$0xff] %v612
      %648 = vst [vmem:[%s303 + $0x80] sm:$0xff] %v616
      %649 = vst [vmem:[%s303 + $0x88] sm:$0xff] %v618
      %650 = vst [vmem:[%s303 + $0x90] sm:$0xff] %v622
      %651 = vst [vmem:[%s303 + $0x98] sm:$0xff] %v624
      %652 = vst [vmem:[%s303 + $0xa0] sm:$0x1f] %v628
      %653 = vst [vmem:[%s303 + $0xa8] sm:$0x1f] %v630
      %v654 = vld [vmem:[%s4] sm:$0xff]
      %v655 = vld [vmem:[%s4 + $0x8] sm:$0xff]
      %v656 = vld [vmem:[%s4 + $0x10] sm:$0xff]
      %v657 = vld [vmem:[%s4 + $0x18] sm:$0xff]
      %v658 = vld [vmem:[%s4 + $0x20] sm:$0xff]
      %v659 = vld [vmem:[%s4 + $0x28] sm:$0xff]
      %v660 = vld [vmem:[%s4 + $0x30] sm:$0xff]
      %v661 = vld [vmem:[%s4 + $0x38] sm:$0xff]
      %v662 = vld [vmem:[%s4 + $0x40] sm:$0xff]
      %v663 = vld [vmem:[%s4 + $0x48] sm:$0xff]
      %v664 = vld [vmem:[%s4 + $0x50] sm:$0x1f]
      %v666 = vsel %vm467, %v654, 0
      %v669 = vsel %vm467, %v655, 0
      %v672 = vsel %vm467, %v656, 0
      %v675 = vsel %vm467, %v657, 0
      %v678 = vsel %vm467, %v658, 0
      %v681 = vsel %vm467, %v659, 0
      %v684 = vsel %vm467, %v660, 0
      %v687 = vsel %vm467, %v661, 0
      %v690 = vsel %vm467, %v662, 0
      %v693 = vsel %vm467, %v663, 0
      %v696 = vsel %vm467, %v664, 0
      %698 = vmatprep.subr.mxu0 0.0
      %699 = vmatpush1.msra.mxu0 0.0
      %700 = vmatprep.subr.mxu0 0.0
      %701 = vmatpush1.msra.mxu0 0.0
      %702 = vmatprep.subr.mxu0 0.0
      %703 = vmatpush1.msra.mxu0 0.0
      %704 = vmatprep.subr.mxu0 0.0
      %705 = vmatpush1.msra.mxu0 0.0
      %706 = vmatprep.subr.mxu0 0.0
      %707 = vmatpush1.msra.mxu0 0.0
      %708 = vmatprep.subr.mxu0 0.0
      %709 = vmatpush1.msra.mxu0 0.0
      %710 = vmatprep.subr.mxu0 0.0
      %711 = vmatpush1.msra.mxu0 0.0
      %712 = vmatprep.subr.mxu0 0.0
      %713 = vmatpush1.msra.mxu0 0.0
      %714 = vmatprep.subr.mxu0 0.0
      %715 = vmatpush1.msra.mxu0 0.0
      %716 = vmatprep.subr.mxu0 0.0
      %717 = vmatpush1.msra.mxu0 0.0
      %718 = vmatprep.subr.mxu0 0.0
      %719 = vmatpush1.msra.mxu0 0.0
      %720 = vmatprep.subr.mxu0 0.0
      %721 = vmatpush1.msra.mxu0 0.0
      %722 = vmatprep.subr.mxu0 %v455
      %723 = vmatpush1.msra.mxu0 %v454
      %724 = vmatprep.subr.mxu0 %v453
      %725 = vmatpush1.msra.mxu0 %v452
      %726 = vmatprep.subr.mxu0 %v451
      %727 = vmatpush1.msra.mxu0 %v450
      %728 = vmatprep.subr.mxu0 %v449
      %729 = vmatpush1.msra.mxu0 %v448
      %730 = vmatprep.subr.mxu0 0.0
      %731 = vmatpush2.msra.mxu0 0.0
      %732 = vmatprep.subr.mxu0 0.0
      %733 = vmatpush2.msra.mxu0 0.0
      %734 = vmatprep.subr.mxu0 0.0
      %735 = vmatpush2.msra.mxu0 0.0
      %736 = vmatprep.subr.mxu0 0.0
      %737 = vmatpush2.msra.mxu0 0.0
      %738 = vmatprep.subr.mxu0 0.0
      %739 = vmatpush2.msra.mxu0 0.0
      %740 = vmatprep.subr.mxu0 0.0
      %741 = vmatpush2.msra.mxu0 0.0
      %742 = vmatprep.subr.mxu0 0.0
      %743 = vmatpush2.msra.mxu0 0.0
      %744 = vmatprep.subr.mxu0 0.0
      %745 = vmatpush2.msra.mxu0 0.0
      %746 = vmatprep.subr.mxu0 0.0
      %747 = vmatpush2.msra.mxu0 0.0
      %748 = vmatprep.subr.mxu0 0.0
      %749 = vmatpush2.msra.mxu0 0.0
      %750 = vmatprep.subr.mxu0 0.0
      %751 = vmatpush2.msra.mxu0 0.0
      %752 = vmatprep.subr.mxu0 0.0
      %753 = vmatpush2.msra.mxu0 0.0
      %754 = vmatprep.subr.mxu0 0.0
      %755 = vmatpush2.msra.mxu0 0.0
      %756 = vmatprep.subr.mxu0 0.0
      %757 = vmatpush2.msra.mxu0 0.0
      %758 = vmatprep.subr.mxu0 0.0
      %759 = vmatpush2.msra.mxu0 0.0
      %760 = vmatprep.subr.mxu0 0.0
      %761 = vmatpush2.msra.mxu0 0.0
      %762 = vmatprep.mubr.f32.mxu0 0.0
      %763 = vmatmul.mubr.f32.gmra.mxu0 %v666
      %v764 = vpop.f32.mrf.mxu0
      %v765 = vadd.f32 0.0, %v764
      %v766 = vpop.f32.mrf.mxu0
      %v767 = vadd.f32 0.0, %v766
      %768 = vmatprep.mubr.f32.mxu0 0.0
      %769 = vmatmul.mubr.f32.gmra.mxu0 %v669
      %v770 = vpop.f32.mrf.mxu0
      %v771 = vadd.f32 0.0, %v770
      %v772 = vpop.f32.mrf.mxu0
      %v773 = vadd.f32 0.0, %v772
      %774 = vmatprep.mubr.f32.mxu0 0.0
      %775 = vmatmul.mubr.f32.gmra.mxu0 %v672
      %v776 = vpop.f32.mrf.mxu0
      %v777 = vadd.f32 0.0, %v776
      %v778 = vpop.f32.mrf.mxu0
      %v779 = vadd.f32 0.0, %v778
      %780 = vmatprep.mubr.f32.mxu0 0.0
      %781 = vmatmul.mubr.f32.gmra.mxu0 %v675
      %v782 = vpop.f32.mrf.mxu0
      %v783 = vadd.f32 0.0, %v782
      %v784 = vpop.f32.mrf.mxu0
      %v785 = vadd.f32 0.0, %v784
      %786 = vmatprep.mubr.f32.mxu0 0.0
      %787 = vmatmul.mubr.f32.gmra.mxu0 %v678
      %v788 = vpop.f32.mrf.mxu0
      %v789 = vadd.f32 0.0, %v788
      %v790 = vpop.f32.mrf.mxu0
      %v791 = vadd.f32 0.0, %v790
      %792 = vmatprep.mubr.f32.mxu0 0.0
      %793 = vmatmul.mubr.f32.gmra.mxu0 %v681
      %v794 = vpop.f32.mrf.mxu0
      %v795 = vadd.f32 0.0, %v794
      %v796 = vpop.f32.mrf.mxu0
      %v797 = vadd.f32 0.0, %v796
      %798 = vmatprep.mubr.f32.mxu0 0.0
      %799 = vmatmul.mubr.f32.gmra.mxu0 %v684
      %v800 = vpop.f32.mrf.mxu0
      %v801 = vadd.f32 0.0, %v800
      %v802 = vpop.f32.mrf.mxu0
      %v803 = vadd.f32 0.0, %v802
      %804 = vmatprep.mubr.f32.mxu0 0.0
      %805 = vmatmul.mubr.f32.gmra.mxu0 %v687
      %v806 = vpop.f32.mrf.mxu0
      %v807 = vadd.f32 0.0, %v806
      %v808 = vpop.f32.mrf.mxu0
      %v809 = vadd.f32 0.0, %v808
      %810 = vmatprep.mubr.f32.mxu0 0.0
      %811 = vmatmul.mubr.f32.gmra.mxu0 %v690
      %v812 = vpop.f32.mrf.mxu0
      %v813 = vadd.f32 0.0, %v812
      %v814 = vpop.f32.mrf.mxu0
      %v815 = vadd.f32 0.0, %v814
      %816 = vmatprep.mubr.f32.mxu0 0.0
      %817 = vmatmul.mubr.f32.gmra.mxu0 %v693
      %v818 = vpop.f32.mrf.mxu0
      %v819 = vadd.f32 0.0, %v818
      %v820 = vpop.f32.mrf.mxu0
      %v821 = vadd.f32 0.0, %v820
      %822 = vmatprep.mubr.f32.mxu0 0.0
      %823 = vmatmul.mubr.f32.gmra.mxu0 %v696
      %v824 = vpop.f32.mrf.mxu0
      %v825 = vadd.f32 0.0, %v824
      %v826 = vpop.f32.mrf.mxu0
      %v827 = vadd.f32 0.0, %v826
      %828 = vdwg.mxu0
      %829 = vst [vmem:[%s313] sm:$0xff] %v765
      %830 = vst [vmem:[%s313 + $0x8] sm:$0xff] %v767
      %831 = vst [vmem:[%s313 + $0x10] sm:$0xff] %v771
      %832 = vst [vmem:[%s313 + $0x18] sm:$0xff] %v773
      %833 = vst [vmem:[%s313 + $0x20] sm:$0xff] %v777
      %834 = vst [vmem:[%s313 + $0x28] sm:$0xff] %v779
      %835 = vst [vmem:[%s313 + $0x30] sm:$0xff] %v783
      %836 = vst [vmem:[%s313 + $0x38] sm:$0xff] %v785
      %837 = vst [vmem:[%s313 + $0x40] sm:$0xff] %v789
      %838 = vst [vmem:[%s313 + $0x48] sm:$0xff] %v791
      %839 = vst [vmem:[%s313 + $0x50] sm:$0xff] %v795
      %840 = vst [vmem:[%s313 + $0x58] sm:$0xff] %v797
      %841 = vst [vmem:[%s313 + $0x60] sm:$0xff] %v801
      %842 = vst [vmem:[%s313 + $0x68] sm:$0xff] %v803
      %843 = vst [vmem:[%s313 + $0x70] sm:$0xff] %v807
      %844 = vst [vmem:[%s313 + $0x78] sm:$0xff] %v809
      %845 = vst [vmem:[%s313 + $0x80] sm:$0xff] %v813
      %846 = vst [vmem:[%s313 + $0x88] sm:$0xff] %v815
      %847 = vst [vmem:[%s313 + $0x90] sm:$0xff] %v819
      %848 = vst [vmem:[%s313 + $0x98] sm:$0xff] %v821
      %849 = vst [vmem:[%s313 + $0xa0] sm:$0x1f] %v825
      %850 = vst [vmem:[%s313 + $0xa8] sm:$0x1f] %v827
      %s851 = smul.u32 2, %s23
      %p852 = scmp.lt.s32.totalorder %s22, 1
      %s853 = scalar_select %p852, %s22, 1
      %p854 = scmp.lt.s32.totalorder %s851, 1
      %s855 = scalar_select %p854, %s851, 1
      %s856 = smul.addr %s853, 22
      %s857 = sadd.s32 %s855, %s856
      %s858 = smul.addr %s857, 8
      %s859 = scalar_lea.vmem %s5, %s858
      %s860 = smul.u32 2, %s23
      %p861 = scmp.lt.s32.totalorder %s22, 1
      %s862 = scalar_select %p861, %s22, 1
      %p863 = scmp.lt.s32.totalorder %s860, 1
      %s864 = scalar_select %p863, %s860, 1
      %s865 = smul.addr %s862, 22
      %s866 = sadd.s32 %s864, %s865
      %s867 = smul.addr %s866, 8
      %s868 = scalar_lea.vmem %s6, %s867
      // Predicated region
      $region41: #{trans10_forward.45} parent=39 // pred_check
        %p869 = pneg %p162
      $region42: #{trans10_forward.45} parent=39 // pred_check_branch
        %871 = sbr.rel (%p869) target = $region44
      $region43: #{trans10_forward.45} parent=39 // pred_region
        %s872 = smul.u32 2, %s23
      $region44: #{trans10_forward.45} parent=39 // pred_fallthru
        _
      // Predicated region
      $region45: #{trans10_forward.45} parent=39 // pred_check
        %p873 = pneg %p190
      $region46: #{trans10_forward.45} parent=39 // pred_check_branch
        %875 = sbr.rel (%p873) target = $region48
      $region47: #{trans10_forward.45} parent=39 // pred_region
        %s876 = smul.u32 2, %s23
      $region48: #{trans10_forward.45} parent=39 // pred_fallthru
        _
    $region40: #{trans10_forward.45} parent=5 // pred_fallthru
      _
    %p877 = scmp.le.s32.totalorder 2, %s13
    // Predicated region
    $region49: #{trans10_forward.45} parent=5 // pred_check
      %p878 = pneg %p877
    $region50: #{trans10_forward.45} parent=5 // pred_check_branch
      %880 = sbr.rel (%p878) target = $region52
    $region51: #{trans10_forward.45} parent=5 // pred_region
      %s881 = ssub.s32 %s13, 2
      // Predicated region
      $region53: #{trans10_forward.45} parent=51 // pred_check
        %p882 = pneg %p168
      $region54: #{trans10_forward.45} parent=51 // pred_check_branch
        %884 = sbr.rel (%p882) target = $region56
      $region55: #{trans10_forward.45} parent=51 // pred_region
        %s885 = smul.u32 2, %s25
        %p886 = scmp.lt.s32.totalorder %s24, 1
        %s887 = scalar_select %p886, %s24, 1
        %p888 = scmp.lt.s32.totalorder %s885, 1
        %s889 = scalar_select %p888, %s885, 1
        %s890 = smul.addr %s887, 22
        %s891 = sadd.s32 %s889, %s890
        %s892 = smul.addr %s891, 8
        %s893 = scalar_lea.vmem %s5, %s892
      $region56: #{trans10_forward.45} parent=51 // pred_fallthru
        _
      // Predicated region
      $region57: #{trans10_forward.45} parent=51 // pred_check
        %p894 = pneg %p196
      $region58: #{trans10_forward.45} parent=51 // pred_check_branch
        %896 = sbr.rel (%p894) target = $region60
      $region59: #{trans10_forward.45} parent=51 // pred_region
        %s897 = smul.u32 2, %s25
        %p898 = scmp.lt.s32.totalorder %s24, 1
        %s899 = scalar_select %p898, %s24, 1
        %p900 = scmp.lt.s32.totalorder %s897, 1
        %s901 = scalar_select %p900, %s897, 1
        %s902 = smul.addr %s899, 22
        %s903 = sadd.s32 %s901, %s902
        %s904 = smul.addr %s903, 8
        %s905 = scalar_lea.vmem %s6, %s904
      $region60: #{trans10_forward.45} parent=51 // pred_fallthru
        _
    $region52: #{trans10_forward.45} parent=5 // pred_fallthru
      _
  $region6: #{trans10_forward.45} parent=0 // loop_footer
    %s17 = sadd.s32 1, %s13
  $region7: #{trans10_forward.45} parent=0 // loop_footer_branch
    %12 = sbr.rel target = $region3
  $region8: #{trans10_forward.45} parent=0 // loop_exit
    _

// kernel: trans10_forward.83
$region0: #{trans10_forward.83}
  #allocation0 [shape = 'u32[]', space=smem, size = 0x4, offset = 0x4, fixed_abs, tag = 'smem constant byte address 0x4 - core index']
  #allocation1 [shape = 'u32[144,128]{1,0:T(1,128)}', space=vmem, size = 0x12000, scoped, tag = 'internal scratch']
  %s0 = inlined_call_operand.vmem [shape: f32[2,32,256], index: 0, kind: input, shape index: {}]
  %s1 = inlined_call_operand.vmem [shape: f32[3,32], index: 1, kind: input, shape index: {}]
  %s2 = inlined_call_operand.vmem [shape: f32[2,3,256], index: 2, kind: input, shape index: {}]
  %s3 = inlined_call_operand.vmem [shape: f32[2,3,256], index: 3, kind: output, shape index: {}]
  %s4 = sld [smem:[#allocation0]]
  $region45: #{trans10_forward.83} parent=0
    _
  %s6 = ssub.s32 1, %s4
  %s7 = scalar_select 0, %s6, %s4
  loop: start=0, step=1, limit=4
  $region2: #{trans10_forward.83} parent=0 // loop_pre_header
    _
  $region3: #{trans10_forward.83} parent=0 // loop_header
    %s9 = sphi 0, %s13
    %p10 = scmp.ge.s32.totalorder %s9, 4
    %s16 = sphi 0, %s28
    %s17 = sphi 0, %s24
    %s18 = sphi 0, %s16
    %s19 = sphi 0, %s17
    %s20 = sphi 0, %s18
    %s21 = sphi 0, %s19
    %s33 = sphi 0, %s35
    %s36 = sphi 0, %s33
    %s37 = sphi 0, %s36
    %s53 = sphi 0, %s37
    %s57 = sphi 0, %s57
    %s59 = sphi 0, %s57
    %s60 = sphi 0, %s59
    %s74 = sphi 0, %s60
    %s82 = sphi 0, %s84
    %s85 = sphi 0, %s82
    %s86 = sphi 0, %s85
    %s102 = sphi 0, %s86
    %s110 = sphi 0, %s112
    %s113 = sphi 0, %s110
    %s114 = sphi 0, %s113
    %s130 = sphi 0, %s114
  $region4: #{trans10_forward.83} parent=0 // loop_header_branch
    %12 = sbr.rel (%p10) target = $region8
  $region5: #{trans10_forward.83} parent=0 // loop_body
    %s14 = ssub.s32 %s9, 1
    %s15 = ssub.s32 %s9, 2
    %s22 = sadd.s32 1, %s17
    %p23 = scmp.ge.s32.totalorder %s22, 1
    %s24 = scalar_select %p23, 0, %s22
    %s25 = sadd.s32 1, %s16
    %s26 = scalar_select %p23, %s25, %s16
    %p27 = scmp.ge.s32.totalorder %s26, 2
    %s28 = scalar_select %p27, 0, %s26
    %s29 = ssub.s32 %s16, %s28
    %s30 = ssub.s32 %s17, %s24
    %s31 = sor.u32 %s29, %s30
    %p32 = scmp.eq.s32.totalorder %s31, 0
    %s34 = sadd.s32 %s33, 1
    %s35 = scalar_select %p32, %s33, %s34
    %p38 = pneg %p32
    %p39 = scmp.eq.s32.totalorder %s9, 1
    %p40 = por %p38, %p39
    %p41 = scmp.ne.s32.totalorder %s33, %s36
    %p42 = scmp.eq.s32.totalorder %s9, 0
    %p43 = por %p41, %p42
    %p44 = scmp.ne.s32.totalorder %s33, %s36
    %p45 = scmp.eq.s32.totalorder %s14, 1
    %p46 = por %p44, %p45
    %p47 = scmp.ne.s32.totalorder %s36, %s37
    %p48 = scmp.eq.s32.totalorder %s14, 0
    %p49 = por %p47, %p48
    %p50 = scmp.ne.s32.totalorder %s36, %s37
    %p51 = scmp.eq.s32.totalorder %s15, 1
    %p52 = por %p50, %p51
    %p54 = scmp.ne.s32.totalorder %s37, %s53
    %p55 = scmp.eq.s32.totalorder %s15, 0
    %p56 = por %p54, %p55
    %s58 = sadd.s32 %s57, 1
    %p61 = scmp.eq.s32.totalorder %s9, 1
    %p62 = scmp.ne.s32.totalorder %s57, %s59
    %p63 = scmp.eq.s32.totalorder %s9, 0
    %p64 = por %p62, %p63
    %p65 = scmp.ne.s32.totalorder %s57, %s59
    %p66 = scmp.eq.s32.totalorder %s14, 1
    %p67 = por %p65, %p66
    %p68 = scmp.ne.s32.totalorder %s59, %s60
    %p69 = scmp.eq.s32.totalorder %s14, 0
    %p70 = por %p68, %p69
    %p71 = scmp.ne.s32.totalorder %s59, %s60
    %p72 = scmp.eq.s32.totalorder %s15, 1
    %p73 = por %p71, %p72
    %p75 = scmp.ne.s32.totalorder %s60, %s74
    %p76 = scmp.eq.s32.totalorder %s15, 0
    %p77 = por %p75, %p76
    %s78 = ssub.s32 %s16, %s28
    %s79 = ssub.s32 %s17, %s24
    %s80 = sor.u32 %s78, %s79
    %p81 = scmp.eq.s32.totalorder %s80, 0
    %s83 = sadd.s32 %s82, 1
    %s84 = scalar_select %p81, %s82, %s83
    %p87 = pneg %p81
    %p88 = scmp.eq.s32.totalorder %s9, 1
    %p89 = por %p87, %p88
    %p90 = scmp.ne.s32.totalorder %s82, %s85
    %p91 = scmp.eq.s32.totalorder %s9, 0
    %p92 = por %p90, %p91
    %p93 = scmp.ne.s32.totalorder %s82, %s85
    %p94 = scmp.eq.s32.totalorder %s14, 1
    %p95 = por %p93, %p94
    %p96 = scmp.ne.s32.totalorder %s85, %s86
    %p97 = scmp.eq.s32.totalorder %s14, 0
    %p98 = por %p96, %p97
    %p99 = scmp.ne.s32.totalorder %s85, %s86
    %p100 = scmp.eq.s32.totalorder %s15, 1
    %p101 = por %p99, %p100
    %p103 = scmp.ne.s32.totalorder %s86, %s102
    %p104 = scmp.eq.s32.totalorder %s15, 0
    %p105 = por %p103, %p104
    %s106 = ssub.s32 %s16, %s28
    %s107 = ssub.s32 %s17, %s24
    %s108 = sor.u32 %s106, %s107
    %p109 = scmp.eq.s32.totalorder %s108, 0
    %s111 = sadd.s32 %s110, 1
    %s112 = scalar_select %p109, %s110, %s111
    %p115 = pneg %p109
    %p116 = scmp.eq.s32.totalorder %s9, 1
    %p117 = por %p115, %p116
    %p118 = scmp.ne.s32.totalorder %s110, %s113
    %p119 = scmp.eq.s32.totalorder %s9, 0
    %p120 = por %p118, %p119
    %p121 = scmp.ne.s32.totalorder %s110, %s113
    %p122 = scmp.eq.s32.totalorder %s14, 1
    %p123 = por %p121, %p122
    %p124 = scmp.ne.s32.totalorder %s113, %s114
    %p125 = scmp.eq.s32.totalorder %s14, 0
    %p126 = por %p124, %p125
    %p127 = scmp.ne.s32.totalorder %s113, %s114
    %p128 = scmp.eq.s32.totalorder %s15, 1
    %p129 = por %p127, %p128
    %p131 = scmp.ne.s32.totalorder %s114, %s130
    %p132 = scmp.eq.s32.totalorder %s15, 0
    %p133 = por %p131, %p132
    %p134 = scmp.le.s32.totalorder 1, %s9
    %p135 = scmp.lt.s32.totalorder %s9, 3
    %p136 = pnand %p134, %p135
    %p137 = pneg %p136
    // Predicated region
    $region9: #{trans10_forward.83} parent=5 // pred_check
      _
    $region10: #{trans10_forward.83} parent=5 // pred_check_branch
      %139 = sbr.rel (%p136) target = $region12
    $region11: #{trans10_forward.83} parent=5 // pred_region
      %s140 = ssub.s32 %s9, 1
      // Predicated region
      $region13: #{trans10_forward.83} parent=11 // pred_check
        %p141 = pneg %p70
      $region14: #{trans10_forward.83} parent=11 // pred_check_branch
        %143 = sbr.rel (%p141) target = $region16
      $region15: #{trans10_forward.83} parent=11 // pred_region
        _
      $region16: #{trans10_forward.83} parent=11 // pred_fallthru
        _
    $region12: #{trans10_forward.83} parent=5 // pred_fallthru
      _
    %p144 = scmp.lt.s32.totalorder %s9, 2
    // Predicated region
    $region17: #{trans10_forward.83} parent=5 // pred_check
      %p145 = pneg %p144
    $region18: #{trans10_forward.83} parent=5 // pred_check_branch
      %147 = sbr.rel (%p145) target = $region20
    $region19: #{trans10_forward.83} parent=5 // pred_region
      // Predicated region
      $region21: #{trans10_forward.83} parent=19 // pred_check
        %p148 = pneg %p43
      $region22: #{trans10_forward.83} parent=19 // pred_check_branch
        %150 = sbr.rel (%p148) target = $region24
      $region23: #{trans10_forward.83} parent=19 // pred_region
        %s151 = smul.u32 2, %s17
        %p152 = scmp.lt.s32.totalorder %s16, 1
        %s153 = scalar_select %p152, %s16, 1
        %p154 = scmp.lt.s32.totalorder %s151, 1
        %s155 = scalar_select %p154, %s151, 1
        %s156 = smul.addr %s153, 8
        %s157 = sadd.s32 %s155, %s156
        %s158 = smul.addr %s157, 8
        %s159 = scalar_lea.vmem %s0, %s158
        %s160 = smul.u32 2, %s17
      $region24: #{trans10_forward.83} parent=19 // pred_fallthru
        _
      // Predicated region
      $region25: #{trans10_forward.83} parent=19 // pred_check
        %p161 = pneg %p92
      $region26: #{trans10_forward.83} parent=19 // pred_check_branch
        %163 = sbr.rel (%p161) target = $region28
      $region27: #{trans10_forward.83} parent=19 // pred_region
        %s164 = smul.u32 2, %s17
        %p165 = scmp.lt.s32.totalorder %s16, 1
        %s166 = scalar_select %p165, %s16, 1
        %p167 = scmp.lt.s32.totalorder %s164, 1
        %s168 = scalar_select %p167, %s164, 1
        %s169 = smul.addr %s166, 2
        %s170 = sadd.s32 %s168, %s169
        %s171 = smul.addr %s170, 4
        %s172 = scalar_lea.vmem %s2, %s171
        %s173 = smul.u32 2, %s17
      $region28: #{trans10_forward.83} parent=19 // pred_fallthru
        _
    $region20: #{trans10_forward.83} parent=5 // pred_fallthru
      _
    %p174 = scmp.le.s32.totalorder 1, %s9
    %p175 = scmp.lt.s32.totalorder %s9, 3
    %p176 = pnand %p174, %p175
    %p177 = pneg %p176
    // Predicated region
    $region29: #{trans10_forward.83} parent=5 // pred_check
      _
    $region30: #{trans10_forward.83} parent=5 // pred_check_branch
      %179 = sbr.rel (%p176) target = $region32
    $region31: #{trans10_forward.83} parent=5 // pred_region
      %s180 = ssub.s32 %s9, 1
      %s181 = smul.u32 2, %s19
      %p182 = scmp.lt.s32.totalorder %s18, 1
      %s183 = scalar_select %p182, %s18, 1
      %p184 = scmp.lt.s32.totalorder %s181, 1
      %s185 = scalar_select %p184, %s181, 1
      %s186 = smul.addr %s183, 8
      %s187 = sadd.s32 %s185, %s186
      %s188 = smul.addr %s187, 8
      %s189 = scalar_lea.vmem %s0, %s188
      %p190 = pneg %p49
      %p191 = pneg %p46
      %p192 = pneg %p70
      %p193 = pneg %p67
      %s194 = smul.u32 2, %s19
      %p195 = scmp.lt.s32.totalorder %s18, 1
      %s196 = scalar_select %p195, %s18, 1
      %p197 = scmp.lt.s32.totalorder %s194, 1
      %s198 = scalar_select %p197, %s194, 1
      %s199 = smul.addr %s196, 2
      %s200 = sadd.s32 %s198, %s199
      %s201 = smul.addr %s200, 4
      %s202 = scalar_lea.vmem %s2, %s201
      %p203 = pneg %p98
      %p204 = pneg %p95
      %p205 = pneg %p126
      %p206 = pneg %p123
      %s207 = smul.u32 2, %s19
      %p208 = scmp.lt.s32.totalorder %s18, 1
      %s209 = scalar_select %p208, %s18, 1
      %p210 = scmp.lt.s32.totalorder %s207, 1
      %s211 = scalar_select %p210, %s207, 1
      %s212 = smul.addr %s209, 2
      %s213 = sadd.s32 %s211, %s212
      %s214 = smul.addr %s213, 4
      %s215 = scalar_lea.vmem %s3, %s214
      %s216 = smul.u32 2, %s19
      %p217 = scmp.lt.s32.totalorder %s18, 1
      %s218 = scalar_select %p217, %s18, 1
      %p219 = scmp.lt.s32.totalorder %s216, 1
      %s220 = scalar_select %p219, %s216, 1
      %s221 = smul.addr %s218, 8
      %s222 = sadd.s32 %s220, %s221
      %s223 = smul.addr %s222, 8
      %s224 = scalar_lea.vmem %s0, %s223
      %s225 = smul.u32 2, %s19
      %s226 = smul.u32 2, %s19
      %p227 = scmp.lt.s32.totalorder %s18, 1
      %s228 = scalar_select %p227, %s18, 1
      %p229 = scmp.lt.s32.totalorder %s226, 1
      %s230 = scalar_select %p229, %s226, 1
      %s231 = smul.addr %s228, 2
      %s232 = sadd.s32 %s230, %s231
      %s233 = smul.addr %s232, 4
      %s234 = scalar_lea.vmem %s2, %s233
      %s235 = smul.u32 2, %s19
      %s236 = smul.u32 2, %s19
      %p237 = scmp.lt.s32.totalorder %s18, 1
      %s238 = scalar_select %p237, %s18, 1
      %p239 = scmp.lt.s32.totalorder %s236, 1
      %s240 = scalar_select %p239, %s236, 1
      %s241 = smul.addr %s238, 2
      %s242 = sadd.s32 %s240, %s241
      %s243 = smul.addr %s242, 4
      %s244 = scalar_lea.vmem %s3, %s243
      %s245 = smul.u32 2, %s19
      %v246 = vld [vmem:[%s1] sm:$0x7]
      %v247 = vld [vmem:[%s224] sm:$0xff]
      %v248 = vld [vmem:[%s224 + $0x8] sm:$0xff]
      %v249 = vld [vmem:[%s224 + $0x10] sm:$0xff]
      %v250 = vld [vmem:[%s224 + $0x18] sm:$0xff]
      %v251 = vld [vmem:[%s224 + $0x20] sm:$0xff]
      %v252 = vld [vmem:[%s224 + $0x28] sm:$0xff]
      %v253 = vld [vmem:[%s224 + $0x30] sm:$0xff]
      %v254 = vld [vmem:[%s224 + $0x38] sm:$0xff]
      %v255 = vld [vmem:[%s234] sm:$0x77]
      %v257 = vcombine.high %v255, %v255
      %vm259 = vcmask 261120
      %v261 = vsel %vm259, %v246, 0
      %263 = vmatprep.subr.mxu0 0.0
      %264 = vmatpush1.msra.mxu0 0.0
      %265 = vmatprep.subr.mxu0 0.0
      %266 = vmatpush1.msra.mxu0 0.0
      %267 = vmatprep.subr.mxu0 0.0
      %268 = vmatpush1.msra.mxu0 0.0
      %269 = vmatprep.subr.mxu0 0.0
      %270 = vmatpush1.msra.mxu0 0.0
      %271 = vmatprep.subr.mxu0 0.0
      %272 = vmatpush1.msra.mxu0 0.0
      %273 = vmatprep.subr.mxu0 0.0
      %274 = vmatpush1.msra.mxu0 0.0
      %275 = vmatprep.subr.mxu0 0.0
      %276 = vmatpush1.msra.mxu0 0.0
      %277 = vmatprep.subr.mxu0 0.0
      %278 = vmatpush1.msra.mxu0 0.0
      %279 = vmatprep.subr.mxu0 0.0
      %280 = vmatpush1.msra.mxu0 0.0
      %281 = vmatprep.subr.mxu0 0.0
      %282 = vmatpush1.msra.mxu0 0.0
      %283 = vmatprep.subr.mxu0 0.0
      %284 = vmatpush1.msra.mxu0 0.0
      %285 = vmatprep.subr.mxu0 0.0
      %286 = vmatpush1.msra.mxu0 0.0
      %287 = vmatprep.subr.mxu0 %v254
      %288 = vmatpush1.msra.mxu0 %v253
      %289 = vmatprep.subr.mxu0 %v252
      %290 = vmatpush1.msra.mxu0 %v251
      %291 = vmatprep.subr.mxu0 %v250
      %292 = vmatpush1.msra.mxu0 %v249
      %293 = vmatprep.subr.mxu0 %v248
      %294 = vmatpush1.msra.mxu0 %v247
      %295 = vmatprep.subr.mxu0 0.0
      %296 = vmatpush2.msra.mxu0 0.0
      %297 = vmatprep.subr.mxu0 0.0
      %298 = vmatpush2.msra.mxu0 0.0
      %299 = vmatprep.subr.mxu0 0.0
      %300 = vmatpush2.msra.mxu0 0.0
      %301 = vmatprep.subr.mxu0 0.0
      %302 = vmatpush2.msra.mxu0 0.0
      %303 = vmatprep.subr.mxu0 0.0
      %304 = vmatpush2.msra.mxu0 0.0
      %305 = vmatprep.subr.mxu0 0.0
      %306 = vmatpush2.msra.mxu0 0.0
      %307 = vmatprep.subr.mxu0 0.0
      %308 = vmatpush2.msra.mxu0 0.0
      %309 = vmatprep.subr.mxu0 0.0
      %310 = vmatpush2.msra.mxu0 0.0
      %311 = vmatprep.subr.mxu0 0.0
      %312 = vmatpush2.msra.mxu0 0.0
      %313 = vmatprep.subr.mxu0 0.0
      %314 = vmatpush2.msra.mxu0 0.0
      %315 = vmatprep.subr.mxu0 0.0
      %316 = vmatpush2.msra.mxu0 0.0
      %317 = vmatprep.subr.mxu0 0.0
      %318 = vmatpush2.msra.mxu0 0.0
      %319 = vmatprep.subr.mxu0 0.0
      %320 = vmatpush2.msra.mxu0 0.0
      %321 = vmatprep.subr.mxu0 0.0
      %322 = vmatpush2.msra.mxu0 0.0
      %323 = vmatprep.subr.mxu0 0.0
      %324 = vmatpush2.msra.mxu0 0.0
      %325 = vmatprep.subr.mxu0 0.0
      %326 = vmatpush2.msra.mxu0 0.0
      %327 = vmatprep.mubr.f32.mxu0 0.0
      %328 = vmatmul.mubr.f32.gmra.mxu0 %v261
      %v329 = vpop.f32.mrf.mxu0
      %v330 = vadd.f32 %v255, %v329
      %v331 = vpop.f32.mrf.mxu0
      %v332 = vadd.f32 %v257, %v331
      %333 = vdwg.mxu0
      %v336 = vcombine.low %v330, %v332
      %338 = vst [vmem:[%s244] sm:$0x77] %v336
      %s339 = smul.u32 2, %s19
      %p340 = scmp.lt.s32.totalorder %s18, 1
      %s341 = scalar_select %p340, %s18, 1
      %p342 = scmp.lt.s32.totalorder %s339, 1
      %s343 = scalar_select %p342, %s339, 1
      %s344 = smul.addr %s341, 2
      %s345 = sadd.s32 %s343, %s344
      %s346 = smul.addr %s345, 4
      %s347 = scalar_lea.vmem %s3, %s346
      // Predicated region
      $region33: #{trans10_forward.83} parent=31 // pred_check
        %p348 = pneg %p123
      $region34: #{trans10_forward.83} parent=31 // pred_check_branch
        %350 = sbr.rel (%p348) target = $region36
      $region35: #{trans10_forward.83} parent=31 // pred_region
        %s351 = smul.u32 2, %s19
      $region36: #{trans10_forward.83} parent=31 // pred_fallthru
        _
    $region32: #{trans10_forward.83} parent=5 // pred_fallthru
      _
    %p352 = scmp.le.s32.totalorder 2, %s9
    // Predicated region
    $region37: #{trans10_forward.83} parent=5 // pred_check
      %p353 = pneg %p352
    $region38: #{trans10_forward.83} parent=5 // pred_check_branch
      %355 = sbr.rel (%p353) target = $region40
    $region39: #{trans10_forward.83} parent=5 // pred_region
      %s356 = ssub.s32 %s9, 2
      // Predicated region
      $region41: #{trans10_forward.83} parent=39 // pred_check
        %p357 = pneg %p129
      $region42: #{trans10_forward.83} parent=39 // pred_check_branch
        %359 = sbr.rel (%p357) target = $region44
      $region43: #{trans10_forward.83} parent=39 // pred_region
        %s360 = smul.u32 2, %s21
        %p361 = scmp.lt.s32.totalorder %s20, 1
        %s362 = scalar_select %p361, %s20, 1
        %p363 = scmp.lt.s32.totalorder %s360, 1
        %s364 = scalar_select %p363, %s360, 1
        %s365 = smul.addr %s362, 2
        %s366 = sadd.s32 %s364, %s365
        %s367 = smul.addr %s366, 4
        %s368 = scalar_lea.vmem %s3, %s367
      $region44: #{trans10_forward.83} parent=39 // pred_fallthru
        _
    $region40: #{trans10_forward.83} parent=5 // pred_fallthru
      _
  $region6: #{trans10_forward.83} parent=0 // loop_footer
    %s13 = sadd.s32 1, %s9
  $region7: #{trans10_forward.83} parent=0 // loop_footer_branch
    %8 = sbr.rel target = $region3
  $region8: #{trans10_forward.83} parent=0 // loop_exit
    _

// kernel: trans10_forward.44
$region0: #{trans10_forward.44}
  #allocation0 [shape = 'u32[]', space=smem, size = 0x4, offset = 0x4, fixed_abs, tag = 'smem constant byte address 0x4 - core index']
  #allocation1 [shape = 'u32[144,128]{1,0:T(1,128)}', space=vmem, size = 0x12000, scoped, tag = 'internal scratch']
  %s0 = inlined_call_operand.vmem [shape: f32[2,32,256], index: 0, kind: input, shape index: {}]
  %s1 = inlined_call_operand.vmem [shape: f32[2,32,256], index: 1, kind: input, shape index: {}]
  %s2 = inlined_call_operand.vmem [shape: f32[2,32,256], index: 2, kind: input, shape index: {}]
  %s3 = inlined_call_operand.vmem [shape: f32[2,32,256], index: 3, kind: input, shape index: {}, may-alias: {3,12}]
  %s4 = inlined_call_operand.vmem [shape: f32[32,9], index: 4, kind: input, shape index: {}]
  %s5 = inlined_call_operand.vmem [shape: f32[32,9], index: 5, kind: input, shape index: {}]
  %s6 = inlined_call_operand.vmem [shape: f32[32,9], index: 6, kind: input, shape index: {}]
  %s7 = inlined_call_operand.vmem [shape: f32[32,1], index: 7, kind: input, shape index: {}]
  %s8 = inlined_call_operand.vmem [shape: f32[32,32], index: 8, kind: input, shape index: {}]
  %s9 = inlined_call_operand.vmem [shape: f32[32,32], index: 9, kind: input, shape index: {}]
  %s10 = inlined_call_operand.vmem [shape: f32[1,256], index: 10, kind: input, shape index: {}]
  %s11 = inlined_call_operand.vmem [shape: f32[1,256], index: 11, kind: input, shape index: {}]
  %s12 = inlined_call_operand.vmem [shape: f32[2,32,256], index: 12, kind: output, shape index: {}, may-alias: {3,12}]
  %s13 = sld [smem:[#allocation0]]
  $region81: #{trans10_forward.44} parent=0
    _
  %s15 = ssub.s32 1, %s13
  %s16 = scalar_select 0, %s15, %s13
  loop: start=0, step=1, limit=4
  $region2: #{trans10_forward.44} parent=0 // loop_pre_header
    _
  $region3: #{trans10_forward.44} parent=0 // loop_header
    %s18 = sphi 0, %s22
    %p19 = scmp.ge.s32.totalorder %s18, 4
    %s28 = sphi 0, %s30
    %s31 = sphi 0, %s28
    %s32 = sphi 0, %s31
    %s48 = sphi 0, %s32
    %s54 = sphi 0, %s56
    %s57 = sphi 0, %s54
    %s58 = sphi 0, %s57
    %s74 = sphi 0, %s58
    %s80 = sphi 0, %s82
    %s83 = sphi 0, %s80
    %s84 = sphi 0, %s83
    %s100 = sphi 0, %s84
    %s106 = sphi 0, %s108
    %s109 = sphi 0, %s106
    %s110 = sphi 0, %s109
    %s126 = sphi 0, %s110
    %s130 = sphi 0, %s130
    %s132 = sphi 0, %s130
    %s133 = sphi 0, %s132
    %s147 = sphi 0, %s133
    %s151 = sphi 0, %s151
    %s153 = sphi 0, %s151
    %s154 = sphi 0, %s153
    %s168 = sphi 0, %s154
    %s172 = sphi 0, %s172
    %s174 = sphi 0, %s172
    %s175 = sphi 0, %s174
    %s189 = sphi 0, %s175
    %s193 = sphi 0, %s193
    %s195 = sphi 0, %s193
    %s196 = sphi 0, %s195
    %s210 = sphi 0, %s196
    %s214 = sphi 0, %s214
    %s216 = sphi 0, %s214
    %s217 = sphi 0, %s216
    %s231 = sphi 0, %s217
    %s235 = sphi 0, %s235
    %s237 = sphi 0, %s235
    %s238 = sphi 0, %s237
    %s252 = sphi 0, %s238
    %s256 = sphi 0, %s256
    %s258 = sphi 0, %s256
    %s259 = sphi 0, %s258
    %s273 = sphi 0, %s259
    %s277 = sphi 0, %s277
    %s279 = sphi 0, %s277
    %s280 = sphi 0, %s279
    %s294 = sphi 0, %s280
    %s300 = sphi 0, %s302
    %s303 = sphi 0, %s300
    %s304 = sphi 0, %s303
    %s320 = sphi 0, %s304
  $region4: #{trans10_forward.44} parent=0 // loop_header_branch
    %21 = sbr.rel (%p19) target = $region8
  $region5: #{trans10_forward.44} parent=0 // loop_body
    %s23 = ssub.s32 %s18, 1
    %s24 = ssub.s32 %s18, 2
    %s25 = sadd.s32 %s18, 1
    %s26 = ssub.s32 %s18, %s25
    %p27 = scmp.eq.s32.totalorder %s26, 0
    %s29 = sadd.s32 %s28, 1
    %s30 = scalar_select %p27, %s28, %s29
    %p33 = pneg %p27
    %p34 = scmp.eq.s32.totalorder %s18, 1
    %p35 = por %p33, %p34
    %p36 = scmp.ne.s32.totalorder %s28, %s31
    %p37 = scmp.eq.s32.totalorder %s18, 0
    %p38 = por %p36, %p37
    %p39 = scmp.ne.s32.totalorder %s28, %s31
    %p40 = scmp.eq.s32.totalorder %s23, 1
    %p41 = por %p39, %p40
    %p42 = scmp.ne.s32.totalorder %s31, %s32
    %p43 = scmp.eq.s32.totalorder %s23, 0
    %p44 = por %p42, %p43
    %p45 = scmp.ne.s32.totalorder %s31, %s32
    %p46 = scmp.eq.s32.totalorder %s24, 1
    %p47 = por %p45, %p46
    %p49 = scmp.ne.s32.totalorder %s32, %s48
    %p50 = scmp.eq.s32.totalorder %s24, 0
    %p51 = por %p49, %p50
    %s52 = ssub.s32 %s18, %s25
    %p53 = scmp.eq.s32.totalorder %s52, 0
    %s55 = sadd.s32 %s54, 1
    %s56 = scalar_select %p53, %s54, %s55
    %p59 = pneg %p53
    %p60 = scmp.eq.s32.totalorder %s18, 1
    %p61 = por %p59, %p60
    %p62 = scmp.ne.s32.totalorder %s54, %s57
    %p63 = scmp.eq.s32.totalorder %s18, 0
    %p64 = por %p62, %p63
    %p65 = scmp.ne.s32.totalorder %s54, %s57
    %p66 = scmp.eq.s32.totalorder %s23, 1
    %p67 = por %p65, %p66
    %p68 = scmp.ne.s32.totalorder %s57, %s58
    %p69 = scmp.eq.s32.totalorder %s23, 0
    %p70 = por %p68, %p69
    %p71 = scmp.ne.s32.totalorder %s57, %s58
    %p72 = scmp.eq.s32.totalorder %s24, 1
    %p73 = por %p71, %p72
    %p75 = scmp.ne.s32.totalorder %s58, %s74
    %p76 = scmp.eq.s32.totalorder %s24, 0
    %p77 = por %p75, %p76
    %s78 = ssub.s32 %s18, %s25
    %p79 = scmp.eq.s32.totalorder %s78, 0
    %s81 = sadd.s32 %s80, 1
    %s82 = scalar_select %p79, %s80, %s81
    %p85 = pneg %p79
    %p86 = scmp.eq.s32.totalorder %s18, 1
    %p87 = por %p85, %p86
    %p88 = scmp.ne.s32.totalorder %s80, %s83
    %p89 = scmp.eq.s32.totalorder %s18, 0
    %p90 = por %p88, %p89
    %p91 = scmp.ne.s32.totalorder %s80, %s83
    %p92 = scmp.eq.s32.totalorder %s23, 1
    %p93 = por %p91, %p92
    %p94 = scmp.ne.s32.totalorder %s83, %s84
    %p95 = scmp.eq.s32.totalorder %s23, 0
    %p96 = por %p94, %p95
    %p97 = scmp.ne.s32.totalorder %s83, %s84
    %p98 = scmp.eq.s32.totalorder %s24, 1
    %p99 = por %p97, %p98
    %p101 = scmp.ne.s32.totalorder %s84, %s100
    %p102 = scmp.eq.s32.totalorder %s24, 0
    %p103 = por %p101, %p102
    %s104 = ssub.s32 %s18, %s25
    %p105 = scmp.eq.s32.totalorder %s104, 0
    %s107 = sadd.s32 %s106, 1
    %s108 = scalar_select %p105, %s106, %s107
    %p111 = pneg %p105
    %p112 = scmp.eq.s32.totalorder %s18, 1
    %p113 = por %p111, %p112
    %p114 = scmp.ne.s32.totalorder %s106, %s109
    %p115 = scmp.eq.s32.totalorder %s18, 0
    %p116 = por %p114, %p115
    %p117 = scmp.ne.s32.totalorder %s106, %s109
    %p118 = scmp.eq.s32.totalorder %s23, 1
    %p119 = por %p117, %p118
    %p120 = scmp.ne.s32.totalorder %s109, %s110
    %p121 = scmp.eq.s32.totalorder %s23, 0
    %p122 = por %p120, %p121
    %p123 = scmp.ne.s32.totalorder %s109, %s110
    %p124 = scmp.eq.s32.totalorder %s24, 1
    %p125 = por %p123, %p124
    %p127 = scmp.ne.s32.totalorder %s110, %s126
    %p128 = scmp.eq.s32.totalorder %s24, 0
    %p129 = por %p127, %p128
    %s131 = sadd.s32 %s130, 1
    %p134 = scmp.eq.s32.totalorder %s18, 1
    %p135 = scmp.ne.s32.totalorder %s130, %s132
    %p136 = scmp.eq.s32.totalorder %s18, 0
    %p137 = por %p135, %p136
    %p138 = scmp.ne.s32.totalorder %s130, %s132
    %p139 = scmp.eq.s32.totalorder %s23, 1
    %p140 = por %p138, %p139
    %p141 = scmp.ne.s32.totalorder %s132, %s133
    %p142 = scmp.eq.s32.totalorder %s23, 0
    %p143 = por %p141, %p142
    %p144 = scmp.ne.s32.totalorder %s132, %s133
    %p145 = scmp.eq.s32.totalorder %s24, 1
    %p146 = por %p144, %p145
    %p148 = scmp.ne.s32.totalorder %s133, %s147
    %p149 = scmp.eq.s32.totalorder %s24, 0
    %p150 = por %p148, %p149
    %s152 = sadd.s32 %s151, 1
    %p155 = scmp.eq.s32.totalorder %s18, 1
    %p156 = scmp.ne.s32.totalorder %s151, %s153
    %p157 = scmp.eq.s32.totalorder %s18, 0
    %p158 = por %p156, %p157
    %p159 = scmp.ne.s32.totalorder %s151, %s153
    %p160 = scmp.eq.s32.totalorder %s23, 1
    %p161 = por %p159, %p160
    %p162 = scmp.ne.s32.totalorder %s153, %s154
    %p163 = scmp.eq.s32.totalorder %s23, 0
    %p164 = por %p162, %p163
    %p165 = scmp.ne.s32.totalorder %s153, %s154
    %p166 = scmp.eq.s32.totalorder %s24, 1
    %p167 = por %p165, %p166
    %p169 = scmp.ne.s32.totalorder %s154, %s168
    %p170 = scmp.eq.s32.totalorder %s24, 0
    %p171 = por %p169, %p170
    %s173 = sadd.s32 %s172, 1
    %p176 = scmp.eq.s32.totalorder %s18, 1
    %p177 = scmp.ne.s32.totalorder %s172, %s174
    %p178 = scmp.eq.s32.totalorder %s18, 0
    %p179 = por %p177, %p178
    %p180 = scmp.ne.s32.totalorder %s172, %s174
    %p181 = scmp.eq.s32.totalorder %s23, 1
    %p182 = por %p180, %p181
    %p183 = scmp.ne.s32.totalorder %s174, %s175
    %p184 = scmp.eq.s32.totalorder %s23, 0
    %p185 = por %p183, %p184
    %p186 = scmp.ne.s32.totalorder %s174, %s175
    %p187 = scmp.eq.s32.totalorder %s24, 1
    %p188 = por %p186, %p187
    %p190 = scmp.ne.s32.totalorder %s175, %s189
    %p191 = scmp.eq.s32.totalorder %s24, 0
    %p192 = por %p190, %p191
    %s194 = sadd.s32 %s193, 1
    %p197 = scmp.eq.s32.totalorder %s18, 1
    %p198 = scmp.ne.s32.totalorder %s193, %s195
    %p199 = scmp.eq.s32.totalorder %s18, 0
    %p200 = por %p198, %p199
    %p201 = scmp.ne.s32.totalorder %s193, %s195
    %p202 = scmp.eq.s32.totalorder %s23, 1
    %p203 = por %p201, %p202
    %p204 = scmp.ne.s32.totalorder %s195, %s196
    %p205 = scmp.eq.s32.totalorder %s23, 0
    %p206 = por %p204, %p205
    %p207 = scmp.ne.s32.totalorder %s195, %s196
    %p208 = scmp.eq.s32.totalorder %s24, 1
    %p209 = por %p207, %p208
    %p211 = scmp.ne.s32.totalorder %s196, %s210
    %p212 = scmp.eq.s32.totalorder %s24, 0
    %p213 = por %p211, %p212
    %s215 = sadd.s32 %s214, 1
    %p218 = scmp.eq.s32.totalorder %s18, 1
    %p219 = scmp.ne.s32.totalorder %s214, %s216
    %p220 = scmp.eq.s32.totalorder %s18, 0
    %p221 = por %p219, %p220
    %p222 = scmp.ne.s32.totalorder %s214, %s216
    %p223 = scmp.eq.s32.totalorder %s23, 1
    %p224 = por %p222, %p223
    %p225 = scmp.ne.s32.totalorder %s216, %s217
    %p226 = scmp.eq.s32.totalorder %s23, 0
    %p227 = por %p225, %p226
    %p228 = scmp.ne.s32.totalorder %s216, %s217
    %p229 = scmp.eq.s32.totalorder %s24, 1
    %p230 = por %p228, %p229
    %p232 = scmp.ne.s32.totalorder %s217, %s231
    %p233 = scmp.eq.s32.totalorder %s24, 0
    %p234 = por %p232, %p233
    %s236 = sadd.s32 %s235, 1
    %p239 = scmp.eq.s32.totalorder %s18, 1
    %p240 = scmp.ne.s32.totalorder %s235, %s237
    %p241 = scmp.eq.s32.totalorder %s18, 0
    %p242 = por %p240, %p241
    %p243 = scmp.ne.s32.totalorder %s235, %s237
    %p244 = scmp.eq.s32.totalorder %s23, 1
    %p245 = por %p243, %p244
    %p246 = scmp.ne.s32.totalorder %s237, %s238
    %p247 = scmp.eq.s32.totalorder %s23, 0
    %p248 = por %p246, %p247
    %p249 = scmp.ne.s32.totalorder %s237, %s238
    %p250 = scmp.eq.s32.totalorder %s24, 1
    %p251 = por %p249, %p250
    %p253 = scmp.ne.s32.totalorder %s238, %s252
    %p254 = scmp.eq.s32.totalorder %s24, 0
    %p255 = por %p253, %p254
    %s257 = sadd.s32 %s256, 1
    %p260 = scmp.eq.s32.totalorder %s18, 1
    %p261 = scmp.ne.s32.totalorder %s256, %s258
    %p262 = scmp.eq.s32.totalorder %s18, 0
    %p263 = por %p261, %p262
    %p264 = scmp.ne.s32.totalorder %s256, %s258
    %p265 = scmp.eq.s32.totalorder %s23, 1
    %p266 = por %p264, %p265
    %p267 = scmp.ne.s32.totalorder %s258, %s259
    %p268 = scmp.eq.s32.totalorder %s23, 0
    %p269 = por %p267, %p268
    %p270 = scmp.ne.s32.totalorder %s258, %s259
    %p271 = scmp.eq.s32.totalorder %s24, 1
    %p272 = por %p270, %p271
    %p274 = scmp.ne.s32.totalorder %s259, %s273
    %p275 = scmp.eq.s32.totalorder %s24, 0
    %p276 = por %p274, %p275
    %s278 = sadd.s32 %s277, 1
    %p281 = scmp.eq.s32.totalorder %s18, 1
    %p282 = scmp.ne.s32.totalorder %s277, %s279
    %p283 = scmp.eq.s32.totalorder %s18, 0
    %p284 = por %p282, %p283
    %p285 = scmp.ne.s32.totalorder %s277, %s279
    %p286 = scmp.eq.s32.totalorder %s23, 1
    %p287 = por %p285, %p286
    %p288 = scmp.ne.s32.totalorder %s279, %s280
    %p289 = scmp.eq.s32.totalorder %s23, 0
    %p290 = por %p288, %p289
    %p291 = scmp.ne.s32.totalorder %s279, %s280
    %p292 = scmp.eq.s32.totalorder %s24, 1
    %p293 = por %p291, %p292
    %p295 = scmp.ne.s32.totalorder %s280, %s294
    %p296 = scmp.eq.s32.totalorder %s24, 0
    %p297 = por %p295, %p296
    %s298 = ssub.s32 %s18, %s25
    %p299 = scmp.eq.s32.totalorder %s298, 0
    %s301 = sadd.s32 %s300, 1
    %s302 = scalar_select %p299, %s300, %s301
    %p305 = pneg %p299
    %p306 = scmp.eq.s32.totalorder %s18, 1
    %p307 = por %p305, %p306
    %p308 = scmp.ne.s32.totalorder %s300, %s303
    %p309 = scmp.eq.s32.totalorder %s18, 0
    %p310 = por %p308, %p309
    %p311 = scmp.ne.s32.totalorder %s300, %s303
    %p312 = scmp.eq.s32.totalorder %s23, 1
    %p313 = por %p311, %p312
    %p314 = scmp.ne.s32.totalorder %s303, %s304
    %p315 = scmp.eq.s32.totalorder %s23, 0
    %p316 = por %p314, %p315
    %p317 = scmp.ne.s32.totalorder %s303, %s304
    %p318 = scmp.eq.s32.totalorder %s24, 1
    %p319 = por %p317, %p318
    %p321 = scmp.ne.s32.totalorder %s304, %s320
    %p322 = scmp.eq.s32.totalorder %s24, 0
    %p323 = por %p321, %p322
    %p324 = scmp.le.s32.totalorder 1, %s18
    %p325 = scmp.lt.s32.totalorder %s18, 3
    %p326 = pnand %p324, %p325
    %p327 = pneg %p326
    // Predicated region
    $region9: #{trans10_forward.44} parent=5 // pred_check
      _
    $region10: #{trans10_forward.44} parent=5 // pred_check_branch
      %329 = sbr.rel (%p326) target = $region12
    $region11: #{trans10_forward.44} parent=5 // pred_region
      %s330 = ssub.s32 %s18, 1
      // Predicated region
      $region13: #{trans10_forward.44} parent=11 // pred_check
        %p331 = pneg %p143
      $region14: #{trans10_forward.44} parent=11 // pred_check_branch
        %333 = sbr.rel (%p331) target = $region16
      $region15: #{trans10_forward.44} parent=11 // pred_region
        _
      $region16: #{trans10_forward.44} parent=11 // pred_fallthru
        _
      // Predicated region
      $region17: #{trans10_forward.44} parent=11 // pred_check
        %p334 = pneg %p164
      $region18: #{trans10_forward.44} parent=11 // pred_check_branch
        %336 = sbr.rel (%p334) target = $region20
      $region19: #{trans10_forward.44} parent=11 // pred_region
        _
      $region20: #{trans10_forward.44} parent=11 // pred_fallthru
        _
      // Predicated region
      $region21: #{trans10_forward.44} parent=11 // pred_check
        %p337 = pneg %p185
      $region22: #{trans10_forward.44} parent=11 // pred_check_branch
        %339 = sbr.rel (%p337) target = $region24
      $region23: #{trans10_forward.44} parent=11 // pred_region
        _
      $region24: #{trans10_forward.44} parent=11 // pred_fallthru
        _
      // Predicated region
      $region25: #{trans10_forward.44} parent=11 // pred_check
        %p340 = pneg %p206
      $region26: #{trans10_forward.44} parent=11 // pred_check_branch
        %342 = sbr.rel (%p340) target = $region28
      $region27: #{trans10_forward.44} parent=11 // pred_region
        _
      $region28: #{trans10_forward.44} parent=11 // pred_fallthru
        _
      // Predicated region
      $region29: #{trans10_forward.44} parent=11 // pred_check
        %p343 = pneg %p227
      $region30: #{trans10_forward.44} parent=11 // pred_check_branch
        %345 = sbr.rel (%p343) target = $region32
      $region31: #{trans10_forward.44} parent=11 // pred_region
        _
      $region32: #{trans10_forward.44} parent=11 // pred_fallthru
        _
      // Predicated region
      $region33: #{trans10_forward.44} parent=11 // pred_check
        %p346 = pneg %p248
      $region34: #{trans10_forward.44} parent=11 // pred_check_branch
        %348 = sbr.rel (%p346) target = $region36
      $region35: #{trans10_forward.44} parent=11 // pred_region
        _
      $region36: #{trans10_forward.44} parent=11 // pred_fallthru
        _
      // Predicated region
      $region37: #{trans10_forward.44} parent=11 // pred_check
        %p349 = pneg %p269
      $region38: #{trans10_forward.44} parent=11 // pred_check_branch
        %351 = sbr.rel (%p349) target = $region40
      $region39: #{trans10_forward.44} parent=11 // pred_region
        _
      $region40: #{trans10_forward.44} parent=11 // pred_fallthru
        _
      // Predicated region
      $region41: #{trans10_forward.44} parent=11 // pred_check
        %p352 = pneg %p290
      $region42: #{trans10_forward.44} parent=11 // pred_check_branch
        %354 = sbr.rel (%p352) target = $region44
      $region43: #{trans10_forward.44} parent=11 // pred_region
        _
      $region44: #{trans10_forward.44} parent=11 // pred_fallthru
        _
    $region12: #{trans10_forward.44} parent=5 // pred_fallthru
      _
    %p355 = scmp.lt.s32.totalorder %s18, 2
    // Predicated region
    $region45: #{trans10_forward.44} parent=5 // pred_check
      %p356 = pneg %p355
    $region46: #{trans10_forward.44} parent=5 // pred_check_branch
      %358 = sbr.rel (%p356) target = $region48
    $region47: #{trans10_forward.44} parent=5 // pred_region
      // Predicated region
      $region49: #{trans10_forward.44} parent=47 // pred_check
        %p359 = pneg %p38
      $region50: #{trans10_forward.44} parent=47 // pred_check_branch
        %361 = sbr.rel (%p359) target = $region52
      $region51: #{trans10_forward.44} parent=47 // pred_region
        %p362 = scmp.lt.s32.totalorder %s18, 1
        %s363 = scalar_select %p362, %s18, 1
        %s364 = smul.addr %s363, 8
        %s365 = smul.addr %s364, 8
        %s366 = scalar_lea.vmem %s0, %s365
      $region52: #{trans10_forward.44} parent=47 // pred_fallthru
        _
      // Predicated region
      $region53: #{trans10_forward.44} parent=47 // pred_check
        %p367 = pneg %p64
      $region54: #{trans10_forward.44} parent=47 // pred_check_branch
        %369 = sbr.rel (%p367) target = $region56
      $region55: #{trans10_forward.44} parent=47 // pred_region
        %p370 = scmp.lt.s32.totalorder %s18, 1
        %s371 = scalar_select %p370, %s18, 1
        %s372 = smul.addr %s371, 8
        %s373 = smul.addr %s372, 8
        %s374 = scalar_lea.vmem %s1, %s373
      $region56: #{trans10_forward.44} parent=47 // pred_fallthru
        _
      // Predicated region
      $region57: #{trans10_forward.44} parent=47 // pred_check
        %p375 = pneg %p90
      $region58: #{trans10_forward.44} parent=47 // pred_check_branch
        %377 = sbr.rel (%p375) target = $region60
      $region59: #{trans10_forward.44} parent=47 // pred_region
        %p378 = scmp.lt.s32.totalorder %s18, 1
        %s379 = scalar_select %p378, %s18, 1
        %s380 = smul.addr %s379, 8
        %s381 = smul.addr %s380, 8
        %s382 = scalar_lea.vmem %s2, %s381
      $region60: #{trans10_forward.44} parent=47 // pred_fallthru
        _
      // Predicated region
      $region61: #{trans10_forward.44} parent=47 // pred_check
        %p383 = pneg %p116
      $region62: #{trans10_forward.44} parent=47 // pred_check_branch
        %385 = sbr.rel (%p383) target = $region64
      $region63: #{trans10_forward.44} parent=47 // pred_region
        %p386 = scmp.lt.s32.totalorder %s18, 1
        %s387 = scalar_select %p386, %s18, 1
        %s388 = smul.addr %s387, 8
        %s389 = smul.addr %s388, 8
        %s390 = scalar_lea.vmem %s3, %s389
      $region64: #{trans10_forward.44} parent=47 // pred_fallthru
        _
    $region48: #{trans10_forward.44} parent=5 // pred_fallthru
      _
    %p391 = scmp.le.s32.totalorder 1, %s18
    %p392 = scmp.lt.s32.totalorder %s18, 3
    %p393 = pnand %p391, %p392
    %p394 = pneg %p393
    // Predicated region
    $region65: #{trans10_forward.44} parent=5 // pred_check
      _
    $region66: #{trans10_forward.44} parent=5 // pred_check_branch
      %396 = sbr.rel (%p393) target = $region68
    $region67: #{trans10_forward.44} parent=5 // pred_region
      %s397 = ssub.s32 %s18, 1
      %p398 = scmp.lt.s32.totalorder %s23, 1
      %s399 = scalar_select %p398, %s23, 1
      %s400 = smul.addr %s399, 8
      %s401 = smul.addr %s400, 8
      %s402 = scalar_lea.vmem %s0, %s401
      %p403 = pneg %p44
      %p404 = pneg %p41
      %p405 = scmp.lt.s32.totalorder %s23, 1
      %s406 = scalar_select %p405, %s23, 1
      %s407 = smul.addr %s406, 8
      %s408 = smul.addr %s407, 8
      %s409 = scalar_lea.vmem %s1, %s408
      %p410 = pneg %p70
      %p411 = pneg %p67
      %p412 = scmp.lt.s32.totalorder %s23, 1
      %s413 = scalar_select %p412, %s23, 1
      %s414 = smul.addr %s413, 8
      %s415 = smul.addr %s414, 8
      %s416 = scalar_lea.vmem %s2, %s415
      %p417 = pneg %p96
      %p418 = pneg %p93
      %p419 = scmp.lt.s32.totalorder %s23, 1
      %s420 = scalar_select %p419, %s23, 1
      %s421 = smul.addr %s420, 8
      %s422 = smul.addr %s421, 8
      %s423 = scalar_lea.vmem %s3, %s422
      %p424 = pneg %p122
      %p425 = pneg %p119
      %p426 = pneg %p143
      %p427 = pneg %p140
      %p428 = pneg %p164
      %p429 = pneg %p161
      %p430 = pneg %p185
      %p431 = pneg %p182
      %p432 = pneg %p206
      %p433 = pneg %p203
      %p434 = pneg %p227
      %p435 = pneg %p224
      %p436 = pneg %p248
      %p437 = pneg %p245
      %p438 = pneg %p269
      %p439 = pneg %p266
      %p440 = pneg %p290
      %p441 = pneg %p287
      %p442 = pneg %p316
      %p443 = pneg %p313
      %p444 = scmp.lt.s32.totalorder %s23, 1
      %s445 = scalar_select %p444, %s23, 1
      %s446 = smul.addr %s445, 8
      %s447 = smul.addr %s446, 8
      %s448 = scalar_lea.vmem %s12, %s447
      %p449 = scmp.lt.s32.totalorder %s23, 1
      %s450 = scalar_select %p449, %s23, 1
      %s451 = smul.addr %s450, 8
      %s452 = smul.addr %s451, 8
      %s453 = scalar_lea.vmem %s0, %s452
      %p454 = scmp.lt.s32.totalorder %s23, 1
      %s455 = scalar_select %p454, %s23, 1
      %s456 = smul.addr %s455, 8
      %s457 = smul.addr %s456, 8
      %s458 = scalar_lea.vmem %s1, %s457
      %p459 = scmp.lt.s32.totalorder %s23, 1
      %s460 = scalar_select %p459, %s23, 1
      %s461 = smul.addr %s460, 8
      %s462 = smul.addr %s461, 8
      %s463 = scalar_lea.vmem %s2, %s462
      %p464 = scmp.lt.s32.totalorder %s23, 1
      %s465 = scalar_select %p464, %s23, 1
      %s466 = smul.addr %s465, 8
      %s467 = smul.addr %s466, 8
      %s468 = scalar_lea.vmem %s3, %s467
      %p469 = scmp.lt.s32.totalorder %s23, 1
      %s470 = scalar_select %p469, %s23, 1
      %s471 = smul.addr %s470, 8
      %s472 = smul.addr %s471, 8
      %s473 = scalar_lea.vmem %s12, %s472
      %v474 = vld [vmem:[%s10] sm:$0x3]
      %v475 = vld [vmem:[%s11] sm:$0x3]
      %v476 = vld [vmem:[%s453] sm:$0xff]
      %v477 = vld [vmem:[%s453 + $0x8] sm:$0xff]
      %v478 = vld [vmem:[%s453 + $0x10] sm:$0xff]
      %v479 = vld [vmem:[%s453 + $0x18] sm:$0xff]
      %v480 = vld [vmem:[%s453 + $0x20] sm:$0xff]
      %v481 = vld [vmem:[%s453 + $0x28] sm:$0xff]
      %v482 = vld [vmem:[%s453 + $0x30] sm:$0xff]
      %v483 = vld [vmem:[%s453 + $0x38] sm:$0xff]
      %492 = vrot.lane.b32.xlu0 %v476, 17
      %v493 = vpop.permute.xlu0 %492
      %494 = vrot.lane.b32.xlu0 %v477, 17
      %v495 = vpop.permute.xlu0 %494
      %496 = vrot.lane.b32.xlu0 %v478, 17
      %v497 = vpop.permute.xlu0 %496
      %498 = vrot.lane.b32.xlu0 %v479, 17
      %v499 = vpop.permute.xlu0 %498
      %500 = vrot.lane.b32.xlu0 %v480, 17
      %v501 = vpop.permute.xlu0 %500
      %502 = vrot.lane.b32.xlu0 %v481, 17
      %v503 = vpop.permute.xlu0 %502
      %504 = vrot.lane.b32.xlu0 %v482, 17
      %v505 = vpop.permute.xlu0 %504
      %506 = vrot.lane.b32.xlu0 %v483, 17
      %v507 = vpop.permute.xlu0 %506
      %vm508 = vcmask 138240
      %v509 = vsel %vm508, %v493, %v495
      %v510 = vsel %vm508, %v497, %v499
      %v511 = vsel %vm508, %v501, %v503
      %v512 = vsel %vm508, %v505, %v507
      %v525 = vsel %vm508, 0.0, %v493
      %v526 = vsel %vm508, 0.0, %v497
      %v527 = vsel %vm508, 0.0, %v501
      %v528 = vsel %vm508, 0.0, %v505
      %v529 = vsel %vm508, %v495, 0.0
      %v530 = vsel %vm508, %v499, 0.0
      %v531 = vsel %vm508, %v503, 0.0
      %v532 = vsel %vm508, %v507, 0.0
      %v533 = vld [vmem:[%s4] sm:$0xff]
      %v534 = vld [vmem:[%s4 + $0x8] sm:$0xff]
      %v535 = vld [vmem:[%s4 + $0x10] sm:$0xff]
      %v536 = vld [vmem:[%s4 + $0x18] sm:$0xff]
      %538 = vset.pattern.permute.xlu0 4
      %539 = vperm.xlu0 %538, %v533
      %v540 = vpop.permute.xlu0 %539
      %543 = vset.pattern.permute.xlu0 4
      %544 = vperm.xlu0 %543, %v534
      %v545 = vpop.permute.xlu0 %544
      %548 = vset.pattern.permute.xlu0 4
      %549 = vperm.xlu0 %548, %v535
      %v550 = vpop.permute.xlu0 %549
      %553 = vset.pattern.permute.xlu0 4
      %554 = vperm.xlu0 %553, %v536
      %v555 = vpop.permute.xlu0 %554
      %v557 = vmul.f32 %v476, %v540
      %v558 = vmul.f32 %v477, %v540
      %v559 = vmul.f32 %v478, %v545
      %v560 = vmul.f32 %v479, %v545
      %v561 = vmul.f32 %v480, %v550
      %v562 = vmul.f32 %v481, %v550
      %v563 = vmul.f32 %v482, %v555
      %v564 = vmul.f32 %v483, %v555
      %v566 = vlaneseq
      %v567 = vshrl.u32 %v566, 7
      %v568 = vsub.s32 0, %v567
      %v569 = vrot.slane %v474, %v568
      %v570 = vlaneseq
      %v571 = vshrl.u32 %v570, 7
      %v572 = vsub.s32 1, %v571
      %v573 = vrot.slane %v474, %v572
      %v576 = vmul.f32 %v525, %v569
      %v577 = vmul.f32 %v509, %v573
      %v578 = vmul.f32 %v526, %v569
      %v579 = vmul.f32 %v510, %v573
      %v580 = vmul.f32 %v527, %v569
      %v581 = vmul.f32 %v511, %v573
      %v582 = vmul.f32 %v528, %v569
      %v583 = vmul.f32 %v512, %v573
      %584 = vset.pattern.permute.xlu0 0
      %585 = vperm.xlu0 %584, %v533
      %v586 = vpop.permute.xlu0 %585
      %588 = vset.pattern.permute.xlu0 0
      %589 = vperm.xlu0 %588, %v534
      %v590 = vpop.permute.xlu0 %589
      %592 = vset.pattern.permute.xlu0 0
      %593 = vperm.xlu0 %592, %v535
      %v594 = vpop.permute.xlu0 %593
      %596 = vset.pattern.permute.xlu0 0
      %597 = vperm.xlu0 %596, %v536
      %v598 = vpop.permute.xlu0 %597
      %v600 = vmul.f32 %v576, %v586
      %v601 = vmul.f32 %v577, %v586
      %v602 = vmul.f32 %v578, %v590
      %v603 = vmul.f32 %v579, %v590
      %v604 = vmul.f32 %v580, %v594
      %v605 = vmul.f32 %v581, %v594
      %v606 = vmul.f32 %v582, %v598
      %v607 = vmul.f32 %v583, %v598
      %v608 = vadd.f32 %v557, %v600
      %v609 = vadd.f32 %v558, %v601
      %v610 = vadd.f32 %v559, %v602
      %v611 = vadd.f32 %v560, %v603
      %v612 = vadd.f32 %v561, %v604
      %v613 = vadd.f32 %v562, %v605
      %v614 = vadd.f32 %v563, %v606
      %v615 = vadd.f32 %v564, %v607
      %616 = vset.pattern.permute.xlu0 1
      %617 = vperm.xlu0 %616, %v533
      %v618 = vpop.permute.xlu0 %617
      %620 = vset.pattern.permute.xlu0 1
      %621 = vperm.xlu0 %620, %v534
      %v622 = vpop.permute.xlu0 %621
      %624 = vset.pattern.permute.xlu0 1
      %625 = vperm.xlu0 %624, %v535
      %v626 = vpop.permute.xlu0 %625
      %628 = vset.pattern.permute.xlu0 1
      %629 = vperm.xlu0 %628, %v536
      %v630 = vpop.permute.xlu0 %629
      %v632 = vmul.f32 %v525, %v618
      %v633 = vmul.f32 %v509, %v618
      %v634 = vmul.f32 %v529, %v618
      %v635 = vmul.f32 %v526, %v622
      %v636 = vmul.f32 %v510, %v622
      %v637 = vmul.f32 %v530, %v622
      %v638 = vmul.f32 %v527, %v626
      %v639 = vmul.f32 %v511, %v626
      %v640 = vmul.f32 %v531, %v626
      %v641 = vmul.f32 %v528, %v630
      %v642 = vmul.f32 %v512, %v630
      %v643 = vmul.f32 %v532, %v630
      %656 = vrot.lane.b32.xlu0 %v632, 127
      %v657 = vpop.permute.xlu0 %656
      %658 = vrot.lane.b32.xlu0 %v633, 127
      %v659 = vpop.permute.xlu0 %658
      %660 = vrot.lane.b32.xlu0 %v634, 127
      %v661 = vpop.permute.xlu0 %660
      %662 = vrot.lane.b32.xlu0 %v635, 127
      %v663 = vpop.permute.xlu0 %662
      %664 = vrot.lane.b32.xlu0 %v636, 127
      %v665 = vpop.permute.xlu0 %664
      %666 = vrot.lane.b32.xlu0 %v637, 127
      %v667 = vpop.permute.xlu0 %666
      %668 = vrot.lane.b32.xlu0 %v638, 127
      %v669 = vpop.permute.xlu0 %668
      %670 = vrot.lane.b32.xlu0 %v639, 127
      %v671 = vpop.permute.xlu0 %670
      %672 = vrot.lane.b32.xlu0 %v640, 127
      %v673 = vpop.permute.xlu0 %672
      %674 = vrot.lane.b32.xlu0 %v641, 127
      %v675 = vpop.permute.xlu0 %674
      %676 = vrot.lane.b32.xlu0 %v642, 127
      %v677 = vpop.permute.xlu0 %676
      %678 = vrot.lane.b32.xlu0 %v643, 127
      %v679 = vpop.permute.xlu0 %678
      %vm680 = vcmask 1039360
      %v681 = vsel %vm680, %v657, %v659
      %v682 = vsel %vm680, %v659, %v661
      %v683 = vsel %vm680, %v663, %v665
      %v684 = vsel %vm680, %v665, %v667
      %v685 = vsel %vm680, %v669, %v671
      %v686 = vsel %vm680, %v671, %v673
      %v687 = vsel %vm680, %v675, %v677
      %v688 = vsel %vm680, %v677, %v679
      %v697 = vadd.f32 %v608, %v681
      %v698 = vadd.f32 %v609, %v682
      %v699 = vadd.f32 %v610, %v683
      %v700 = vadd.f32 %v611, %v684
      %v701 = vadd.f32 %v612, %v685
      %v702 = vadd.f32 %v613, %v686
      %v703 = vadd.f32 %v614, %v687
      %v704 = vadd.f32 %v615, %v688
      %v706 = vlaneseq
      %v707 = vshrl.u32 %v706, 7
      %v708 = vsub.s32 0, %v707
      %v709 = vrot.slane %v475, %v708
      %v710 = vlaneseq
      %v711 = vshrl.u32 %v710, 7
      %v712 = vsub.s32 1, %v711
      %v713 = vrot.slane %v475, %v712
      %714 = vrot.lane.b32.xlu0 %v709, 2
      %v715 = vpop.permute.xlu0 %714
      %716 = vrot.lane.b32.xlu0 %v713, 2
      %v717 = vpop.permute.xlu0 %716
      %vm718 = vcmask 15360
      %v719 = vsel %vm718, %v715, %v717
      %v723 = vmul.f32 %v525, %v715
      %v724 = vmul.f32 %v509, %v719
      %v725 = vmul.f32 %v529, %v717
      %v726 = vmul.f32 %v526, %v715
      %v727 = vmul.f32 %v510, %v719
      %v728 = vmul.f32 %v530, %v717
      %v729 = vmul.f32 %v527, %v715
      %v730 = vmul.f32 %v511, %v719
      %v731 = vmul.f32 %v531, %v717
      %v732 = vmul.f32 %v528, %v715
      %v733 = vmul.f32 %v512, %v719
      %v734 = vmul.f32 %v532, %v717
      %735 = vset.pattern.permute.xlu0 2
      %736 = vperm.xlu0 %735, %v533
      %v737 = vpop.permute.xlu0 %736
      %739 = vset.pattern.permute.xlu0 2
      %740 = vperm.xlu0 %739, %v534
      %v741 = vpop.permute.xlu0 %740
      %743 = vset.pattern.permute.xlu0 2
      %744 = vperm.xlu0 %743, %v535
      %v745 = vpop.permute.xlu0 %744
      %747 = vset.pattern.permute.xlu0 2
      %748 = vperm.xlu0 %747, %v536
      %v749 = vpop.permute.xlu0 %748
      %v751 = vmul.f32 %v723, %v737
      %v752 = vmul.f32 %v724, %v737
      %v753 = vmul.f32 %v725, %v737
      %v754 = vmul.f32 %v726, %v741
      %v755 = vmul.f32 %v727, %v741
      %v756 = vmul.f32 %v728, %v741
      %v757 = vmul.f32 %v729, %v745
      %v758 = vmul.f32 %v730, %v745
      %v759 = vmul.f32 %v731, %v745
      %v760 = vmul.f32 %v732, %v749
      %v761 = vmul.f32 %v733, %v749
      %v762 = vmul.f32 %v734, %v749
      %775 = vrot.lane.b32.xlu0 %v751, 126
      %v776 = vpop.permute.xlu0 %775
      %777 = vrot.lane.b32.xlu0 %v752, 126
      %v778 = vpop.permute.xlu0 %777
      %779 = vrot.lane.b32.xlu0 %v753, 126
      %v780 = vpop.permute.xlu0 %779
      %781 = vrot.lane.b32.xlu0 %v754, 126
      %v782 = vpop.permute.xlu0 %781
      %783 = vrot.lane.b32.xlu0 %v755, 126
      %v784 = vpop.permute.xlu0 %783
      %785 = vrot.lane.b32.xlu0 %v756, 126
      %v786 = vpop.permute.xlu0 %785
      %787 = vrot.lane.b32.xlu0 %v757, 126
      %v788 = vpop.permute.xlu0 %787
      %789 = vrot.lane.b32.xlu0 %v758, 126
      %v790 = vpop.permute.xlu0 %789
      %791 = vrot.lane.b32.xlu0 %v759, 126
      %v792 = vpop.permute.xlu0 %791
      %793 = vrot.lane.b32.xlu0 %v760, 126
      %v794 = vpop.permute.xlu0 %793
      %795 = vrot.lane.b32.xlu0 %v761, 126
      %v796 = vpop.permute.xlu0 %795
      %797 = vrot.lane.b32.xlu0 %v762, 126
      %v798 = vpop.permute.xlu0 %797
      %vm799 = vcmask 1031168
      %v800 = vsel %vm799, %v776, %v778
      %v801 = vsel %vm799, %v778, %v780
      %v802 = vsel %vm799, %v782, %v784
      %v803 = vsel %vm799, %v784, %v786
      %v804 = vsel %vm799, %v788, %v790
      %v805 = vsel %vm799, %v790, %v792
      %v806 = vsel %vm799, %v794, %v796
      %v807 = vsel %vm799, %v796, %v798
      %v816 = vadd.f32 %v697, %v800
      %v817 = vadd.f32 %v698, %v801
      %v818 = vadd.f32 %v699, %v802
      %v819 = vadd.f32 %v700, %v803
      %v820 = vadd.f32 %v701, %v804
      %v821 = vadd.f32 %v702, %v805
      %v822 = vadd.f32 %v703, %v806
      %v823 = vadd.f32 %v704, %v807
      %824 = vrot.lane.b32.xlu0 %v569, 16
      %v825 = vpop.permute.xlu0 %824
      %826 = vrot.lane.b32.xlu0 %v573, 16
      %v827 = vpop.permute.xlu0 %826
      %vm828 = vcmask 130048
      %v829 = vsel %vm828, %v825, %v827
      %v833 = vmul.f32 %v525, %v825
      %v834 = vmul.f32 %v509, %v829
      %v835 = vmul.f32 %v529, %v827
      %v836 = vmul.f32 %v526, %v825
      %v837 = vmul.f32 %v510, %v829
      %v838 = vmul.f32 %v530, %v827
      %v839 = vmul.f32 %v527, %v825
      %v840 = vmul.f32 %v511, %v829
      %v841 = vmul.f32 %v531, %v827
      %v842 = vmul.f32 %v528, %v825
      %v843 = vmul.f32 %v512, %v829
      %v844 = vmul.f32 %v532, %v827
      %845 = vset.pattern.permute.xlu0 3
      %846 = vperm.xlu0 %845, %v533
      %v847 = vpop.permute.xlu0 %846
      %849 = vset.pattern.permute.xlu0 3
      %850 = vperm.xlu0 %849, %v534
      %v851 = vpop.permute.xlu0 %850
      %853 = vset.pattern.permute.xlu0 3
      %854 = vperm.xlu0 %853, %v535
      %v855 = vpop.permute.xlu0 %854
      %857 = vset.pattern.permute.xlu0 3
      %858 = vperm.xlu0 %857, %v536
      %v859 = vpop.permute.xlu0 %858
      %v861 = vmul.f32 %v833, %v847
      %v862 = vmul.f32 %v834, %v847
      %v863 = vmul.f32 %v835, %v847
      %v864 = vmul.f32 %v836, %v851
      %v865 = vmul.f32 %v837, %v851
      %v866 = vmul.f32 %v838, %v851
      %v867 = vmul.f32 %v839, %v855
      %v868 = vmul.f32 %v840, %v855
      %v869 = vmul.f32 %v841, %v855
      %v870 = vmul.f32 %v842, %v859
      %v871 = vmul.f32 %v843, %v859
      %v872 = vmul.f32 %v844, %v859
      %885 = vrot.lane.b32.xlu0 %v861, 112
      %v886 = vpop.permute.xlu0 %885
      %887 = vrot.lane.b32.xlu0 %v862, 112
      %v888 = vpop.permute.xlu0 %887
      %889 = vrot.lane.b32.xlu0 %v863, 112
      %v890 = vpop.permute.xlu0 %889
      %891 = vrot.lane.b32.xlu0 %v864, 112
      %v892 = vpop.permute.xlu0 %891
      %893 = vrot.lane.b32.xlu0 %v865, 112
      %v894 = vpop.permute.xlu0 %893
      %895 = vrot.lane.b32.xlu0 %v866, 112
      %v896 = vpop.permute.xlu0 %895
      %897 = vrot.lane.b32.xlu0 %v867, 112
      %v898 = vpop.permute.xlu0 %897
      %899 = vrot.lane.b32.xlu0 %v868, 112
      %v900 = vpop.permute.xlu0 %899
      %901 = vrot.lane.b32.xlu0 %v869, 112
      %v902 = vpop.permute.xlu0 %901
      %903 = vrot.lane.b32.xlu0 %v870, 112
      %v904 = vpop.permute.xlu0 %903
      %905 = vrot.lane.b32.xlu0 %v871, 112
      %v906 = vpop.permute.xlu0 %905
      %907 = vrot.lane.b32.xlu0 %v872, 112
      %v908 = vpop.permute.xlu0 %907
      %vm909 = vcmask 916480
      %v910 = vsel %vm909, %v886, %v888
      %v911 = vsel %vm909, %v888, %v890
      %v912 = vsel %vm909, %v892, %v894
      %v913 = vsel %vm909, %v894, %v896
      %v914 = vsel %vm909, %v898, %v900
      %v915 = vsel %vm909, %v900, %v902
      %v916 = vsel %vm909, %v904, %v906
      %v917 = vsel %vm909, %v906, %v908
      %v926 = vadd.f32 %v816, %v910
      %v927 = vadd.f32 %v817, %v911
      %v928 = vadd.f32 %v818, %v912
      %v929 = vadd.f32 %v819, %v913
      %v930 = vadd.f32 %v820, %v914
      %v931 = vadd.f32 %v821, %v915
      %v932 = vadd.f32 %v822, %v916
      %v933 = vadd.f32 %v823, %v917
      %934 = vrot.lane.b32.xlu0 %v709, 18
      %v935 = vpop.permute.xlu0 %934
      %936 = vrot.lane.b32.xlu0 %v713, 18
      %v937 = vpop.permute.xlu0 %936
      %vm938 = vcmask 146432
      %v939 = vsel %vm938, %v935, %v937
      %v943 = vmul.f32 %v525, %v935
      %v944 = vmul.f32 %v509, %v939
      %v945 = vmul.f32 %v529, %v937
      %v946 = vmul.f32 %v526, %v935
      %v947 = vmul.f32 %v510, %v939
      %v948 = vmul.f32 %v530, %v937
      %v949 = vmul.f32 %v527, %v935
      %v950 = vmul.f32 %v511, %v939
      %v951 = vmul.f32 %v531, %v937
      %v952 = vmul.f32 %v528, %v935
      %v953 = vmul.f32 %v512, %v939
      %v954 = vmul.f32 %v532, %v937
      %955 = vset.pattern.permute.xlu0 5
      %956 = vperm.xlu0 %955, %v533
      %v957 = vpop.permute.xlu0 %956
      %959 = vset.pattern.permute.xlu0 5
      %960 = vperm.xlu0 %959, %v534
      %v961 = vpop.permute.xlu0 %960
      %963 = vset.pattern.permute.xlu0 5
      %964 = vperm.xlu0 %963, %v535
      %v965 = vpop.permute.xlu0 %964
      %967 = vset.pattern.permute.xlu0 5
      %968 = vperm.xlu0 %967, %v536
      %v969 = vpop.permute.xlu0 %968
      %v971 = vmul.f32 %v943, %v957
      %v972 = vmul.f32 %v944, %v957
      %v973 = vmul.f32 %v945, %v957
      %v974 = vmul.f32 %v946, %v961
      %v975 = vmul.f32 %v947, %v961
      %v976 = vmul.f32 %v948, %v961
      %v977 = vmul.f32 %v949, %v965
      %v978 = vmul.f32 %v950, %v965
      %v979 = vmul.f32 %v951, %v965
      %v980 = vmul.f32 %v952, %v969
      %v981 = vmul.f32 %v953, %v969
      %v982 = vmul.f32 %v954, %v969
      %995 = vrot.lane.b32.xlu0 %v971, 110
      %v996 = vpop.permute.xlu0 %995
      %997 = vrot.lane.b32.xlu0 %v972, 110
      %v998 = vpop.permute.xlu0 %997
      %999 = vrot.lane.b32.xlu0 %v973, 110
      %v1000 = vpop.permute.xlu0 %999
      %1001 = vrot.lane.b32.xlu0 %v974, 110
      %v1002 = vpop.permute.xlu0 %1001
      %1003 = vrot.lane.b32.xlu0 %v975, 110
      %v1004 = vpop.permute.xlu0 %1003
      %1005 = vrot.lane.b32.xlu0 %v976, 110
      %v1006 = vpop.permute.xlu0 %1005
      %1007 = vrot.lane.b32.xlu0 %v977, 110
      %v1008 = vpop.permute.xlu0 %1007
      %1009 = vrot.lane.b32.xlu0 %v978, 110
      %v1010 = vpop.permute.xlu0 %1009
      %1011 = vrot.lane.b32.xlu0 %v979, 110
      %v1012 = vpop.permute.xlu0 %1011
      %1013 = vrot.lane.b32.xlu0 %v980, 110
      %v1014 = vpop.permute.xlu0 %1013
      %1015 = vrot.lane.b32.xlu0 %v981, 110
      %v1016 = vpop.permute.xlu0 %1015
      %1017 = vrot.lane.b32.xlu0 %v982, 110
      %v1018 = vpop.permute.xlu0 %1017
      %vm1019 = vcmask 900096
      %v1020 = vsel %vm1019, %v996, %v998
      %v1021 = vsel %vm1019, %v998, %v1000
      %v1022 = vsel %vm1019, %v1002, %v1004
      %v1023 = vsel %vm1019, %v1004, %v1006
      %v1024 = vsel %vm1019, %v1008, %v1010
      %v1025 = vsel %vm1019, %v1010, %v1012
      %v1026 = vsel %vm1019, %v1014, %v1016
      %v1027 = vsel %vm1019, %v1016, %v1018
      %v1036 = vadd.f32 %v926, %v1020
      %v1037 = vadd.f32 %v927, %v1021
      %v1038 = vadd.f32 %v928, %v1022
      %v1039 = vadd.f32 %v929, %v1023
      %v1040 = vadd.f32 %v930, %v1024
      %v1041 = vadd.f32 %v931, %v1025
      %v1042 = vadd.f32 %v932, %v1026
      %v1043 = vadd.f32 %v933, %v1027
      %1044 = vrot.lane.b32.xlu0 %v569, 32
      %v1045 = vpop.permute.xlu0 %1044
      %1046 = vrot.lane.b32.xlu0 %v573, 32
      %v1047 = vpop.permute.xlu0 %1046
      %vm1048 = vcmask 261120
      %v1049 = vsel %vm1048, %v1045, %v1047
      %v1053 = vmul.f32 %v525, %v1045
      %v1054 = vmul.f32 %v509, %v1049
      %v1055 = vmul.f32 %v529, %v1047
      %v1056 = vmul.f32 %v526, %v1045
      %v1057 = vmul.f32 %v510, %v1049
      %v1058 = vmul.f32 %v530, %v1047
      %v1059 = vmul.f32 %v527, %v1045
      %v1060 = vmul.f32 %v511, %v1049
      %v1061 = vmul.f32 %v531, %v1047
      %v1062 = vmul.f32 %v528, %v1045
      %v1063 = vmul.f32 %v512, %v1049
      %v1064 = vmul.f32 %v532, %v1047
      %1065 = vset.pattern.permute.xlu0 6
      %1066 = vperm.xlu0 %1065, %v533
      %v1067 = vpop.permute.xlu0 %1066
      %1069 = vset.pattern.permute.xlu0 6
      %1070 = vperm.xlu0 %1069, %v534
      %v1071 = vpop.permute.xlu0 %1070
      %1073 = vset.pattern.permute.xlu0 6
      %1074 = vperm.xlu0 %1073, %v535
      %v1075 = vpop.permute.xlu0 %1074
      %1077 = vset.pattern.permute.xlu0 6
      %1078 = vperm.xlu0 %1077, %v536
      %v1079 = vpop.permute.xlu0 %1078
      %v1081 = vmul.f32 %v1053, %v1067
      %v1082 = vmul.f32 %v1054, %v1067
      %v1083 = vmul.f32 %v1055, %v1067
      %v1084 = vmul.f32 %v1056, %v1071
      %v1085 = vmul.f32 %v1057, %v1071
      %v1086 = vmul.f32 %v1058, %v1071
      %v1087 = vmul.f32 %v1059, %v1075
      %v1088 = vmul.f32 %v1060, %v1075
      %v1089 = vmul.f32 %v1061, %v1075
      %v1090 = vmul.f32 %v1062, %v1079
      %v1091 = vmul.f32 %v1063, %v1079
      %v1092 = vmul.f32 %v1064, %v1079
      %1105 = vrot.lane.b32.xlu0 %v1081, 96
      %v1106 = vpop.permute.xlu0 %1105
      %1107 = vrot.lane.b32.xlu0 %v1082, 96
      %v1108 = vpop.permute.xlu0 %1107
      %1109 = vrot.lane.b32.xlu0 %v1083, 96
      %v1110 = vpop.permute.xlu0 %1109
      %1111 = vrot.lane.b32.xlu0 %v1084, 96
      %v1112 = vpop.permute.xlu0 %1111
      %1113 = vrot.lane.b32.xlu0 %v1085, 96
      %v1114 = vpop.permute.xlu0 %1113
      %1115 = vrot.lane.b32.xlu0 %v1086, 96
      %v1116 = vpop.permute.xlu0 %1115
      %1117 = vrot.lane.b32.xlu0 %v1087, 96
      %v1118 = vpop.permute.xlu0 %1117
      %1119 = vrot.lane.b32.xlu0 %v1088, 96
      %v1120 = vpop.permute.xlu0 %1119
      %1121 = vrot.lane.b32.xlu0 %v1089, 96
      %v1122 = vpop.permute.xlu0 %1121
      %1123 = vrot.lane.b32.xlu0 %v1090, 96
      %v1124 = vpop.permute.xlu0 %1123
      %1125 = vrot.lane.b32.xlu0 %v1091, 96
      %v1126 = vpop.permute.xlu0 %1125
      %1127 = vrot.lane.b32.xlu0 %v1092, 96
      %v1128 = vpop.permute.xlu0 %1127
      %vm1129 = vcmask 785408
      %v1130 = vsel %vm1129, %v1106, %v1108
      %v1131 = vsel %vm1129, %v1108, %v1110
      %v1132 = vsel %vm1129, %v1112, %v1114
      %v1133 = vsel %vm1129, %v1114, %v1116
      %v1134 = vsel %vm1129, %v1118, %v1120
      %v1135 = vsel %vm1129, %v1120, %v1122
      %v1136 = vsel %vm1129, %v1124, %v1126
      %v1137 = vsel %vm1129, %v1126, %v1128
      %v1146 = vadd.f32 %v1036, %v1130
      %v1147 = vadd.f32 %v1037, %v1131
      %v1148 = vadd.f32 %v1038, %v1132
      %v1149 = vadd.f32 %v1039, %v1133
      %v1150 = vadd.f32 %v1040, %v1134
      %v1151 = vadd.f32 %v1041, %v1135
      %v1152 = vadd.f32 %v1042, %v1136
      %v1153 = vadd.f32 %v1043, %v1137
      %1154 = vset.pattern.permute.xlu0 7
      %1155 = vperm.xlu0 %1154, %v533
      %v1156 = vpop.permute.xlu0 %1155
      %1158 = vset.pattern.permute.xlu0 7
      %1159 = vperm.xlu0 %1158, %v534
      %v1160 = vpop.permute.xlu0 %1159
      %1162 = vset.pattern.permute.xlu0 7
      %1163 = vperm.xlu0 %1162, %v535
      %v1164 = vpop.permute.xlu0 %1163
      %1166 = vset.pattern.permute.xlu0 7
      %1167 = vperm.xlu0 %1166, %v536
      %v1168 = vpop.permute.xlu0 %1167
      %v1170 = vmul.f32 %v525, %v1156
      %v1171 = vmul.f32 %v509, %v1156
      %v1172 = vmul.f32 %v529, %v1156
      %v1173 = vmul.f32 %v526, %v1160
      %v1174 = vmul.f32 %v510, %v1160
      %v1175 = vmul.f32 %v530, %v1160
      %v1176 = vmul.f32 %v527, %v1164
      %v1177 = vmul.f32 %v511, %v1164
      %v1178 = vmul.f32 %v531, %v1164
      %v1179 = vmul.f32 %v528, %v1168
      %v1180 = vmul.f32 %v512, %v1168
      %v1181 = vmul.f32 %v532, %v1168
      %1194 = vrot.lane.b32.xlu0 %v1170, 95
      %v1195 = vpop.permute.xlu0 %1194
      %1196 = vrot.lane.b32.xlu0 %v1171, 95
      %v1197 = vpop.permute.xlu0 %1196
      %1198 = vrot.lane.b32.xlu0 %v1172, 95
      %v1199 = vpop.permute.xlu0 %1198
      %1200 = vrot.lane.b32.xlu0 %v1173, 95
      %v1201 = vpop.permute.xlu0 %1200
      %1202 = vrot.lane.b32.xlu0 %v1174, 95
      %v1203 = vpop.permute.xlu0 %1202
      %1204 = vrot.lane.b32.xlu0 %v1175, 95
      %v1205 = vpop.permute.xlu0 %1204
      %1206 = vrot.lane.b32.xlu0 %v1176, 95
      %v1207 = vpop.permute.xlu0 %1206
      %1208 = vrot.lane.b32.xlu0 %v1177, 95
      %v1209 = vpop.permute.xlu0 %1208
      %1210 = vrot.lane.b32.xlu0 %v1178, 95
      %v1211 = vpop.permute.xlu0 %1210
      %1212 = vrot.lane.b32.xlu0 %v1179, 95
      %v1213 = vpop.permute.xlu0 %1212
      %1214 = vrot.lane.b32.xlu0 %v1180, 95
      %v1215 = vpop.permute.xlu0 %1214
      %1216 = vrot.lane.b32.xlu0 %v1181, 95
      %v1217 = vpop.permute.xlu0 %1216
      %vm1218 = vcmask 777216
      %v1219 = vsel %vm1218, %v1195, %v1197
      %v1220 = vsel %vm1218, %v1197, %v1199
      %v1221 = vsel %vm1218, %v1201, %v1203
      %v1222 = vsel %vm1218, %v1203, %v1205
      %v1223 = vsel %vm1218, %v1207, %v1209
      %v1224 = vsel %vm1218, %v1209, %v1211
      %v1225 = vsel %vm1218, %v1213, %v1215
      %v1226 = vsel %vm1218, %v1215, %v1217
      %v1235 = vadd.f32 %v1146, %v1219
      %v1236 = vadd.f32 %v1147, %v1220
      %v1237 = vadd.f32 %v1148, %v1221
      %v1238 = vadd.f32 %v1149, %v1222
      %v1239 = vadd.f32 %v1150, %v1223
      %v1240 = vadd.f32 %v1151, %v1224
      %v1241 = vadd.f32 %v1152, %v1225
      %v1242 = vadd.f32 %v1153, %v1226
      %1243 = vrot.lane.b32.xlu0 %v709, 34
      %v1244 = vpop.permute.xlu0 %1243
      %1245 = vrot.lane.b32.xlu0 %v713, 34
      %v1246 = vpop.permute.xlu0 %1245
      %vm1247 = vcmask 277504
      %v1248 = vsel %vm1247, %v1244, %v1246
      %v1252 = vmul.f32 %v525, %v1244
      %v1253 = vmul.f32 %v509, %v1248
      %v1254 = vmul.f32 %v529, %v1246
      %v1255 = vmul.f32 %v526, %v1244
      %v1256 = vmul.f32 %v510, %v1248
      %v1257 = vmul.f32 %v530, %v1246
      %v1258 = vmul.f32 %v527, %v1244
      %v1259 = vmul.f32 %v511, %v1248
      %v1260 = vmul.f32 %v531, %v1246
      %v1261 = vmul.f32 %v528, %v1244
      %v1262 = vmul.f32 %v512, %v1248
      %v1263 = vmul.f32 %v532, %v1246
      %1264 = vset.pattern.permute.xlu0 8
      %1265 = vperm.xlu0 %1264, %v533
      %v1266 = vpop.permute.xlu0 %1265
      %1268 = vset.pattern.permute.xlu0 8
      %1269 = vperm.xlu0 %1268, %v534
      %v1270 = vpop.permute.xlu0 %1269
      %1272 = vset.pattern.permute.xlu0 8
      %1273 = vperm.xlu0 %1272, %v535
      %v1274 = vpop.permute.xlu0 %1273
      %1276 = vset.pattern.permute.xlu0 8
      %1277 = vperm.xlu0 %1276, %v536
      %v1278 = vpop.permute.xlu0 %1277
      %v1280 = vmul.f32 %v1252, %v1266
      %v1281 = vmul.f32 %v1253, %v1266
      %v1282 = vmul.f32 %v1254, %v1266
      %v1283 = vmul.f32 %v1255, %v1270
      %v1284 = vmul.f32 %v1256, %v1270
      %v1285 = vmul.f32 %v1257, %v1270
      %v1286 = vmul.f32 %v1258, %v1274
      %v1287 = vmul.f32 %v1259, %v1274
      %v1288 = vmul.f32 %v1260, %v1274
      %v1289 = vmul.f32 %v1261, %v1278
      %v1290 = vmul.f32 %v1262, %v1278
      %v1291 = vmul.f32 %v1263, %v1278
      %1304 = vrot.lane.b32.xlu0 %v1280, 94
      %v1305 = vpop.permute.xlu0 %1304
      %1306 = vrot.lane.b32.xlu0 %v1281, 94
      %v1307 = vpop.permute.xlu0 %1306
      %1308 = vrot.lane.b32.xlu0 %v1282, 94
      %v1309 = vpop.permute.xlu0 %1308
      %1310 = vrot.lane.b32.xlu0 %v1283, 94
      %v1311 = vpop.permute.xlu0 %1310
      %1312 = vrot.lane.b32.xlu0 %v1284, 94
      %v1313 = vpop.permute.xlu0 %1312
      %1314 = vrot.lane.b32.xlu0 %v1285, 94
      %v1315 = vpop.permute.xlu0 %1314
      %1316 = vrot.lane.b32.xlu0 %v1286, 94
      %v1317 = vpop.permute.xlu0 %1316
      %1318 = vrot.lane.b32.xlu0 %v1287, 94
      %v1319 = vpop.permute.xlu0 %1318
      %1320 = vrot.lane.b32.xlu0 %v1288, 94
      %v1321 = vpop.permute.xlu0 %1320
      %1322 = vrot.lane.b32.xlu0 %v1289, 94
      %v1323 = vpop.permute.xlu0 %1322
      %1324 = vrot.lane.b32.xlu0 %v1290, 94
      %v1325 = vpop.permute.xlu0 %1324
      %1326 = vrot.lane.b32.xlu0 %v1291, 94
      %v1327 = vpop.permute.xlu0 %1326
      %vm1328 = vcmask 769024
      %v1329 = vsel %vm1328, %v1305, %v1307
      %v1330 = vsel %vm1328, %v1307, %v1309
      %v1331 = vsel %vm1328, %v1311, %v1313
      %v1332 = vsel %vm1328, %v1313, %v1315
      %v1333 = vsel %vm1328, %v1317, %v1319
      %v1334 = vsel %vm1328, %v1319, %v1321
      %v1335 = vsel %vm1328, %v1323, %v1325
      %v1336 = vsel %vm1328, %v1325, %v1327
      %v1345 = vadd.f32 %v1235, %v1329
      %v1346 = vadd.f32 %v1236, %v1330
      %v1347 = vadd.f32 %v1237, %v1331
      %v1348 = vadd.f32 %v1238, %v1332
      %v1349 = vadd.f32 %v1239, %v1333
      %v1350 = vadd.f32 %v1240, %v1334
      %v1351 = vadd.f32 %v1241, %v1335
      %v1352 = vadd.f32 %v1242, %v1336
      %v1353 = vld [vmem:[%s458] sm:$0xff]
      %v1354 = vld [vmem:[%s458 + $0x8] sm:$0xff]
      %v1355 = vld [vmem:[%s458 + $0x10] sm:$0xff]
      %v1356 = vld [vmem:[%s458 + $0x18] sm:$0xff]
      %v1357 = vld [vmem:[%s458 + $0x20] sm:$0xff]
      %v1358 = vld [vmem:[%s458 + $0x28] sm:$0xff]
      %v1359 = vld [vmem:[%s458 + $0x30] sm:$0xff]
      %v1360 = vld [vmem:[%s458 + $0x38] sm:$0xff]
      %1369 = vrot.lane.b32.xlu0 %v1353, 17
      %v1370 = vpop.permute.xlu0 %1369
      %1371 = vrot.lane.b32.xlu0 %v1354, 17
      %v1372 = vpop.permute.xlu0 %1371
      %1373 = vrot.lane.b32.xlu0 %v1355, 17
      %v1374 = vpop.permute.xlu0 %1373
      %1375 = vrot.lane.b32.xlu0 %v1356, 17
      %v1376 = vpop.permute.xlu0 %1375
      %1377 = vrot.lane.b32.xlu0 %v1357, 17
      %v1378 = vpop.permute.xlu0 %1377
      %1379 = vrot.lane.b32.xlu0 %v1358, 17
      %v1380 = vpop.permute.xlu0 %1379
      %1381 = vrot.lane.b32.xlu0 %v1359, 17
      %v1382 = vpop.permute.xlu0 %1381
      %1383 = vrot.lane.b32.xlu0 %v1360, 17
      %v1384 = vpop.permute.xlu0 %1383
      %v1385 = vsel %vm508, %v1370, %v1372
      %v1386 = vsel %vm508, %v1374, %v1376
      %v1387 = vsel %vm508, %v1378, %v1380
      %v1388 = vsel %vm508, %v1382, %v1384
      %v1401 = vsel %vm508, 0.0, %v1370
      %v1402 = vsel %vm508, 0.0, %v1374
      %v1403 = vsel %vm508, 0.0, %v1378
      %v1404 = vsel %vm508, 0.0, %v1382
      %v1405 = vsel %vm508, %v1372, 0.0
      %v1406 = vsel %vm508, %v1376, 0.0
      %v1407 = vsel %vm508, %v1380, 0.0
      %v1408 = vsel %vm508, %v1384, 0.0
      %v1409 = vld [vmem:[%s5] sm:$0xff]
      %v1410 = vld [vmem:[%s5 + $0x8] sm:$0xff]
      %v1411 = vld [vmem:[%s5 + $0x10] sm:$0xff]
      %v1412 = vld [vmem:[%s5 + $0x18] sm:$0xff]
      %1414 = vset.pattern.permute.xlu0 4
      %1415 = vperm.xlu0 %1414, %v1409
      %v1416 = vpop.permute.xlu0 %1415
      %1419 = vset.pattern.permute.xlu0 4
      %1420 = vperm.xlu0 %1419, %v1410
      %v1421 = vpop.permute.xlu0 %1420
      %1424 = vset.pattern.permute.xlu0 4
      %1425 = vperm.xlu0 %1424, %v1411
      %v1426 = vpop.permute.xlu0 %1425
      %1429 = vset.pattern.permute.xlu0 4
      %1430 = vperm.xlu0 %1429, %v1412
      %v1431 = vpop.permute.xlu0 %1430
      %v1433 = vmul.f32 %v1353, %v1416
      %v1434 = vmul.f32 %v1354, %v1416
      %v1435 = vmul.f32 %v1355, %v1421
      %v1436 = vmul.f32 %v1356, %v1421
      %v1437 = vmul.f32 %v1357, %v1426
      %v1438 = vmul.f32 %v1358, %v1426
      %v1439 = vmul.f32 %v1359, %v1431
      %v1440 = vmul.f32 %v1360, %v1431
      %v1441 = vmul.f32 %v1401, %v569
      %v1442 = vmul.f32 %v1385, %v573
      %v1443 = vmul.f32 %v1402, %v569
      %v1444 = vmul.f32 %v1386, %v573
      %v1445 = vmul.f32 %v1403, %v569
      %v1446 = vmul.f32 %v1387, %v573
      %v1447 = vmul.f32 %v1404, %v569
      %v1448 = vmul.f32 %v1388, %v573
      %1449 = vset.pattern.permute.xlu0 0
      %1450 = vperm.xlu0 %1449, %v1409
      %v1451 = vpop.permute.xlu0 %1450
      %1453 = vset.pattern.permute.xlu0 0
      %1454 = vperm.xlu0 %1453, %v1410
      %v1455 = vpop.permute.xlu0 %1454
      %1457 = vset.pattern.permute.xlu0 0
      %1458 = vperm.xlu0 %1457, %v1411
      %v1459 = vpop.permute.xlu0 %1458
      %1461 = vset.pattern.permute.xlu0 0
      %1462 = vperm.xlu0 %1461, %v1412
      %v1463 = vpop.permute.xlu0 %1462
      %v1465 = vmul.f32 %v1441, %v1451
      %v1466 = vmul.f32 %v1442, %v1451
      %v1467 = vmul.f32 %v1443, %v1455
      %v1468 = vmul.f32 %v1444, %v1455
      %v1469 = vmul.f32 %v1445, %v1459
      %v1470 = vmul.f32 %v1446, %v1459
      %v1471 = vmul.f32 %v1447, %v1463
      %v1472 = vmul.f32 %v1448, %v1463
      %v1473 = vadd.f32 %v1433, %v1465
      %v1474 = vadd.f32 %v1434, %v1466
      %v1475 = vadd.f32 %v1435, %v1467
      %v1476 = vadd.f32 %v1436, %v1468
      %v1477 = vadd.f32 %v1437, %v1469
      %v1478 = vadd.f32 %v1438, %v1470
      %v1479 = vadd.f32 %v1439, %v1471
      %v1480 = vadd.f32 %v1440, %v1472
      %1481 = vset.pattern.permute.xlu0 1
      %1482 = vperm.xlu0 %1481, %v1409
      %v1483 = vpop.permute.xlu0 %1482
      %1485 = vset.pattern.permute.xlu0 1
      %1486 = vperm.xlu0 %1485, %v1410
      %v1487 = vpop.permute.xlu0 %1486
      %1489 = vset.pattern.permute.xlu0 1
      %1490 = vperm.xlu0 %1489, %v1411
      %v1491 = vpop.permute.xlu0 %1490
      %1493 = vset.pattern.permute.xlu0 1
      %1494 = vperm.xlu0 %1493, %v1412
      %v1495 = vpop.permute.xlu0 %1494
      %v1497 = vmul.f32 %v1401, %v1483
      %v1498 = vmul.f32 %v1385, %v1483
      %v1499 = vmul.f32 %v1405, %v1483
      %v1500 = vmul.f32 %v1402, %v1487
      %v1501 = vmul.f32 %v1386, %v1487
      %v1502 = vmul.f32 %v1406, %v1487
      %v1503 = vmul.f32 %v1403, %v1491
      %v1504 = vmul.f32 %v1387, %v1491
      %v1505 = vmul.f32 %v1407, %v1491
      %v1506 = vmul.f32 %v1404, %v1495
      %v1507 = vmul.f32 %v1388, %v1495
      %v1508 = vmul.f32 %v1408, %v1495
      %1521 = vrot.lane.b32.xlu0 %v1497, 127
      %v1522 = vpop.permute.xlu0 %1521
      %1523 = vrot.lane.b32.xlu0 %v1498, 127
      %v1524 = vpop.permute.xlu0 %1523
      %1525 = vrot.lane.b32.xlu0 %v1499, 127
      %v1526 = vpop.permute.xlu0 %1525
      %1527 = vrot.lane.b32.xlu0 %v1500, 127
      %v1528 = vpop.permute.xlu0 %1527
      %1529 = vrot.lane.b32.xlu0 %v1501, 127
      %v1530 = vpop.permute.xlu0 %1529
      %1531 = vrot.lane.b32.xlu0 %v1502, 127
      %v1532 = vpop.permute.xlu0 %1531
      %1533 = vrot.lane.b32.xlu0 %v1503, 127
      %v1534 = vpop.permute.xlu0 %1533
      %1535 = vrot.lane.b32.xlu0 %v1504, 127
      %v1536 = vpop.permute.xlu0 %1535
      %1537 = vrot.lane.b32.xlu0 %v1505, 127
      %v1538 = vpop.permute.xlu0 %1537
      %1539 = vrot.lane.b32.xlu0 %v1506, 127
      %v1540 = vpop.permute.xlu0 %1539
      %1541 = vrot.lane.b32.xlu0 %v1507, 127
      %v1542 = vpop.permute.xlu0 %1541
      %1543 = vrot.lane.b32.xlu0 %v1508, 127
      %v1544 = vpop.permute.xlu0 %1543
      %v1545 = vsel %vm680, %v1522, %v1524
      %v1546 = vsel %vm680, %v1524, %v1526
      %v1547 = vsel %vm680, %v1528, %v1530
      %v1548 = vsel %vm680, %v1530, %v1532
      %v1549 = vsel %vm680, %v1534, %v1536
      %v1550 = vsel %vm680, %v1536, %v1538
      %v1551 = vsel %vm680, %v1540, %v1542
      %v1552 = vsel %vm680, %v1542, %v1544
      %v1561 = vadd.f32 %v1473, %v1545
      %v1562 = vadd.f32 %v1474, %v1546
      %v1563 = vadd.f32 %v1475, %v1547
      %v1564 = vadd.f32 %v1476, %v1548
      %v1565 = vadd.f32 %v1477, %v1549
      %v1566 = vadd.f32 %v1478, %v1550
      %v1567 = vadd.f32 %v1479, %v1551
      %v1568 = vadd.f32 %v1480, %v1552
      %v1569 = vmul.f32 %v1401, %v715
      %v1570 = vmul.f32 %v1385, %v719
      %v1571 = vmul.f32 %v1405, %v717
      %v1572 = vmul.f32 %v1402, %v715
      %v1573 = vmul.f32 %v1386, %v719
      %v1574 = vmul.f32 %v1406, %v717
      %v1575 = vmul.f32 %v1403, %v715
      %v1576 = vmul.f32 %v1387, %v719
      %v1577 = vmul.f32 %v1407, %v717
      %v1578 = vmul.f32 %v1404, %v715
      %v1579 = vmul.f32 %v1388, %v719
      %v1580 = vmul.f32 %v1408, %v717
      %1581 = vset.pattern.permute.xlu0 2
      %1582 = vperm.xlu0 %1581, %v1409
      %v1583 = vpop.permute.xlu0 %1582
      %1585 = vset.pattern.permute.xlu0 2
      %1586 = vperm.xlu0 %1585, %v1410
      %v1587 = vpop.permute.xlu0 %1586
      %1589 = vset.pattern.permute.xlu0 2
      %1590 = vperm.xlu0 %1589, %v1411
      %v1591 = vpop.permute.xlu0 %1590
      %1593 = vset.pattern.permute.xlu0 2
      %1594 = vperm.xlu0 %1593, %v1412
      %v1595 = vpop.permute.xlu0 %1594
      %v1597 = vmul.f32 %v1569, %v1583
      %v1598 = vmul.f32 %v1570, %v1583
      %v1599 = vmul.f32 %v1571, %v1583
      %v1600 = vmul.f32 %v1572, %v1587
      %v1601 = vmul.f32 %v1573, %v1587
      %v1602 = vmul.f32 %v1574, %v1587
      %v1603 = vmul.f32 %v1575, %v1591
      %v1604 = vmul.f32 %v1576, %v1591
      %v1605 = vmul.f32 %v1577, %v1591
      %v1606 = vmul.f32 %v1578, %v1595
      %v1607 = vmul.f32 %v1579, %v1595
      %v1608 = vmul.f32 %v1580, %v1595
      %1621 = vrot.lane.b32.xlu0 %v1597, 126
      %v1622 = vpop.permute.xlu0 %1621
      %1623 = vrot.lane.b32.xlu0 %v1598, 126
      %v1624 = vpop.permute.xlu0 %1623
      %1625 = vrot.lane.b32.xlu0 %v1599, 126
      %v1626 = vpop.permute.xlu0 %1625
      %1627 = vrot.lane.b32.xlu0 %v1600, 126
      %v1628 = vpop.permute.xlu0 %1627
      %1629 = vrot.lane.b32.xlu0 %v1601, 126
      %v1630 = vpop.permute.xlu0 %1629
      %1631 = vrot.lane.b32.xlu0 %v1602, 126
      %v1632 = vpop.permute.xlu0 %1631
      %1633 = vrot.lane.b32.xlu0 %v1603, 126
      %v1634 = vpop.permute.xlu0 %1633
      %1635 = vrot.lane.b32.xlu0 %v1604, 126
      %v1636 = vpop.permute.xlu0 %1635
      %1637 = vrot.lane.b32.xlu0 %v1605, 126
      %v1638 = vpop.permute.xlu0 %1637
      %1639 = vrot.lane.b32.xlu0 %v1606, 126
      %v1640 = vpop.permute.xlu0 %1639
      %1641 = vrot.lane.b32.xlu0 %v1607, 126
      %v1642 = vpop.permute.xlu0 %1641
      %1643 = vrot.lane.b32.xlu0 %v1608, 126
      %v1644 = vpop.permute.xlu0 %1643
      %v1645 = vsel %vm799, %v1622, %v1624
      %v1646 = vsel %vm799, %v1624, %v1626
      %v1647 = vsel %vm799, %v1628, %v1630
      %v1648 = vsel %vm799, %v1630, %v1632
      %v1649 = vsel %vm799, %v1634, %v1636
      %v1650 = vsel %vm799, %v1636, %v1638
      %v1651 = vsel %vm799, %v1640, %v1642
      %v1652 = vsel %vm799, %v1642, %v1644
      %v1661 = vadd.f32 %v1561, %v1645
      %v1662 = vadd.f32 %v1562, %v1646
      %v1663 = vadd.f32 %v1563, %v1647
      %v1664 = vadd.f32 %v1564, %v1648
      %v1665 = vadd.f32 %v1565, %v1649
      %v1666 = vadd.f32 %v1566, %v1650
      %v1667 = vadd.f32 %v1567, %v1651
      %v1668 = vadd.f32 %v1568, %v1652
      %v1669 = vmul.f32 %v1401, %v825
      %v1670 = vmul.f32 %v1385, %v829
      %v1671 = vmul.f32 %v1405, %v827
      %v1672 = vmul.f32 %v1402, %v825
      %v1673 = vmul.f32 %v1386, %v829
      %v1674 = vmul.f32 %v1406, %v827
      %v1675 = vmul.f32 %v1403, %v825
      %v1676 = vmul.f32 %v1387, %v829
      %v1677 = vmul.f32 %v1407, %v827
      %v1678 = vmul.f32 %v1404, %v825
      %v1679 = vmul.f32 %v1388, %v829
      %v1680 = vmul.f32 %v1408, %v827
      %1681 = vset.pattern.permute.xlu0 3
      %1682 = vperm.xlu0 %1681, %v1409
      %v1683 = vpop.permute.xlu0 %1682
      %1685 = vset.pattern.permute.xlu0 3
      %1686 = vperm.xlu0 %1685, %v1410
      %v1687 = vpop.permute.xlu0 %1686
      %1689 = vset.pattern.permute.xlu0 3
      %1690 = vperm.xlu0 %1689, %v1411
      %v1691 = vpop.permute.xlu0 %1690
      %1693 = vset.pattern.permute.xlu0 3
      %1694 = vperm.xlu0 %1693, %v1412
      %v1695 = vpop.permute.xlu0 %1694
      %v1697 = vmul.f32 %v1669, %v1683
      %v1698 = vmul.f32 %v1670, %v1683
      %v1699 = vmul.f32 %v1671, %v1683
      %v1700 = vmul.f32 %v1672, %v1687
      %v1701 = vmul.f32 %v1673, %v1687
      %v1702 = vmul.f32 %v1674, %v1687
      %v1703 = vmul.f32 %v1675, %v1691
      %v1704 = vmul.f32 %v1676, %v1691
      %v1705 = vmul.f32 %v1677, %v1691
      %v1706 = vmul.f32 %v1678, %v1695
      %v1707 = vmul.f32 %v1679, %v1695
      %v1708 = vmul.f32 %v1680, %v1695
      %1721 = vrot.lane.b32.xlu0 %v1697, 112
      %v1722 = vpop.permute.xlu0 %1721
      %1723 = vrot.lane.b32.xlu0 %v1698, 112
      %v1724 = vpop.permute.xlu0 %1723
      %1725 = vrot.lane.b32.xlu0 %v1699, 112
      %v1726 = vpop.permute.xlu0 %1725
      %1727 = vrot.lane.b32.xlu0 %v1700, 112
      %v1728 = vpop.permute.xlu0 %1727
      %1729 = vrot.lane.b32.xlu0 %v1701, 112
      %v1730 = vpop.permute.xlu0 %1729
      %1731 = vrot.lane.b32.xlu0 %v1702, 112
      %v1732 = vpop.permute.xlu0 %1731
      %1733 = vrot.lane.b32.xlu0 %v1703, 112
      %v1734 = vpop.permute.xlu0 %1733
      %1735 = vrot.lane.b32.xlu0 %v1704, 112
      %v1736 = vpop.permute.xlu0 %1735
      %1737 = vrot.lane.b32.xlu0 %v1705, 112
      %v1738 = vpop.permute.xlu0 %1737
      %1739 = vrot.lane.b32.xlu0 %v1706, 112
      %v1740 = vpop.permute.xlu0 %1739
      %1741 = vrot.lane.b32.xlu0 %v1707, 112
      %v1742 = vpop.permute.xlu0 %1741
      %1743 = vrot.lane.b32.xlu0 %v1708, 112
      %v1744 = vpop.permute.xlu0 %1743
      %v1745 = vsel %vm909, %v1722, %v1724
      %v1746 = vsel %vm909, %v1724, %v1726
      %v1747 = vsel %vm909, %v1728, %v1730
      %v1748 = vsel %vm909, %v1730, %v1732
      %v1749 = vsel %vm909, %v1734, %v1736
      %v1750 = vsel %vm909, %v1736, %v1738
      %v1751 = vsel %vm909, %v1740, %v1742
      %v1752 = vsel %vm909, %v1742, %v1744
      %v1761 = vadd.f32 %v1661, %v1745
      %v1762 = vadd.f32 %v1662, %v1746
      %v1763 = vadd.f32 %v1663, %v1747
      %v1764 = vadd.f32 %v1664, %v1748
      %v1765 = vadd.f32 %v1665, %v1749
      %v1766 = vadd.f32 %v1666, %v1750
      %v1767 = vadd.f32 %v1667, %v1751
      %v1768 = vadd.f32 %v1668, %v1752
      %v1769 = vmul.f32 %v1401, %v935
      %v1770 = vmul.f32 %v1385, %v939
      %v1771 = vmul.f32 %v1405, %v937
      %v1772 = vmul.f32 %v1402, %v935
      %v1773 = vmul.f32 %v1386, %v939
      %v1774 = vmul.f32 %v1406, %v937
      %v1775 = vmul.f32 %v1403, %v935
      %v1776 = vmul.f32 %v1387, %v939
      %v1777 = vmul.f32 %v1407, %v937
      %v1778 = vmul.f32 %v1404, %v935
      %v1779 = vmul.f32 %v1388, %v939
      %v1780 = vmul.f32 %v1408, %v937
      %1781 = vset.pattern.permute.xlu0 5
      %1782 = vperm.xlu0 %1781, %v1409
      %v1783 = vpop.permute.xlu0 %1782
      %1785 = vset.pattern.permute.xlu0 5
      %1786 = vperm.xlu0 %1785, %v1410
      %v1787 = vpop.permute.xlu0 %1786
      %1789 = vset.pattern.permute.xlu0 5
      %1790 = vperm.xlu0 %1789, %v1411
      %v1791 = vpop.permute.xlu0 %1790
      %1793 = vset.pattern.permute.xlu0 5
      %1794 = vperm.xlu0 %1793, %v1412
      %v1795 = vpop.permute.xlu0 %1794
      %v1797 = vmul.f32 %v1769, %v1783
      %v1798 = vmul.f32 %v1770, %v1783
      %v1799 = vmul.f32 %v1771, %v1783
      %v1800 = vmul.f32 %v1772, %v1787
      %v1801 = vmul.f32 %v1773, %v1787
      %v1802 = vmul.f32 %v1774, %v1787
      %v1803 = vmul.f32 %v1775, %v1791
      %v1804 = vmul.f32 %v1776, %v1791
      %v1805 = vmul.f32 %v1777, %v1791
      %v1806 = vmul.f32 %v1778, %v1795
      %v1807 = vmul.f32 %v1779, %v1795
      %v1808 = vmul.f32 %v1780, %v1795
      %1821 = vrot.lane.b32.xlu0 %v1797, 110
      %v1822 = vpop.permute.xlu0 %1821
      %1823 = vrot.lane.b32.xlu0 %v1798, 110
      %v1824 = vpop.permute.xlu0 %1823
      %1825 = vrot.lane.b32.xlu0 %v1799, 110
      %v1826 = vpop.permute.xlu0 %1825
      %1827 = vrot.lane.b32.xlu0 %v1800, 110
      %v1828 = vpop.permute.xlu0 %1827
      %1829 = vrot.lane.b32.xlu0 %v1801, 110
      %v1830 = vpop.permute.xlu0 %1829
      %1831 = vrot.lane.b32.xlu0 %v1802, 110
      %v1832 = vpop.permute.xlu0 %1831
      %1833 = vrot.lane.b32.xlu0 %v1803, 110
      %v1834 = vpop.permute.xlu0 %1833
      %1835 = vrot.lane.b32.xlu0 %v1804, 110
      %v1836 = vpop.permute.xlu0 %1835
      %1837 = vrot.lane.b32.xlu0 %v1805, 110
      %v1838 = vpop.permute.xlu0 %1837
      %1839 = vrot.lane.b32.xlu0 %v1806, 110
      %v1840 = vpop.permute.xlu0 %1839
      %1841 = vrot.lane.b32.xlu0 %v1807, 110
      %v1842 = vpop.permute.xlu0 %1841
      %1843 = vrot.lane.b32.xlu0 %v1808, 110
      %v1844 = vpop.permute.xlu0 %1843
      %v1845 = vsel %vm1019, %v1822, %v1824
      %v1846 = vsel %vm1019, %v1824, %v1826
      %v1847 = vsel %vm1019, %v1828, %v1830
      %v1848 = vsel %vm1019, %v1830, %v1832
      %v1849 = vsel %vm1019, %v1834, %v1836
      %v1850 = vsel %vm1019, %v1836, %v1838
      %v1851 = vsel %vm1019, %v1840, %v1842
      %v1852 = vsel %vm1019, %v1842, %v1844
      %v1861 = vadd.f32 %v1761, %v1845
      %v1862 = vadd.f32 %v1762, %v1846
      %v1863 = vadd.f32 %v1763, %v1847
      %v1864 = vadd.f32 %v1764, %v1848
      %v1865 = vadd.f32 %v1765, %v1849
      %v1866 = vadd.f32 %v1766, %v1850
      %v1867 = vadd.f32 %v1767, %v1851
      %v1868 = vadd.f32 %v1768, %v1852
      %v1869 = vmul.f32 %v1401, %v1045
      %v1870 = vmul.f32 %v1385, %v1049
      %v1871 = vmul.f32 %v1405, %v1047
      %v1872 = vmul.f32 %v1402, %v1045
      %v1873 = vmul.f32 %v1386, %v1049
      %v1874 = vmul.f32 %v1406, %v1047
      %v1875 = vmul.f32 %v1403, %v1045
      %v1876 = vmul.f32 %v1387, %v1049
      %v1877 = vmul.f32 %v1407, %v1047
      %v1878 = vmul.f32 %v1404, %v1045
      %v1879 = vmul.f32 %v1388, %v1049
      %v1880 = vmul.f32 %v1408, %v1047
      %1881 = vset.pattern.permute.xlu0 6
      %1882 = vperm.xlu0 %1881, %v1409
      %v1883 = vpop.permute.xlu0 %1882
      %1885 = vset.pattern.permute.xlu0 6
      %1886 = vperm.xlu0 %1885, %v1410
      %v1887 = vpop.permute.xlu0 %1886
      %1889 = vset.pattern.permute.xlu0 6
      %1890 = vperm.xlu0 %1889, %v1411
      %v1891 = vpop.permute.xlu0 %1890
      %1893 = vset.pattern.permute.xlu0 6
      %1894 = vperm.xlu0 %1893, %v1412
      %v1895 = vpop.permute.xlu0 %1894
      %v1897 = vmul.f32 %v1869, %v1883
      %v1898 = vmul.f32 %v1870, %v1883
      %v1899 = vmul.f32 %v1871, %v1883
      %v1900 = vmul.f32 %v1872, %v1887
      %v1901 = vmul.f32 %v1873, %v1887
      %v1902 = vmul.f32 %v1874, %v1887
      %v1903 = vmul.f32 %v1875, %v1891
      %v1904 = vmul.f32 %v1876, %v1891
      %v1905 = vmul.f32 %v1877, %v1891
      %v1906 = vmul.f32 %v1878, %v1895
      %v1907 = vmul.f32 %v1879, %v1895
      %v1908 = vmul.f32 %v1880, %v1895
      %1921 = vrot.lane.b32.xlu0 %v1897, 96
      %v1922 = vpop.permute.xlu0 %1921
      %1923 = vrot.lane.b32.xlu0 %v1898, 96
      %v1924 = vpop.permute.xlu0 %1923
      %1925 = vrot.lane.b32.xlu0 %v1899, 96
      %v1926 = vpop.permute.xlu0 %1925
      %1927 = vrot.lane.b32.xlu0 %v1900, 96
      %v1928 = vpop.permute.xlu0 %1927
      %1929 = vrot.lane.b32.xlu0 %v1901, 96
      %v1930 = vpop.permute.xlu0 %1929
      %1931 = vrot.lane.b32.xlu0 %v1902, 96
      %v1932 = vpop.permute.xlu0 %1931
      %1933 = vrot.lane.b32.xlu0 %v1903, 96
      %v1934 = vpop.permute.xlu0 %1933
      %1935 = vrot.lane.b32.xlu0 %v1904, 96
      %v1936 = vpop.permute.xlu0 %1935
      %1937 = vrot.lane.b32.xlu0 %v1905, 96
      %v1938 = vpop.permute.xlu0 %1937
      %1939 = vrot.lane.b32.xlu0 %v1906, 96
      %v1940 = vpop.permute.xlu0 %1939
      %1941 = vrot.lane.b32.xlu0 %v1907, 96
      %v1942 = vpop.permute.xlu0 %1941
      %1943 = vrot.lane.b32.xlu0 %v1908, 96
      %v1944 = vpop.permute.xlu0 %1943
      %v1945 = vsel %vm1129, %v1922, %v1924
      %v1946 = vsel %vm1129, %v1924, %v1926
      %v1947 = vsel %vm1129, %v1928, %v1930
      %v1948 = vsel %vm1129, %v1930, %v1932
      %v1949 = vsel %vm1129, %v1934, %v1936
      %v1950 = vsel %vm1129, %v1936, %v1938
      %v1951 = vsel %vm1129, %v1940, %v1942
      %v1952 = vsel %vm1129, %v1942, %v1944
      %v1961 = vadd.f32 %v1861, %v1945
      %v1962 = vadd.f32 %v1862, %v1946
      %v1963 = vadd.f32 %v1863, %v1947
      %v1964 = vadd.f32 %v1864, %v1948
      %v1965 = vadd.f32 %v1865, %v1949
      %v1966 = vadd.f32 %v1866, %v1950
      %v1967 = vadd.f32 %v1867, %v1951
      %v1968 = vadd.f32 %v1868, %v1952
      %1969 = vset.pattern.permute.xlu0 7
      %1970 = vperm.xlu0 %1969, %v1409
      %v1971 = vpop.permute.xlu0 %1970
      %1973 = vset.pattern.permute.xlu0 7
      %1974 = vperm.xlu0 %1973, %v1410
      %v1975 = vpop.permute.xlu0 %1974
      %1977 = vset.pattern.permute.xlu0 7
      %1978 = vperm.xlu0 %1977, %v1411
      %v1979 = vpop.permute.xlu0 %1978
      %1981 = vset.pattern.permute.xlu0 7
      %1982 = vperm.xlu0 %1981, %v1412
      %v1983 = vpop.permute.xlu0 %1982
      %v1985 = vmul.f32 %v1401, %v1971
      %v1986 = vmul.f32 %v1385, %v1971
      %v1987 = vmul.f32 %v1405, %v1971
      %v1988 = vmul.f32 %v1402, %v1975
      %v1989 = vmul.f32 %v1386, %v1975
      %v1990 = vmul.f32 %v1406, %v1975
      %v1991 = vmul.f32 %v1403, %v1979
      %v1992 = vmul.f32 %v1387, %v1979
      %v1993 = vmul.f32 %v1407, %v1979
      %v1994 = vmul.f32 %v1404, %v1983
      %v1995 = vmul.f32 %v1388, %v1983
      %v1996 = vmul.f32 %v1408, %v1983
      %2009 = vrot.lane.b32.xlu0 %v1985, 95
      %v2010 = vpop.permute.xlu0 %2009
      %2011 = vrot.lane.b32.xlu0 %v1986, 95
      %v2012 = vpop.permute.xlu0 %2011
      %2013 = vrot.lane.b32.xlu0 %v1987, 95
      %v2014 = vpop.permute.xlu0 %2013
      %2015 = vrot.lane.b32.xlu0 %v1988, 95
      %v2016 = vpop.permute.xlu0 %2015
      %2017 = vrot.lane.b32.xlu0 %v1989, 95
      %v2018 = vpop.permute.xlu0 %2017
      %2019 = vrot.lane.b32.xlu0 %v1990, 95
      %v2020 = vpop.permute.xlu0 %2019
      %2021 = vrot.lane.b32.xlu0 %v1991, 95
      %v2022 = vpop.permute.xlu0 %2021
      %2023 = vrot.lane.b32.xlu0 %v1992, 95
      %v2024 = vpop.permute.xlu0 %2023
      %2025 = vrot.lane.b32.xlu0 %v1993, 95
      %v2026 = vpop.permute.xlu0 %2025
      %2027 = vrot.lane.b32.xlu0 %v1994, 95
      %v2028 = vpop.permute.xlu0 %2027
      %2029 = vrot.lane.b32.xlu0 %v1995, 95
      %v2030 = vpop.permute.xlu0 %2029
      %2031 = vrot.lane.b32.xlu0 %v1996, 95
      %v2032 = vpop.permute.xlu0 %2031
      %v2033 = vsel %vm1218, %v2010, %v2012
      %v2034 = vsel %vm1218, %v2012, %v2014
      %v2035 = vsel %vm1218, %v2016, %v2018
      %v2036 = vsel %vm1218, %v2018, %v2020
      %v2037 = vsel %vm1218, %v2022, %v2024
      %v2038 = vsel %vm1218, %v2024, %v2026
      %v2039 = vsel %vm1218, %v2028, %v2030
      %v2040 = vsel %vm1218, %v2030, %v2032
      %v2049 = vadd.f32 %v1961, %v2033
      %v2050 = vadd.f32 %v1962, %v2034
      %v2051 = vadd.f32 %v1963, %v2035
      %v2052 = vadd.f32 %v1964, %v2036
      %v2053 = vadd.f32 %v1965, %v2037
      %v2054 = vadd.f32 %v1966, %v2038
      %v2055 = vadd.f32 %v1967, %v2039
      %v2056 = vadd.f32 %v1968, %v2040
      %v2057 = vmul.f32 %v1401, %v1244
      %v2058 = vmul.f32 %v1385, %v1248
      %v2059 = vmul.f32 %v1405, %v1246
      %v2060 = vmul.f32 %v1402, %v1244
      %v2061 = vmul.f32 %v1386, %v1248
      %v2062 = vmul.f32 %v1406, %v1246
      %v2063 = vmul.f32 %v1403, %v1244
      %v2064 = vmul.f32 %v1387, %v1248
      %v2065 = vmul.f32 %v1407, %v1246
      %v2066 = vmul.f32 %v1404, %v1244
      %v2067 = vmul.f32 %v1388, %v1248
      %v2068 = vmul.f32 %v1408, %v1246
      %2069 = vset.pattern.permute.xlu0 8
      %2070 = vperm.xlu0 %2069, %v1409
      %v2071 = vpop.permute.xlu0 %2070
      %2073 = vset.pattern.permute.xlu0 8
      %2074 = vperm.xlu0 %2073, %v1410
      %v2075 = vpop.permute.xlu0 %2074
      %2077 = vset.pattern.permute.xlu0 8
      %2078 = vperm.xlu0 %2077, %v1411
      %v2079 = vpop.permute.xlu0 %2078
      %2081 = vset.pattern.permute.xlu0 8
      %2082 = vperm.xlu0 %2081, %v1412
      %v2083 = vpop.permute.xlu0 %2082
      %v2085 = vmul.f32 %v2057, %v2071
      %v2086 = vmul.f32 %v2058, %v2071
      %v2087 = vmul.f32 %v2059, %v2071
      %v2088 = vmul.f32 %v2060, %v2075
      %v2089 = vmul.f32 %v2061, %v2075
      %v2090 = vmul.f32 %v2062, %v2075
      %v2091 = vmul.f32 %v2063, %v2079
      %v2092 = vmul.f32 %v2064, %v2079
      %v2093 = vmul.f32 %v2065, %v2079
      %v2094 = vmul.f32 %v2066, %v2083
      %v2095 = vmul.f32 %v2067, %v2083
      %v2096 = vmul.f32 %v2068, %v2083
      %2109 = vrot.lane.b32.xlu0 %v2085, 94
      %v2110 = vpop.permute.xlu0 %2109
      %2111 = vrot.lane.b32.xlu0 %v2086, 94
      %v2112 = vpop.permute.xlu0 %2111
      %2113 = vrot.lane.b32.xlu0 %v2087, 94
      %v2114 = vpop.permute.xlu0 %2113
      %2115 = vrot.lane.b32.xlu0 %v2088, 94
      %v2116 = vpop.permute.xlu0 %2115
      %2117 = vrot.lane.b32.xlu0 %v2089, 94
      %v2118 = vpop.permute.xlu0 %2117
      %2119 = vrot.lane.b32.xlu0 %v2090, 94
      %v2120 = vpop.permute.xlu0 %2119
      %2121 = vrot.lane.b32.xlu0 %v2091, 94
      %v2122 = vpop.permute.xlu0 %2121
      %2123 = vrot.lane.b32.xlu0 %v2092, 94
      %v2124 = vpop.permute.xlu0 %2123
      %2125 = vrot.lane.b32.xlu0 %v2093, 94
      %v2126 = vpop.permute.xlu0 %2125
      %2127 = vrot.lane.b32.xlu0 %v2094, 94
      %v2128 = vpop.permute.xlu0 %2127
      %2129 = vrot.lane.b32.xlu0 %v2095, 94
      %v2130 = vpop.permute.xlu0 %2129
      %2131 = vrot.lane.b32.xlu0 %v2096, 94
      %v2132 = vpop.permute.xlu0 %2131
      %v2133 = vsel %vm1328, %v2110, %v2112
      %v2134 = vsel %vm1328, %v2112, %v2114
      %v2135 = vsel %vm1328, %v2116, %v2118
      %v2136 = vsel %vm1328, %v2118, %v2120
      %v2137 = vsel %vm1328, %v2122, %v2124
      %v2138 = vsel %vm1328, %v2124, %v2126
      %v2139 = vsel %vm1328, %v2128, %v2130
      %v2140 = vsel %vm1328, %v2130, %v2132
      %v2149 = vadd.f32 %v2049, %v2133
      %v2150 = vadd.f32 %v2050, %v2134
      %v2151 = vadd.f32 %v2051, %v2135
      %v2152 = vadd.f32 %v2052, %v2136
      %v2153 = vadd.f32 %v2053, %v2137
      %v2154 = vadd.f32 %v2054, %v2138
      %v2155 = vadd.f32 %v2055, %v2139
      %v2156 = vadd.f32 %v2056, %v2140
      %v2157 = vld [vmem:[%s463] sm:$0xff]
      %v2158 = vld [vmem:[%s463 + $0x8] sm:$0xff]
      %v2159 = vld [vmem:[%s463 + $0x10] sm:$0xff]
      %v2160 = vld [vmem:[%s463 + $0x18] sm:$0xff]
      %v2161 = vld [vmem:[%s463 + $0x20] sm:$0xff]
      %v2162 = vld [vmem:[%s463 + $0x28] sm:$0xff]
      %v2163 = vld [vmem:[%s463 + $0x30] sm:$0xff]
      %v2164 = vld [vmem:[%s463 + $0x38] sm:$0xff]
      %2173 = vrot.lane.b32.xlu0 %v2157, 17
      %v2174 = vpop.permute.xlu0 %2173
      %2175 = vrot.lane.b32.xlu0 %v2158, 17
      %v2176 = vpop.permute.xlu0 %2175
      %2177 = vrot.lane.b32.xlu0 %v2159, 17
      %v2178 = vpop.permute.xlu0 %2177
      %2179 = vrot.lane.b32.xlu0 %v2160, 17
      %v2180 = vpop.permute.xlu0 %2179
      %2181 = vrot.lane.b32.xlu0 %v2161, 17
      %v2182 = vpop.permute.xlu0 %2181
      %2183 = vrot.lane.b32.xlu0 %v2162, 17
      %v2184 = vpop.permute.xlu0 %2183
      %2185 = vrot.lane.b32.xlu0 %v2163, 17
      %v2186 = vpop.permute.xlu0 %2185
      %2187 = vrot.lane.b32.xlu0 %v2164, 17
      %v2188 = vpop.permute.xlu0 %2187
      %v2189 = vsel %vm508, %v2174, %v2176
      %v2190 = vsel %vm508, %v2178, %v2180
      %v2191 = vsel %vm508, %v2182, %v2184
      %v2192 = vsel %vm508, %v2186, %v2188
      %v2205 = vsel %vm508, 0.0, %v2174
      %v2206 = vsel %vm508, 0.0, %v2178
      %v2207 = vsel %vm508, 0.0, %v2182
      %v2208 = vsel %vm508, 0.0, %v2186
      %v2209 = vsel %vm508, %v2176, 0.0
      %v2210 = vsel %vm508, %v2180, 0.0
      %v2211 = vsel %vm508, %v2184, 0.0
      %v2212 = vsel %vm508, %v2188, 0.0
      %v2213 = vld [vmem:[%s6] sm:$0xff]
      %v2214 = vld [vmem:[%s6 + $0x8] sm:$0xff]
      %v2215 = vld [vmem:[%s6 + $0x10] sm:$0xff]
      %v2216 = vld [vmem:[%s6 + $0x18] sm:$0xff]
      %2218 = vset.pattern.permute.xlu0 4
      %2219 = vperm.xlu0 %2218, %v2213
      %v2220 = vpop.permute.xlu0 %2219
      %2223 = vset.pattern.permute.xlu0 4
      %2224 = vperm.xlu0 %2223, %v2214
      %v2225 = vpop.permute.xlu0 %2224
      %2228 = vset.pattern.permute.xlu0 4
      %2229 = vperm.xlu0 %2228, %v2215
      %v2230 = vpop.permute.xlu0 %2229
      %2233 = vset.pattern.permute.xlu0 4
      %2234 = vperm.xlu0 %2233, %v2216
      %v2235 = vpop.permute.xlu0 %2234
      %v2237 = vmul.f32 %v2157, %v2220
      %v2238 = vmul.f32 %v2158, %v2220
      %v2239 = vmul.f32 %v2159, %v2225
      %v2240 = vmul.f32 %v2160, %v2225
      %v2241 = vmul.f32 %v2161, %v2230
      %v2242 = vmul.f32 %v2162, %v2230
      %v2243 = vmul.f32 %v2163, %v2235
      %v2244 = vmul.f32 %v2164, %v2235
      %v2245 = vmul.f32 %v2205, %v569
      %v2246 = vmul.f32 %v2189, %v573
      %v2247 = vmul.f32 %v2206, %v569
      %v2248 = vmul.f32 %v2190, %v573
      %v2249 = vmul.f32 %v2207, %v569
      %v2250 = vmul.f32 %v2191, %v573
      %v2251 = vmul.f32 %v2208, %v569
      %v2252 = vmul.f32 %v2192, %v573
      %2253 = vset.pattern.permute.xlu0 0
      %2254 = vperm.xlu0 %2253, %v2213
      %v2255 = vpop.permute.xlu0 %2254
      %2257 = vset.pattern.permute.xlu0 0
      %2258 = vperm.xlu0 %2257, %v2214
      %v2259 = vpop.permute.xlu0 %2258
      %2261 = vset.pattern.permute.xlu0 0
      %2262 = vperm.xlu0 %2261, %v2215
      %v2263 = vpop.permute.xlu0 %2262
      %2265 = vset.pattern.permute.xlu0 0
      %2266 = vperm.xlu0 %2265, %v2216
      %v2267 = vpop.permute.xlu0 %2266
      %v2269 = vmul.f32 %v2245, %v2255
      %v2270 = vmul.f32 %v2246, %v2255
      %v2271 = vmul.f32 %v2247, %v2259
      %v2272 = vmul.f32 %v2248, %v2259
      %v2273 = vmul.f32 %v2249, %v2263
      %v2274 = vmul.f32 %v2250, %v2263
      %v2275 = vmul.f32 %v2251, %v2267
      %v2276 = vmul.f32 %v2252, %v2267
      %v2277 = vadd.f32 %v2237, %v2269
      %v2278 = vadd.f32 %v2238, %v2270
      %v2279 = vadd.f32 %v2239, %v2271
      %v2280 = vadd.f32 %v2240, %v2272
      %v2281 = vadd.f32 %v2241, %v2273
      %v2282 = vadd.f32 %v2242, %v2274
      %v2283 = vadd.f32 %v2243, %v2275
      %v2284 = vadd.f32 %v2244, %v2276
      %2285 = vset.pattern.permute.xlu0 1
      %2286 = vperm.xlu0 %2285, %v2213
      %v2287 = vpop.permute.xlu0 %2286
      %2289 = vset.pattern.permute.xlu0 1
      %2290 = vperm.xlu0 %2289, %v2214
      %v2291 = vpop.permute.xlu0 %2290
      %2293 = vset.pattern.permute.xlu0 1
      %2294 = vperm.xlu0 %2293, %v2215
      %v2295 = vpop.permute.xlu0 %2294
      %2297 = vset.pattern.permute.xlu0 1
      %2298 = vperm.xlu0 %2297, %v2216
      %v2299 = vpop.permute.xlu0 %2298
      %v2301 = vmul.f32 %v2205, %v2287
      %v2302 = vmul.f32 %v2189, %v2287
      %v2303 = vmul.f32 %v2209, %v2287
      %v2304 = vmul.f32 %v2206, %v2291
      %v2305 = vmul.f32 %v2190, %v2291
      %v2306 = vmul.f32 %v2210, %v2291
      %v2307 = vmul.f32 %v2207, %v2295
      %v2308 = vmul.f32 %v2191, %v2295
      %v2309 = vmul.f32 %v2211, %v2295
      %v2310 = vmul.f32 %v2208, %v2299
      %v2311 = vmul.f32 %v2192, %v2299
      %v2312 = vmul.f32 %v2212, %v2299
      %2325 = vrot.lane.b32.xlu0 %v2301, 127
      %v2326 = vpop.permute.xlu0 %2325
      %2327 = vrot.lane.b32.xlu0 %v2302, 127
      %v2328 = vpop.permute.xlu0 %2327
      %2329 = vrot.lane.b32.xlu0 %v2303, 127
      %v2330 = vpop.permute.xlu0 %2329
      %2331 = vrot.lane.b32.xlu0 %v2304, 127
      %v2332 = vpop.permute.xlu0 %2331
      %2333 = vrot.lane.b32.xlu0 %v2305, 127
      %v2334 = vpop.permute.xlu0 %2333
      %2335 = vrot.lane.b32.xlu0 %v2306, 127
      %v2336 = vpop.permute.xlu0 %2335
      %2337 = vrot.lane.b32.xlu0 %v2307, 127
      %v2338 = vpop.permute.xlu0 %2337
      %2339 = vrot.lane.b32.xlu0 %v2308, 127
      %v2340 = vpop.permute.xlu0 %2339
      %2341 = vrot.lane.b32.xlu0 %v2309, 127
      %v2342 = vpop.permute.xlu0 %2341
      %2343 = vrot.lane.b32.xlu0 %v2310, 127
      %v2344 = vpop.permute.xlu0 %2343
      %2345 = vrot.lane.b32.xlu0 %v2311, 127
      %v2346 = vpop.permute.xlu0 %2345
      %2347 = vrot.lane.b32.xlu0 %v2312, 127
      %v2348 = vpop.permute.xlu0 %2347
      %v2349 = vsel %vm680, %v2326, %v2328
      %v2350 = vsel %vm680, %v2328, %v2330
      %v2351 = vsel %vm680, %v2332, %v2334
      %v2352 = vsel %vm680, %v2334, %v2336
      %v2353 = vsel %vm680, %v2338, %v2340
      %v2354 = vsel %vm680, %v2340, %v2342
      %v2355 = vsel %vm680, %v2344, %v2346
      %v2356 = vsel %vm680, %v2346, %v2348
      %v2365 = vadd.f32 %v2277, %v2349
      %v2366 = vadd.f32 %v2278, %v2350
      %v2367 = vadd.f32 %v2279, %v2351
      %v2368 = vadd.f32 %v2280, %v2352
      %v2369 = vadd.f32 %v2281, %v2353
      %v2370 = vadd.f32 %v2282, %v2354
      %v2371 = vadd.f32 %v2283, %v2355
      %v2372 = vadd.f32 %v2284, %v2356
      %v2373 = vmul.f32 %v2205, %v715
      %v2374 = vmul.f32 %v2189, %v719
      %v2375 = vmul.f32 %v2209, %v717
      %v2376 = vmul.f32 %v2206, %v715
      %v2377 = vmul.f32 %v2190, %v719
      %v2378 = vmul.f32 %v2210, %v717
      %v2379 = vmul.f32 %v2207, %v715
      %v2380 = vmul.f32 %v2191, %v719
      %v2381 = vmul.f32 %v2211, %v717
      %v2382 = vmul.f32 %v2208, %v715
      %v2383 = vmul.f32 %v2192, %v719
      %v2384 = vmul.f32 %v2212, %v717
      %2385 = vset.pattern.permute.xlu0 2
      %2386 = vperm.xlu0 %2385, %v2213
      %v2387 = vpop.permute.xlu0 %2386
      %2389 = vset.pattern.permute.xlu0 2
      %2390 = vperm.xlu0 %2389, %v2214
      %v2391 = vpop.permute.xlu0 %2390
      %2393 = vset.pattern.permute.xlu0 2
      %2394 = vperm.xlu0 %2393, %v2215
      %v2395 = vpop.permute.xlu0 %2394
      %2397 = vset.pattern.permute.xlu0 2
      %2398 = vperm.xlu0 %2397, %v2216
      %v2399 = vpop.permute.xlu0 %2398
      %v2401 = vmul.f32 %v2373, %v2387
      %v2402 = vmul.f32 %v2374, %v2387
      %v2403 = vmul.f32 %v2375, %v2387
      %v2404 = vmul.f32 %v2376, %v2391
      %v2405 = vmul.f32 %v2377, %v2391
      %v2406 = vmul.f32 %v2378, %v2391
      %v2407 = vmul.f32 %v2379, %v2395
      %v2408 = vmul.f32 %v2380, %v2395
      %v2409 = vmul.f32 %v2381, %v2395
      %v2410 = vmul.f32 %v2382, %v2399
      %v2411 = vmul.f32 %v2383, %v2399
      %v2412 = vmul.f32 %v2384, %v2399
      %2425 = vrot.lane.b32.xlu0 %v2401, 126
      %v2426 = vpop.permute.xlu0 %2425
      %2427 = vrot.lane.b32.xlu0 %v2402, 126
      %v2428 = vpop.permute.xlu0 %2427
      %2429 = vrot.lane.b32.xlu0 %v2403, 126
      %v2430 = vpop.permute.xlu0 %2429
      %2431 = vrot.lane.b32.xlu0 %v2404, 126
      %v2432 = vpop.permute.xlu0 %2431
      %2433 = vrot.lane.b32.xlu0 %v2405, 126
      %v2434 = vpop.permute.xlu0 %2433
      %2435 = vrot.lane.b32.xlu0 %v2406, 126
      %v2436 = vpop.permute.xlu0 %2435
      %2437 = vrot.lane.b32.xlu0 %v2407, 126
      %v2438 = vpop.permute.xlu0 %2437
      %2439 = vrot.lane.b32.xlu0 %v2408, 126
      %v2440 = vpop.permute.xlu0 %2439
      %2441 = vrot.lane.b32.xlu0 %v2409, 126
      %v2442 = vpop.permute.xlu0 %2441
      %2443 = vrot.lane.b32.xlu0 %v2410, 126
      %v2444 = vpop.permute.xlu0 %2443
      %2445 = vrot.lane.b32.xlu0 %v2411, 126
      %v2446 = vpop.permute.xlu0 %2445
      %2447 = vrot.lane.b32.xlu0 %v2412, 126
      %v2448 = vpop.permute.xlu0 %2447
      %v2449 = vsel %vm799, %v2426, %v2428
      %v2450 = vsel %vm799, %v2428, %v2430
      %v2451 = vsel %vm799, %v2432, %v2434
      %v2452 = vsel %vm799, %v2434, %v2436
      %v2453 = vsel %vm799, %v2438, %v2440
      %v2454 = vsel %vm799, %v2440, %v2442
      %v2455 = vsel %vm799, %v2444, %v2446
      %v2456 = vsel %vm799, %v2446, %v2448
      %v2465 = vadd.f32 %v2365, %v2449
      %v2466 = vadd.f32 %v2366, %v2450
      %v2467 = vadd.f32 %v2367, %v2451
      %v2468 = vadd.f32 %v2368, %v2452
      %v2469 = vadd.f32 %v2369, %v2453
      %v2470 = vadd.f32 %v2370, %v2454
      %v2471 = vadd.f32 %v2371, %v2455
      %v2472 = vadd.f32 %v2372, %v2456
      %v2473 = vmul.f32 %v2205, %v825
      %v2474 = vmul.f32 %v2189, %v829
      %v2475 = vmul.f32 %v2209, %v827
      %v2476 = vmul.f32 %v2206, %v825
      %v2477 = vmul.f32 %v2190, %v829
      %v2478 = vmul.f32 %v2210, %v827
      %v2479 = vmul.f32 %v2207, %v825
      %v2480 = vmul.f32 %v2191, %v829
      %v2481 = vmul.f32 %v2211, %v827
      %v2482 = vmul.f32 %v2208, %v825
      %v2483 = vmul.f32 %v2192, %v829
      %v2484 = vmul.f32 %v2212, %v827
      %2485 = vset.pattern.permute.xlu0 3
      %2486 = vperm.xlu0 %2485, %v2213
      %v2487 = vpop.permute.xlu0 %2486
      %2489 = vset.pattern.permute.xlu0 3
      %2490 = vperm.xlu0 %2489, %v2214
      %v2491 = vpop.permute.xlu0 %2490
      %2493 = vset.pattern.permute.xlu0 3
      %2494 = vperm.xlu0 %2493, %v2215
      %v2495 = vpop.permute.xlu0 %2494
      %2497 = vset.pattern.permute.xlu0 3
      %2498 = vperm.xlu0 %2497, %v2216
      %v2499 = vpop.permute.xlu0 %2498
      %v2501 = vmul.f32 %v2473, %v2487
      %v2502 = vmul.f32 %v2474, %v2487
      %v2503 = vmul.f32 %v2475, %v2487
      %v2504 = vmul.f32 %v2476, %v2491
      %v2505 = vmul.f32 %v2477, %v2491
      %v2506 = vmul.f32 %v2478, %v2491
      %v2507 = vmul.f32 %v2479, %v2495
      %v2508 = vmul.f32 %v2480, %v2495
      %v2509 = vmul.f32 %v2481, %v2495
      %v2510 = vmul.f32 %v2482, %v2499
      %v2511 = vmul.f32 %v2483, %v2499
      %v2512 = vmul.f32 %v2484, %v2499
      %2525 = vrot.lane.b32.xlu0 %v2501, 112
      %v2526 = vpop.permute.xlu0 %2525
      %2527 = vrot.lane.b32.xlu0 %v2502, 112
      %v2528 = vpop.permute.xlu0 %2527
      %2529 = vrot.lane.b32.xlu0 %v2503, 112
      %v2530 = vpop.permute.xlu0 %2529
      %2531 = vrot.lane.b32.xlu0 %v2504, 112
      %v2532 = vpop.permute.xlu0 %2531
      %2533 = vrot.lane.b32.xlu0 %v2505, 112
      %v2534 = vpop.permute.xlu0 %2533
      %2535 = vrot.lane.b32.xlu0 %v2506, 112
      %v2536 = vpop.permute.xlu0 %2535
      %2537 = vrot.lane.b32.xlu0 %v2507, 112
      %v2538 = vpop.permute.xlu0 %2537
      %2539 = vrot.lane.b32.xlu0 %v2508, 112
      %v2540 = vpop.permute.xlu0 %2539
      %2541 = vrot.lane.b32.xlu0 %v2509, 112
      %v2542 = vpop.permute.xlu0 %2541
      %2543 = vrot.lane.b32.xlu0 %v2510, 112
      %v2544 = vpop.permute.xlu0 %2543
      %2545 = vrot.lane.b32.xlu0 %v2511, 112
      %v2546 = vpop.permute.xlu0 %2545
      %2547 = vrot.lane.b32.xlu0 %v2512, 112
      %v2548 = vpop.permute.xlu0 %2547
      %v2549 = vsel %vm909, %v2526, %v2528
      %v2550 = vsel %vm909, %v2528, %v2530
      %v2551 = vsel %vm909, %v2532, %v2534
      %v2552 = vsel %vm909, %v2534, %v2536
      %v2553 = vsel %vm909, %v2538, %v2540
      %v2554 = vsel %vm909, %v2540, %v2542
      %v2555 = vsel %vm909, %v2544, %v2546
      %v2556 = vsel %vm909, %v2546, %v2548
      %v2565 = vadd.f32 %v2465, %v2549
      %v2566 = vadd.f32 %v2466, %v2550
      %v2567 = vadd.f32 %v2467, %v2551
      %v2568 = vadd.f32 %v2468, %v2552
      %v2569 = vadd.f32 %v2469, %v2553
      %v2570 = vadd.f32 %v2470, %v2554
      %v2571 = vadd.f32 %v2471, %v2555
      %v2572 = vadd.f32 %v2472, %v2556
      %v2573 = vmul.f32 %v2205, %v935
      %v2574 = vmul.f32 %v2189, %v939
      %v2575 = vmul.f32 %v2209, %v937
      %v2576 = vmul.f32 %v2206, %v935
      %v2577 = vmul.f32 %v2190, %v939
      %v2578 = vmul.f32 %v2210, %v937
      %v2579 = vmul.f32 %v2207, %v935
      %v2580 = vmul.f32 %v2191, %v939
      %v2581 = vmul.f32 %v2211, %v937
      %v2582 = vmul.f32 %v2208, %v935
      %v2583 = vmul.f32 %v2192, %v939
      %v2584 = vmul.f32 %v2212, %v937
      %2585 = vset.pattern.permute.xlu0 5
      %2586 = vperm.xlu0 %2585, %v2213
      %v2587 = vpop.permute.xlu0 %2586
      %2589 = vset.pattern.permute.xlu0 5
      %2590 = vperm.xlu0 %2589, %v2214
      %v2591 = vpop.permute.xlu0 %2590
      %2593 = vset.pattern.permute.xlu0 5
      %2594 = vperm.xlu0 %2593, %v2215
      %v2595 = vpop.permute.xlu0 %2594
      %2597 = vset.pattern.permute.xlu0 5
      %2598 = vperm.xlu0 %2597, %v2216
      %v2599 = vpop.permute.xlu0 %2598
      %v2601 = vmul.f32 %v2573, %v2587
      %v2602 = vmul.f32 %v2574, %v2587
      %v2603 = vmul.f32 %v2575, %v2587
      %v2604 = vmul.f32 %v2576, %v2591
      %v2605 = vmul.f32 %v2577, %v2591
      %v2606 = vmul.f32 %v2578, %v2591
      %v2607 = vmul.f32 %v2579, %v2595
      %v2608 = vmul.f32 %v2580, %v2595
      %v2609 = vmul.f32 %v2581, %v2595
      %v2610 = vmul.f32 %v2582, %v2599
      %v2611 = vmul.f32 %v2583, %v2599
      %v2612 = vmul.f32 %v2584, %v2599
      %2625 = vrot.lane.b32.xlu0 %v2601, 110
      %v2626 = vpop.permute.xlu0 %2625
      %2627 = vrot.lane.b32.xlu0 %v2602, 110
      %v2628 = vpop.permute.xlu0 %2627
      %2629 = vrot.lane.b32.xlu0 %v2603, 110
      %v2630 = vpop.permute.xlu0 %2629
      %2631 = vrot.lane.b32.xlu0 %v2604, 110
      %v2632 = vpop.permute.xlu0 %2631
      %2633 = vrot.lane.b32.xlu0 %v2605, 110
      %v2634 = vpop.permute.xlu0 %2633
      %2635 = vrot.lane.b32.xlu0 %v2606, 110
      %v2636 = vpop.permute.xlu0 %2635
      %2637 = vrot.lane.b32.xlu0 %v2607, 110
      %v2638 = vpop.permute.xlu0 %2637
      %2639 = vrot.lane.b32.xlu0 %v2608, 110
      %v2640 = vpop.permute.xlu0 %2639
      %2641 = vrot.lane.b32.xlu0 %v2609, 110
      %v2642 = vpop.permute.xlu0 %2641
      %2643 = vrot.lane.b32.xlu0 %v2610, 110
      %v2644 = vpop.permute.xlu0 %2643
      %2645 = vrot.lane.b32.xlu0 %v2611, 110
      %v2646 = vpop.permute.xlu0 %2645
      %2647 = vrot.lane.b32.xlu0 %v2612, 110
      %v2648 = vpop.permute.xlu0 %2647
      %v2649 = vsel %vm1019, %v2626, %v2628
      %v2650 = vsel %vm1019, %v2628, %v2630
      %v2651 = vsel %vm1019, %v2632, %v2634
      %v2652 = vsel %vm1019, %v2634, %v2636
      %v2653 = vsel %vm1019, %v2638, %v2640
      %v2654 = vsel %vm1019, %v2640, %v2642
      %v2655 = vsel %vm1019, %v2644, %v2646
      %v2656 = vsel %vm1019, %v2646, %v2648
      %v2665 = vadd.f32 %v2565, %v2649
      %v2666 = vadd.f32 %v2566, %v2650
      %v2667 = vadd.f32 %v2567, %v2651
      %v2668 = vadd.f32 %v2568, %v2652
      %v2669 = vadd.f32 %v2569, %v2653
      %v2670 = vadd.f32 %v2570, %v2654
      %v2671 = vadd.f32 %v2571, %v2655
      %v2672 = vadd.f32 %v2572, %v2656
      %v2673 = vmul.f32 %v2205, %v1045
      %v2674 = vmul.f32 %v2189, %v1049
      %v2675 = vmul.f32 %v2209, %v1047
      %v2676 = vmul.f32 %v2206, %v1045
      %v2677 = vmul.f32 %v2190, %v1049
      %v2678 = vmul.f32 %v2210, %v1047
      %v2679 = vmul.f32 %v2207, %v1045
      %v2680 = vmul.f32 %v2191, %v1049
      %v2681 = vmul.f32 %v2211, %v1047
      %v2682 = vmul.f32 %v2208, %v1045
      %v2683 = vmul.f32 %v2192, %v1049
      %v2684 = vmul.f32 %v2212, %v1047
      %2685 = vset.pattern.permute.xlu0 6
      %2686 = vperm.xlu0 %2685, %v2213
      %v2687 = vpop.permute.xlu0 %2686
      %2689 = vset.pattern.permute.xlu0 6
      %2690 = vperm.xlu0 %2689, %v2214
      %v2691 = vpop.permute.xlu0 %2690
      %2693 = vset.pattern.permute.xlu0 6
      %2694 = vperm.xlu0 %2693, %v2215
      %v2695 = vpop.permute.xlu0 %2694
      %2697 = vset.pattern.permute.xlu0 6
      %2698 = vperm.xlu0 %2697, %v2216
      %v2699 = vpop.permute.xlu0 %2698
      %v2701 = vmul.f32 %v2673, %v2687
      %v2702 = vmul.f32 %v2674, %v2687
      %v2703 = vmul.f32 %v2675, %v2687
      %v2704 = vmul.f32 %v2676, %v2691
      %v2705 = vmul.f32 %v2677, %v2691
      %v2706 = vmul.f32 %v2678, %v2691
      %v2707 = vmul.f32 %v2679, %v2695
      %v2708 = vmul.f32 %v2680, %v2695
      %v2709 = vmul.f32 %v2681, %v2695
      %v2710 = vmul.f32 %v2682, %v2699
      %v2711 = vmul.f32 %v2683, %v2699
      %v2712 = vmul.f32 %v2684, %v2699
      %2725 = vrot.lane.b32.xlu0 %v2701, 96
      %v2726 = vpop.permute.xlu0 %2725
      %2727 = vrot.lane.b32.xlu0 %v2702, 96
      %v2728 = vpop.permute.xlu0 %2727
      %2729 = vrot.lane.b32.xlu0 %v2703, 96
      %v2730 = vpop.permute.xlu0 %2729
      %2731 = vrot.lane.b32.xlu0 %v2704, 96
      %v2732 = vpop.permute.xlu0 %2731
      %2733 = vrot.lane.b32.xlu0 %v2705, 96
      %v2734 = vpop.permute.xlu0 %2733
      %2735 = vrot.lane.b32.xlu0 %v2706, 96
      %v2736 = vpop.permute.xlu0 %2735
      %2737 = vrot.lane.b32.xlu0 %v2707, 96
      %v2738 = vpop.permute.xlu0 %2737
      %2739 = vrot.lane.b32.xlu0 %v2708, 96
      %v2740 = vpop.permute.xlu0 %2739
      %2741 = vrot.lane.b32.xlu0 %v2709, 96
      %v2742 = vpop.permute.xlu0 %2741
      %2743 = vrot.lane.b32.xlu0 %v2710, 96
      %v2744 = vpop.permute.xlu0 %2743
      %2745 = vrot.lane.b32.xlu0 %v2711, 96
      %v2746 = vpop.permute.xlu0 %2745
      %2747 = vrot.lane.b32.xlu0 %v2712, 96
      %v2748 = vpop.permute.xlu0 %2747
      %v2749 = vsel %vm1129, %v2726, %v2728
      %v2750 = vsel %vm1129, %v2728, %v2730
      %v2751 = vsel %vm1129, %v2732, %v2734
      %v2752 = vsel %vm1129, %v2734, %v2736
      %v2753 = vsel %vm1129, %v2738, %v2740
      %v2754 = vsel %vm1129, %v2740, %v2742
      %v2755 = vsel %vm1129, %v2744, %v2746
      %v2756 = vsel %vm1129, %v2746, %v2748
      %v2765 = vadd.f32 %v2665, %v2749
      %v2766 = vadd.f32 %v2666, %v2750
      %v2767 = vadd.f32 %v2667, %v2751
      %v2768 = vadd.f32 %v2668, %v2752
      %v2769 = vadd.f32 %v2669, %v2753
      %v2770 = vadd.f32 %v2670, %v2754
      %v2771 = vadd.f32 %v2671, %v2755
      %v2772 = vadd.f32 %v2672, %v2756
      %2773 = vset.pattern.permute.xlu0 7
      %2774 = vperm.xlu0 %2773, %v2213
      %v2775 = vpop.permute.xlu0 %2774
      %2777 = vset.pattern.permute.xlu0 7
      %2778 = vperm.xlu0 %2777, %v2214
      %v2779 = vpop.permute.xlu0 %2778
      %2781 = vset.pattern.permute.xlu0 7
      %2782 = vperm.xlu0 %2781, %v2215
      %v2783 = vpop.permute.xlu0 %2782
      %2785 = vset.pattern.permute.xlu0 7
      %2786 = vperm.xlu0 %2785, %v2216
      %v2787 = vpop.permute.xlu0 %2786
      %v2789 = vmul.f32 %v2205, %v2775
      %v2790 = vmul.f32 %v2189, %v2775
      %v2791 = vmul.f32 %v2209, %v2775
      %v2792 = vmul.f32 %v2206, %v2779
      %v2793 = vmul.f32 %v2190, %v2779
      %v2794 = vmul.f32 %v2210, %v2779
      %v2795 = vmul.f32 %v2207, %v2783
      %v2796 = vmul.f32 %v2191, %v2783
      %v2797 = vmul.f32 %v2211, %v2783
      %v2798 = vmul.f32 %v2208, %v2787
      %v2799 = vmul.f32 %v2192, %v2787
      %v2800 = vmul.f32 %v2212, %v2787
      %2813 = vrot.lane.b32.xlu0 %v2789, 95
      %v2814 = vpop.permute.xlu0 %2813
      %2815 = vrot.lane.b32.xlu0 %v2790, 95
      %v2816 = vpop.permute.xlu0 %2815
      %2817 = vrot.lane.b32.xlu0 %v2791, 95
      %v2818 = vpop.permute.xlu0 %2817
      %2819 = vrot.lane.b32.xlu0 %v2792, 95
      %v2820 = vpop.permute.xlu0 %2819
      %2821 = vrot.lane.b32.xlu0 %v2793, 95
      %v2822 = vpop.permute.xlu0 %2821
      %2823 = vrot.lane.b32.xlu0 %v2794, 95
      %v2824 = vpop.permute.xlu0 %2823
      %2825 = vrot.lane.b32.xlu0 %v2795, 95
      %v2826 = vpop.permute.xlu0 %2825
      %2827 = vrot.lane.b32.xlu0 %v2796, 95
      %v2828 = vpop.permute.xlu0 %2827
      %2829 = vrot.lane.b32.xlu0 %v2797, 95
      %v2830 = vpop.permute.xlu0 %2829
      %2831 = vrot.lane.b32.xlu0 %v2798, 95
      %v2832 = vpop.permute.xlu0 %2831
      %2833 = vrot.lane.b32.xlu0 %v2799, 95
      %v2834 = vpop.permute.xlu0 %2833
      %2835 = vrot.lane.b32.xlu0 %v2800, 95
      %v2836 = vpop.permute.xlu0 %2835
      %v2837 = vsel %vm1218, %v2814, %v2816
      %v2838 = vsel %vm1218, %v2816, %v2818
      %v2839 = vsel %vm1218, %v2820, %v2822
      %v2840 = vsel %vm1218, %v2822, %v2824
      %v2841 = vsel %vm1218, %v2826, %v2828
      %v2842 = vsel %vm1218, %v2828, %v2830
      %v2843 = vsel %vm1218, %v2832, %v2834
      %v2844 = vsel %vm1218, %v2834, %v2836
      %v2853 = vadd.f32 %v2765, %v2837
      %v2854 = vadd.f32 %v2766, %v2838
      %v2855 = vadd.f32 %v2767, %v2839
      %v2856 = vadd.f32 %v2768, %v2840
      %v2857 = vadd.f32 %v2769, %v2841
      %v2858 = vadd.f32 %v2770, %v2842
      %v2859 = vadd.f32 %v2771, %v2843
      %v2860 = vadd.f32 %v2772, %v2844
      %v2861 = vmul.f32 %v2205, %v1244
      %v2862 = vmul.f32 %v2189, %v1248
      %v2863 = vmul.f32 %v2209, %v1246
      %v2864 = vmul.f32 %v2206, %v1244
      %v2865 = vmul.f32 %v2190, %v1248
      %v2866 = vmul.f32 %v2210, %v1246
      %v2867 = vmul.f32 %v2207, %v1244
      %v2868 = vmul.f32 %v2191, %v1248
      %v2869 = vmul.f32 %v2211, %v1246
      %v2870 = vmul.f32 %v2208, %v1244
      %v2871 = vmul.f32 %v2192, %v1248
      %v2872 = vmul.f32 %v2212, %v1246
      %2873 = vset.pattern.permute.xlu0 8
      %2874 = vperm.xlu0 %2873, %v2213
      %v2875 = vpop.permute.xlu0 %2874
      %2877 = vset.pattern.permute.xlu0 8
      %2878 = vperm.xlu0 %2877, %v2214
      %v2879 = vpop.permute.xlu0 %2878
      %2881 = vset.pattern.permute.xlu0 8
      %2882 = vperm.xlu0 %2881, %v2215
      %v2883 = vpop.permute.xlu0 %2882
      %2885 = vset.pattern.permute.xlu0 8
      %2886 = vperm.xlu0 %2885, %v2216
      %v2887 = vpop.permute.xlu0 %2886
      %v2889 = vmul.f32 %v2861, %v2875
      %v2890 = vmul.f32 %v2862, %v2875
      %v2891 = vmul.f32 %v2863, %v2875
      %v2892 = vmul.f32 %v2864, %v2879
      %v2893 = vmul.f32 %v2865, %v2879
      %v2894 = vmul.f32 %v2866, %v2879
      %v2895 = vmul.f32 %v2867, %v2883
      %v2896 = vmul.f32 %v2868, %v2883
      %v2897 = vmul.f32 %v2869, %v2883
      %v2898 = vmul.f32 %v2870, %v2887
      %v2899 = vmul.f32 %v2871, %v2887
      %v2900 = vmul.f32 %v2872, %v2887
      %2913 = vrot.lane.b32.xlu0 %v2889, 94
      %v2914 = vpop.permute.xlu0 %2913
      %2915 = vrot.lane.b32.xlu0 %v2890, 94
      %v2916 = vpop.permute.xlu0 %2915
      %2917 = vrot.lane.b32.xlu0 %v2891, 94
      %v2918 = vpop.permute.xlu0 %2917
      %2919 = vrot.lane.b32.xlu0 %v2892, 94
      %v2920 = vpop.permute.xlu0 %2919
      %2921 = vrot.lane.b32.xlu0 %v2893, 94
      %v2922 = vpop.permute.xlu0 %2921
      %2923 = vrot.lane.b32.xlu0 %v2894, 94
      %v2924 = vpop.permute.xlu0 %2923
      %2925 = vrot.lane.b32.xlu0 %v2895, 94
      %v2926 = vpop.permute.xlu0 %2925
      %2927 = vrot.lane.b32.xlu0 %v2896, 94
      %v2928 = vpop.permute.xlu0 %2927
      %2929 = vrot.lane.b32.xlu0 %v2897, 94
      %v2930 = vpop.permute.xlu0 %2929
      %2931 = vrot.lane.b32.xlu0 %v2898, 94
      %v2932 = vpop.permute.xlu0 %2931
      %2933 = vrot.lane.b32.xlu0 %v2899, 94
      %v2934 = vpop.permute.xlu0 %2933
      %2935 = vrot.lane.b32.xlu0 %v2900, 94
      %v2936 = vpop.permute.xlu0 %2935
      %v2937 = vsel %vm1328, %v2914, %v2916
      %v2938 = vsel %vm1328, %v2916, %v2918
      %v2939 = vsel %vm1328, %v2920, %v2922
      %v2940 = vsel %vm1328, %v2922, %v2924
      %v2941 = vsel %vm1328, %v2926, %v2928
      %v2942 = vsel %vm1328, %v2928, %v2930
      %v2943 = vsel %vm1328, %v2932, %v2934
      %v2944 = vsel %vm1328, %v2934, %v2936
      %v2953 = vadd.f32 %v2853, %v2937
      %v2954 = vadd.f32 %v2854, %v2938
      %v2955 = vadd.f32 %v2855, %v2939
      %v2956 = vadd.f32 %v2856, %v2940
      %v2957 = vadd.f32 %v2857, %v2941
      %v2958 = vadd.f32 %v2858, %v2942
      %v2959 = vadd.f32 %v2859, %v2943
      %v2960 = vadd.f32 %v2860, %v2944
      %v2961 = vmul.f32 %v1345, %v1345
      %v2962 = vmul.f32 %v1346, %v1346
      %v2963 = vmul.f32 %v1347, %v1347
      %v2964 = vmul.f32 %v1348, %v1348
      %v2965 = vmul.f32 %v1349, %v1349
      %v2966 = vmul.f32 %v1350, %v1350
      %v2967 = vmul.f32 %v1351, %v1351
      %v2968 = vmul.f32 %v1352, %v1352
      %v2969 = vadd.f32 %v2961, %v2962
      %2970 = vadd.xlane.f32.xlu0 %v2969
      %v2971 = vpop.xlane.xlu0 %2970
      %v2972 = vadd.f32 %v2963, %v2964
      %2973 = vadd.xlane.f32.xlu0 %v2972
      %v2974 = vpop.xlane.xlu0 %2973
      %v2975 = vadd.f32 %v2965, %v2966
      %2976 = vadd.xlane.f32.xlu0 %v2975
      %v2977 = vpop.xlane.xlu0 %2976
      %v2978 = vadd.f32 %v2967, %v2968
      %2979 = vadd.xlane.f32.xlu0 %v2978
      %v2980 = vpop.xlane.xlu0 %2979
      %v2981 = vmax.f32 %v2971, 1e-24
      %v2982 = vmax.f32 %v2974, 1e-24
      %v2983 = vmax.f32 %v2977, 1e-24
      %v2984 = vmax.f32 %v2980, 1e-24
      %v2985 = vrsqrt.pop %v2981
      %v2986 = vrsqrt.pop %v2982
      %v2987 = vrsqrt.pop %v2983
      %v2988 = vrsqrt.pop %v2984
      %v2989 = vmul.f32 %v1345, %v2985
      %v2990 = vmul.f32 %v1346, %v2985
      %v2991 = vmul.f32 %v1347, %v2986
      %v2992 = vmul.f32 %v1348, %v2986
      %v2993 = vmul.f32 %v1349, %v2987
      %v2994 = vmul.f32 %v1350, %v2987
      %v2995 = vmul.f32 %v1351, %v2988
      %v2996 = vmul.f32 %v1352, %v2988
      %v2997 = vmul.f32 %v2149, %v2149
      %v2998 = vmul.f32 %v2150, %v2150
      %v2999 = vmul.f32 %v2151, %v2151
      %v3000 = vmul.f32 %v2152, %v2152
      %v3001 = vmul.f32 %v2153, %v2153
      %v3002 = vmul.f32 %v2154, %v2154
      %v3003 = vmul.f32 %v2155, %v2155
      %v3004 = vmul.f32 %v2156, %v2156
      %v3005 = vadd.f32 %v2997, %v2998
      %3006 = vadd.xlane.f32.xlu0 %v3005
      %v3007 = vpop.xlane.xlu0 %3006
      %v3008 = vadd.f32 %v2999, %v3000
      %3009 = vadd.xlane.f32.xlu0 %v3008
      %v3010 = vpop.xlane.xlu0 %3009
      %v3011 = vadd.f32 %v3001, %v3002
      %3012 = vadd.xlane.f32.xlu0 %v3011
      %v3013 = vpop.xlane.xlu0 %3012
      %v3014 = vadd.f32 %v3003, %v3004
      %3015 = vadd.xlane.f32.xlu0 %v3014
      %v3016 = vpop.xlane.xlu0 %3015
      %v3017 = vmax.f32 %v3007, 1e-24
      %v3018 = vmax.f32 %v3010, 1e-24
      %v3019 = vmax.f32 %v3013, 1e-24
      %v3020 = vmax.f32 %v3016, 1e-24
      %v3021 = vrsqrt.pop %v3017
      %v3022 = vrsqrt.pop %v3018
      %v3023 = vrsqrt.pop %v3019
      %v3024 = vrsqrt.pop %v3020
      %v3025 = vmul.f32 %v2149, %v3021
      %v3026 = vmul.f32 %v2150, %v3021
      %v3027 = vmul.f32 %v2151, %v3022
      %v3028 = vmul.f32 %v2152, %v3022
      %v3029 = vmul.f32 %v2153, %v3023
      %v3030 = vmul.f32 %v2154, %v3023
      %v3031 = vmul.f32 %v2155, %v3024
      %v3032 = vmul.f32 %v2156, %v3024
      %3033 = vmatprep.subr.mxu0 0.0
      %3034 = vmatpush1.xpose.msra.mxu0 0.0
      %3035 = vmatprep.subr.mxu0 0.0
      %3036 = vmatpush1.xpose.msra.mxu0 0.0
      %3037 = vmatprep.subr.mxu0 0.0
      %3038 = vmatpush1.xpose.msra.mxu0 0.0
      %3039 = vmatprep.subr.mxu0 0.0
      %3040 = vmatpush1.xpose.msra.mxu0 0.0
      %3041 = vmatprep.subr.mxu0 0.0
      %3042 = vmatpush1.xpose.msra.mxu0 0.0
      %3043 = vmatprep.subr.mxu0 0.0
      %3044 = vmatpush1.xpose.msra.mxu0 0.0
      %3045 = vmatprep.subr.mxu0 0.0
      %3046 = vmatpush1.xpose.msra.mxu0 0.0
      %3047 = vmatprep.subr.mxu0 0.0
      %3048 = vmatpush1.xpose.msra.mxu0 0.0
      %3049 = vmatprep.subr.mxu0 0.0
      %3050 = vmatpush1.xpose.msra.mxu0 0.0
      %3051 = vmatprep.subr.mxu0 0.0
      %3052 = vmatpush1.xpose.msra.mxu0 0.0
      %3053 = vmatprep.subr.mxu0 0.0
      %3054 = vmatpush1.xpose.msra.mxu0 0.0
      %3055 = vmatprep.subr.mxu0 0.0
      %3056 = vmatpush1.xpose.msra.mxu0 0.0
      %3057 = vmatprep.subr.mxu0 %v3032
      %3058 = vmatpush1.xpose.msra.mxu0 %v3031
      %3059 = vmatprep.subr.mxu0 %v3030
      %3060 = vmatpush1.xpose.msra.mxu0 %v3029
      %3061 = vmatprep.subr.mxu0 %v3028
      %3062 = vmatpush1.xpose.msra.mxu0 %v3027
      %3063 = vmatprep.subr.mxu0 %v3026
      %3064 = vmatpush1.xpose.msra.mxu0 %v3025
      %3065 = vmatprep.subr.mxu0 0.0
      %3066 = vmatpush2.xpose.msra.mxu0 0.0
      %3067 = vmatprep.subr.mxu0 0.0
      %3068 = vmatpush2.xpose.msra.mxu0 0.0
      %3069 = vmatprep.subr.mxu0 0.0
      %3070 = vmatpush2.xpose.msra.mxu0 0.0
      %3071 = vmatprep.subr.mxu0 0.0
      %3072 = vmatpush2.xpose.msra.mxu0 0.0
      %3073 = vmatprep.subr.mxu0 0.0
      %3074 = vmatpush2.xpose.msra.mxu0 0.0
      %3075 = vmatprep.subr.mxu0 0.0
      %3076 = vmatpush2.xpose.msra.mxu0 0.0
      %3077 = vmatprep.subr.mxu0 0.0
      %3078 = vmatpush2.xpose.msra.mxu0 0.0
      %3079 = vmatprep.subr.mxu0 0.0
      %3080 = vmatpush2.xpose.msra.mxu0 0.0
      %3081 = vmatprep.subr.mxu0 0.0
      %3082 = vmatpush2.xpose.msra.mxu0 0.0
      %3083 = vmatprep.subr.mxu0 0.0
      %3084 = vmatpush2.xpose.msra.mxu0 0.0
      %3085 = vmatprep.subr.mxu0 0.0
      %3086 = vmatpush2.xpose.msra.mxu0 0.0
      %3087 = vmatprep.subr.mxu0 0.0
      %3088 = vmatpush2.xpose.msra.mxu0 0.0
      %3089 = vmatprep.subr.mxu0 0.0
      %3090 = vmatpush2.xpose.msra.mxu0 0.0
      %3091 = vmatprep.subr.mxu0 0.0
      %3092 = vmatpush2.xpose.msra.mxu0 0.0
      %3093 = vmatprep.subr.mxu0 0.0
      %3094 = vmatpush2.xpose.msra.mxu0 0.0
      %3095 = vmatprep.subr.mxu0 0.0
      %3096 = vmatpush2.xpose.msra.mxu0 0.0
      %3097 = vmatprep.mubr.f32.mxu0 %v2990
      %3098 = vmatmul.mubr.f32.gmra.mxu0 %v2989
      %v3099 = vpop.f32.mrf.mxu0
      %v3100 = vadd.f32 0.0, %v3099
      %v3101 = vpop.f32.mrf.mxu0
      %3102 = vmatprep.mubr.f32.mxu0 %v2992
      %3103 = vmatmul.mubr.f32.gmra.mxu0 %v2991
      %v3104 = vpop.f32.mrf.mxu0
      %v3105 = vadd.f32 0.0, %v3104
      %v3106 = vpop.f32.mrf.mxu0
      %3107 = vmatprep.mubr.f32.mxu0 %v2994
      %3108 = vmatmul.mubr.f32.gmra.mxu0 %v2993
      %v3109 = vpop.f32.mrf.mxu0
      %v3110 = vadd.f32 0.0, %v3109
      %v3111 = vpop.f32.mrf.mxu0
      %3112 = vmatprep.mubr.f32.mxu0 %v2996
      %3113 = vmatmul.mubr.f32.gmra.mxu0 %v2995
      %v3114 = vpop.f32.mrf.mxu0
      %v3115 = vadd.f32 0.0, %v3114
      %v3116 = vpop.f32.mrf.mxu0
      %3117 = vdwg.mxu0
      %v3118 = vld [vmem:[%s7] sm:$0xff]
      %v3119 = vld [vmem:[%s7 + $0x8] sm:$0xff]
      %v3120 = vld [vmem:[%s7 + $0x10] sm:$0xff]
      %v3121 = vld [vmem:[%s7 + $0x18] sm:$0xff]
      %3123 = vset.pattern.permute.xlu0 0
      %3124 = vperm.xlu0 %3123, %v3118
      %v3125 = vpop.permute.xlu0 %3124
      %3128 = vset.pattern.permute.xlu0 0
      %3129 = vperm.xlu0 %3128, %v3119
      %v3130 = vpop.permute.xlu0 %3129
      %3133 = vset.pattern.permute.xlu0 0
      %3134 = vperm.xlu0 %3133, %v3120
      %v3135 = vpop.permute.xlu0 %3134
      %3138 = vset.pattern.permute.xlu0 0
      %3139 = vperm.xlu0 %3138, %v3121
      %v3140 = vpop.permute.xlu0 %3139
      %v3142 = vmul.f32 %v3100, %v3125
      %v3143 = vmul.f32 %v3105, %v3130
      %v3144 = vmul.f32 %v3110, %v3135
      %v3145 = vmul.f32 %v3115, %v3140
      %v3146 = vld [vmem:[%s8] sm:$0xff]
      %v3147 = vld [vmem:[%s8 + $0x8] sm:$0xff]
      %v3148 = vld [vmem:[%s8 + $0x10] sm:$0xff]
      %v3149 = vld [vmem:[%s8 + $0x18] sm:$0xff]
      %v3150 = vadd.f32 %v3142, %v3146
      %v3151 = vadd.f32 %v3143, %v3147
      %v3152 = vadd.f32 %v3144, %v3148
      %v3153 = vadd.f32 %v3145, %v3149
      %v3154 = vsel %vm1048, %v3150, -inf
      %3155 = vmax.xlane.f32.xlu0 %v3154
      %v3156 = vpop.xlane.xlu0 %3155
      %v3157 = vsel %vm1048, %v3151, -inf
      %3158 = vmax.xlane.f32.xlu0 %v3157
      %v3159 = vpop.xlane.xlu0 %3158
      %v3160 = vsel %vm1048, %v3152, -inf
      %3161 = vmax.xlane.f32.xlu0 %v3160
      %v3162 = vpop.xlane.xlu0 %3161
      %v3163 = vsel %vm1048, %v3153, -inf
      %3164 = vmax.xlane.f32.xlu0 %v3163
      %v3165 = vpop.xlane.xlu0 %3164
      %v3166 = vsub.f32 %v3150, %v3156
      %v3167 = vsub.f32 %v3151, %v3159
      %v3168 = vsub.f32 %v3152, %v3162
      %v3169 = vsub.f32 %v3153, %v3165
      %v3170 = vmul.f32 %v3166, 1.442695
      %v3171 = vpow.pop %v3170
      %v3172 = vmul.f32 %v3167, 1.442695
      %v3173 = vpow.pop %v3172
      %v3174 = vmul.f32 %v3168, 1.442695
      %v3175 = vpow.pop %v3174
      %v3176 = vmul.f32 %v3169, 1.442695
      %v3177 = vpow.pop %v3176
      %v3178 = vsel %vm1048, %v3171, 0.0
      %3179 = vadd.xlane.f32.xlu0 %v3178
      %v3180 = vpop.xlane.xlu0 %3179
      %v3181 = vsel %vm1048, %v3173, 0.0
      %3182 = vadd.xlane.f32.xlu0 %v3181
      %v3183 = vpop.xlane.xlu0 %3182
      %v3184 = vsel %vm1048, %v3175, 0.0
      %3185 = vadd.xlane.f32.xlu0 %v3184
      %v3186 = vpop.xlane.xlu0 %3185
      %v3187 = vsel %vm1048, %v3177, 0.0
      %3188 = vadd.xlane.f32.xlu0 %v3187
      %v3189 = vpop.xlane.xlu0 %3188
      %v3190 = vrcp.pop %v3180
      %v3191 = vrcp.pop %v3183
      %v3192 = vrcp.pop %v3186
      %v3193 = vrcp.pop %v3189
      %v3194 = vmul.f32 %v3171, %v3190
      %v3195 = vmul.f32 %v3173, %v3191
      %v3196 = vmul.f32 %v3175, %v3192
      %v3197 = vmul.f32 %v3177, %v3193
      %v3199 = vsel %vm1048, %v3194, 0
      %v3202 = vsel %vm1048, %v3195, 0
      %v3205 = vsel %vm1048, %v3196, 0
      %v3208 = vsel %vm1048, %v3197, 0
      %3210 = vmatprep.subr.mxu0 0.0
      %3211 = vmatpush1.msra.mxu0 0.0
      %3212 = vmatprep.subr.mxu0 0.0
      %3213 = vmatpush1.msra.mxu0 0.0
      %3214 = vmatprep.subr.mxu0 0.0
      %3215 = vmatpush1.msra.mxu0 0.0
      %3216 = vmatprep.subr.mxu0 0.0
      %3217 = vmatpush1.msra.mxu0 0.0
      %3218 = vmatprep.subr.mxu0 0.0
      %3219 = vmatpush1.msra.mxu0 0.0
      %3220 = vmatprep.subr.mxu0 0.0
      %3221 = vmatpush1.msra.mxu0 0.0
      %3222 = vmatprep.subr.mxu0 0.0
      %3223 = vmatpush1.msra.mxu0 0.0
      %3224 = vmatprep.subr.mxu0 0.0
      %3225 = vmatpush1.msra.mxu0 0.0
      %3226 = vmatprep.subr.mxu0 0.0
      %3227 = vmatpush1.msra.mxu0 0.0
      %3228 = vmatprep.subr.mxu0 0.0
      %3229 = vmatpush1.msra.mxu0 0.0
      %3230 = vmatprep.subr.mxu0 0.0
      %3231 = vmatpush1.msra.mxu0 0.0
      %3232 = vmatprep.subr.mxu0 0.0
      %3233 = vmatpush1.msra.mxu0 0.0
      %3234 = vmatprep.subr.mxu0 %v2960
      %3235 = vmatpush1.msra.mxu0 %v2959
      %3236 = vmatprep.subr.mxu0 %v2958
      %3237 = vmatpush1.msra.mxu0 %v2957
      %3238 = vmatprep.subr.mxu0 %v2956
      %3239 = vmatpush1.msra.mxu0 %v2955
      %3240 = vmatprep.subr.mxu0 %v2954
      %3241 = vmatpush1.msra.mxu0 %v2953
      %3242 = vmatprep.subr.mxu0 0.0
      %3243 = vmatpush2.msra.mxu0 0.0
      %3244 = vmatprep.subr.mxu0 0.0
      %3245 = vmatpush2.msra.mxu0 0.0
      %3246 = vmatprep.subr.mxu0 0.0
      %3247 = vmatpush2.msra.mxu0 0.0
      %3248 = vmatprep.subr.mxu0 0.0
      %3249 = vmatpush2.msra.mxu0 0.0
      %3250 = vmatprep.subr.mxu0 0.0
      %3251 = vmatpush2.msra.mxu0 0.0
      %3252 = vmatprep.subr.mxu0 0.0
      %3253 = vmatpush2.msra.mxu0 0.0
      %3254 = vmatprep.subr.mxu0 0.0
      %3255 = vmatpush2.msra.mxu0 0.0
      %3256 = vmatprep.subr.mxu0 0.0
      %3257 = vmatpush2.msra.mxu0 0.0
      %3258 = vmatprep.subr.mxu0 0.0
      %3259 = vmatpush2.msra.mxu0 0.0
      %3260 = vmatprep.subr.mxu0 0.0
      %3261 = vmatpush2.msra.mxu0 0.0
      %3262 = vmatprep.subr.mxu0 0.0
      %3263 = vmatpush2.msra.mxu0 0.0
      %3264 = vmatprep.subr.mxu0 0.0
      %3265 = vmatpush2.msra.mxu0 0.0
      %3266 = vmatprep.subr.mxu0 0.0
      %3267 = vmatpush2.msra.mxu0 0.0
      %3268 = vmatprep.subr.mxu0 0.0
      %3269 = vmatpush2.msra.mxu0 0.0
      %3270 = vmatprep.subr.mxu0 0.0
      %3271 = vmatpush2.msra.mxu0 0.0
      %3272 = vmatprep.subr.mxu0 0.0
      %3273 = vmatpush2.msra.mxu0 0.0
      %3274 = vmatprep.mubr.f32.mxu0 0.0
      %3275 = vmatmul.mubr.f32.gmra.mxu0 %v3199
      %v3276 = vpop.f32.mrf.mxu0
      %v3277 = vadd.f32 0.0, %v3276
      %v3278 = vpop.f32.mrf.mxu0
      %v3279 = vadd.f32 0.0, %v3278
      %3280 = vmatprep.mubr.f32.mxu0 0.0
      %3281 = vmatmul.mubr.f32.gmra.mxu0 %v3202
      %v3282 = vpop.f32.mrf.mxu0
      %v3283 = vadd.f32 0.0, %v3282
      %v3284 = vpop.f32.mrf.mxu0
      %v3285 = vadd.f32 0.0, %v3284
      %3286 = vmatprep.mubr.f32.mxu0 0.0
      %3287 = vmatmul.mubr.f32.gmra.mxu0 %v3205
      %v3288 = vpop.f32.mrf.mxu0
      %v3289 = vadd.f32 0.0, %v3288
      %v3290 = vpop.f32.mrf.mxu0
      %v3291 = vadd.f32 0.0, %v3290
      %3292 = vmatprep.mubr.f32.mxu0 0.0
      %3293 = vmatmul.mubr.f32.gmra.mxu0 %v3208
      %v3294 = vpop.f32.mrf.mxu0
      %v3295 = vadd.f32 0.0, %v3294
      %v3296 = vpop.f32.mrf.mxu0
      %v3297 = vadd.f32 0.0, %v3296
      %3298 = vdwg.mxu0
      %v3299 = vld [vmem:[%s468] sm:$0xff]
      %v3300 = vld [vmem:[%s468 + $0x8] sm:$0xff]
      %v3301 = vld [vmem:[%s468 + $0x10] sm:$0xff]
      %v3302 = vld [vmem:[%s468 + $0x18] sm:$0xff]
      %v3303 = vld [vmem:[%s468 + $0x20] sm:$0xff]
      %v3304 = vld [vmem:[%s468 + $0x28] sm:$0xff]
      %v3305 = vld [vmem:[%s468 + $0x30] sm:$0xff]
      %v3306 = vld [vmem:[%s468 + $0x38] sm:$0xff]
      %v3307 = vld [vmem:[%s9] sm:$0xff]
      %v3308 = vld [vmem:[%s9 + $0x8] sm:$0xff]
      %v3309 = vld [vmem:[%s9 + $0x10] sm:$0xff]
      %v3310 = vld [vmem:[%s9 + $0x18] sm:$0xff]
      %v3312 = vsel %vm1048, %v3307, 0
      %v3315 = vsel %vm1048, %v3308, 0
      %v3318 = vsel %vm1048, %v3309, 0
      %v3321 = vsel %vm1048, %v3310, 0
      %3323 = vmatprep.subr.mxu0 0.0
      %3324 = vmatpush1.msra.mxu0 0.0
      %3325 = vmatprep.subr.mxu0 0.0
      %3326 = vmatpush1.msra.mxu0 0.0
      %3327 = vmatprep.subr.mxu0 0.0
      %3328 = vmatpush1.msra.mxu0 0.0
      %3329 = vmatprep.subr.mxu0 0.0
      %3330 = vmatpush1.msra.mxu0 0.0
      %3331 = vmatprep.subr.mxu0 0.0
      %3332 = vmatpush1.msra.mxu0 0.0
      %3333 = vmatprep.subr.mxu0 0.0
      %3334 = vmatpush1.msra.mxu0 0.0
      %3335 = vmatprep.subr.mxu0 0.0
      %3336 = vmatpush1.msra.mxu0 0.0
      %3337 = vmatprep.subr.mxu0 0.0
      %3338 = vmatpush1.msra.mxu0 0.0
      %3339 = vmatprep.subr.mxu0 0.0
      %3340 = vmatpush1.msra.mxu0 0.0
      %3341 = vmatprep.subr.mxu0 0.0
      %3342 = vmatpush1.msra.mxu0 0.0
      %3343 = vmatprep.subr.mxu0 0.0
      %3344 = vmatpush1.msra.mxu0 0.0
      %3345 = vmatprep.subr.mxu0 0.0
      %3346 = vmatpush1.msra.mxu0 0.0
      %3347 = vmatprep.subr.mxu0 %v3297
      %3348 = vmatpush1.msra.mxu0 %v3295
      %3349 = vmatprep.subr.mxu0 %v3291
      %3350 = vmatpush1.msra.mxu0 %v3289
      %3351 = vmatprep.subr.mxu0 %v3285
      %3352 = vmatpush1.msra.mxu0 %v3283
      %3353 = vmatprep.subr.mxu0 %v3279
      %3354 = vmatpush1.msra.mxu0 %v3277
      %3355 = vmatprep.subr.mxu0 0.0
      %3356 = vmatpush2.msra.mxu0 0.0
      %3357 = vmatprep.subr.mxu0 0.0
      %3358 = vmatpush2.msra.mxu0 0.0
      %3359 = vmatprep.subr.mxu0 0.0
      %3360 = vmatpush2.msra.mxu0 0.0
      %3361 = vmatprep.subr.mxu0 0.0
      %3362 = vmatpush2.msra.mxu0 0.0
      %3363 = vmatprep.subr.mxu0 0.0
      %3364 = vmatpush2.msra.mxu0 0.0
      %3365 = vmatprep.subr.mxu0 0.0
      %3366 = vmatpush2.msra.mxu0 0.0
      %3367 = vmatprep.subr.mxu0 0.0
      %3368 = vmatpush2.msra.mxu0 0.0
      %3369 = vmatprep.subr.mxu0 0.0
      %3370 = vmatpush2.msra.mxu0 0.0
      %3371 = vmatprep.subr.mxu0 0.0
      %3372 = vmatpush2.msra.mxu0 0.0
      %3373 = vmatprep.subr.mxu0 0.0
      %3374 = vmatpush2.msra.mxu0 0.0
      %3375 = vmatprep.subr.mxu0 0.0
      %3376 = vmatpush2.msra.mxu0 0.0
      %3377 = vmatprep.subr.mxu0 0.0
      %3378 = vmatpush2.msra.mxu0 0.0
      %3379 = vmatprep.subr.mxu0 0.0
      %3380 = vmatpush2.msra.mxu0 0.0
      %3381 = vmatprep.subr.mxu0 0.0
      %3382 = vmatpush2.msra.mxu0 0.0
      %3383 = vmatprep.subr.mxu0 0.0
      %3384 = vmatpush2.msra.mxu0 0.0
      %3385 = vmatprep.subr.mxu0 0.0
      %3386 = vmatpush2.msra.mxu0 0.0
      %3387 = vmatprep.mubr.f32.mxu0 0.0
      %3388 = vmatmul.mubr.f32.gmra.mxu0 %v3312
      %v3389 = vpop.f32.mrf.mxu0
      %v3390 = vadd.f32 0.0, %v3389
      %v3391 = vpop.f32.mrf.mxu0
      %v3392 = vadd.f32 0.0, %v3391
      %3393 = vmatprep.mubr.f32.mxu0 0.0
      %3394 = vmatmul.mubr.f32.gmra.mxu0 %v3315
      %v3395 = vpop.f32.mrf.mxu0
      %v3396 = vadd.f32 0.0, %v3395
      %v3397 = vpop.f32.mrf.mxu0
      %v3398 = vadd.f32 0.0, %v3397
      %3399 = vmatprep.mubr.f32.mxu0 0.0
      %3400 = vmatmul.mubr.f32.gmra.mxu0 %v3318
      %v3401 = vpop.f32.mrf.mxu0
      %v3402 = vadd.f32 0.0, %v3401
      %v3403 = vpop.f32.mrf.mxu0
      %v3404 = vadd.f32 0.0, %v3403
      %3405 = vmatprep.mubr.f32.mxu0 0.0
      %3406 = vmatmul.mubr.f32.gmra.mxu0 %v3321
      %v3407 = vpop.f32.mrf.mxu0
      %v3408 = vadd.f32 0.0, %v3407
      %v3409 = vpop.f32.mrf.mxu0
      %v3410 = vadd.f32 0.0, %v3409
      %3411 = vdwg.mxu0
      %v3412 = vadd.f32 %v3299, %v3390
      %v3413 = vadd.f32 %v3300, %v3392
      %v3414 = vadd.f32 %v3301, %v3396
      %v3415 = vadd.f32 %v3302, %v3398
      %v3416 = vadd.f32 %v3303, %v3402
      %v3417 = vadd.f32 %v3304, %v3404
      %v3418 = vadd.f32 %v3305, %v3408
      %v3419 = vadd.f32 %v3306, %v3410
      %3420 = vst [vmem:[%s473] sm:$0xff] %v3412
      %3421 = vst [vmem:[%s473 + $0x8] sm:$0xff] %v3413
      %3422 = vst [vmem:[%s473 + $0x10] sm:$0xff] %v3414
      %3423 = vst [vmem:[%s473 + $0x18] sm:$0xff] %v3415
      %3424 = vst [vmem:[%s473 + $0x20] sm:$0xff] %v3416
      %3425 = vst [vmem:[%s473 + $0x28] sm:$0xff] %v3417
      %3426 = vst [vmem:[%s473 + $0x30] sm:$0xff] %v3418
      %3427 = vst [vmem:[%s473 + $0x38] sm:$0xff] %v3419
      %p3428 = scmp.lt.s32.totalorder %s23, 1
      %s3429 = scalar_select %p3428, %s23, 1
      %s3430 = smul.addr %s3429, 8
      %s3431 = smul.addr %s3430, 8
      %s3432 = scalar_lea.vmem %s12, %s3431
      // Predicated region
      $region69: #{trans10_forward.44} parent=67 // pred_check
        %p3433 = pneg %p313
      $region70: #{trans10_forward.44} parent=67 // pred_check_branch
        %3435 = sbr.rel (%p3433) target = $region72
      $region71: #{trans10_forward.44} parent=67 // pred_region
        _
      $region72: #{trans10_forward.44} parent=67 // pred_fallthru
        _
    $region68: #{trans10_forward.44} parent=5 // pred_fallthru
      _
    %p3436 = scmp.le.s32.totalorder 2, %s18
    // Predicated region
    $region73: #{trans10_forward.44} parent=5 // pred_check
      %p3437 = pneg %p3436
    $region74: #{trans10_forward.44} parent=5 // pred_check_branch
      %3439 = sbr.rel (%p3437) target = $region76
    $region75: #{trans10_forward.44} parent=5 // pred_region
      %s3440 = ssub.s32 %s18, 2
      // Predicated region
      $region77: #{trans10_forward.44} parent=75 // pred_check
        %p3441 = pneg %p319
      $region78: #{trans10_forward.44} parent=75 // pred_check_branch
        %3443 = sbr.rel (%p3441) target = $region80
      $region79: #{trans10_forward.44} parent=75 // pred_region
        %p3444 = scmp.lt.s32.totalorder %s24, 1
        %s3445 = scalar_select %p3444, %s24, 1
        %s3446 = smul.addr %s3445, 8
        %s3447 = smul.addr %s3446, 8
        %s3448 = scalar_lea.vmem %s12, %s3447
      $region80: #{trans10_forward.44} parent=75 // pred_fallthru
        _
    $region76: #{trans10_forward.44} parent=5 // pred_fallthru
      _
  $region6: #{trans10_forward.44} parent=0 // loop_footer
    %s22 = sadd.s32 1, %s18
  $region7: #{trans10_forward.44} parent=0 // loop_footer_branch
    %17 = sbr.rel target = $region3
  $region8: #{trans10_forward.44} parent=0 // loop_exit
    _

// kernel: trans10_forward.46
$region0: #{trans10_forward.46}
  #allocation0 [shape = 'u32[]', space=smem, size = 0x4, offset = 0x4, fixed_abs, tag = 'smem constant byte address 0x4 - core index']
  #allocation1 [shape = 'u32[144,128]{1,0:T(1,128)}', space=vmem, size = 0x12000, scoped, tag = 'internal scratch']
  %s0 = inlined_call_operand.vmem [shape: f32[2,85,256], index: 0, kind: input, shape index: {}]
  %s1 = inlined_call_operand.vmem [shape: f32[2,85,256], index: 1, kind: input, shape index: {}]
  %s2 = inlined_call_operand.vmem [shape: f32[2,32,256], index: 2, kind: input, shape index: {}, may-alias: {2,8}]
  %s3 = inlined_call_operand.vmem [shape: f32[85,9], index: 3, kind: input, shape index: {}]
  %s4 = inlined_call_operand.vmem [shape: f32[85,9], index: 4, kind: input, shape index: {}]
  %s5 = inlined_call_operand.vmem [shape: f32[32,85], index: 5, kind: input, shape index: {}]
  %s6 = inlined_call_operand.vmem [shape: f32[1,256], index: 6, kind: input, shape index: {}]
  %s7 = inlined_call_operand.vmem [shape: f32[1,256], index: 7, kind: input, shape index: {}]
  %s8 = inlined_call_operand.vmem [shape: f32[2,32,256], index: 8, kind: output, shape index: {}, may-alias: {2,8}]
  %s9 = sld [smem:[#allocation0]]
  $region65: #{trans10_forward.46} parent=0
    _
  %s11 = ssub.s32 1, %s9
  %s12 = scalar_select 0, %s11, %s9
  loop: start=0, step=1, limit=4
  $region2: #{trans10_forward.46} parent=0 // loop_pre_header
    _
  $region3: #{trans10_forward.46} parent=0 // loop_header
    %s14 = sphi 0, %s18
    %p15 = scmp.ge.s32.totalorder %s14, 4
    %s24 = sphi 0, %s26
    %s27 = sphi 0, %s24
    %s28 = sphi 0, %s27
    %s44 = sphi 0, %s28
    %s50 = sphi 0, %s52
    %s53 = sphi 0, %s50
    %s54 = sphi 0, %s53
    %s70 = sphi 0, %s54
    %s76 = sphi 0, %s78
    %s79 = sphi 0, %s76
    %s80 = sphi 0, %s79
    %s96 = sphi 0, %s80
    %s100 = sphi 0, %s100
    %s102 = sphi 0, %s100
    %s103 = sphi 0, %s102
    %s117 = sphi 0, %s103
    %s121 = sphi 0, %s121
    %s123 = sphi 0, %s121
    %s124 = sphi 0, %s123
    %s138 = sphi 0, %s124
    %s142 = sphi 0, %s142
    %s144 = sphi 0, %s142
    %s145 = sphi 0, %s144
    %s159 = sphi 0, %s145
    %s163 = sphi 0, %s163
    %s165 = sphi 0, %s163
    %s166 = sphi 0, %s165
    %s180 = sphi 0, %s166
    %s184 = sphi 0, %s184
    %s186 = sphi 0, %s184
    %s187 = sphi 0, %s186
    %s201 = sphi 0, %s187
    %s207 = sphi 0, %s209
    %s210 = sphi 0, %s207
    %s211 = sphi 0, %s210
    %s227 = sphi 0, %s211
  $region4: #{trans10_forward.46} parent=0 // loop_header_branch
    %17 = sbr.rel (%p15) target = $region8
  $region5: #{trans10_forward.46} parent=0 // loop_body
    %s19 = ssub.s32 %s14, 1
    %s20 = ssub.s32 %s14, 2
    %s21 = sadd.s32 %s14, 1
    %s22 = ssub.s32 %s14, %s21
    %p23 = scmp.eq.s32.totalorder %s22, 0
    %s25 = sadd.s32 %s24, 1
    %s26 = scalar_select %p23, %s24, %s25
    %p29 = pneg %p23
    %p30 = scmp.eq.s32.totalorder %s14, 1
    %p31 = por %p29, %p30
    %p32 = scmp.ne.s32.totalorder %s24, %s27
    %p33 = scmp.eq.s32.totalorder %s14, 0
    %p34 = por %p32, %p33
    %p35 = scmp.ne.s32.totalorder %s24, %s27
    %p36 = scmp.eq.s32.totalorder %s19, 1
    %p37 = por %p35, %p36
    %p38 = scmp.ne.s32.totalorder %s27, %s28
    %p39 = scmp.eq.s32.totalorder %s19, 0
    %p40 = por %p38, %p39
    %p41 = scmp.ne.s32.totalorder %s27, %s28
    %p42 = scmp.eq.s32.totalorder %s20, 1
    %p43 = por %p41, %p42
    %p45 = scmp.ne.s32.totalorder %s28, %s44
    %p46 = scmp.eq.s32.totalorder %s20, 0
    %p47 = por %p45, %p46
    %s48 = ssub.s32 %s14, %s21
    %p49 = scmp.eq.s32.totalorder %s48, 0
    %s51 = sadd.s32 %s50, 1
    %s52 = scalar_select %p49, %s50, %s51
    %p55 = pneg %p49
    %p56 = scmp.eq.s32.totalorder %s14, 1
    %p57 = por %p55, %p56
    %p58 = scmp.ne.s32.totalorder %s50, %s53
    %p59 = scmp.eq.s32.totalorder %s14, 0
    %p60 = por %p58, %p59
    %p61 = scmp.ne.s32.totalorder %s50, %s53
    %p62 = scmp.eq.s32.totalorder %s19, 1
    %p63 = por %p61, %p62
    %p64 = scmp.ne.s32.totalorder %s53, %s54
    %p65 = scmp.eq.s32.totalorder %s19, 0
    %p66 = por %p64, %p65
    %p67 = scmp.ne.s32.totalorder %s53, %s54
    %p68 = scmp.eq.s32.totalorder %s20, 1
    %p69 = por %p67, %p68
    %p71 = scmp.ne.s32.totalorder %s54, %s70
    %p72 = scmp.eq.s32.totalorder %s20, 0
    %p73 = por %p71, %p72
    %s74 = ssub.s32 %s14, %s21
    %p75 = scmp.eq.s32.totalorder %s74, 0
    %s77 = sadd.s32 %s76, 1
    %s78 = scalar_select %p75, %s76, %s77
    %p81 = pneg %p75
    %p82 = scmp.eq.s32.totalorder %s14, 1
    %p83 = por %p81, %p82
    %p84 = scmp.ne.s32.totalorder %s76, %s79
    %p85 = scmp.eq.s32.totalorder %s14, 0
    %p86 = por %p84, %p85
    %p87 = scmp.ne.s32.totalorder %s76, %s79
    %p88 = scmp.eq.s32.totalorder %s19, 1
    %p89 = por %p87, %p88
    %p90 = scmp.ne.s32.totalorder %s79, %s80
    %p91 = scmp.eq.s32.totalorder %s19, 0
    %p92 = por %p90, %p91
    %p93 = scmp.ne.s32.totalorder %s79, %s80
    %p94 = scmp.eq.s32.totalorder %s20, 1
    %p95 = por %p93, %p94
    %p97 = scmp.ne.s32.totalorder %s80, %s96
    %p98 = scmp.eq.s32.totalorder %s20, 0
    %p99 = por %p97, %p98
    %s101 = sadd.s32 %s100, 1
    %p104 = scmp.eq.s32.totalorder %s14, 1
    %p105 = scmp.ne.s32.totalorder %s100, %s102
    %p106 = scmp.eq.s32.totalorder %s14, 0
    %p107 = por %p105, %p106
    %p108 = scmp.ne.s32.totalorder %s100, %s102
    %p109 = scmp.eq.s32.totalorder %s19, 1
    %p110 = por %p108, %p109
    %p111 = scmp.ne.s32.totalorder %s102, %s103
    %p112 = scmp.eq.s32.totalorder %s19, 0
    %p113 = por %p111, %p112
    %p114 = scmp.ne.s32.totalorder %s102, %s103
    %p115 = scmp.eq.s32.totalorder %s20, 1
    %p116 = por %p114, %p115
    %p118 = scmp.ne.s32.totalorder %s103, %s117
    %p119 = scmp.eq.s32.totalorder %s20, 0
    %p120 = por %p118, %p119
    %s122 = sadd.s32 %s121, 1
    %p125 = scmp.eq.s32.totalorder %s14, 1
    %p126 = scmp.ne.s32.totalorder %s121, %s123
    %p127 = scmp.eq.s32.totalorder %s14, 0
    %p128 = por %p126, %p127
    %p129 = scmp.ne.s32.totalorder %s121, %s123
    %p130 = scmp.eq.s32.totalorder %s19, 1
    %p131 = por %p129, %p130
    %p132 = scmp.ne.s32.totalorder %s123, %s124
    %p133 = scmp.eq.s32.totalorder %s19, 0
    %p134 = por %p132, %p133
    %p135 = scmp.ne.s32.totalorder %s123, %s124
    %p136 = scmp.eq.s32.totalorder %s20, 1
    %p137 = por %p135, %p136
    %p139 = scmp.ne.s32.totalorder %s124, %s138
    %p140 = scmp.eq.s32.totalorder %s20, 0
    %p141 = por %p139, %p140
    %s143 = sadd.s32 %s142, 1
    %p146 = scmp.eq.s32.totalorder %s14, 1
    %p147 = scmp.ne.s32.totalorder %s142, %s144
    %p148 = scmp.eq.s32.totalorder %s14, 0
    %p149 = por %p147, %p148
    %p150 = scmp.ne.s32.totalorder %s142, %s144
    %p151 = scmp.eq.s32.totalorder %s19, 1
    %p152 = por %p150, %p151
    %p153 = scmp.ne.s32.totalorder %s144, %s145
    %p154 = scmp.eq.s32.totalorder %s19, 0
    %p155 = por %p153, %p154
    %p156 = scmp.ne.s32.totalorder %s144, %s145
    %p157 = scmp.eq.s32.totalorder %s20, 1
    %p158 = por %p156, %p157
    %p160 = scmp.ne.s32.totalorder %s145, %s159
    %p161 = scmp.eq.s32.totalorder %s20, 0
    %p162 = por %p160, %p161
    %s164 = sadd.s32 %s163, 1
    %p167 = scmp.eq.s32.totalorder %s14, 1
    %p168 = scmp.ne.s32.totalorder %s163, %s165
    %p169 = scmp.eq.s32.totalorder %s14, 0
    %p170 = por %p168, %p169
    %p171 = scmp.ne.s32.totalorder %s163, %s165
    %p172 = scmp.eq.s32.totalorder %s19, 1
    %p173 = por %p171, %p172
    %p174 = scmp.ne.s32.totalorder %s165, %s166
    %p175 = scmp.eq.s32.totalorder %s19, 0
    %p176 = por %p174, %p175
    %p177 = scmp.ne.s32.totalorder %s165, %s166
    %p178 = scmp.eq.s32.totalorder %s20, 1
    %p179 = por %p177, %p178
    %p181 = scmp.ne.s32.totalorder %s166, %s180
    %p182 = scmp.eq.s32.totalorder %s20, 0
    %p183 = por %p181, %p182
    %s185 = sadd.s32 %s184, 1
    %p188 = scmp.eq.s32.totalorder %s14, 1
    %p189 = scmp.ne.s32.totalorder %s184, %s186
    %p190 = scmp.eq.s32.totalorder %s14, 0
    %p191 = por %p189, %p190
    %p192 = scmp.ne.s32.totalorder %s184, %s186
    %p193 = scmp.eq.s32.totalorder %s19, 1
    %p194 = por %p192, %p193
    %p195 = scmp.ne.s32.totalorder %s186, %s187
    %p196 = scmp.eq.s32.totalorder %s19, 0
    %p197 = por %p195, %p196
    %p198 = scmp.ne.s32.totalorder %s186, %s187
    %p199 = scmp.eq.s32.totalorder %s20, 1
    %p200 = por %p198, %p199
    %p202 = scmp.ne.s32.totalorder %s187, %s201
    %p203 = scmp.eq.s32.totalorder %s20, 0
    %p204 = por %p202, %p203
    %s205 = ssub.s32 %s14, %s21
    %p206 = scmp.eq.s32.totalorder %s205, 0
    %s208 = sadd.s32 %s207, 1
    %s209 = scalar_select %p206, %s207, %s208
    %p212 = pneg %p206
    %p213 = scmp.eq.s32.totalorder %s14, 1
    %p214 = por %p212, %p213
    %p215 = scmp.ne.s32.totalorder %s207, %s210
    %p216 = scmp.eq.s32.totalorder %s14, 0
    %p217 = por %p215, %p216
    %p218 = scmp.ne.s32.totalorder %s207, %s210
    %p219 = scmp.eq.s32.totalorder %s19, 1
    %p220 = por %p218, %p219
    %p221 = scmp.ne.s32.totalorder %s210, %s211
    %p222 = scmp.eq.s32.totalorder %s19, 0
    %p223 = por %p221, %p222
    %p224 = scmp.ne.s32.totalorder %s210, %s211
    %p225 = scmp.eq.s32.totalorder %s20, 1
    %p226 = por %p224, %p225
    %p228 = scmp.ne.s32.totalorder %s211, %s227
    %p229 = scmp.eq.s32.totalorder %s20, 0
    %p230 = por %p228, %p229
    %p231 = scmp.le.s32.totalorder 1, %s14
    %p232 = scmp.lt.s32.totalorder %s14, 3
    %p233 = pnand %p231, %p232
    %p234 = pneg %p233
    // Predicated region
    $region9: #{trans10_forward.46} parent=5 // pred_check
      _
    $region10: #{trans10_forward.46} parent=5 // pred_check_branch
      %236 = sbr.rel (%p233) target = $region12
    $region11: #{trans10_forward.46} parent=5 // pred_region
      %s237 = ssub.s32 %s14, 1
      // Predicated region
      $region13: #{trans10_forward.46} parent=11 // pred_check
        %p238 = pneg %p113
      $region14: #{trans10_forward.46} parent=11 // pred_check_branch
        %240 = sbr.rel (%p238) target = $region16
      $region15: #{trans10_forward.46} parent=11 // pred_region
        _
      $region16: #{trans10_forward.46} parent=11 // pred_fallthru
        _
      // Predicated region
      $region17: #{trans10_forward.46} parent=11 // pred_check
        %p241 = pneg %p134
      $region18: #{trans10_forward.46} parent=11 // pred_check_branch
        %243 = sbr.rel (%p241) target = $region20
      $region19: #{trans10_forward.46} parent=11 // pred_region
        _
      $region20: #{trans10_forward.46} parent=11 // pred_fallthru
        _
      // Predicated region
      $region21: #{trans10_forward.46} parent=11 // pred_check
        %p244 = pneg %p155
      $region22: #{trans10_forward.46} parent=11 // pred_check_branch
        %246 = sbr.rel (%p244) target = $region24
      $region23: #{trans10_forward.46} parent=11 // pred_region
        _
      $region24: #{trans10_forward.46} parent=11 // pred_fallthru
        _
      // Predicated region
      $region25: #{trans10_forward.46} parent=11 // pred_check
        %p247 = pneg %p176
      $region26: #{trans10_forward.46} parent=11 // pred_check_branch
        %249 = sbr.rel (%p247) target = $region28
      $region27: #{trans10_forward.46} parent=11 // pred_region
        _
      $region28: #{trans10_forward.46} parent=11 // pred_fallthru
        _
      // Predicated region
      $region29: #{trans10_forward.46} parent=11 // pred_check
        %p250 = pneg %p197
      $region30: #{trans10_forward.46} parent=11 // pred_check_branch
        %252 = sbr.rel (%p250) target = $region32
      $region31: #{trans10_forward.46} parent=11 // pred_region
        _
      $region32: #{trans10_forward.46} parent=11 // pred_fallthru
        _
    $region12: #{trans10_forward.46} parent=5 // pred_fallthru
      _
    %p253 = scmp.lt.s32.totalorder %s14, 2
    // Predicated region
    $region33: #{trans10_forward.46} parent=5 // pred_check
      %p254 = pneg %p253
    $region34: #{trans10_forward.46} parent=5 // pred_check_branch
      %256 = sbr.rel (%p254) target = $region36
    $region35: #{trans10_forward.46} parent=5 // pred_region
      // Predicated region
      $region37: #{trans10_forward.46} parent=35 // pred_check
        %p257 = pneg %p34
      $region38: #{trans10_forward.46} parent=35 // pred_check_branch
        %259 = sbr.rel (%p257) target = $region40
      $region39: #{trans10_forward.46} parent=35 // pred_region
        %p260 = scmp.lt.s32.totalorder %s14, 1
        %s261 = scalar_select %p260, %s14, 1
        %s262 = smul.addr %s261, 22
        %s263 = smul.addr %s262, 8
        %s264 = scalar_lea.vmem %s0, %s263
      $region40: #{trans10_forward.46} parent=35 // pred_fallthru
        _
      // Predicated region
      $region41: #{trans10_forward.46} parent=35 // pred_check
        %p265 = pneg %p60
      $region42: #{trans10_forward.46} parent=35 // pred_check_branch
        %267 = sbr.rel (%p265) target = $region44
      $region43: #{trans10_forward.46} parent=35 // pred_region
        %p268 = scmp.lt.s32.totalorder %s14, 1
        %s269 = scalar_select %p268, %s14, 1
        %s270 = smul.addr %s269, 22
        %s271 = smul.addr %s270, 8
        %s272 = scalar_lea.vmem %s1, %s271
      $region44: #{trans10_forward.46} parent=35 // pred_fallthru
        _
      // Predicated region
      $region45: #{trans10_forward.46} parent=35 // pred_check
        %p273 = pneg %p86
      $region46: #{trans10_forward.46} parent=35 // pred_check_branch
        %275 = sbr.rel (%p273) target = $region48
      $region47: #{trans10_forward.46} parent=35 // pred_region
        %p276 = scmp.lt.s32.totalorder %s14, 1
        %s277 = scalar_select %p276, %s14, 1
        %s278 = smul.addr %s277, 8
        %s279 = smul.addr %s278, 8
        %s280 = scalar_lea.vmem %s2, %s279
      $region48: #{trans10_forward.46} parent=35 // pred_fallthru
        _
    $region36: #{trans10_forward.46} parent=5 // pred_fallthru
      _
    %p281 = scmp.le.s32.totalorder 1, %s14
    %p282 = scmp.lt.s32.totalorder %s14, 3
    %p283 = pnand %p281, %p282
    %p284 = pneg %p283
    // Predicated region
    $region49: #{trans10_forward.46} parent=5 // pred_check
      _
    $region50: #{trans10_forward.46} parent=5 // pred_check_branch
      %286 = sbr.rel (%p283) target = $region52
    $region51: #{trans10_forward.46} parent=5 // pred_region
      %s287 = ssub.s32 %s14, 1
      %p288 = scmp.lt.s32.totalorder %s19, 1
      %s289 = scalar_select %p288, %s19, 1
      %s290 = smul.addr %s289, 22
      %s291 = smul.addr %s290, 8
      %s292 = scalar_lea.vmem %s0, %s291
      %p293 = pneg %p40
      %p294 = pneg %p37
      %p295 = scmp.lt.s32.totalorder %s19, 1
      %s296 = scalar_select %p295, %s19, 1
      %s297 = smul.addr %s296, 22
      %s298 = smul.addr %s297, 8
      %s299 = scalar_lea.vmem %s1, %s298
      %p300 = pneg %p66
      %p301 = pneg %p63
      %p302 = scmp.lt.s32.totalorder %s19, 1
      %s303 = scalar_select %p302, %s19, 1
      %s304 = smul.addr %s303, 8
      %s305 = smul.addr %s304, 8
      %s306 = scalar_lea.vmem %s2, %s305
      %p307 = pneg %p92
      %p308 = pneg %p89
      %p309 = pneg %p113
      %p310 = pneg %p110
      %p311 = pneg %p134
      %p312 = pneg %p131
      %p313 = pneg %p155
      %p314 = pneg %p152
      %p315 = pneg %p176
      %p316 = pneg %p173
      %p317 = pneg %p197
      %p318 = pneg %p194
      %p319 = pneg %p223
      %p320 = pneg %p220
      %p321 = scmp.lt.s32.totalorder %s19, 1
      %s322 = scalar_select %p321, %s19, 1
      %s323 = smul.addr %s322, 8
      %s324 = smul.addr %s323, 8
      %s325 = scalar_lea.vmem %s8, %s324
      %p326 = scmp.lt.s32.totalorder %s19, 1
      %s327 = scalar_select %p326, %s19, 1
      %s328 = smul.addr %s327, 22
      %s329 = smul.addr %s328, 8
      %s330 = scalar_lea.vmem %s0, %s329
      %p331 = scmp.lt.s32.totalorder %s19, 1
      %s332 = scalar_select %p331, %s19, 1
      %s333 = smul.addr %s332, 22
      %s334 = smul.addr %s333, 8
      %s335 = scalar_lea.vmem %s1, %s334
      %p336 = scmp.lt.s32.totalorder %s19, 1
      %s337 = scalar_select %p336, %s19, 1
      %s338 = smul.addr %s337, 8
      %s339 = smul.addr %s338, 8
      %s340 = scalar_lea.vmem %s2, %s339
      %p341 = scmp.lt.s32.totalorder %s19, 1
      %s342 = scalar_select %p341, %s19, 1
      %s343 = smul.addr %s342, 8
      %s344 = smul.addr %s343, 8
      %s345 = scalar_lea.vmem %s8, %s344
      %v346 = vld [vmem:[%s6] sm:$0x3]
      %v347 = vld [vmem:[%s7] sm:$0x3]
      %v348 = vld [vmem:[%s330] sm:$0xff]
      %v349 = vld [vmem:[%s330 + $0x8] sm:$0xff]
      %v350 = vld [vmem:[%s330 + $0x10] sm:$0xff]
      %v351 = vld [vmem:[%s330 + $0x18] sm:$0xff]
      %v352 = vld [vmem:[%s330 + $0x20] sm:$0xff]
      %v353 = vld [vmem:[%s330 + $0x28] sm:$0xff]
      %v354 = vld [vmem:[%s330 + $0x30] sm:$0xff]
      %v355 = vld [vmem:[%s330 + $0x38] sm:$0xff]
      %v356 = vld [vmem:[%s330 + $0x40] sm:$0xff]
      %v357 = vld [vmem:[%s330 + $0x48] sm:$0xff]
      %v358 = vld [vmem:[%s330 + $0x50] sm:$0xff]
      %v359 = vld [vmem:[%s330 + $0x58] sm:$0xff]
      %v360 = vld [vmem:[%s330 + $0x60] sm:$0xff]
      %v361 = vld [vmem:[%s330 + $0x68] sm:$0xff]
      %v362 = vld [vmem:[%s330 + $0x70] sm:$0xff]
      %v363 = vld [vmem:[%s330 + $0x78] sm:$0xff]
      %v364 = vld [vmem:[%s330 + $0x80] sm:$0xff]
      %v365 = vld [vmem:[%s330 + $0x88] sm:$0xff]
      %v366 = vld [vmem:[%s330 + $0x90] sm:$0xff]
      %v367 = vld [vmem:[%s330 + $0x98] sm:$0xff]
      %v368 = vld [vmem:[%s330 + $0xa0] sm:$0x1f]
      %v369 = vld [vmem:[%s330 + $0xa8] sm:$0x1f]
      %392 = vrot.lane.b32.xlu0 %v348, 17
      %v393 = vpop.permute.xlu0 %392
      %394 = vrot.lane.b32.xlu0 %v349, 17
      %v395 = vpop.permute.xlu0 %394
      %396 = vrot.lane.b32.xlu0 %v350, 17
      %v397 = vpop.permute.xlu0 %396
      %398 = vrot.lane.b32.xlu0 %v351, 17
      %v399 = vpop.permute.xlu0 %398
      %400 = vrot.lane.b32.xlu0 %v352, 17
      %v401 = vpop.permute.xlu0 %400
      %402 = vrot.lane.b32.xlu0 %v353, 17
      %v403 = vpop.permute.xlu0 %402
      %404 = vrot.lane.b32.xlu0 %v354, 17
      %v405 = vpop.permute.xlu0 %404
      %406 = vrot.lane.b32.xlu0 %v355, 17
      %v407 = vpop.permute.xlu0 %406
      %408 = vrot.lane.b32.xlu0 %v356, 17
      %v409 = vpop.permute.xlu0 %408
      %410 = vrot.lane.b32.xlu0 %v357, 17
      %v411 = vpop.permute.xlu0 %410
      %412 = vrot.lane.b32.xlu0 %v358, 17
      %v413 = vpop.permute.xlu0 %412
      %414 = vrot.lane.b32.xlu0 %v359, 17
      %v415 = vpop.permute.xlu0 %414
      %416 = vrot.lane.b32.xlu0 %v360, 17
      %v417 = vpop.permute.xlu0 %416
      %418 = vrot.lane.b32.xlu0 %v361, 17
      %v419 = vpop.permute.xlu0 %418
      %420 = vrot.lane.b32.xlu0 %v362, 17
      %v421 = vpop.permute.xlu0 %420
      %422 = vrot.lane.b32.xlu0 %v363, 17
      %v423 = vpop.permute.xlu0 %422
      %424 = vrot.lane.b32.xlu0 %v364, 17
      %v425 = vpop.permute.xlu0 %424
      %426 = vrot.lane.b32.xlu0 %v365, 17
      %v427 = vpop.permute.xlu0 %426
      %428 = vrot.lane.b32.xlu0 %v366, 17
      %v429 = vpop.permute.xlu0 %428
      %430 = vrot.lane.b32.xlu0 %v367, 17
      %v431 = vpop.permute.xlu0 %430
      %432 = vrot.lane.b32.xlu0 %v368, 17
      %v433 = vpop.permute.xlu0 %432
      %434 = vrot.lane.b32.xlu0 %v369, 17
      %v435 = vpop.permute.xlu0 %434
      %vm436 = vcmask 138240
      %v437 = vsel %vm436, %v393, %v395
      %v438 = vsel %vm436, %v397, %v399
      %v439 = vsel %vm436, %v401, %v403
      %v440 = vsel %vm436, %v405, %v407
      %v441 = vsel %vm436, %v409, %v411
      %v442 = vsel %vm436, %v413, %v415
      %v443 = vsel %vm436, %v417, %v419
      %v444 = vsel %vm436, %v421, %v423
      %v445 = vsel %vm436, %v425, %v427
      %v446 = vsel %vm436, %v429, %v431
      %v447 = vsel %vm436, %v433, %v435
      %v481 = vsel %vm436, 0.0, %v393
      %v482 = vsel %vm436, 0.0, %v397
      %v483 = vsel %vm436, 0.0, %v401
      %v484 = vsel %vm436, 0.0, %v405
      %v485 = vsel %vm436, 0.0, %v409
      %v486 = vsel %vm436, 0.0, %v413
      %v487 = vsel %vm436, 0.0, %v417
      %v488 = vsel %vm436, 0.0, %v421
      %v489 = vsel %vm436, 0.0, %v425
      %v490 = vsel %vm436, 0.0, %v429
      %v491 = vsel %vm436, 0.0, %v433
      %v492 = vsel %vm436, %v395, 0.0
      %v493 = vsel %vm436, %v399, 0.0
      %v494 = vsel %vm436, %v403, 0.0
      %v495 = vsel %vm436, %v407, 0.0
      %v496 = vsel %vm436, %v411, 0.0
      %v497 = vsel %vm436, %v415, 0.0
      %v498 = vsel %vm436, %v419, 0.0
      %v499 = vsel %vm436, %v423, 0.0
      %v500 = vsel %vm436, %v427, 0.0
      %v501 = vsel %vm436, %v431, 0.0
      %v502 = vsel %vm436, %v435, 0.0
      %v503 = vld [vmem:[%s3] sm:$0xff]
      %v504 = vld [vmem:[%s3 + $0x8] sm:$0xff]
      %v505 = vld [vmem:[%s3 + $0x10] sm:$0xff]
      %v506 = vld [vmem:[%s3 + $0x18] sm:$0xff]
      %v507 = vld [vmem:[%s3 + $0x20] sm:$0xff]
      %v508 = vld [vmem:[%s3 + $0x28] sm:$0xff]
      %v509 = vld [vmem:[%s3 + $0x30] sm:$0xff]
      %v510 = vld [vmem:[%s3 + $0x38] sm:$0xff]
      %v511 = vld [vmem:[%s3 + $0x40] sm:$0xff]
      %v512 = vld [vmem:[%s3 + $0x48] sm:$0xff]
      %v513 = vld [vmem:[%s3 + $0x50] sm:$0x1f]
      %515 = vset.pattern.permute.xlu0 4
      %516 = vperm.xlu0 %515, %v503
      %v517 = vpop.permute.xlu0 %516
      %520 = vset.pattern.permute.xlu0 4
      %521 = vperm.xlu0 %520, %v504
      %v522 = vpop.permute.xlu0 %521
      %525 = vset.pattern.permute.xlu0 4
      %526 = vperm.xlu0 %525, %v505
      %v527 = vpop.permute.xlu0 %526
      %530 = vset.pattern.permute.xlu0 4
      %531 = vperm.xlu0 %530, %v506
      %v532 = vpop.permute.xlu0 %531
      %535 = vset.pattern.permute.xlu0 4
      %536 = vperm.xlu0 %535, %v507
      %v537 = vpop.permute.xlu0 %536
      %540 = vset.pattern.permute.xlu0 4
      %541 = vperm.xlu0 %540, %v508
      %v542 = vpop.permute.xlu0 %541
      %545 = vset.pattern.permute.xlu0 4
      %546 = vperm.xlu0 %545, %v509
      %v547 = vpop.permute.xlu0 %546
      %550 = vset.pattern.permute.xlu0 4
      %551 = vperm.xlu0 %550, %v510
      %v552 = vpop.permute.xlu0 %551
      %555 = vset.pattern.permute.xlu0 4
      %556 = vperm.xlu0 %555, %v511
      %v557 = vpop.permute.xlu0 %556
      %560 = vset.pattern.permute.xlu0 4
      %561 = vperm.xlu0 %560, %v512
      %v562 = vpop.permute.xlu0 %561
      %565 = vset.pattern.permute.xlu0 4
      %566 = vperm.xlu0 %565, %v513
      %v567 = vpop.permute.xlu0 %566
      %v569 = vmul.f32 %v348, %v517
      %v570 = vmul.f32 %v349, %v517
      %v571 = vmul.f32 %v350, %v522
      %v572 = vmul.f32 %v351, %v522
      %v573 = vmul.f32 %v352, %v527
      %v574 = vmul.f32 %v353, %v527
      %v575 = vmul.f32 %v354, %v532
      %v576 = vmul.f32 %v355, %v532
      %v577 = vmul.f32 %v356, %v537
      %v578 = vmul.f32 %v357, %v537
      %v579 = vmul.f32 %v358, %v542
      %v580 = vmul.f32 %v359, %v542
      %v581 = vmul.f32 %v360, %v547
      %v582 = vmul.f32 %v361, %v547
      %v583 = vmul.f32 %v362, %v552
      %v584 = vmul.f32 %v363, %v552
      %v585 = vmul.f32 %v364, %v557
      %v586 = vmul.f32 %v365, %v557
      %v587 = vmul.f32 %v366, %v562
      %v588 = vmul.f32 %v367, %v562
      %v589 = vmul.f32 %v368, %v567
      %v590 = vmul.f32 %v369, %v567
      %v592 = vlaneseq
      %v593 = vshrl.u32 %v592, 7
      %v594 = vsub.s32 0, %v593
      %v595 = vrot.slane %v346, %v594
      %v596 = vlaneseq
      %v597 = vshrl.u32 %v596, 7
      %v598 = vsub.s32 1, %v597
      %v599 = vrot.slane %v346, %v598
      %v602 = vmul.f32 %v481, %v595
      %v603 = vmul.f32 %v437, %v599
      %v604 = vmul.f32 %v482, %v595
      %v605 = vmul.f32 %v438, %v599
      %v606 = vmul.f32 %v483, %v595
      %v607 = vmul.f32 %v439, %v599
      %v608 = vmul.f32 %v484, %v595
      %v609 = vmul.f32 %v440, %v599
      %v610 = vmul.f32 %v485, %v595
      %v611 = vmul.f32 %v441, %v599
      %v612 = vmul.f32 %v486, %v595
      %v613 = vmul.f32 %v442, %v599
      %v614 = vmul.f32 %v487, %v595
      %v615 = vmul.f32 %v443, %v599
      %v616 = vmul.f32 %v488, %v595
      %v617 = vmul.f32 %v444, %v599
      %v618 = vmul.f32 %v489, %v595
      %v619 = vmul.f32 %v445, %v599
      %v620 = vmul.f32 %v490, %v595
      %v621 = vmul.f32 %v446, %v599
      %v622 = vmul.f32 %v491, %v595
      %v623 = vmul.f32 %v447, %v599
      %624 = vset.pattern.permute.xlu0 0
      %625 = vperm.xlu0 %624, %v503
      %v626 = vpop.permute.xlu0 %625
      %628 = vset.pattern.permute.xlu0 0
      %629 = vperm.xlu0 %628, %v504
      %v630 = vpop.permute.xlu0 %629
      %632 = vset.pattern.permute.xlu0 0
      %633 = vperm.xlu0 %632, %v505
      %v634 = vpop.permute.xlu0 %633
      %636 = vset.pattern.permute.xlu0 0
      %637 = vperm.xlu0 %636, %v506
      %v638 = vpop.permute.xlu0 %637
      %640 = vset.pattern.permute.xlu0 0
      %641 = vperm.xlu0 %640, %v507
      %v642 = vpop.permute.xlu0 %641
      %644 = vset.pattern.permute.xlu0 0
      %645 = vperm.xlu0 %644, %v508
      %v646 = vpop.permute.xlu0 %645
      %648 = vset.pattern.permute.xlu0 0
      %649 = vperm.xlu0 %648, %v509
      %v650 = vpop.permute.xlu0 %649
      %652 = vset.pattern.permute.xlu0 0
      %653 = vperm.xlu0 %652, %v510
      %v654 = vpop.permute.xlu0 %653
      %656 = vset.pattern.permute.xlu0 0
      %657 = vperm.xlu0 %656, %v511
      %v658 = vpop.permute.xlu0 %657
      %660 = vset.pattern.permute.xlu0 0
      %661 = vperm.xlu0 %660, %v512
      %v662 = vpop.permute.xlu0 %661
      %664 = vset.pattern.permute.xlu0 0
      %665 = vperm.xlu0 %664, %v513
      %v666 = vpop.permute.xlu0 %665
      %v668 = vmul.f32 %v602, %v626
      %v669 = vmul.f32 %v603, %v626
      %v670 = vmul.f32 %v604, %v630
      %v671 = vmul.f32 %v605, %v630
      %v672 = vmul.f32 %v606, %v634
      %v673 = vmul.f32 %v607, %v634
      %v674 = vmul.f32 %v608, %v638
      %v675 = vmul.f32 %v609, %v638
      %v676 = vmul.f32 %v610, %v642
      %v677 = vmul.f32 %v611, %v642
      %v678 = vmul.f32 %v612, %v646
      %v679 = vmul.f32 %v613, %v646
      %v680 = vmul.f32 %v614, %v650
      %v681 = vmul.f32 %v615, %v650
      %v682 = vmul.f32 %v616, %v654
      %v683 = vmul.f32 %v617, %v654
      %v684 = vmul.f32 %v618, %v658
      %v685 = vmul.f32 %v619, %v658
      %v686 = vmul.f32 %v620, %v662
      %v687 = vmul.f32 %v621, %v662
      %v688 = vmul.f32 %v622, %v666
      %v689 = vmul.f32 %v623, %v666
      %v690 = vadd.f32 %v569, %v668
      %v691 = vadd.f32 %v570, %v669
      %v692 = vadd.f32 %v571, %v670
      %v693 = vadd.f32 %v572, %v671
      %v694 = vadd.f32 %v573, %v672
      %v695 = vadd.f32 %v574, %v673
      %v696 = vadd.f32 %v575, %v674
      %v697 = vadd.f32 %v576, %v675
      %v698 = vadd.f32 %v577, %v676
      %v699 = vadd.f32 %v578, %v677
      %v700 = vadd.f32 %v579, %v678
      %v701 = vadd.f32 %v580, %v679
      %v702 = vadd.f32 %v581, %v680
      %v703 = vadd.f32 %v582, %v681
      %v704 = vadd.f32 %v583, %v682
      %v705 = vadd.f32 %v584, %v683
      %v706 = vadd.f32 %v585, %v684
      %v707 = vadd.f32 %v586, %v685
      %v708 = vadd.f32 %v587, %v686
      %v709 = vadd.f32 %v588, %v687
      %v710 = vadd.f32 %v589, %v688
      %v711 = vadd.f32 %v590, %v689
      %712 = vset.pattern.permute.xlu0 1
      %713 = vperm.xlu0 %712, %v503
      %v714 = vpop.permute.xlu0 %713
      %716 = vset.pattern.permute.xlu0 1
      %717 = vperm.xlu0 %716, %v504
      %v718 = vpop.permute.xlu0 %717
      %720 = vset.pattern.permute.xlu0 1
      %721 = vperm.xlu0 %720, %v505
      %v722 = vpop.permute.xlu0 %721
      %724 = vset.pattern.permute.xlu0 1
      %725 = vperm.xlu0 %724, %v506
      %v726 = vpop.permute.xlu0 %725
      %728 = vset.pattern.permute.xlu0 1
      %729 = vperm.xlu0 %728, %v507
      %v730 = vpop.permute.xlu0 %729
      %732 = vset.pattern.permute.xlu0 1
      %733 = vperm.xlu0 %732, %v508
      %v734 = vpop.permute.xlu0 %733
      %736 = vset.pattern.permute.xlu0 1
      %737 = vperm.xlu0 %736, %v509
      %v738 = vpop.permute.xlu0 %737
      %740 = vset.pattern.permute.xlu0 1
      %741 = vperm.xlu0 %740, %v510
      %v742 = vpop.permute.xlu0 %741
      %744 = vset.pattern.permute.xlu0 1
      %745 = vperm.xlu0 %744, %v511
      %v746 = vpop.permute.xlu0 %745
      %748 = vset.pattern.permute.xlu0 1
      %749 = vperm.xlu0 %748, %v512
      %v750 = vpop.permute.xlu0 %749
      %752 = vset.pattern.permute.xlu0 1
      %753 = vperm.xlu0 %752, %v513
      %v754 = vpop.permute.xlu0 %753
      %v756 = vmul.f32 %v481, %v714
      %v757 = vmul.f32 %v437, %v714
      %v758 = vmul.f32 %v492, %v714
      %v759 = vmul.f32 %v482, %v718
      %v760 = vmul.f32 %v438, %v718
      %v761 = vmul.f32 %v493, %v718
      %v762 = vmul.f32 %v483, %v722
      %v763 = vmul.f32 %v439, %v722
      %v764 = vmul.f32 %v494, %v722
      %v765 = vmul.f32 %v484, %v726
      %v766 = vmul.f32 %v440, %v726
      %v767 = vmul.f32 %v495, %v726
      %v768 = vmul.f32 %v485, %v730
      %v769 = vmul.f32 %v441, %v730
      %v770 = vmul.f32 %v496, %v730
      %v771 = vmul.f32 %v486, %v734
      %v772 = vmul.f32 %v442, %v734
      %v773 = vmul.f32 %v497, %v734
      %v774 = vmul.f32 %v487, %v738
      %v775 = vmul.f32 %v443, %v738
      %v776 = vmul.f32 %v498, %v738
      %v777 = vmul.f32 %v488, %v742
      %v778 = vmul.f32 %v444, %v742
      %v779 = vmul.f32 %v499, %v742
      %v780 = vmul.f32 %v489, %v746
      %v781 = vmul.f32 %v445, %v746
      %v782 = vmul.f32 %v500, %v746
      %v783 = vmul.f32 %v490, %v750
      %v784 = vmul.f32 %v446, %v750
      %v785 = vmul.f32 %v501, %v750
      %v786 = vmul.f32 %v491, %v754
      %v787 = vmul.f32 %v447, %v754
      %v788 = vmul.f32 %v502, %v754
      %822 = vrot.lane.b32.xlu0 %v756, 127
      %v823 = vpop.permute.xlu0 %822
      %824 = vrot.lane.b32.xlu0 %v757, 127
      %v825 = vpop.permute.xlu0 %824
      %826 = vrot.lane.b32.xlu0 %v758, 127
      %v827 = vpop.permute.xlu0 %826
      %828 = vrot.lane.b32.xlu0 %v759, 127
      %v829 = vpop.permute.xlu0 %828
      %830 = vrot.lane.b32.xlu0 %v760, 127
      %v831 = vpop.permute.xlu0 %830
      %832 = vrot.lane.b32.xlu0 %v761, 127
      %v833 = vpop.permute.xlu0 %832
      %834 = vrot.lane.b32.xlu0 %v762, 127
      %v835 = vpop.permute.xlu0 %834
      %836 = vrot.lane.b32.xlu0 %v763, 127
      %v837 = vpop.permute.xlu0 %836
      %838 = vrot.lane.b32.xlu0 %v764, 127
      %v839 = vpop.permute.xlu0 %838
      %840 = vrot.lane.b32.xlu0 %v765, 127
      %v841 = vpop.permute.xlu0 %840
      %842 = vrot.lane.b32.xlu0 %v766, 127
      %v843 = vpop.permute.xlu0 %842
      %844 = vrot.lane.b32.xlu0 %v767, 127
      %v845 = vpop.permute.xlu0 %844
      %846 = vrot.lane.b32.xlu0 %v768, 127
      %v847 = vpop.permute.xlu0 %846
      %848 = vrot.lane.b32.xlu0 %v769, 127
      %v849 = vpop.permute.xlu0 %848
      %850 = vrot.lane.b32.xlu0 %v770, 127
      %v851 = vpop.permute.xlu0 %850
      %852 = vrot.lane.b32.xlu0 %v771, 127
      %v853 = vpop.permute.xlu0 %852
      %854 = vrot.lane.b32.xlu0 %v772, 127
      %v855 = vpop.permute.xlu0 %854
      %856 = vrot.lane.b32.xlu0 %v773, 127
      %v857 = vpop.permute.xlu0 %856
      %858 = vrot.lane.b32.xlu0 %v774, 127
      %v859 = vpop.permute.xlu0 %858
      %860 = vrot.lane.b32.xlu0 %v775, 127
      %v861 = vpop.permute.xlu0 %860
      %862 = vrot.lane.b32.xlu0 %v776, 127
      %v863 = vpop.permute.xlu0 %862
      %864 = vrot.lane.b32.xlu0 %v777, 127
      %v865 = vpop.permute.xlu0 %864
      %866 = vrot.lane.b32.xlu0 %v778, 127
      %v867 = vpop.permute.xlu0 %866
      %868 = vrot.lane.b32.xlu0 %v779, 127
      %v869 = vpop.permute.xlu0 %868
      %870 = vrot.lane.b32.xlu0 %v780, 127
      %v871 = vpop.permute.xlu0 %870
      %872 = vrot.lane.b32.xlu0 %v781, 127
      %v873 = vpop.permute.xlu0 %872
      %874 = vrot.lane.b32.xlu0 %v782, 127
      %v875 = vpop.permute.xlu0 %874
      %876 = vrot.lane.b32.xlu0 %v783, 127
      %v877 = vpop.permute.xlu0 %876
      %878 = vrot.lane.b32.xlu0 %v784, 127
      %v879 = vpop.permute.xlu0 %878
      %880 = vrot.lane.b32.xlu0 %v785, 127
      %v881 = vpop.permute.xlu0 %880
      %882 = vrot.lane.b32.xlu0 %v786, 127
      %v883 = vpop.permute.xlu0 %882
      %884 = vrot.lane.b32.xlu0 %v787, 127
      %v885 = vpop.permute.xlu0 %884
      %886 = vrot.lane.b32.xlu0 %v788, 127
      %v887 = vpop.permute.xlu0 %886
      %vm888 = vcmask 1039360
      %v889 = vsel %vm888, %v823, %v825
      %v890 = vsel %vm888, %v825, %v827
      %v891 = vsel %vm888, %v829, %v831
      %v892 = vsel %vm888, %v831, %v833
      %v893 = vsel %vm888, %v835, %v837
      %v894 = vsel %vm888, %v837, %v839
      %v895 = vsel %vm888, %v841, %v843
      %v896 = vsel %vm888, %v843, %v845
      %v897 = vsel %vm888, %v847, %v849
      %v898 = vsel %vm888, %v849, %v851
      %v899 = vsel %vm888, %v853, %v855
      %v900 = vsel %vm888, %v855, %v857
      %v901 = vsel %vm888, %v859, %v861
      %v902 = vsel %vm888, %v861, %v863
      %v903 = vsel %vm888, %v865, %v867
      %v904 = vsel %vm888, %v867, %v869
      %v905 = vsel %vm888, %v871, %v873
      %v906 = vsel %vm888, %v873, %v875
      %v907 = vsel %vm888, %v877, %v879
      %v908 = vsel %vm888, %v879, %v881
      %v909 = vsel %vm888, %v883, %v885
      %v910 = vsel %vm888, %v885, %v887
      %v933 = vadd.f32 %v690, %v889
      %v934 = vadd.f32 %v691, %v890
      %v935 = vadd.f32 %v692, %v891
      %v936 = vadd.f32 %v693, %v892
      %v937 = vadd.f32 %v694, %v893
      %v938 = vadd.f32 %v695, %v894
      %v939 = vadd.f32 %v696, %v895
      %v940 = vadd.f32 %v697, %v896
      %v941 = vadd.f32 %v698, %v897
      %v942 = vadd.f32 %v699, %v898
      %v943 = vadd.f32 %v700, %v899
      %v944 = vadd.f32 %v701, %v900
      %v945 = vadd.f32 %v702, %v901
      %v946 = vadd.f32 %v703, %v902
      %v947 = vadd.f32 %v704, %v903
      %v948 = vadd.f32 %v705, %v904
      %v949 = vadd.f32 %v706, %v905
      %v950 = vadd.f32 %v707, %v906
      %v951 = vadd.f32 %v708, %v907
      %v952 = vadd.f32 %v709, %v908
      %v953 = vadd.f32 %v710, %v909
      %v954 = vadd.f32 %v711, %v910
      %v956 = vlaneseq
      %v957 = vshrl.u32 %v956, 7
      %v958 = vsub.s32 0, %v957
      %v959 = vrot.slane %v347, %v958
      %v960 = vlaneseq
      %v961 = vshrl.u32 %v960, 7
      %v962 = vsub.s32 1, %v961
      %v963 = vrot.slane %v347, %v962
      %964 = vrot.lane.b32.xlu0 %v959, 2
      %v965 = vpop.permute.xlu0 %964
      %966 = vrot.lane.b32.xlu0 %v963, 2
      %v967 = vpop.permute.xlu0 %966
      %vm968 = vcmask 15360
      %v969 = vsel %vm968, %v965, %v967
      %v973 = vmul.f32 %v481, %v965
      %v974 = vmul.f32 %v437, %v969
      %v975 = vmul.f32 %v492, %v967
      %v976 = vmul.f32 %v482, %v965
      %v977 = vmul.f32 %v438, %v969
      %v978 = vmul.f32 %v493, %v967
      %v979 = vmul.f32 %v483, %v965
      %v980 = vmul.f32 %v439, %v969
      %v981 = vmul.f32 %v494, %v967
      %v982 = vmul.f32 %v484, %v965
      %v983 = vmul.f32 %v440, %v969
      %v984 = vmul.f32 %v495, %v967
      %v985 = vmul.f32 %v485, %v965
      %v986 = vmul.f32 %v441, %v969
      %v987 = vmul.f32 %v496, %v967
      %v988 = vmul.f32 %v486, %v965
      %v989 = vmul.f32 %v442, %v969
      %v990 = vmul.f32 %v497, %v967
      %v991 = vmul.f32 %v487, %v965
      %v992 = vmul.f32 %v443, %v969
      %v993 = vmul.f32 %v498, %v967
      %v994 = vmul.f32 %v488, %v965
      %v995 = vmul.f32 %v444, %v969
      %v996 = vmul.f32 %v499, %v967
      %v997 = vmul.f32 %v489, %v965
      %v998 = vmul.f32 %v445, %v969
      %v999 = vmul.f32 %v500, %v967
      %v1000 = vmul.f32 %v490, %v965
      %v1001 = vmul.f32 %v446, %v969
      %v1002 = vmul.f32 %v501, %v967
      %v1003 = vmul.f32 %v491, %v965
      %v1004 = vmul.f32 %v447, %v969
      %v1005 = vmul.f32 %v502, %v967
      %1006 = vset.pattern.permute.xlu0 2
      %1007 = vperm.xlu0 %1006, %v503
      %v1008 = vpop.permute.xlu0 %1007
      %1010 = vset.pattern.permute.xlu0 2
      %1011 = vperm.xlu0 %1010, %v504
      %v1012 = vpop.permute.xlu0 %1011
      %1014 = vset.pattern.permute.xlu0 2
      %1015 = vperm.xlu0 %1014, %v505
      %v1016 = vpop.permute.xlu0 %1015
      %1018 = vset.pattern.permute.xlu0 2
      %1019 = vperm.xlu0 %1018, %v506
      %v1020 = vpop.permute.xlu0 %1019
      %1022 = vset.pattern.permute.xlu0 2
      %1023 = vperm.xlu0 %1022, %v507
      %v1024 = vpop.permute.xlu0 %1023
      %1026 = vset.pattern.permute.xlu0 2
      %1027 = vperm.xlu0 %1026, %v508
      %v1028 = vpop.permute.xlu0 %1027
      %1030 = vset.pattern.permute.xlu0 2
      %1031 = vperm.xlu0 %1030, %v509
      %v1032 = vpop.permute.xlu0 %1031
      %1034 = vset.pattern.permute.xlu0 2
      %1035 = vperm.xlu0 %1034, %v510
      %v1036 = vpop.permute.xlu0 %1035
      %1038 = vset.pattern.permute.xlu0 2
      %1039 = vperm.xlu0 %1038, %v511
      %v1040 = vpop.permute.xlu0 %1039
      %1042 = vset.pattern.permute.xlu0 2
      %1043 = vperm.xlu0 %1042, %v512
      %v1044 = vpop.permute.xlu0 %1043
      %1046 = vset.pattern.permute.xlu0 2
      %1047 = vperm.xlu0 %1046, %v513
      %v1048 = vpop.permute.xlu0 %1047
      %v1050 = vmul.f32 %v973, %v1008
      %v1051 = vmul.f32 %v974, %v1008
      %v1052 = vmul.f32 %v975, %v1008
      %v1053 = vmul.f32 %v976, %v1012
      %v1054 = vmul.f32 %v977, %v1012
      %v1055 = vmul.f32 %v978, %v1012
      %v1056 = vmul.f32 %v979, %v1016
      %v1057 = vmul.f32 %v980, %v1016
      %v1058 = vmul.f32 %v981, %v1016
      %v1059 = vmul.f32 %v982, %v1020
      %v1060 = vmul.f32 %v983, %v1020
      %v1061 = vmul.f32 %v984, %v1020
      %v1062 = vmul.f32 %v985, %v1024
      %v1063 = vmul.f32 %v986, %v1024
      %v1064 = vmul.f32 %v987, %v1024
      %v1065 = vmul.f32 %v988, %v1028
      %v1066 = vmul.f32 %v989, %v1028
      %v1067 = vmul.f32 %v990, %v1028
      %v1068 = vmul.f32 %v991, %v1032
      %v1069 = vmul.f32 %v992, %v1032
      %v1070 = vmul.f32 %v993, %v1032
      %v1071 = vmul.f32 %v994, %v1036
      %v1072 = vmul.f32 %v995, %v1036
      %v1073 = vmul.f32 %v996, %v1036
      %v1074 = vmul.f32 %v997, %v1040
      %v1075 = vmul.f32 %v998, %v1040
      %v1076 = vmul.f32 %v999, %v1040
      %v1077 = vmul.f32 %v1000, %v1044
      %v1078 = vmul.f32 %v1001, %v1044
      %v1079 = vmul.f32 %v1002, %v1044
      %v1080 = vmul.f32 %v1003, %v1048
      %v1081 = vmul.f32 %v1004, %v1048
      %v1082 = vmul.f32 %v1005, %v1048
      %1116 = vrot.lane.b32.xlu0 %v1050, 126
      %v1117 = vpop.permute.xlu0 %1116
      %1118 = vrot.lane.b32.xlu0 %v1051, 126
      %v1119 = vpop.permute.xlu0 %1118
      %1120 = vrot.lane.b32.xlu0 %v1052, 126
      %v1121 = vpop.permute.xlu0 %1120
      %1122 = vrot.lane.b32.xlu0 %v1053, 126
      %v1123 = vpop.permute.xlu0 %1122
      %1124 = vrot.lane.b32.xlu0 %v1054, 126
      %v1125 = vpop.permute.xlu0 %1124
      %1126 = vrot.lane.b32.xlu0 %v1055, 126
      %v1127 = vpop.permute.xlu0 %1126
      %1128 = vrot.lane.b32.xlu0 %v1056, 126
      %v1129 = vpop.permute.xlu0 %1128
      %1130 = vrot.lane.b32.xlu0 %v1057, 126
      %v1131 = vpop.permute.xlu0 %1130
      %1132 = vrot.lane.b32.xlu0 %v1058, 126
      %v1133 = vpop.permute.xlu0 %1132
      %1134 = vrot.lane.b32.xlu0 %v1059, 126
      %v1135 = vpop.permute.xlu0 %1134
      %1136 = vrot.lane.b32.xlu0 %v1060, 126
      %v1137 = vpop.permute.xlu0 %1136
      %1138 = vrot.lane.b32.xlu0 %v1061, 126
      %v1139 = vpop.permute.xlu0 %1138
      %1140 = vrot.lane.b32.xlu0 %v1062, 126
      %v1141 = vpop.permute.xlu0 %1140
      %1142 = vrot.lane.b32.xlu0 %v1063, 126
      %v1143 = vpop.permute.xlu0 %1142
      %1144 = vrot.lane.b32.xlu0 %v1064, 126
      %v1145 = vpop.permute.xlu0 %1144
      %1146 = vrot.lane.b32.xlu0 %v1065, 126
      %v1147 = vpop.permute.xlu0 %1146
      %1148 = vrot.lane.b32.xlu0 %v1066, 126
      %v1149 = vpop.permute.xlu0 %1148
      %1150 = vrot.lane.b32.xlu0 %v1067, 126
      %v1151 = vpop.permute.xlu0 %1150
      %1152 = vrot.lane.b32.xlu0 %v1068, 126
      %v1153 = vpop.permute.xlu0 %1152
      %1154 = vrot.lane.b32.xlu0 %v1069, 126
      %v1155 = vpop.permute.xlu0 %1154
      %1156 = vrot.lane.b32.xlu0 %v1070, 126
      %v1157 = vpop.permute.xlu0 %1156
      %1158 = vrot.lane.b32.xlu0 %v1071, 126
      %v1159 = vpop.permute.xlu0 %1158
      %1160 = vrot.lane.b32.xlu0 %v1072, 126
      %v1161 = vpop.permute.xlu0 %1160
      %1162 = vrot.lane.b32.xlu0 %v1073, 126
      %v1163 = vpop.permute.xlu0 %1162
      %1164 = vrot.lane.b32.xlu0 %v1074, 126
      %v1165 = vpop.permute.xlu0 %1164
      %1166 = vrot.lane.b32.xlu0 %v1075, 126
      %v1167 = vpop.permute.xlu0 %1166
      %1168 = vrot.lane.b32.xlu0 %v1076, 126
      %v1169 = vpop.permute.xlu0 %1168
      %1170 = vrot.lane.b32.xlu0 %v1077, 126
      %v1171 = vpop.permute.xlu0 %1170
      %1172 = vrot.lane.b32.xlu0 %v1078, 126
      %v1173 = vpop.permute.xlu0 %1172
      %1174 = vrot.lane.b32.xlu0 %v1079, 126
      %v1175 = vpop.permute.xlu0 %1174
      %1176 = vrot.lane.b32.xlu0 %v1080, 126
      %v1177 = vpop.permute.xlu0 %1176
      %1178 = vrot.lane.b32.xlu0 %v1081, 126
      %v1179 = vpop.permute.xlu0 %1178
      %1180 = vrot.lane.b32.xlu0 %v1082, 126
      %v1181 = vpop.permute.xlu0 %1180
      %vm1182 = vcmask 1031168
      %v1183 = vsel %vm1182, %v1117, %v1119
      %v1184 = vsel %vm1182, %v1119, %v1121
      %v1185 = vsel %vm1182, %v1123, %v1125
      %v1186 = vsel %vm1182, %v1125, %v1127
      %v1187 = vsel %vm1182, %v1129, %v1131
      %v1188 = vsel %vm1182, %v1131, %v1133
      %v1189 = vsel %vm1182, %v1135, %v1137
      %v1190 = vsel %vm1182, %v1137, %v1139
      %v1191 = vsel %vm1182, %v1141, %v1143
      %v1192 = vsel %vm1182, %v1143, %v1145
      %v1193 = vsel %vm1182, %v1147, %v1149
      %v1194 = vsel %vm1182, %v1149, %v1151
      %v1195 = vsel %vm1182, %v1153, %v1155
      %v1196 = vsel %vm1182, %v1155, %v1157
      %v1197 = vsel %vm1182, %v1159, %v1161
      %v1198 = vsel %vm1182, %v1161, %v1163
      %v1199 = vsel %vm1182, %v1165, %v1167
      %v1200 = vsel %vm1182, %v1167, %v1169
      %v1201 = vsel %vm1182, %v1171, %v1173
      %v1202 = vsel %vm1182, %v1173, %v1175
      %v1203 = vsel %vm1182, %v1177, %v1179
      %v1204 = vsel %vm1182, %v1179, %v1181
      %v1227 = vadd.f32 %v933, %v1183
      %v1228 = vadd.f32 %v934, %v1184
      %v1229 = vadd.f32 %v935, %v1185
      %v1230 = vadd.f32 %v936, %v1186
      %v1231 = vadd.f32 %v937, %v1187
      %v1232 = vadd.f32 %v938, %v1188
      %v1233 = vadd.f32 %v939, %v1189
      %v1234 = vadd.f32 %v940, %v1190
      %v1235 = vadd.f32 %v941, %v1191
      %v1236 = vadd.f32 %v942, %v1192
      %v1237 = vadd.f32 %v943, %v1193
      %v1238 = vadd.f32 %v944, %v1194
      %v1239 = vadd.f32 %v945, %v1195
      %v1240 = vadd.f32 %v946, %v1196
      %v1241 = vadd.f32 %v947, %v1197
      %v1242 = vadd.f32 %v948, %v1198
      %v1243 = vadd.f32 %v949, %v1199
      %v1244 = vadd.f32 %v950, %v1200
      %v1245 = vadd.f32 %v951, %v1201
      %v1246 = vadd.f32 %v952, %v1202
      %v1247 = vadd.f32 %v953, %v1203
      %v1248 = vadd.f32 %v954, %v1204
      %1249 = vrot.lane.b32.xlu0 %v595, 16
      %v1250 = vpop.permute.xlu0 %1249
      %1251 = vrot.lane.b32.xlu0 %v599, 16
      %v1252 = vpop.permute.xlu0 %1251
      %vm1253 = vcmask 130048
      %v1254 = vsel %vm1253, %v1250, %v1252
      %v1258 = vmul.f32 %v481, %v1250
      %v1259 = vmul.f32 %v437, %v1254
      %v1260 = vmul.f32 %v492, %v1252
      %v1261 = vmul.f32 %v482, %v1250
      %v1262 = vmul.f32 %v438, %v1254
      %v1263 = vmul.f32 %v493, %v1252
      %v1264 = vmul.f32 %v483, %v1250
      %v1265 = vmul.f32 %v439, %v1254
      %v1266 = vmul.f32 %v494, %v1252
      %v1267 = vmul.f32 %v484, %v1250
      %v1268 = vmul.f32 %v440, %v1254
      %v1269 = vmul.f32 %v495, %v1252
      %v1270 = vmul.f32 %v485, %v1250
      %v1271 = vmul.f32 %v441, %v1254
      %v1272 = vmul.f32 %v496, %v1252
      %v1273 = vmul.f32 %v486, %v1250
      %v1274 = vmul.f32 %v442, %v1254
      %v1275 = vmul.f32 %v497, %v1252
      %v1276 = vmul.f32 %v487, %v1250
      %v1277 = vmul.f32 %v443, %v1254
      %v1278 = vmul.f32 %v498, %v1252
      %v1279 = vmul.f32 %v488, %v1250
      %v1280 = vmul.f32 %v444, %v1254
      %v1281 = vmul.f32 %v499, %v1252
      %v1282 = vmul.f32 %v489, %v1250
      %v1283 = vmul.f32 %v445, %v1254
      %v1284 = vmul.f32 %v500, %v1252
      %v1285 = vmul.f32 %v490, %v1250
      %v1286 = vmul.f32 %v446, %v1254
      %v1287 = vmul.f32 %v501, %v1252
      %v1288 = vmul.f32 %v491, %v1250
      %v1289 = vmul.f32 %v447, %v1254
      %v1290 = vmul.f32 %v502, %v1252
      %1291 = vset.pattern.permute.xlu0 3
      %1292 = vperm.xlu0 %1291, %v503
      %v1293 = vpop.permute.xlu0 %1292
      %1295 = vset.pattern.permute.xlu0 3
      %1296 = vperm.xlu0 %1295, %v504
      %v1297 = vpop.permute.xlu0 %1296
      %1299 = vset.pattern.permute.xlu0 3
      %1300 = vperm.xlu0 %1299, %v505
      %v1301 = vpop.permute.xlu0 %1300
      %1303 = vset.pattern.permute.xlu0 3
      %1304 = vperm.xlu0 %1303, %v506
      %v1305 = vpop.permute.xlu0 %1304
      %1307 = vset.pattern.permute.xlu0 3
      %1308 = vperm.xlu0 %1307, %v507
      %v1309 = vpop.permute.xlu0 %1308
      %1311 = vset.pattern.permute.xlu0 3
      %1312 = vperm.xlu0 %1311, %v508
      %v1313 = vpop.permute.xlu0 %1312
      %1315 = vset.pattern.permute.xlu0 3
      %1316 = vperm.xlu0 %1315, %v509
      %v1317 = vpop.permute.xlu0 %1316
      %1319 = vset.pattern.permute.xlu0 3
      %1320 = vperm.xlu0 %1319, %v510
      %v1321 = vpop.permute.xlu0 %1320
      %1323 = vset.pattern.permute.xlu0 3
      %1324 = vperm.xlu0 %1323, %v511
      %v1325 = vpop.permute.xlu0 %1324
      %1327 = vset.pattern.permute.xlu0 3
      %1328 = vperm.xlu0 %1327, %v512
      %v1329 = vpop.permute.xlu0 %1328
      %1331 = vset.pattern.permute.xlu0 3
      %1332 = vperm.xlu0 %1331, %v513
      %v1333 = vpop.permute.xlu0 %1332
      %v1335 = vmul.f32 %v1258, %v1293
      %v1336 = vmul.f32 %v1259, %v1293
      %v1337 = vmul.f32 %v1260, %v1293
      %v1338 = vmul.f32 %v1261, %v1297
      %v1339 = vmul.f32 %v1262, %v1297
      %v1340 = vmul.f32 %v1263, %v1297
      %v1341 = vmul.f32 %v1264, %v1301
      %v1342 = vmul.f32 %v1265, %v1301
      %v1343 = vmul.f32 %v1266, %v1301
      %v1344 = vmul.f32 %v1267, %v1305
      %v1345 = vmul.f32 %v1268, %v1305
      %v1346 = vmul.f32 %v1269, %v1305
      %v1347 = vmul.f32 %v1270, %v1309
      %v1348 = vmul.f32 %v1271, %v1309
      %v1349 = vmul.f32 %v1272, %v1309
      %v1350 = vmul.f32 %v1273, %v1313
      %v1351 = vmul.f32 %v1274, %v1313
      %v1352 = vmul.f32 %v1275, %v1313
      %v1353 = vmul.f32 %v1276, %v1317
      %v1354 = vmul.f32 %v1277, %v1317
      %v1355 = vmul.f32 %v1278, %v1317
      %v1356 = vmul.f32 %v1279, %v1321
      %v1357 = vmul.f32 %v1280, %v1321
      %v1358 = vmul.f32 %v1281, %v1321
      %v1359 = vmul.f32 %v1282, %v1325
      %v1360 = vmul.f32 %v1283, %v1325
      %v1361 = vmul.f32 %v1284, %v1325
      %v1362 = vmul.f32 %v1285, %v1329
      %v1363 = vmul.f32 %v1286, %v1329
      %v1364 = vmul.f32 %v1287, %v1329
      %v1365 = vmul.f32 %v1288, %v1333
      %v1366 = vmul.f32 %v1289, %v1333
      %v1367 = vmul.f32 %v1290, %v1333
      %1401 = vrot.lane.b32.xlu0 %v1335, 112
      %v1402 = vpop.permute.xlu0 %1401
      %1403 = vrot.lane.b32.xlu0 %v1336, 112
      %v1404 = vpop.permute.xlu0 %1403
      %1405 = vrot.lane.b32.xlu0 %v1337, 112
      %v1406 = vpop.permute.xlu0 %1405
      %1407 = vrot.lane.b32.xlu0 %v1338, 112
      %v1408 = vpop.permute.xlu0 %1407
      %1409 = vrot.lane.b32.xlu0 %v1339, 112
      %v1410 = vpop.permute.xlu0 %1409
      %1411 = vrot.lane.b32.xlu0 %v1340, 112
      %v1412 = vpop.permute.xlu0 %1411
      %1413 = vrot.lane.b32.xlu0 %v1341, 112
      %v1414 = vpop.permute.xlu0 %1413
      %1415 = vrot.lane.b32.xlu0 %v1342, 112
      %v1416 = vpop.permute.xlu0 %1415
      %1417 = vrot.lane.b32.xlu0 %v1343, 112
      %v1418 = vpop.permute.xlu0 %1417
      %1419 = vrot.lane.b32.xlu0 %v1344, 112
      %v1420 = vpop.permute.xlu0 %1419
      %1421 = vrot.lane.b32.xlu0 %v1345, 112
      %v1422 = vpop.permute.xlu0 %1421
      %1423 = vrot.lane.b32.xlu0 %v1346, 112
      %v1424 = vpop.permute.xlu0 %1423
      %1425 = vrot.lane.b32.xlu0 %v1347, 112
      %v1426 = vpop.permute.xlu0 %1425
      %1427 = vrot.lane.b32.xlu0 %v1348, 112
      %v1428 = vpop.permute.xlu0 %1427
      %1429 = vrot.lane.b32.xlu0 %v1349, 112
      %v1430 = vpop.permute.xlu0 %1429
      %1431 = vrot.lane.b32.xlu0 %v1350, 112
      %v1432 = vpop.permute.xlu0 %1431
      %1433 = vrot.lane.b32.xlu0 %v1351, 112
      %v1434 = vpop.permute.xlu0 %1433
      %1435 = vrot.lane.b32.xlu0 %v1352, 112
      %v1436 = vpop.permute.xlu0 %1435
      %1437 = vrot.lane.b32.xlu0 %v1353, 112
      %v1438 = vpop.permute.xlu0 %1437
      %1439 = vrot.lane.b32.xlu0 %v1354, 112
      %v1440 = vpop.permute.xlu0 %1439
      %1441 = vrot.lane.b32.xlu0 %v1355, 112
      %v1442 = vpop.permute.xlu0 %1441
      %1443 = vrot.lane.b32.xlu0 %v1356, 112
      %v1444 = vpop.permute.xlu0 %1443
      %1445 = vrot.lane.b32.xlu0 %v1357, 112
      %v1446 = vpop.permute.xlu0 %1445
      %1447 = vrot.lane.b32.xlu0 %v1358, 112
      %v1448 = vpop.permute.xlu0 %1447
      %1449 = vrot.lane.b32.xlu0 %v1359, 112
      %v1450 = vpop.permute.xlu0 %1449
      %1451 = vrot.lane.b32.xlu0 %v1360, 112
      %v1452 = vpop.permute.xlu0 %1451
      %1453 = vrot.lane.b32.xlu0 %v1361, 112
      %v1454 = vpop.permute.xlu0 %1453
      %1455 = vrot.lane.b32.xlu0 %v1362, 112
      %v1456 = vpop.permute.xlu0 %1455
      %1457 = vrot.lane.b32.xlu0 %v1363, 112
      %v1458 = vpop.permute.xlu0 %1457
      %1459 = vrot.lane.b32.xlu0 %v1364, 112
      %v1460 = vpop.permute.xlu0 %1459
      %1461 = vrot.lane.b32.xlu0 %v1365, 112
      %v1462 = vpop.permute.xlu0 %1461
      %1463 = vrot.lane.b32.xlu0 %v1366, 112
      %v1464 = vpop.permute.xlu0 %1463
      %1465 = vrot.lane.b32.xlu0 %v1367, 112
      %v1466 = vpop.permute.xlu0 %1465
      %vm1467 = vcmask 916480
      %v1468 = vsel %vm1467, %v1402, %v1404
      %v1469 = vsel %vm1467, %v1404, %v1406
      %v1470 = vsel %vm1467, %v1408, %v1410
      %v1471 = vsel %vm1467, %v1410, %v1412
      %v1472 = vsel %vm1467, %v1414, %v1416
      %v1473 = vsel %vm1467, %v1416, %v1418
      %v1474 = vsel %vm1467, %v1420, %v1422
      %v1475 = vsel %vm1467, %v1422, %v1424
      %v1476 = vsel %vm1467, %v1426, %v1428
      %v1477 = vsel %vm1467, %v1428, %v1430
      %v1478 = vsel %vm1467, %v1432, %v1434
      %v1479 = vsel %vm1467, %v1434, %v1436
      %v1480 = vsel %vm1467, %v1438, %v1440
      %v1481 = vsel %vm1467, %v1440, %v1442
      %v1482 = vsel %vm1467, %v1444, %v1446
      %v1483 = vsel %vm1467, %v1446, %v1448
      %v1484 = vsel %vm1467, %v1450, %v1452
      %v1485 = vsel %vm1467, %v1452, %v1454
      %v1486 = vsel %vm1467, %v1456, %v1458
      %v1487 = vsel %vm1467, %v1458, %v1460
      %v1488 = vsel %vm1467, %v1462, %v1464
      %v1489 = vsel %vm1467, %v1464, %v1466
      %v1512 = vadd.f32 %v1227, %v1468
      %v1513 = vadd.f32 %v1228, %v1469
      %v1514 = vadd.f32 %v1229, %v1470
      %v1515 = vadd.f32 %v1230, %v1471
      %v1516 = vadd.f32 %v1231, %v1472
      %v1517 = vadd.f32 %v1232, %v1473
      %v1518 = vadd.f32 %v1233, %v1474
      %v1519 = vadd.f32 %v1234, %v1475
      %v1520 = vadd.f32 %v1235, %v1476
      %v1521 = vadd.f32 %v1236, %v1477
      %v1522 = vadd.f32 %v1237, %v1478
      %v1523 = vadd.f32 %v1238, %v1479
      %v1524 = vadd.f32 %v1239, %v1480
      %v1525 = vadd.f32 %v1240, %v1481
      %v1526 = vadd.f32 %v1241, %v1482
      %v1527 = vadd.f32 %v1242, %v1483
      %v1528 = vadd.f32 %v1243, %v1484
      %v1529 = vadd.f32 %v1244, %v1485
      %v1530 = vadd.f32 %v1245, %v1486
      %v1531 = vadd.f32 %v1246, %v1487
      %v1532 = vadd.f32 %v1247, %v1488
      %v1533 = vadd.f32 %v1248, %v1489
      %1534 = vrot.lane.b32.xlu0 %v959, 18
      %v1535 = vpop.permute.xlu0 %1534
      %1536 = vrot.lane.b32.xlu0 %v963, 18
      %v1537 = vpop.permute.xlu0 %1536
      %vm1538 = vcmask 146432
      %v1539 = vsel %vm1538, %v1535, %v1537
      %v1543 = vmul.f32 %v481, %v1535
      %v1544 = vmul.f32 %v437, %v1539
      %v1545 = vmul.f32 %v492, %v1537
      %v1546 = vmul.f32 %v482, %v1535
      %v1547 = vmul.f32 %v438, %v1539
      %v1548 = vmul.f32 %v493, %v1537
      %v1549 = vmul.f32 %v483, %v1535
      %v1550 = vmul.f32 %v439, %v1539
      %v1551 = vmul.f32 %v494, %v1537
      %v1552 = vmul.f32 %v484, %v1535
      %v1553 = vmul.f32 %v440, %v1539
      %v1554 = vmul.f32 %v495, %v1537
      %v1555 = vmul.f32 %v485, %v1535
      %v1556 = vmul.f32 %v441, %v1539
      %v1557 = vmul.f32 %v496, %v1537
      %v1558 = vmul.f32 %v486, %v1535
      %v1559 = vmul.f32 %v442, %v1539
      %v1560 = vmul.f32 %v497, %v1537
      %v1561 = vmul.f32 %v487, %v1535
      %v1562 = vmul.f32 %v443, %v1539
      %v1563 = vmul.f32 %v498, %v1537
      %v1564 = vmul.f32 %v488, %v1535
      %v1565 = vmul.f32 %v444, %v1539
      %v1566 = vmul.f32 %v499, %v1537
      %v1567 = vmul.f32 %v489, %v1535
      %v1568 = vmul.f32 %v445, %v1539
      %v1569 = vmul.f32 %v500, %v1537
      %v1570 = vmul.f32 %v490, %v1535
      %v1571 = vmul.f32 %v446, %v1539
      %v1572 = vmul.f32 %v501, %v1537
      %v1573 = vmul.f32 %v491, %v1535
      %v1574 = vmul.f32 %v447, %v1539
      %v1575 = vmul.f32 %v502, %v1537
      %1576 = vset.pattern.permute.xlu0 5
      %1577 = vperm.xlu0 %1576, %v503
      %v1578 = vpop.permute.xlu0 %1577
      %1580 = vset.pattern.permute.xlu0 5
      %1581 = vperm.xlu0 %1580, %v504
      %v1582 = vpop.permute.xlu0 %1581
      %1584 = vset.pattern.permute.xlu0 5
      %1585 = vperm.xlu0 %1584, %v505
      %v1586 = vpop.permute.xlu0 %1585
      %1588 = vset.pattern.permute.xlu0 5
      %1589 = vperm.xlu0 %1588, %v506
      %v1590 = vpop.permute.xlu0 %1589
      %1592 = vset.pattern.permute.xlu0 5
      %1593 = vperm.xlu0 %1592, %v507
      %v1594 = vpop.permute.xlu0 %1593
      %1596 = vset.pattern.permute.xlu0 5
      %1597 = vperm.xlu0 %1596, %v508
      %v1598 = vpop.permute.xlu0 %1597
      %1600 = vset.pattern.permute.xlu0 5
      %1601 = vperm.xlu0 %1600, %v509
      %v1602 = vpop.permute.xlu0 %1601
      %1604 = vset.pattern.permute.xlu0 5
      %1605 = vperm.xlu0 %1604, %v510
      %v1606 = vpop.permute.xlu0 %1605
      %1608 = vset.pattern.permute.xlu0 5
      %1609 = vperm.xlu0 %1608, %v511
      %v1610 = vpop.permute.xlu0 %1609
      %1612 = vset.pattern.permute.xlu0 5
      %1613 = vperm.xlu0 %1612, %v512
      %v1614 = vpop.permute.xlu0 %1613
      %1616 = vset.pattern.permute.xlu0 5
      %1617 = vperm.xlu0 %1616, %v513
      %v1618 = vpop.permute.xlu0 %1617
      %v1620 = vmul.f32 %v1543, %v1578
      %v1621 = vmul.f32 %v1544, %v1578
      %v1622 = vmul.f32 %v1545, %v1578
      %v1623 = vmul.f32 %v1546, %v1582
      %v1624 = vmul.f32 %v1547, %v1582
      %v1625 = vmul.f32 %v1548, %v1582
      %v1626 = vmul.f32 %v1549, %v1586
      %v1627 = vmul.f32 %v1550, %v1586
      %v1628 = vmul.f32 %v1551, %v1586
      %v1629 = vmul.f32 %v1552, %v1590
      %v1630 = vmul.f32 %v1553, %v1590
      %v1631 = vmul.f32 %v1554, %v1590
      %v1632 = vmul.f32 %v1555, %v1594
      %v1633 = vmul.f32 %v1556, %v1594
      %v1634 = vmul.f32 %v1557, %v1594
      %v1635 = vmul.f32 %v1558, %v1598
      %v1636 = vmul.f32 %v1559, %v1598
      %v1637 = vmul.f32 %v1560, %v1598
      %v1638 = vmul.f32 %v1561, %v1602
      %v1639 = vmul.f32 %v1562, %v1602
      %v1640 = vmul.f32 %v1563, %v1602
      %v1641 = vmul.f32 %v1564, %v1606
      %v1642 = vmul.f32 %v1565, %v1606
      %v1643 = vmul.f32 %v1566, %v1606
      %v1644 = vmul.f32 %v1567, %v1610
      %v1645 = vmul.f32 %v1568, %v1610
      %v1646 = vmul.f32 %v1569, %v1610
      %v1647 = vmul.f32 %v1570, %v1614
      %v1648 = vmul.f32 %v1571, %v1614
      %v1649 = vmul.f32 %v1572, %v1614
      %v1650 = vmul.f32 %v1573, %v1618
      %v1651 = vmul.f32 %v1574, %v1618
      %v1652 = vmul.f32 %v1575, %v1618
      %1686 = vrot.lane.b32.xlu0 %v1620, 110
      %v1687 = vpop.permute.xlu0 %1686
      %1688 = vrot.lane.b32.xlu0 %v1621, 110
      %v1689 = vpop.permute.xlu0 %1688
      %1690 = vrot.lane.b32.xlu0 %v1622, 110
      %v1691 = vpop.permute.xlu0 %1690
      %1692 = vrot.lane.b32.xlu0 %v1623, 110
      %v1693 = vpop.permute.xlu0 %1692
      %1694 = vrot.lane.b32.xlu0 %v1624, 110
      %v1695 = vpop.permute.xlu0 %1694
      %1696 = vrot.lane.b32.xlu0 %v1625, 110
      %v1697 = vpop.permute.xlu0 %1696
      %1698 = vrot.lane.b32.xlu0 %v1626, 110
      %v1699 = vpop.permute.xlu0 %1698
      %1700 = vrot.lane.b32.xlu0 %v1627, 110
      %v1701 = vpop.permute.xlu0 %1700
      %1702 = vrot.lane.b32.xlu0 %v1628, 110
      %v1703 = vpop.permute.xlu0 %1702
      %1704 = vrot.lane.b32.xlu0 %v1629, 110
      %v1705 = vpop.permute.xlu0 %1704
      %1706 = vrot.lane.b32.xlu0 %v1630, 110
      %v1707 = vpop.permute.xlu0 %1706
      %1708 = vrot.lane.b32.xlu0 %v1631, 110
      %v1709 = vpop.permute.xlu0 %1708
      %1710 = vrot.lane.b32.xlu0 %v1632, 110
      %v1711 = vpop.permute.xlu0 %1710
      %1712 = vrot.lane.b32.xlu0 %v1633, 110
      %v1713 = vpop.permute.xlu0 %1712
      %1714 = vrot.lane.b32.xlu0 %v1634, 110
      %v1715 = vpop.permute.xlu0 %1714
      %1716 = vrot.lane.b32.xlu0 %v1635, 110
      %v1717 = vpop.permute.xlu0 %1716
      %1718 = vrot.lane.b32.xlu0 %v1636, 110
      %v1719 = vpop.permute.xlu0 %1718
      %1720 = vrot.lane.b32.xlu0 %v1637, 110
      %v1721 = vpop.permute.xlu0 %1720
      %1722 = vrot.lane.b32.xlu0 %v1638, 110
      %v1723 = vpop.permute.xlu0 %1722
      %1724 = vrot.lane.b32.xlu0 %v1639, 110
      %v1725 = vpop.permute.xlu0 %1724
      %1726 = vrot.lane.b32.xlu0 %v1640, 110
      %v1727 = vpop.permute.xlu0 %1726
      %1728 = vrot.lane.b32.xlu0 %v1641, 110
      %v1729 = vpop.permute.xlu0 %1728
      %1730 = vrot.lane.b32.xlu0 %v1642, 110
      %v1731 = vpop.permute.xlu0 %1730
      %1732 = vrot.lane.b32.xlu0 %v1643, 110
      %v1733 = vpop.permute.xlu0 %1732
      %1734 = vrot.lane.b32.xlu0 %v1644, 110
      %v1735 = vpop.permute.xlu0 %1734
      %1736 = vrot.lane.b32.xlu0 %v1645, 110
      %v1737 = vpop.permute.xlu0 %1736
      %1738 = vrot.lane.b32.xlu0 %v1646, 110
      %v1739 = vpop.permute.xlu0 %1738
      %1740 = vrot.lane.b32.xlu0 %v1647, 110
      %v1741 = vpop.permute.xlu0 %1740
      %1742 = vrot.lane.b32.xlu0 %v1648, 110
      %v1743 = vpop.permute.xlu0 %1742
      %1744 = vrot.lane.b32.xlu0 %v1649, 110
      %v1745 = vpop.permute.xlu0 %1744
      %1746 = vrot.lane.b32.xlu0 %v1650, 110
      %v1747 = vpop.permute.xlu0 %1746
      %1748 = vrot.lane.b32.xlu0 %v1651, 110
      %v1749 = vpop.permute.xlu0 %1748
      %1750 = vrot.lane.b32.xlu0 %v1652, 110
      %v1751 = vpop.permute.xlu0 %1750
      %vm1752 = vcmask 900096
      %v1753 = vsel %vm1752, %v1687, %v1689
      %v1754 = vsel %vm1752, %v1689, %v1691
      %v1755 = vsel %vm1752, %v1693, %v1695
      %v1756 = vsel %vm1752, %v1695, %v1697
      %v1757 = vsel %vm1752, %v1699, %v1701
      %v1758 = vsel %vm1752, %v1701, %v1703
      %v1759 = vsel %vm1752, %v1705, %v1707
      %v1760 = vsel %vm1752, %v1707, %v1709
      %v1761 = vsel %vm1752, %v1711, %v1713
      %v1762 = vsel %vm1752, %v1713, %v1715
      %v1763 = vsel %vm1752, %v1717, %v1719
      %v1764 = vsel %vm1752, %v1719, %v1721
      %v1765 = vsel %vm1752, %v1723, %v1725
      %v1766 = vsel %vm1752, %v1725, %v1727
      %v1767 = vsel %vm1752, %v1729, %v1731
      %v1768 = vsel %vm1752, %v1731, %v1733
      %v1769 = vsel %vm1752, %v1735, %v1737
      %v1770 = vsel %vm1752, %v1737, %v1739
      %v1771 = vsel %vm1752, %v1741, %v1743
      %v1772 = vsel %vm1752, %v1743, %v1745
      %v1773 = vsel %vm1752, %v1747, %v1749
      %v1774 = vsel %vm1752, %v1749, %v1751
      %v1797 = vadd.f32 %v1512, %v1753
      %v1798 = vadd.f32 %v1513, %v1754
      %v1799 = vadd.f32 %v1514, %v1755
      %v1800 = vadd.f32 %v1515, %v1756
      %v1801 = vadd.f32 %v1516, %v1757
      %v1802 = vadd.f32 %v1517, %v1758
      %v1803 = vadd.f32 %v1518, %v1759
      %v1804 = vadd.f32 %v1519, %v1760
      %v1805 = vadd.f32 %v1520, %v1761
      %v1806 = vadd.f32 %v1521, %v1762
      %v1807 = vadd.f32 %v1522, %v1763
      %v1808 = vadd.f32 %v1523, %v1764
      %v1809 = vadd.f32 %v1524, %v1765
      %v1810 = vadd.f32 %v1525, %v1766
      %v1811 = vadd.f32 %v1526, %v1767
      %v1812 = vadd.f32 %v1527, %v1768
      %v1813 = vadd.f32 %v1528, %v1769
      %v1814 = vadd.f32 %v1529, %v1770
      %v1815 = vadd.f32 %v1530, %v1771
      %v1816 = vadd.f32 %v1531, %v1772
      %v1817 = vadd.f32 %v1532, %v1773
      %v1818 = vadd.f32 %v1533, %v1774
      %1819 = vrot.lane.b32.xlu0 %v595, 32
      %v1820 = vpop.permute.xlu0 %1819
      %1821 = vrot.lane.b32.xlu0 %v599, 32
      %v1822 = vpop.permute.xlu0 %1821
      %vm1823 = vcmask 261120
      %v1824 = vsel %vm1823, %v1820, %v1822
      %v1828 = vmul.f32 %v481, %v1820
      %v1829 = vmul.f32 %v437, %v1824
      %v1830 = vmul.f32 %v492, %v1822
      %v1831 = vmul.f32 %v482, %v1820
      %v1832 = vmul.f32 %v438, %v1824
      %v1833 = vmul.f32 %v493, %v1822
      %v1834 = vmul.f32 %v483, %v1820
      %v1835 = vmul.f32 %v439, %v1824
      %v1836 = vmul.f32 %v494, %v1822
      %v1837 = vmul.f32 %v484, %v1820
      %v1838 = vmul.f32 %v440, %v1824
      %v1839 = vmul.f32 %v495, %v1822
      %v1840 = vmul.f32 %v485, %v1820
      %v1841 = vmul.f32 %v441, %v1824
      %v1842 = vmul.f32 %v496, %v1822
      %v1843 = vmul.f32 %v486, %v1820
      %v1844 = vmul.f32 %v442, %v1824
      %v1845 = vmul.f32 %v497, %v1822
      %v1846 = vmul.f32 %v487, %v1820
      %v1847 = vmul.f32 %v443, %v1824
      %v1848 = vmul.f32 %v498, %v1822
      %v1849 = vmul.f32 %v488, %v1820
      %v1850 = vmul.f32 %v444, %v1824
      %v1851 = vmul.f32 %v499, %v1822
      %v1852 = vmul.f32 %v489, %v1820
      %v1853 = vmul.f32 %v445, %v1824
      %v1854 = vmul.f32 %v500, %v1822
      %v1855 = vmul.f32 %v490, %v1820
      %v1856 = vmul.f32 %v446, %v1824
      %v1857 = vmul.f32 %v501, %v1822
      %v1858 = vmul.f32 %v491, %v1820
      %v1859 = vmul.f32 %v447, %v1824
      %v1860 = vmul.f32 %v502, %v1822
      %1861 = vset.pattern.permute.xlu0 6
      %1862 = vperm.xlu0 %1861, %v503
      %v1863 = vpop.permute.xlu0 %1862
      %1865 = vset.pattern.permute.xlu0 6
      %1866 = vperm.xlu0 %1865, %v504
      %v1867 = vpop.permute.xlu0 %1866
      %1869 = vset.pattern.permute.xlu0 6
      %1870 = vperm.xlu0 %1869, %v505
      %v1871 = vpop.permute.xlu0 %1870
      %1873 = vset.pattern.permute.xlu0 6
      %1874 = vperm.xlu0 %1873, %v506
      %v1875 = vpop.permute.xlu0 %1874
      %1877 = vset.pattern.permute.xlu0 6
      %1878 = vperm.xlu0 %1877, %v507
      %v1879 = vpop.permute.xlu0 %1878
      %1881 = vset.pattern.permute.xlu0 6
      %1882 = vperm.xlu0 %1881, %v508
      %v1883 = vpop.permute.xlu0 %1882
      %1885 = vset.pattern.permute.xlu0 6
      %1886 = vperm.xlu0 %1885, %v509
      %v1887 = vpop.permute.xlu0 %1886
      %1889 = vset.pattern.permute.xlu0 6
      %1890 = vperm.xlu0 %1889, %v510
      %v1891 = vpop.permute.xlu0 %1890
      %1893 = vset.pattern.permute.xlu0 6
      %1894 = vperm.xlu0 %1893, %v511
      %v1895 = vpop.permute.xlu0 %1894
      %1897 = vset.pattern.permute.xlu0 6
      %1898 = vperm.xlu0 %1897, %v512
      %v1899 = vpop.permute.xlu0 %1898
      %1901 = vset.pattern.permute.xlu0 6
      %1902 = vperm.xlu0 %1901, %v513
      %v1903 = vpop.permute.xlu0 %1902
      %v1905 = vmul.f32 %v1828, %v1863
      %v1906 = vmul.f32 %v1829, %v1863
      %v1907 = vmul.f32 %v1830, %v1863
      %v1908 = vmul.f32 %v1831, %v1867
      %v1909 = vmul.f32 %v1832, %v1867
      %v1910 = vmul.f32 %v1833, %v1867
      %v1911 = vmul.f32 %v1834, %v1871
      %v1912 = vmul.f32 %v1835, %v1871
      %v1913 = vmul.f32 %v1836, %v1871
      %v1914 = vmul.f32 %v1837, %v1875
      %v1915 = vmul.f32 %v1838, %v1875
      %v1916 = vmul.f32 %v1839, %v1875
      %v1917 = vmul.f32 %v1840, %v1879
      %v1918 = vmul.f32 %v1841, %v1879
      %v1919 = vmul.f32 %v1842, %v1879
      %v1920 = vmul.f32 %v1843, %v1883
      %v1921 = vmul.f32 %v1844, %v1883
      %v1922 = vmul.f32 %v1845, %v1883
      %v1923 = vmul.f32 %v1846, %v1887
      %v1924 = vmul.f32 %v1847, %v1887
      %v1925 = vmul.f32 %v1848, %v1887
      %v1926 = vmul.f32 %v1849, %v1891
      %v1927 = vmul.f32 %v1850, %v1891
      %v1928 = vmul.f32 %v1851, %v1891
      %v1929 = vmul.f32 %v1852, %v1895
      %v1930 = vmul.f32 %v1853, %v1895
      %v1931 = vmul.f32 %v1854, %v1895
      %v1932 = vmul.f32 %v1855, %v1899
      %v1933 = vmul.f32 %v1856, %v1899
      %v1934 = vmul.f32 %v1857, %v1899
      %v1935 = vmul.f32 %v1858, %v1903
      %v1936 = vmul.f32 %v1859, %v1903
      %v1937 = vmul.f32 %v1860, %v1903
      %1971 = vrot.lane.b32.xlu0 %v1905, 96
      %v1972 = vpop.permute.xlu0 %1971
      %1973 = vrot.lane.b32.xlu0 %v1906, 96
      %v1974 = vpop.permute.xlu0 %1973
      %1975 = vrot.lane.b32.xlu0 %v1907, 96
      %v1976 = vpop.permute.xlu0 %1975
      %1977 = vrot.lane.b32.xlu0 %v1908, 96
      %v1978 = vpop.permute.xlu0 %1977
      %1979 = vrot.lane.b32.xlu0 %v1909, 96
      %v1980 = vpop.permute.xlu0 %1979
      %1981 = vrot.lane.b32.xlu0 %v1910, 96
      %v1982 = vpop.permute.xlu0 %1981
      %1983 = vrot.lane.b32.xlu0 %v1911, 96
      %v1984 = vpop.permute.xlu0 %1983
      %1985 = vrot.lane.b32.xlu0 %v1912, 96
      %v1986 = vpop.permute.xlu0 %1985
      %1987 = vrot.lane.b32.xlu0 %v1913, 96
      %v1988 = vpop.permute.xlu0 %1987
      %1989 = vrot.lane.b32.xlu0 %v1914, 96
      %v1990 = vpop.permute.xlu0 %1989
      %1991 = vrot.lane.b32.xlu0 %v1915, 96
      %v1992 = vpop.permute.xlu0 %1991
      %1993 = vrot.lane.b32.xlu0 %v1916, 96
      %v1994 = vpop.permute.xlu0 %1993
      %1995 = vrot.lane.b32.xlu0 %v1917, 96
      %v1996 = vpop.permute.xlu0 %1995
      %1997 = vrot.lane.b32.xlu0 %v1918, 96
      %v1998 = vpop.permute.xlu0 %1997
      %1999 = vrot.lane.b32.xlu0 %v1919, 96
      %v2000 = vpop.permute.xlu0 %1999
      %2001 = vrot.lane.b32.xlu0 %v1920, 96
      %v2002 = vpop.permute.xlu0 %2001
      %2003 = vrot.lane.b32.xlu0 %v1921, 96
      %v2004 = vpop.permute.xlu0 %2003
      %2005 = vrot.lane.b32.xlu0 %v1922, 96
      %v2006 = vpop.permute.xlu0 %2005
      %2007 = vrot.lane.b32.xlu0 %v1923, 96
      %v2008 = vpop.permute.xlu0 %2007
      %2009 = vrot.lane.b32.xlu0 %v1924, 96
      %v2010 = vpop.permute.xlu0 %2009
      %2011 = vrot.lane.b32.xlu0 %v1925, 96
      %v2012 = vpop.permute.xlu0 %2011
      %2013 = vrot.lane.b32.xlu0 %v1926, 96
      %v2014 = vpop.permute.xlu0 %2013
      %2015 = vrot.lane.b32.xlu0 %v1927, 96
      %v2016 = vpop.permute.xlu0 %2015
      %2017 = vrot.lane.b32.xlu0 %v1928, 96
      %v2018 = vpop.permute.xlu0 %2017
      %2019 = vrot.lane.b32.xlu0 %v1929, 96
      %v2020 = vpop.permute.xlu0 %2019
      %2021 = vrot.lane.b32.xlu0 %v1930, 96
      %v2022 = vpop.permute.xlu0 %2021
      %2023 = vrot.lane.b32.xlu0 %v1931, 96
      %v2024 = vpop.permute.xlu0 %2023
      %2025 = vrot.lane.b32.xlu0 %v1932, 96
      %v2026 = vpop.permute.xlu0 %2025
      %2027 = vrot.lane.b32.xlu0 %v1933, 96
      %v2028 = vpop.permute.xlu0 %2027
      %2029 = vrot.lane.b32.xlu0 %v1934, 96
      %v2030 = vpop.permute.xlu0 %2029
      %2031 = vrot.lane.b32.xlu0 %v1935, 96
      %v2032 = vpop.permute.xlu0 %2031
      %2033 = vrot.lane.b32.xlu0 %v1936, 96
      %v2034 = vpop.permute.xlu0 %2033
      %2035 = vrot.lane.b32.xlu0 %v1937, 96
      %v2036 = vpop.permute.xlu0 %2035
      %vm2037 = vcmask 785408
      %v2038 = vsel %vm2037, %v1972, %v1974
      %v2039 = vsel %vm2037, %v1974, %v1976
      %v2040 = vsel %vm2037, %v1978, %v1980
      %v2041 = vsel %vm2037, %v1980, %v1982
      %v2042 = vsel %vm2037, %v1984, %v1986
      %v2043 = vsel %vm2037, %v1986, %v1988
      %v2044 = vsel %vm2037, %v1990, %v1992
      %v2045 = vsel %vm2037, %v1992, %v1994
      %v2046 = vsel %vm2037, %v1996, %v1998
      %v2047 = vsel %vm2037, %v1998, %v2000
      %v2048 = vsel %vm2037, %v2002, %v2004
      %v2049 = vsel %vm2037, %v2004, %v2006
      %v2050 = vsel %vm2037, %v2008, %v2010
      %v2051 = vsel %vm2037, %v2010, %v2012
      %v2052 = vsel %vm2037, %v2014, %v2016
      %v2053 = vsel %vm2037, %v2016, %v2018
      %v2054 = vsel %vm2037, %v2020, %v2022
      %v2055 = vsel %vm2037, %v2022, %v2024
      %v2056 = vsel %vm2037, %v2026, %v2028
      %v2057 = vsel %vm2037, %v2028, %v2030
      %v2058 = vsel %vm2037, %v2032, %v2034
      %v2059 = vsel %vm2037, %v2034, %v2036
      %v2082 = vadd.f32 %v1797, %v2038
      %v2083 = vadd.f32 %v1798, %v2039
      %v2084 = vadd.f32 %v1799, %v2040
      %v2085 = vadd.f32 %v1800, %v2041
      %v2086 = vadd.f32 %v1801, %v2042
      %v2087 = vadd.f32 %v1802, %v2043
      %v2088 = vadd.f32 %v1803, %v2044
      %v2089 = vadd.f32 %v1804, %v2045
      %v2090 = vadd.f32 %v1805, %v2046
      %v2091 = vadd.f32 %v1806, %v2047
      %v2092 = vadd.f32 %v1807, %v2048
      %v2093 = vadd.f32 %v1808, %v2049
      %v2094 = vadd.f32 %v1809, %v2050
      %v2095 = vadd.f32 %v1810, %v2051
      %v2096 = vadd.f32 %v1811, %v2052
      %v2097 = vadd.f32 %v1812, %v2053
      %v2098 = vadd.f32 %v1813, %v2054
      %v2099 = vadd.f32 %v1814, %v2055
      %v2100 = vadd.f32 %v1815, %v2056
      %v2101 = vadd.f32 %v1816, %v2057
      %v2102 = vadd.f32 %v1817, %v2058
      %v2103 = vadd.f32 %v1818, %v2059
      %2104 = vset.pattern.permute.xlu0 7
      %2105 = vperm.xlu0 %2104, %v503
      %v2106 = vpop.permute.xlu0 %2105
      %2108 = vset.pattern.permute.xlu0 7
      %2109 = vperm.xlu0 %2108, %v504
      %v2110 = vpop.permute.xlu0 %2109
      %2112 = vset.pattern.permute.xlu0 7
      %2113 = vperm.xlu0 %2112, %v505
      %v2114 = vpop.permute.xlu0 %2113
      %2116 = vset.pattern.permute.xlu0 7
      %2117 = vperm.xlu0 %2116, %v506
      %v2118 = vpop.permute.xlu0 %2117
      %2120 = vset.pattern.permute.xlu0 7
      %2121 = vperm.xlu0 %2120, %v507
      %v2122 = vpop.permute.xlu0 %2121
      %2124 = vset.pattern.permute.xlu0 7
      %2125 = vperm.xlu0 %2124, %v508
      %v2126 = vpop.permute.xlu0 %2125
      %2128 = vset.pattern.permute.xlu0 7
      %2129 = vperm.xlu0 %2128, %v509
      %v2130 = vpop.permute.xlu0 %2129
      %2132 = vset.pattern.permute.xlu0 7
      %2133 = vperm.xlu0 %2132, %v510
      %v2134 = vpop.permute.xlu0 %2133
      %2136 = vset.pattern.permute.xlu0 7
      %2137 = vperm.xlu0 %2136, %v511
      %v2138 = vpop.permute.xlu0 %2137
      %2140 = vset.pattern.permute.xlu0 7
      %2141 = vperm.xlu0 %2140, %v512
      %v2142 = vpop.permute.xlu0 %2141
      %2144 = vset.pattern.permute.xlu0 7
      %2145 = vperm.xlu0 %2144, %v513
      %v2146 = vpop.permute.xlu0 %2145
      %v2148 = vmul.f32 %v481, %v2106
      %v2149 = vmul.f32 %v437, %v2106
      %v2150 = vmul.f32 %v492, %v2106
      %v2151 = vmul.f32 %v482, %v2110
      %v2152 = vmul.f32 %v438, %v2110
      %v2153 = vmul.f32 %v493, %v2110
      %v2154 = vmul.f32 %v483, %v2114
      %v2155 = vmul.f32 %v439, %v2114
      %v2156 = vmul.f32 %v494, %v2114
      %v2157 = vmul.f32 %v484, %v2118
      %v2158 = vmul.f32 %v440, %v2118
      %v2159 = vmul.f32 %v495, %v2118
      %v2160 = vmul.f32 %v485, %v2122
      %v2161 = vmul.f32 %v441, %v2122
      %v2162 = vmul.f32 %v496, %v2122
      %v2163 = vmul.f32 %v486, %v2126
      %v2164 = vmul.f32 %v442, %v2126
      %v2165 = vmul.f32 %v497, %v2126
      %v2166 = vmul.f32 %v487, %v2130
      %v2167 = vmul.f32 %v443, %v2130
      %v2168 = vmul.f32 %v498, %v2130
      %v2169 = vmul.f32 %v488, %v2134
      %v2170 = vmul.f32 %v444, %v2134
      %v2171 = vmul.f32 %v499, %v2134
      %v2172 = vmul.f32 %v489, %v2138
      %v2173 = vmul.f32 %v445, %v2138
      %v2174 = vmul.f32 %v500, %v2138
      %v2175 = vmul.f32 %v490, %v2142
      %v2176 = vmul.f32 %v446, %v2142
      %v2177 = vmul.f32 %v501, %v2142
      %v2178 = vmul.f32 %v491, %v2146
      %v2179 = vmul.f32 %v447, %v2146
      %v2180 = vmul.f32 %v502, %v2146
      %2214 = vrot.lane.b32.xlu0 %v2148, 95
      %v2215 = vpop.permute.xlu0 %2214
      %2216 = vrot.lane.b32.xlu0 %v2149, 95
      %v2217 = vpop.permute.xlu0 %2216
      %2218 = vrot.lane.b32.xlu0 %v2150, 95
      %v2219 = vpop.permute.xlu0 %2218
      %2220 = vrot.lane.b32.xlu0 %v2151, 95
      %v2221 = vpop.permute.xlu0 %2220
      %2222 = vrot.lane.b32.xlu0 %v2152, 95
      %v2223 = vpop.permute.xlu0 %2222
      %2224 = vrot.lane.b32.xlu0 %v2153, 95
      %v2225 = vpop.permute.xlu0 %2224
      %2226 = vrot.lane.b32.xlu0 %v2154, 95
      %v2227 = vpop.permute.xlu0 %2226
      %2228 = vrot.lane.b32.xlu0 %v2155, 95
      %v2229 = vpop.permute.xlu0 %2228
      %2230 = vrot.lane.b32.xlu0 %v2156, 95
      %v2231 = vpop.permute.xlu0 %2230
      %2232 = vrot.lane.b32.xlu0 %v2157, 95
      %v2233 = vpop.permute.xlu0 %2232
      %2234 = vrot.lane.b32.xlu0 %v2158, 95
      %v2235 = vpop.permute.xlu0 %2234
      %2236 = vrot.lane.b32.xlu0 %v2159, 95
      %v2237 = vpop.permute.xlu0 %2236
      %2238 = vrot.lane.b32.xlu0 %v2160, 95
      %v2239 = vpop.permute.xlu0 %2238
      %2240 = vrot.lane.b32.xlu0 %v2161, 95
      %v2241 = vpop.permute.xlu0 %2240
      %2242 = vrot.lane.b32.xlu0 %v2162, 95
      %v2243 = vpop.permute.xlu0 %2242
      %2244 = vrot.lane.b32.xlu0 %v2163, 95
      %v2245 = vpop.permute.xlu0 %2244
      %2246 = vrot.lane.b32.xlu0 %v2164, 95
      %v2247 = vpop.permute.xlu0 %2246
      %2248 = vrot.lane.b32.xlu0 %v2165, 95
      %v2249 = vpop.permute.xlu0 %2248
      %2250 = vrot.lane.b32.xlu0 %v2166, 95
      %v2251 = vpop.permute.xlu0 %2250
      %2252 = vrot.lane.b32.xlu0 %v2167, 95
      %v2253 = vpop.permute.xlu0 %2252
      %2254 = vrot.lane.b32.xlu0 %v2168, 95
      %v2255 = vpop.permute.xlu0 %2254
      %2256 = vrot.lane.b32.xlu0 %v2169, 95
      %v2257 = vpop.permute.xlu0 %2256
      %2258 = vrot.lane.b32.xlu0 %v2170, 95
      %v2259 = vpop.permute.xlu0 %2258
      %2260 = vrot.lane.b32.xlu0 %v2171, 95
      %v2261 = vpop.permute.xlu0 %2260
      %2262 = vrot.lane.b32.xlu0 %v2172, 95
      %v2263 = vpop.permute.xlu0 %2262
      %2264 = vrot.lane.b32.xlu0 %v2173, 95
      %v2265 = vpop.permute.xlu0 %2264
      %2266 = vrot.lane.b32.xlu0 %v2174, 95
      %v2267 = vpop.permute.xlu0 %2266
      %2268 = vrot.lane.b32.xlu0 %v2175, 95
      %v2269 = vpop.permute.xlu0 %2268
      %2270 = vrot.lane.b32.xlu0 %v2176, 95
      %v2271 = vpop.permute.xlu0 %2270
      %2272 = vrot.lane.b32.xlu0 %v2177, 95
      %v2273 = vpop.permute.xlu0 %2272
      %2274 = vrot.lane.b32.xlu0 %v2178, 95
      %v2275 = vpop.permute.xlu0 %2274
      %2276 = vrot.lane.b32.xlu0 %v2179, 95
      %v2277 = vpop.permute.xlu0 %2276
      %2278 = vrot.lane.b32.xlu0 %v2180, 95
      %v2279 = vpop.permute.xlu0 %2278
      %vm2280 = vcmask 777216
      %v2281 = vsel %vm2280, %v2215, %v2217
      %v2282 = vsel %vm2280, %v2217, %v2219
      %v2283 = vsel %vm2280, %v2221, %v2223
      %v2284 = vsel %vm2280, %v2223, %v2225
      %v2285 = vsel %vm2280, %v2227, %v2229
      %v2286 = vsel %vm2280, %v2229, %v2231
      %v2287 = vsel %vm2280, %v2233, %v2235
      %v2288 = vsel %vm2280, %v2235, %v2237
      %v2289 = vsel %vm2280, %v2239, %v2241
      %v2290 = vsel %vm2280, %v2241, %v2243
      %v2291 = vsel %vm2280, %v2245, %v2247
      %v2292 = vsel %vm2280, %v2247, %v2249
      %v2293 = vsel %vm2280, %v2251, %v2253
      %v2294 = vsel %vm2280, %v2253, %v2255
      %v2295 = vsel %vm2280, %v2257, %v2259
      %v2296 = vsel %vm2280, %v2259, %v2261
      %v2297 = vsel %vm2280, %v2263, %v2265
      %v2298 = vsel %vm2280, %v2265, %v2267
      %v2299 = vsel %vm2280, %v2269, %v2271
      %v2300 = vsel %vm2280, %v2271, %v2273
      %v2301 = vsel %vm2280, %v2275, %v2277
      %v2302 = vsel %vm2280, %v2277, %v2279
      %v2325 = vadd.f32 %v2082, %v2281
      %v2326 = vadd.f32 %v2083, %v2282
      %v2327 = vadd.f32 %v2084, %v2283
      %v2328 = vadd.f32 %v2085, %v2284
      %v2329 = vadd.f32 %v2086, %v2285
      %v2330 = vadd.f32 %v2087, %v2286
      %v2331 = vadd.f32 %v2088, %v2287
      %v2332 = vadd.f32 %v2089, %v2288
      %v2333 = vadd.f32 %v2090, %v2289
      %v2334 = vadd.f32 %v2091, %v2290
      %v2335 = vadd.f32 %v2092, %v2291
      %v2336 = vadd.f32 %v2093, %v2292
      %v2337 = vadd.f32 %v2094, %v2293
      %v2338 = vadd.f32 %v2095, %v2294
      %v2339 = vadd.f32 %v2096, %v2295
      %v2340 = vadd.f32 %v2097, %v2296
      %v2341 = vadd.f32 %v2098, %v2297
      %v2342 = vadd.f32 %v2099, %v2298
      %v2343 = vadd.f32 %v2100, %v2299
      %v2344 = vadd.f32 %v2101, %v2300
      %v2345 = vadd.f32 %v2102, %v2301
      %v2346 = vadd.f32 %v2103, %v2302
      %2347 = vrot.lane.b32.xlu0 %v959, 34
      %v2348 = vpop.permute.xlu0 %2347
      %2349 = vrot.lane.b32.xlu0 %v963, 34
      %v2350 = vpop.permute.xlu0 %2349
      %vm2351 = vcmask 277504
      %v2352 = vsel %vm2351, %v2348, %v2350
      %v2356 = vmul.f32 %v481, %v2348
      %v2357 = vmul.f32 %v437, %v2352
      %v2358 = vmul.f32 %v492, %v2350
      %v2359 = vmul.f32 %v482, %v2348
      %v2360 = vmul.f32 %v438, %v2352
      %v2361 = vmul.f32 %v493, %v2350
      %v2362 = vmul.f32 %v483, %v2348
      %v2363 = vmul.f32 %v439, %v2352
      %v2364 = vmul.f32 %v494, %v2350
      %v2365 = vmul.f32 %v484, %v2348
      %v2366 = vmul.f32 %v440, %v2352
      %v2367 = vmul.f32 %v495, %v2350
      %v2368 = vmul.f32 %v485, %v2348
      %v2369 = vmul.f32 %v441, %v2352
      %v2370 = vmul.f32 %v496, %v2350
      %v2371 = vmul.f32 %v486, %v2348
      %v2372 = vmul.f32 %v442, %v2352
      %v2373 = vmul.f32 %v497, %v2350
      %v2374 = vmul.f32 %v487, %v2348
      %v2375 = vmul.f32 %v443, %v2352
      %v2376 = vmul.f32 %v498, %v2350
      %v2377 = vmul.f32 %v488, %v2348
      %v2378 = vmul.f32 %v444, %v2352
      %v2379 = vmul.f32 %v499, %v2350
      %v2380 = vmul.f32 %v489, %v2348
      %v2381 = vmul.f32 %v445, %v2352
      %v2382 = vmul.f32 %v500, %v2350
      %v2383 = vmul.f32 %v490, %v2348
      %v2384 = vmul.f32 %v446, %v2352
      %v2385 = vmul.f32 %v501, %v2350
      %v2386 = vmul.f32 %v491, %v2348
      %v2387 = vmul.f32 %v447, %v2352
      %v2388 = vmul.f32 %v502, %v2350
      %2389 = vset.pattern.permute.xlu0 8
      %2390 = vperm.xlu0 %2389, %v503
      %v2391 = vpop.permute.xlu0 %2390
      %2393 = vset.pattern.permute.xlu0 8
      %2394 = vperm.xlu0 %2393, %v504
      %v2395 = vpop.permute.xlu0 %2394
      %2397 = vset.pattern.permute.xlu0 8
      %2398 = vperm.xlu0 %2397, %v505
      %v2399 = vpop.permute.xlu0 %2398
      %2401 = vset.pattern.permute.xlu0 8
      %2402 = vperm.xlu0 %2401, %v506
      %v2403 = vpop.permute.xlu0 %2402
      %2405 = vset.pattern.permute.xlu0 8
      %2406 = vperm.xlu0 %2405, %v507
      %v2407 = vpop.permute.xlu0 %2406
      %2409 = vset.pattern.permute.xlu0 8
      %2410 = vperm.xlu0 %2409, %v508
      %v2411 = vpop.permute.xlu0 %2410
      %2413 = vset.pattern.permute.xlu0 8
      %2414 = vperm.xlu0 %2413, %v509
      %v2415 = vpop.permute.xlu0 %2414
      %2417 = vset.pattern.permute.xlu0 8
      %2418 = vperm.xlu0 %2417, %v510
      %v2419 = vpop.permute.xlu0 %2418
      %2421 = vset.pattern.permute.xlu0 8
      %2422 = vperm.xlu0 %2421, %v511
      %v2423 = vpop.permute.xlu0 %2422
      %2425 = vset.pattern.permute.xlu0 8
      %2426 = vperm.xlu0 %2425, %v512
      %v2427 = vpop.permute.xlu0 %2426
      %2429 = vset.pattern.permute.xlu0 8
      %2430 = vperm.xlu0 %2429, %v513
      %v2431 = vpop.permute.xlu0 %2430
      %v2433 = vmul.f32 %v2356, %v2391
      %v2434 = vmul.f32 %v2357, %v2391
      %v2435 = vmul.f32 %v2358, %v2391
      %v2436 = vmul.f32 %v2359, %v2395
      %v2437 = vmul.f32 %v2360, %v2395
      %v2438 = vmul.f32 %v2361, %v2395
      %v2439 = vmul.f32 %v2362, %v2399
      %v2440 = vmul.f32 %v2363, %v2399
      %v2441 = vmul.f32 %v2364, %v2399
      %v2442 = vmul.f32 %v2365, %v2403
      %v2443 = vmul.f32 %v2366, %v2403
      %v2444 = vmul.f32 %v2367, %v2403
      %v2445 = vmul.f32 %v2368, %v2407
      %v2446 = vmul.f32 %v2369, %v2407
      %v2447 = vmul.f32 %v2370, %v2407
      %v2448 = vmul.f32 %v2371, %v2411
      %v2449 = vmul.f32 %v2372, %v2411
      %v2450 = vmul.f32 %v2373, %v2411
      %v2451 = vmul.f32 %v2374, %v2415
      %v2452 = vmul.f32 %v2375, %v2415
      %v2453 = vmul.f32 %v2376, %v2415
      %v2454 = vmul.f32 %v2377, %v2419
      %v2455 = vmul.f32 %v2378, %v2419
      %v2456 = vmul.f32 %v2379, %v2419
      %v2457 = vmul.f32 %v2380, %v2423
      %v2458 = vmul.f32 %v2381, %v2423
      %v2459 = vmul.f32 %v2382, %v2423
      %v2460 = vmul.f32 %v2383, %v2427
      %v2461 = vmul.f32 %v2384, %v2427
      %v2462 = vmul.f32 %v2385, %v2427
      %v2463 = vmul.f32 %v2386, %v2431
      %v2464 = vmul.f32 %v2387, %v2431
      %v2465 = vmul.f32 %v2388, %v2431
      %2499 = vrot.lane.b32.xlu0 %v2433, 94
      %v2500 = vpop.permute.xlu0 %2499
      %2501 = vrot.lane.b32.xlu0 %v2434, 94
      %v2502 = vpop.permute.xlu0 %2501
      %2503 = vrot.lane.b32.xlu0 %v2435, 94
      %v2504 = vpop.permute.xlu0 %2503
      %2505 = vrot.lane.b32.xlu0 %v2436, 94
      %v2506 = vpop.permute.xlu0 %2505
      %2507 = vrot.lane.b32.xlu0 %v2437, 94
      %v2508 = vpop.permute.xlu0 %2507
      %2509 = vrot.lane.b32.xlu0 %v2438, 94
      %v2510 = vpop.permute.xlu0 %2509
      %2511 = vrot.lane.b32.xlu0 %v2439, 94
      %v2512 = vpop.permute.xlu0 %2511
      %2513 = vrot.lane.b32.xlu0 %v2440, 94
      %v2514 = vpop.permute.xlu0 %2513
      %2515 = vrot.lane.b32.xlu0 %v2441, 94
      %v2516 = vpop.permute.xlu0 %2515
      %2517 = vrot.lane.b32.xlu0 %v2442, 94
      %v2518 = vpop.permute.xlu0 %2517
      %2519 = vrot.lane.b32.xlu0 %v2443, 94
      %v2520 = vpop.permute.xlu0 %2519
      %2521 = vrot.lane.b32.xlu0 %v2444, 94
      %v2522 = vpop.permute.xlu0 %2521
      %2523 = vrot.lane.b32.xlu0 %v2445, 94
      %v2524 = vpop.permute.xlu0 %2523
      %2525 = vrot.lane.b32.xlu0 %v2446, 94
      %v2526 = vpop.permute.xlu0 %2525
      %2527 = vrot.lane.b32.xlu0 %v2447, 94
      %v2528 = vpop.permute.xlu0 %2527
      %2529 = vrot.lane.b32.xlu0 %v2448, 94
      %v2530 = vpop.permute.xlu0 %2529
      %2531 = vrot.lane.b32.xlu0 %v2449, 94
      %v2532 = vpop.permute.xlu0 %2531
      %2533 = vrot.lane.b32.xlu0 %v2450, 94
      %v2534 = vpop.permute.xlu0 %2533
      %2535 = vrot.lane.b32.xlu0 %v2451, 94
      %v2536 = vpop.permute.xlu0 %2535
      %2537 = vrot.lane.b32.xlu0 %v2452, 94
      %v2538 = vpop.permute.xlu0 %2537
      %2539 = vrot.lane.b32.xlu0 %v2453, 94
      %v2540 = vpop.permute.xlu0 %2539
      %2541 = vrot.lane.b32.xlu0 %v2454, 94
      %v2542 = vpop.permute.xlu0 %2541
      %2543 = vrot.lane.b32.xlu0 %v2455, 94
      %v2544 = vpop.permute.xlu0 %2543
      %2545 = vrot.lane.b32.xlu0 %v2456, 94
      %v2546 = vpop.permute.xlu0 %2545
      %2547 = vrot.lane.b32.xlu0 %v2457, 94
      %v2548 = vpop.permute.xlu0 %2547
      %2549 = vrot.lane.b32.xlu0 %v2458, 94
      %v2550 = vpop.permute.xlu0 %2549
      %2551 = vrot.lane.b32.xlu0 %v2459, 94
      %v2552 = vpop.permute.xlu0 %2551
      %2553 = vrot.lane.b32.xlu0 %v2460, 94
      %v2554 = vpop.permute.xlu0 %2553
      %2555 = vrot.lane.b32.xlu0 %v2461, 94
      %v2556 = vpop.permute.xlu0 %2555
      %2557 = vrot.lane.b32.xlu0 %v2462, 94
      %v2558 = vpop.permute.xlu0 %2557
      %2559 = vrot.lane.b32.xlu0 %v2463, 94
      %v2560 = vpop.permute.xlu0 %2559
      %2561 = vrot.lane.b32.xlu0 %v2464, 94
      %v2562 = vpop.permute.xlu0 %2561
      %2563 = vrot.lane.b32.xlu0 %v2465, 94
      %v2564 = vpop.permute.xlu0 %2563
      %vm2565 = vcmask 769024
      %v2566 = vsel %vm2565, %v2500, %v2502
      %v2567 = vsel %vm2565, %v2502, %v2504
      %v2568 = vsel %vm2565, %v2506, %v2508
      %v2569 = vsel %vm2565, %v2508, %v2510
      %v2570 = vsel %vm2565, %v2512, %v2514
      %v2571 = vsel %vm2565, %v2514, %v2516
      %v2572 = vsel %vm2565, %v2518, %v2520
      %v2573 = vsel %vm2565, %v2520, %v2522
      %v2574 = vsel %vm2565, %v2524, %v2526
      %v2575 = vsel %vm2565, %v2526, %v2528
      %v2576 = vsel %vm2565, %v2530, %v2532
      %v2577 = vsel %vm2565, %v2532, %v2534
      %v2578 = vsel %vm2565, %v2536, %v2538
      %v2579 = vsel %vm2565, %v2538, %v2540
      %v2580 = vsel %vm2565, %v2542, %v2544
      %v2581 = vsel %vm2565, %v2544, %v2546
      %v2582 = vsel %vm2565, %v2548, %v2550
      %v2583 = vsel %vm2565, %v2550, %v2552
      %v2584 = vsel %vm2565, %v2554, %v2556
      %v2585 = vsel %vm2565, %v2556, %v2558
      %v2586 = vsel %vm2565, %v2560, %v2562
      %v2587 = vsel %vm2565, %v2562, %v2564
      %v2610 = vadd.f32 %v2325, %v2566
      %v2611 = vadd.f32 %v2326, %v2567
      %v2612 = vadd.f32 %v2327, %v2568
      %v2613 = vadd.f32 %v2328, %v2569
      %v2614 = vadd.f32 %v2329, %v2570
      %v2615 = vadd.f32 %v2330, %v2571
      %v2616 = vadd.f32 %v2331, %v2572
      %v2617 = vadd.f32 %v2332, %v2573
      %v2618 = vadd.f32 %v2333, %v2574
      %v2619 = vadd.f32 %v2334, %v2575
      %v2620 = vadd.f32 %v2335, %v2576
      %v2621 = vadd.f32 %v2336, %v2577
      %v2622 = vadd.f32 %v2337, %v2578
      %v2623 = vadd.f32 %v2338, %v2579
      %v2624 = vadd.f32 %v2339, %v2580
      %v2625 = vadd.f32 %v2340, %v2581
      %v2626 = vadd.f32 %v2341, %v2582
      %v2627 = vadd.f32 %v2342, %v2583
      %v2628 = vadd.f32 %v2343, %v2584
      %v2629 = vadd.f32 %v2344, %v2585
      %v2630 = vadd.f32 %v2345, %v2586
      %v2631 = vadd.f32 %v2346, %v2587
      %v2632 = vld [vmem:[%s335] sm:$0xff]
      %v2633 = vld [vmem:[%s335 + $0x8] sm:$0xff]
      %v2634 = vld [vmem:[%s335 + $0x10] sm:$0xff]
      %v2635 = vld [vmem:[%s335 + $0x18] sm:$0xff]
      %v2636 = vld [vmem:[%s335 + $0x20] sm:$0xff]
      %v2637 = vld [vmem:[%s335 + $0x28] sm:$0xff]
      %v2638 = vld [vmem:[%s335 + $0x30] sm:$0xff]
      %v2639 = vld [vmem:[%s335 + $0x38] sm:$0xff]
      %v2640 = vld [vmem:[%s335 + $0x40] sm:$0xff]
      %v2641 = vld [vmem:[%s335 + $0x48] sm:$0xff]
      %v2642 = vld [vmem:[%s335 + $0x50] sm:$0xff]
      %v2643 = vld [vmem:[%s335 + $0x58] sm:$0xff]
      %v2644 = vld [vmem:[%s335 + $0x60] sm:$0xff]
      %v2645 = vld [vmem:[%s335 + $0x68] sm:$0xff]
      %v2646 = vld [vmem:[%s335 + $0x70] sm:$0xff]
      %v2647 = vld [vmem:[%s335 + $0x78] sm:$0xff]
      %v2648 = vld [vmem:[%s335 + $0x80] sm:$0xff]
      %v2649 = vld [vmem:[%s335 + $0x88] sm:$0xff]
      %v2650 = vld [vmem:[%s335 + $0x90] sm:$0xff]
      %v2651 = vld [vmem:[%s335 + $0x98] sm:$0xff]
      %v2652 = vld [vmem:[%s335 + $0xa0] sm:$0x1f]
      %v2653 = vld [vmem:[%s335 + $0xa8] sm:$0x1f]
      %2676 = vrot.lane.b32.xlu0 %v2632, 17
      %v2677 = vpop.permute.xlu0 %2676
      %2678 = vrot.lane.b32.xlu0 %v2633, 17
      %v2679 = vpop.permute.xlu0 %2678
      %2680 = vrot.lane.b32.xlu0 %v2634, 17
      %v2681 = vpop.permute.xlu0 %2680
      %2682 = vrot.lane.b32.xlu0 %v2635, 17
      %v2683 = vpop.permute.xlu0 %2682
      %2684 = vrot.lane.b32.xlu0 %v2636, 17
      %v2685 = vpop.permute.xlu0 %2684
      %2686 = vrot.lane.b32.xlu0 %v2637, 17
      %v2687 = vpop.permute.xlu0 %2686
      %2688 = vrot.lane.b32.xlu0 %v2638, 17
      %v2689 = vpop.permute.xlu0 %2688
      %2690 = vrot.lane.b32.xlu0 %v2639, 17
      %v2691 = vpop.permute.xlu0 %2690
      %2692 = vrot.lane.b32.xlu0 %v2640, 17
      %v2693 = vpop.permute.xlu0 %2692
      %2694 = vrot.lane.b32.xlu0 %v2641, 17
      %v2695 = vpop.permute.xlu0 %2694
      %2696 = vrot.lane.b32.xlu0 %v2642, 17
      %v2697 = vpop.permute.xlu0 %2696
      %2698 = vrot.lane.b32.xlu0 %v2643, 17
      %v2699 = vpop.permute.xlu0 %2698
      %2700 = vrot.lane.b32.xlu0 %v2644, 17
      %v2701 = vpop.permute.xlu0 %2700
      %2702 = vrot.lane.b32.xlu0 %v2645, 17
      %v2703 = vpop.permute.xlu0 %2702
      %2704 = vrot.lane.b32.xlu0 %v2646, 17
      %v2705 = vpop.permute.xlu0 %2704
      %2706 = vrot.lane.b32.xlu0 %v2647, 17
      %v2707 = vpop.permute.xlu0 %2706
      %2708 = vrot.lane.b32.xlu0 %v2648, 17
      %v2709 = vpop.permute.xlu0 %2708
      %2710 = vrot.lane.b32.xlu0 %v2649, 17
      %v2711 = vpop.permute.xlu0 %2710
      %2712 = vrot.lane.b32.xlu0 %v2650, 17
      %v2713 = vpop.permute.xlu0 %2712
      %2714 = vrot.lane.b32.xlu0 %v2651, 17
      %v2715 = vpop.permute.xlu0 %2714
      %2716 = vrot.lane.b32.xlu0 %v2652, 17
      %v2717 = vpop.permute.xlu0 %2716
      %2718 = vrot.lane.b32.xlu0 %v2653, 17
      %v2719 = vpop.permute.xlu0 %2718
      %v2720 = vsel %vm436, %v2677, %v2679
      %v2721 = vsel %vm436, %v2681, %v2683
      %v2722 = vsel %vm436, %v2685, %v2687
      %v2723 = vsel %vm436, %v2689, %v2691
      %v2724 = vsel %vm436, %v2693, %v2695
      %v2725 = vsel %vm436, %v2697, %v2699
      %v2726 = vsel %vm436, %v2701, %v2703
      %v2727 = vsel %vm436, %v2705, %v2707
      %v2728 = vsel %vm436, %v2709, %v2711
      %v2729 = vsel %vm436, %v2713, %v2715
      %v2730 = vsel %vm436, %v2717, %v2719
      %v2764 = vsel %vm436, 0.0, %v2677
      %v2765 = vsel %vm436, 0.0, %v2681
      %v2766 = vsel %vm436, 0.0, %v2685
      %v2767 = vsel %vm436, 0.0, %v2689
      %v2768 = vsel %vm436, 0.0, %v2693
      %v2769 = vsel %vm436, 0.0, %v2697
      %v2770 = vsel %vm436, 0.0, %v2701
      %v2771 = vsel %vm436, 0.0, %v2705
      %v2772 = vsel %vm436, 0.0, %v2709
      %v2773 = vsel %vm436, 0.0, %v2713
      %v2774 = vsel %vm436, 0.0, %v2717
      %v2775 = vsel %vm436, %v2679, 0.0
      %v2776 = vsel %vm436, %v2683, 0.0
      %v2777 = vsel %vm436, %v2687, 0.0
      %v2778 = vsel %vm436, %v2691, 0.0
      %v2779 = vsel %vm436, %v2695, 0.0
      %v2780 = vsel %vm436, %v2699, 0.0
      %v2781 = vsel %vm436, %v2703, 0.0
      %v2782 = vsel %vm436, %v2707, 0.0
      %v2783 = vsel %vm436, %v2711, 0.0
      %v2784 = vsel %vm436, %v2715, 0.0
      %v2785 = vsel %vm436, %v2719, 0.0
      %v2786 = vld [vmem:[%s4] sm:$0xff]
      %v2787 = vld [vmem:[%s4 + $0x8] sm:$0xff]
      %v2788 = vld [vmem:[%s4 + $0x10] sm:$0xff]
      %v2789 = vld [vmem:[%s4 + $0x18] sm:$0xff]
      %v2790 = vld [vmem:[%s4 + $0x20] sm:$0xff]
      %v2791 = vld [vmem:[%s4 + $0x28] sm:$0xff]
      %v2792 = vld [vmem:[%s4 + $0x30] sm:$0xff]
      %v2793 = vld [vmem:[%s4 + $0x38] sm:$0xff]
      %v2794 = vld [vmem:[%s4 + $0x40] sm:$0xff]
      %v2795 = vld [vmem:[%s4 + $0x48] sm:$0xff]
      %v2796 = vld [vmem:[%s4 + $0x50] sm:$0x1f]
      %2798 = vset.pattern.permute.xlu0 4
      %2799 = vperm.xlu0 %2798, %v2786
      %v2800 = vpop.permute.xlu0 %2799
      %2803 = vset.pattern.permute.xlu0 4
      %2804 = vperm.xlu0 %2803, %v2787
      %v2805 = vpop.permute.xlu0 %2804
      %2808 = vset.pattern.permute.xlu0 4
      %2809 = vperm.xlu0 %2808, %v2788
      %v2810 = vpop.permute.xlu0 %2809
      %2813 = vset.pattern.permute.xlu0 4
      %2814 = vperm.xlu0 %2813, %v2789
      %v2815 = vpop.permute.xlu0 %2814
      %2818 = vset.pattern.permute.xlu0 4
      %2819 = vperm.xlu0 %2818, %v2790
      %v2820 = vpop.permute.xlu0 %2819
      %2823 = vset.pattern.permute.xlu0 4
      %2824 = vperm.xlu0 %2823, %v2791
      %v2825 = vpop.permute.xlu0 %2824
      %2828 = vset.pattern.permute.xlu0 4
      %2829 = vperm.xlu0 %2828, %v2792
      %v2830 = vpop.permute.xlu0 %2829
      %2833 = vset.pattern.permute.xlu0 4
      %2834 = vperm.xlu0 %2833, %v2793
      %v2835 = vpop.permute.xlu0 %2834
      %2838 = vset.pattern.permute.xlu0 4
      %2839 = vperm.xlu0 %2838, %v2794
      %v2840 = vpop.permute.xlu0 %2839
      %2843 = vset.pattern.permute.xlu0 4
      %2844 = vperm.xlu0 %2843, %v2795
      %v2845 = vpop.permute.xlu0 %2844
      %2848 = vset.pattern.permute.xlu0 4
      %2849 = vperm.xlu0 %2848, %v2796
      %v2850 = vpop.permute.xlu0 %2849
      %v2852 = vmul.f32 %v2632, %v2800
      %v2853 = vmul.f32 %v2633, %v2800
      %v2854 = vmul.f32 %v2634, %v2805
      %v2855 = vmul.f32 %v2635, %v2805
      %v2856 = vmul.f32 %v2636, %v2810
      %v2857 = vmul.f32 %v2637, %v2810
      %v2858 = vmul.f32 %v2638, %v2815
      %v2859 = vmul.f32 %v2639, %v2815
      %v2860 = vmul.f32 %v2640, %v2820
      %v2861 = vmul.f32 %v2641, %v2820
      %v2862 = vmul.f32 %v2642, %v2825
      %v2863 = vmul.f32 %v2643, %v2825
      %v2864 = vmul.f32 %v2644, %v2830
      %v2865 = vmul.f32 %v2645, %v2830
      %v2866 = vmul.f32 %v2646, %v2835
      %v2867 = vmul.f32 %v2647, %v2835
      %v2868 = vmul.f32 %v2648, %v2840
      %v2869 = vmul.f32 %v2649, %v2840
      %v2870 = vmul.f32 %v2650, %v2845
      %v2871 = vmul.f32 %v2651, %v2845
      %v2872 = vmul.f32 %v2652, %v2850
      %v2873 = vmul.f32 %v2653, %v2850
      %v2874 = vmul.f32 %v2764, %v595
      %v2875 = vmul.f32 %v2720, %v599
      %v2876 = vmul.f32 %v2765, %v595
      %v2877 = vmul.f32 %v2721, %v599
      %v2878 = vmul.f32 %v2766, %v595
      %v2879 = vmul.f32 %v2722, %v599
      %v2880 = vmul.f32 %v2767, %v595
      %v2881 = vmul.f32 %v2723, %v599
      %v2882 = vmul.f32 %v2768, %v595
      %v2883 = vmul.f32 %v2724, %v599
      %v2884 = vmul.f32 %v2769, %v595
      %v2885 = vmul.f32 %v2725, %v599
      %v2886 = vmul.f32 %v2770, %v595
      %v2887 = vmul.f32 %v2726, %v599
      %v2888 = vmul.f32 %v2771, %v595
      %v2889 = vmul.f32 %v2727, %v599
      %v2890 = vmul.f32 %v2772, %v595
      %v2891 = vmul.f32 %v2728, %v599
      %v2892 = vmul.f32 %v2773, %v595
      %v2893 = vmul.f32 %v2729, %v599
      %v2894 = vmul.f32 %v2774, %v595
      %v2895 = vmul.f32 %v2730, %v599
      %2896 = vset.pattern.permute.xlu0 0
      %2897 = vperm.xlu0 %2896, %v2786
      %v2898 = vpop.permute.xlu0 %2897
      %2900 = vset.pattern.permute.xlu0 0
      %2901 = vperm.xlu0 %2900, %v2787
      %v2902 = vpop.permute.xlu0 %2901
      %2904 = vset.pattern.permute.xlu0 0
      %2905 = vperm.xlu0 %2904, %v2788
      %v2906 = vpop.permute.xlu0 %2905
      %2908 = vset.pattern.permute.xlu0 0
      %2909 = vperm.xlu0 %2908, %v2789
      %v2910 = vpop.permute.xlu0 %2909
      %2912 = vset.pattern.permute.xlu0 0
      %2913 = vperm.xlu0 %2912, %v2790
      %v2914 = vpop.permute.xlu0 %2913
      %2916 = vset.pattern.permute.xlu0 0
      %2917 = vperm.xlu0 %2916, %v2791
      %v2918 = vpop.permute.xlu0 %2917
      %2920 = vset.pattern.permute.xlu0 0
      %2921 = vperm.xlu0 %2920, %v2792
      %v2922 = vpop.permute.xlu0 %2921
      %2924 = vset.pattern.permute.xlu0 0
      %2925 = vperm.xlu0 %2924, %v2793
      %v2926 = vpop.permute.xlu0 %2925
      %2928 = vset.pattern.permute.xlu0 0
      %2929 = vperm.xlu0 %2928, %v2794
      %v2930 = vpop.permute.xlu0 %2929
      %2932 = vset.pattern.permute.xlu0 0
      %2933 = vperm.xlu0 %2932, %v2795
      %v2934 = vpop.permute.xlu0 %2933
      %2936 = vset.pattern.permute.xlu0 0
      %2937 = vperm.xlu0 %2936, %v2796
      %v2938 = vpop.permute.xlu0 %2937
      %v2940 = vmul.f32 %v2874, %v2898
      %v2941 = vmul.f32 %v2875, %v2898
      %v2942 = vmul.f32 %v2876, %v2902
      %v2943 = vmul.f32 %v2877, %v2902
      %v2944 = vmul.f32 %v2878, %v2906
      %v2945 = vmul.f32 %v2879, %v2906
      %v2946 = vmul.f32 %v2880, %v2910
      %v2947 = vmul.f32 %v2881, %v2910
      %v2948 = vmul.f32 %v2882, %v2914
      %v2949 = vmul.f32 %v2883, %v2914
      %v2950 = vmul.f32 %v2884, %v2918
      %v2951 = vmul.f32 %v2885, %v2918
      %v2952 = vmul.f32 %v2886, %v2922
      %v2953 = vmul.f32 %v2887, %v2922
      %v2954 = vmul.f32 %v2888, %v2926
      %v2955 = vmul.f32 %v2889, %v2926
      %v2956 = vmul.f32 %v2890, %v2930
      %v2957 = vmul.f32 %v2891, %v2930
      %v2958 = vmul.f32 %v2892, %v2934
      %v2959 = vmul.f32 %v2893, %v2934
      %v2960 = vmul.f32 %v2894, %v2938
      %v2961 = vmul.f32 %v2895, %v2938
      %v2962 = vadd.f32 %v2852, %v2940
      %v2963 = vadd.f32 %v2853, %v2941
      %v2964 = vadd.f32 %v2854, %v2942
      %v2965 = vadd.f32 %v2855, %v2943
      %v2966 = vadd.f32 %v2856, %v2944
      %v2967 = vadd.f32 %v2857, %v2945
      %v2968 = vadd.f32 %v2858, %v2946
      %v2969 = vadd.f32 %v2859, %v2947
      %v2970 = vadd.f32 %v2860, %v2948
      %v2971 = vadd.f32 %v2861, %v2949
      %v2972 = vadd.f32 %v2862, %v2950
      %v2973 = vadd.f32 %v2863, %v2951
      %v2974 = vadd.f32 %v2864, %v2952
      %v2975 = vadd.f32 %v2865, %v2953
      %v2976 = vadd.f32 %v2866, %v2954
      %v2977 = vadd.f32 %v2867, %v2955
      %v2978 = vadd.f32 %v2868, %v2956
      %v2979 = vadd.f32 %v2869, %v2957
      %v2980 = vadd.f32 %v2870, %v2958
      %v2981 = vadd.f32 %v2871, %v2959
      %v2982 = vadd.f32 %v2872, %v2960
      %v2983 = vadd.f32 %v2873, %v2961
      %2984 = vset.pattern.permute.xlu0 1
      %2985 = vperm.xlu0 %2984, %v2786
      %v2986 = vpop.permute.xlu0 %2985
      %2988 = vset.pattern.permute.xlu0 1
      %2989 = vperm.xlu0 %2988, %v2787
      %v2990 = vpop.permute.xlu0 %2989
      %2992 = vset.pattern.permute.xlu0 1
      %2993 = vperm.xlu0 %2992, %v2788
      %v2994 = vpop.permute.xlu0 %2993
      %2996 = vset.pattern.permute.xlu0 1
      %2997 = vperm.xlu0 %2996, %v2789
      %v2998 = vpop.permute.xlu0 %2997
      %3000 = vset.pattern.permute.xlu0 1
      %3001 = vperm.xlu0 %3000, %v2790
      %v3002 = vpop.permute.xlu0 %3001
      %3004 = vset.pattern.permute.xlu0 1
      %3005 = vperm.xlu0 %3004, %v2791
      %v3006 = vpop.permute.xlu0 %3005
      %3008 = vset.pattern.permute.xlu0 1
      %3009 = vperm.xlu0 %3008, %v2792
      %v3010 = vpop.permute.xlu0 %3009
      %3012 = vset.pattern.permute.xlu0 1
      %3013 = vperm.xlu0 %3012, %v2793
      %v3014 = vpop.permute.xlu0 %3013
      %3016 = vset.pattern.permute.xlu0 1
      %3017 = vperm.xlu0 %3016, %v2794
      %v3018 = vpop.permute.xlu0 %3017
      %3020 = vset.pattern.permute.xlu0 1
      %3021 = vperm.xlu0 %3020, %v2795
      %v3022 = vpop.permute.xlu0 %3021
      %3024 = vset.pattern.permute.xlu0 1
      %3025 = vperm.xlu0 %3024, %v2796
      %v3026 = vpop.permute.xlu0 %3025
      %v3028 = vmul.f32 %v2764, %v2986
      %v3029 = vmul.f32 %v2720, %v2986
      %v3030 = vmul.f32 %v2775, %v2986
      %v3031 = vmul.f32 %v2765, %v2990
      %v3032 = vmul.f32 %v2721, %v2990
      %v3033 = vmul.f32 %v2776, %v2990
      %v3034 = vmul.f32 %v2766, %v2994
      %v3035 = vmul.f32 %v2722, %v2994
      %v3036 = vmul.f32 %v2777, %v2994
      %v3037 = vmul.f32 %v2767, %v2998
      %v3038 = vmul.f32 %v2723, %v2998
      %v3039 = vmul.f32 %v2778, %v2998
      %v3040 = vmul.f32 %v2768, %v3002
      %v3041 = vmul.f32 %v2724, %v3002
      %v3042 = vmul.f32 %v2779, %v3002
      %v3043 = vmul.f32 %v2769, %v3006
      %v3044 = vmul.f32 %v2725, %v3006
      %v3045 = vmul.f32 %v2780, %v3006
      %v3046 = vmul.f32 %v2770, %v3010
      %v3047 = vmul.f32 %v2726, %v3010
      %v3048 = vmul.f32 %v2781, %v3010
      %v3049 = vmul.f32 %v2771, %v3014
      %v3050 = vmul.f32 %v2727, %v3014
      %v3051 = vmul.f32 %v2782, %v3014
      %v3052 = vmul.f32 %v2772, %v3018
      %v3053 = vmul.f32 %v2728, %v3018
      %v3054 = vmul.f32 %v2783, %v3018
      %v3055 = vmul.f32 %v2773, %v3022
      %v3056 = vmul.f32 %v2729, %v3022
      %v3057 = vmul.f32 %v2784, %v3022
      %v3058 = vmul.f32 %v2774, %v3026
      %v3059 = vmul.f32 %v2730, %v3026
      %v3060 = vmul.f32 %v2785, %v3026
      %3094 = vrot.lane.b32.xlu0 %v3028, 127
      %v3095 = vpop.permute.xlu0 %3094
      %3096 = vrot.lane.b32.xlu0 %v3029, 127
      %v3097 = vpop.permute.xlu0 %3096
      %3098 = vrot.lane.b32.xlu0 %v3030, 127
      %v3099 = vpop.permute.xlu0 %3098
      %3100 = vrot.lane.b32.xlu0 %v3031, 127
      %v3101 = vpop.permute.xlu0 %3100
      %3102 = vrot.lane.b32.xlu0 %v3032, 127
      %v3103 = vpop.permute.xlu0 %3102
      %3104 = vrot.lane.b32.xlu0 %v3033, 127
      %v3105 = vpop.permute.xlu0 %3104
      %3106 = vrot.lane.b32.xlu0 %v3034, 127
      %v3107 = vpop.permute.xlu0 %3106
      %3108 = vrot.lane.b32.xlu0 %v3035, 127
      %v3109 = vpop.permute.xlu0 %3108
      %3110 = vrot.lane.b32.xlu0 %v3036, 127
      %v3111 = vpop.permute.xlu0 %3110
      %3112 = vrot.lane.b32.xlu0 %v3037, 127
      %v3113 = vpop.permute.xlu0 %3112
      %3114 = vrot.lane.b32.xlu0 %v3038, 127
      %v3115 = vpop.permute.xlu0 %3114
      %3116 = vrot.lane.b32.xlu0 %v3039, 127
      %v3117 = vpop.permute.xlu0 %3116
      %3118 = vrot.lane.b32.xlu0 %v3040, 127
      %v3119 = vpop.permute.xlu0 %3118
      %3120 = vrot.lane.b32.xlu0 %v3041, 127
      %v3121 = vpop.permute.xlu0 %3120
      %3122 = vrot.lane.b32.xlu0 %v3042, 127
      %v3123 = vpop.permute.xlu0 %3122
      %3124 = vrot.lane.b32.xlu0 %v3043, 127
      %v3125 = vpop.permute.xlu0 %3124
      %3126 = vrot.lane.b32.xlu0 %v3044, 127
      %v3127 = vpop.permute.xlu0 %3126
      %3128 = vrot.lane.b32.xlu0 %v3045, 127
      %v3129 = vpop.permute.xlu0 %3128
      %3130 = vrot.lane.b32.xlu0 %v3046, 127
      %v3131 = vpop.permute.xlu0 %3130
      %3132 = vrot.lane.b32.xlu0 %v3047, 127
      %v3133 = vpop.permute.xlu0 %3132
      %3134 = vrot.lane.b32.xlu0 %v3048, 127
      %v3135 = vpop.permute.xlu0 %3134
      %3136 = vrot.lane.b32.xlu0 %v3049, 127
      %v3137 = vpop.permute.xlu0 %3136
      %3138 = vrot.lane.b32.xlu0 %v3050, 127
      %v3139 = vpop.permute.xlu0 %3138
      %3140 = vrot.lane.b32.xlu0 %v3051, 127
      %v3141 = vpop.permute.xlu0 %3140
      %3142 = vrot.lane.b32.xlu0 %v3052, 127
      %v3143 = vpop.permute.xlu0 %3142
      %3144 = vrot.lane.b32.xlu0 %v3053, 127
      %v3145 = vpop.permute.xlu0 %3144
      %3146 = vrot.lane.b32.xlu0 %v3054, 127
      %v3147 = vpop.permute.xlu0 %3146
      %3148 = vrot.lane.b32.xlu0 %v3055, 127
      %v3149 = vpop.permute.xlu0 %3148
      %3150 = vrot.lane.b32.xlu0 %v3056, 127
      %v3151 = vpop.permute.xlu0 %3150
      %3152 = vrot.lane.b32.xlu0 %v3057, 127
      %v3153 = vpop.permute.xlu0 %3152
      %3154 = vrot.lane.b32.xlu0 %v3058, 127
      %v3155 = vpop.permute.xlu0 %3154
      %3156 = vrot.lane.b32.xlu0 %v3059, 127
      %v3157 = vpop.permute.xlu0 %3156
      %3158 = vrot.lane.b32.xlu0 %v3060, 127
      %v3159 = vpop.permute.xlu0 %3158
      %v3160 = vsel %vm888, %v3095, %v3097
      %v3161 = vsel %vm888, %v3097, %v3099
      %v3162 = vsel %vm888, %v3101, %v3103
      %v3163 = vsel %vm888, %v3103, %v3105
      %v3164 = vsel %vm888, %v3107, %v3109
      %v3165 = vsel %vm888, %v3109, %v3111
      %v3166 = vsel %vm888, %v3113, %v3115
      %v3167 = vsel %vm888, %v3115, %v3117
      %v3168 = vsel %vm888, %v3119, %v3121
      %v3169 = vsel %vm888, %v3121, %v3123
      %v3170 = vsel %vm888, %v3125, %v3127
      %v3171 = vsel %vm888, %v3127, %v3129
      %v3172 = vsel %vm888, %v3131, %v3133
      %v3173 = vsel %vm888, %v3133, %v3135
      %v3174 = vsel %vm888, %v3137, %v3139
      %v3175 = vsel %vm888, %v3139, %v3141
      %v3176 = vsel %vm888, %v3143, %v3145
      %v3177 = vsel %vm888, %v3145, %v3147
      %v3178 = vsel %vm888, %v3149, %v3151
      %v3179 = vsel %vm888, %v3151, %v3153
      %v3180 = vsel %vm888, %v3155, %v3157
      %v3181 = vsel %vm888, %v3157, %v3159
      %v3204 = vadd.f32 %v2962, %v3160
      %v3205 = vadd.f32 %v2963, %v3161
      %v3206 = vadd.f32 %v2964, %v3162
      %v3207 = vadd.f32 %v2965, %v3163
      %v3208 = vadd.f32 %v2966, %v3164
      %v3209 = vadd.f32 %v2967, %v3165
      %v3210 = vadd.f32 %v2968, %v3166
      %v3211 = vadd.f32 %v2969, %v3167
      %v3212 = vadd.f32 %v2970, %v3168
      %v3213 = vadd.f32 %v2971, %v3169
      %v3214 = vadd.f32 %v2972, %v3170
      %v3215 = vadd.f32 %v2973, %v3171
      %v3216 = vadd.f32 %v2974, %v3172
      %v3217 = vadd.f32 %v2975, %v3173
      %v3218 = vadd.f32 %v2976, %v3174
      %v3219 = vadd.f32 %v2977, %v3175
      %v3220 = vadd.f32 %v2978, %v3176
      %v3221 = vadd.f32 %v2979, %v3177
      %v3222 = vadd.f32 %v2980, %v3178
      %v3223 = vadd.f32 %v2981, %v3179
      %v3224 = vadd.f32 %v2982, %v3180
      %v3225 = vadd.f32 %v2983, %v3181
      %v3226 = vmul.f32 %v2764, %v965
      %v3227 = vmul.f32 %v2720, %v969
      %v3228 = vmul.f32 %v2775, %v967
      %v3229 = vmul.f32 %v2765, %v965
      %v3230 = vmul.f32 %v2721, %v969
      %v3231 = vmul.f32 %v2776, %v967
      %v3232 = vmul.f32 %v2766, %v965
      %v3233 = vmul.f32 %v2722, %v969
      %v3234 = vmul.f32 %v2777, %v967
      %v3235 = vmul.f32 %v2767, %v965
      %v3236 = vmul.f32 %v2723, %v969
      %v3237 = vmul.f32 %v2778, %v967
      %v3238 = vmul.f32 %v2768, %v965
      %v3239 = vmul.f32 %v2724, %v969
      %v3240 = vmul.f32 %v2779, %v967
      %v3241 = vmul.f32 %v2769, %v965
      %v3242 = vmul.f32 %v2725, %v969
      %v3243 = vmul.f32 %v2780, %v967
      %v3244 = vmul.f32 %v2770, %v965
      %v3245 = vmul.f32 %v2726, %v969
      %v3246 = vmul.f32 %v2781, %v967
      %v3247 = vmul.f32 %v2771, %v965
      %v3248 = vmul.f32 %v2727, %v969
      %v3249 = vmul.f32 %v2782, %v967
      %v3250 = vmul.f32 %v2772, %v965
      %v3251 = vmul.f32 %v2728, %v969
      %v3252 = vmul.f32 %v2783, %v967
      %v3253 = vmul.f32 %v2773, %v965
      %v3254 = vmul.f32 %v2729, %v969
      %v3255 = vmul.f32 %v2784, %v967
      %v3256 = vmul.f32 %v2774, %v965
      %v3257 = vmul.f32 %v2730, %v969
      %v3258 = vmul.f32 %v2785, %v967
      %3259 = vset.pattern.permute.xlu0 2
      %3260 = vperm.xlu0 %3259, %v2786
      %v3261 = vpop.permute.xlu0 %3260
      %3263 = vset.pattern.permute.xlu0 2
      %3264 = vperm.xlu0 %3263, %v2787
      %v3265 = vpop.permute.xlu0 %3264
      %3267 = vset.pattern.permute.xlu0 2
      %3268 = vperm.xlu0 %3267, %v2788
      %v3269 = vpop.permute.xlu0 %3268
      %3271 = vset.pattern.permute.xlu0 2
      %3272 = vperm.xlu0 %3271, %v2789
      %v3273 = vpop.permute.xlu0 %3272
      %3275 = vset.pattern.permute.xlu0 2
      %3276 = vperm.xlu0 %3275, %v2790
      %v3277 = vpop.permute.xlu0 %3276
      %3279 = vset.pattern.permute.xlu0 2
      %3280 = vperm.xlu0 %3279, %v2791
      %v3281 = vpop.permute.xlu0 %3280
      %3283 = vset.pattern.permute.xlu0 2
      %3284 = vperm.xlu0 %3283, %v2792
      %v3285 = vpop.permute.xlu0 %3284
      %3287 = vset.pattern.permute.xlu0 2
      %3288 = vperm.xlu0 %3287, %v2793
      %v3289 = vpop.permute.xlu0 %3288
      %3291 = vset.pattern.permute.xlu0 2
      %3292 = vperm.xlu0 %3291, %v2794
      %v3293 = vpop.permute.xlu0 %3292
      %3295 = vset.pattern.permute.xlu0 2
      %3296 = vperm.xlu0 %3295, %v2795
      %v3297 = vpop.permute.xlu0 %3296
      %3299 = vset.pattern.permute.xlu0 2
      %3300 = vperm.xlu0 %3299, %v2796
      %v3301 = vpop.permute.xlu0 %3300
      %v3303 = vmul.f32 %v3226, %v3261
      %v3304 = vmul.f32 %v3227, %v3261
      %v3305 = vmul.f32 %v3228, %v3261
      %v3306 = vmul.f32 %v3229, %v3265
      %v3307 = vmul.f32 %v3230, %v3265
      %v3308 = vmul.f32 %v3231, %v3265
      %v3309 = vmul.f32 %v3232, %v3269
      %v3310 = vmul.f32 %v3233, %v3269
      %v3311 = vmul.f32 %v3234, %v3269
      %v3312 = vmul.f32 %v3235, %v3273
      %v3313 = vmul.f32 %v3236, %v3273
      %v3314 = vmul.f32 %v3237, %v3273
      %v3315 = vmul.f32 %v3238, %v3277
      %v3316 = vmul.f32 %v3239, %v3277
      %v3317 = vmul.f32 %v3240, %v3277
      %v3318 = vmul.f32 %v3241, %v3281
      %v3319 = vmul.f32 %v3242, %v3281
      %v3320 = vmul.f32 %v3243, %v3281
      %v3321 = vmul.f32 %v3244, %v3285
      %v3322 = vmul.f32 %v3245, %v3285
      %v3323 = vmul.f32 %v3246, %v3285
      %v3324 = vmul.f32 %v3247, %v3289
      %v3325 = vmul.f32 %v3248, %v3289
      %v3326 = vmul.f32 %v3249, %v3289
      %v3327 = vmul.f32 %v3250, %v3293
      %v3328 = vmul.f32 %v3251, %v3293
      %v3329 = vmul.f32 %v3252, %v3293
      %v3330 = vmul.f32 %v3253, %v3297
      %v3331 = vmul.f32 %v3254, %v3297
      %v3332 = vmul.f32 %v3255, %v3297
      %v3333 = vmul.f32 %v3256, %v3301
      %v3334 = vmul.f32 %v3257, %v3301
      %v3335 = vmul.f32 %v3258, %v3301
      %3369 = vrot.lane.b32.xlu0 %v3303, 126
      %v3370 = vpop.permute.xlu0 %3369
      %3371 = vrot.lane.b32.xlu0 %v3304, 126
      %v3372 = vpop.permute.xlu0 %3371
      %3373 = vrot.lane.b32.xlu0 %v3305, 126
      %v3374 = vpop.permute.xlu0 %3373
      %3375 = vrot.lane.b32.xlu0 %v3306, 126
      %v3376 = vpop.permute.xlu0 %3375
      %3377 = vrot.lane.b32.xlu0 %v3307, 126
      %v3378 = vpop.permute.xlu0 %3377
      %3379 = vrot.lane.b32.xlu0 %v3308, 126
      %v3380 = vpop.permute.xlu0 %3379
      %3381 = vrot.lane.b32.xlu0 %v3309, 126
      %v3382 = vpop.permute.xlu0 %3381
      %3383 = vrot.lane.b32.xlu0 %v3310, 126
      %v3384 = vpop.permute.xlu0 %3383
      %3385 = vrot.lane.b32.xlu0 %v3311, 126
      %v3386 = vpop.permute.xlu0 %3385
      %3387 = vrot.lane.b32.xlu0 %v3312, 126
      %v3388 = vpop.permute.xlu0 %3387
      %3389 = vrot.lane.b32.xlu0 %v3313, 126
      %v3390 = vpop.permute.xlu0 %3389
      %3391 = vrot.lane.b32.xlu0 %v3314, 126
      %v3392 = vpop.permute.xlu0 %3391
      %3393 = vrot.lane.b32.xlu0 %v3315, 126
      %v3394 = vpop.permute.xlu0 %3393
      %3395 = vrot.lane.b32.xlu0 %v3316, 126
      %v3396 = vpop.permute.xlu0 %3395
      %3397 = vrot.lane.b32.xlu0 %v3317, 126
      %v3398 = vpop.permute.xlu0 %3397
      %3399 = vrot.lane.b32.xlu0 %v3318, 126
      %v3400 = vpop.permute.xlu0 %3399
      %3401 = vrot.lane.b32.xlu0 %v3319, 126
      %v3402 = vpop.permute.xlu0 %3401
      %3403 = vrot.lane.b32.xlu0 %v3320, 126
      %v3404 = vpop.permute.xlu0 %3403
      %3405 = vrot.lane.b32.xlu0 %v3321, 126
      %v3406 = vpop.permute.xlu0 %3405
      %3407 = vrot.lane.b32.xlu0 %v3322, 126
      %v3408 = vpop.permute.xlu0 %3407
      %3409 = vrot.lane.b32.xlu0 %v3323, 126
      %v3410 = vpop.permute.xlu0 %3409
      %3411 = vrot.lane.b32.xlu0 %v3324, 126
      %v3412 = vpop.permute.xlu0 %3411
      %3413 = vrot.lane.b32.xlu0 %v3325, 126
      %v3414 = vpop.permute.xlu0 %3413
      %3415 = vrot.lane.b32.xlu0 %v3326, 126
      %v3416 = vpop.permute.xlu0 %3415
      %3417 = vrot.lane.b32.xlu0 %v3327, 126
      %v3418 = vpop.permute.xlu0 %3417
      %3419 = vrot.lane.b32.xlu0 %v3328, 126
      %v3420 = vpop.permute.xlu0 %3419
      %3421 = vrot.lane.b32.xlu0 %v3329, 126
      %v3422 = vpop.permute.xlu0 %3421
      %3423 = vrot.lane.b32.xlu0 %v3330, 126
      %v3424 = vpop.permute.xlu0 %3423
      %3425 = vrot.lane.b32.xlu0 %v3331, 126
      %v3426 = vpop.permute.xlu0 %3425
      %3427 = vrot.lane.b32.xlu0 %v3332, 126
      %v3428 = vpop.permute.xlu0 %3427
      %3429 = vrot.lane.b32.xlu0 %v3333, 126
      %v3430 = vpop.permute.xlu0 %3429
      %3431 = vrot.lane.b32.xlu0 %v3334, 126
      %v3432 = vpop.permute.xlu0 %3431
      %3433 = vrot.lane.b32.xlu0 %v3335, 126
      %v3434 = vpop.permute.xlu0 %3433
      %v3435 = vsel %vm1182, %v3370, %v3372
      %v3436 = vsel %vm1182, %v3372, %v3374
      %v3437 = vsel %vm1182, %v3376, %v3378
      %v3438 = vsel %vm1182, %v3378, %v3380
      %v3439 = vsel %vm1182, %v3382, %v3384
      %v3440 = vsel %vm1182, %v3384, %v3386
      %v3441 = vsel %vm1182, %v3388, %v3390
      %v3442 = vsel %vm1182, %v3390, %v3392
      %v3443 = vsel %vm1182, %v3394, %v3396
      %v3444 = vsel %vm1182, %v3396, %v3398
      %v3445 = vsel %vm1182, %v3400, %v3402
      %v3446 = vsel %vm1182, %v3402, %v3404
      %v3447 = vsel %vm1182, %v3406, %v3408
      %v3448 = vsel %vm1182, %v3408, %v3410
      %v3449 = vsel %vm1182, %v3412, %v3414
      %v3450 = vsel %vm1182, %v3414, %v3416
      %v3451 = vsel %vm1182, %v3418, %v3420
      %v3452 = vsel %vm1182, %v3420, %v3422
      %v3453 = vsel %vm1182, %v3424, %v3426
      %v3454 = vsel %vm1182, %v3426, %v3428
      %v3455 = vsel %vm1182, %v3430, %v3432
      %v3456 = vsel %vm1182, %v3432, %v3434
      %v3479 = vadd.f32 %v3204, %v3435
      %v3480 = vadd.f32 %v3205, %v3436
      %v3481 = vadd.f32 %v3206, %v3437
      %v3482 = vadd.f32 %v3207, %v3438
      %v3483 = vadd.f32 %v3208, %v3439
      %v3484 = vadd.f32 %v3209, %v3440
      %v3485 = vadd.f32 %v3210, %v3441
      %v3486 = vadd.f32 %v3211, %v3442
      %v3487 = vadd.f32 %v3212, %v3443
      %v3488 = vadd.f32 %v3213, %v3444
      %v3489 = vadd.f32 %v3214, %v3445
      %v3490 = vadd.f32 %v3215, %v3446
      %v3491 = vadd.f32 %v3216, %v3447
      %v3492 = vadd.f32 %v3217, %v3448
      %v3493 = vadd.f32 %v3218, %v3449
      %v3494 = vadd.f32 %v3219, %v3450
      %v3495 = vadd.f32 %v3220, %v3451
      %v3496 = vadd.f32 %v3221, %v3452
      %v3497 = vadd.f32 %v3222, %v3453
      %v3498 = vadd.f32 %v3223, %v3454
      %v3499 = vadd.f32 %v3224, %v3455
      %v3500 = vadd.f32 %v3225, %v3456
      %v3501 = vmul.f32 %v2764, %v1250
      %v3502 = vmul.f32 %v2720, %v1254
      %v3503 = vmul.f32 %v2775, %v1252
      %v3504 = vmul.f32 %v2765, %v1250
      %v3505 = vmul.f32 %v2721, %v1254
      %v3506 = vmul.f32 %v2776, %v1252
      %v3507 = vmul.f32 %v2766, %v1250
      %v3508 = vmul.f32 %v2722, %v1254
      %v3509 = vmul.f32 %v2777, %v1252
      %v3510 = vmul.f32 %v2767, %v1250
      %v3511 = vmul.f32 %v2723, %v1254
      %v3512 = vmul.f32 %v2778, %v1252
      %v3513 = vmul.f32 %v2768, %v1250
      %v3514 = vmul.f32 %v2724, %v1254
      %v3515 = vmul.f32 %v2779, %v1252
      %v3516 = vmul.f32 %v2769, %v1250
      %v3517 = vmul.f32 %v2725, %v1254
      %v3518 = vmul.f32 %v2780, %v1252
      %v3519 = vmul.f32 %v2770, %v1250
      %v3520 = vmul.f32 %v2726, %v1254
      %v3521 = vmul.f32 %v2781, %v1252
      %v3522 = vmul.f32 %v2771, %v1250
      %v3523 = vmul.f32 %v2727, %v1254
      %v3524 = vmul.f32 %v2782, %v1252
      %v3525 = vmul.f32 %v2772, %v1250
      %v3526 = vmul.f32 %v2728, %v1254
      %v3527 = vmul.f32 %v2783, %v1252
      %v3528 = vmul.f32 %v2773, %v1250
      %v3529 = vmul.f32 %v2729, %v1254
      %v3530 = vmul.f32 %v2784, %v1252
      %v3531 = vmul.f32 %v2774, %v1250
      %v3532 = vmul.f32 %v2730, %v1254
      %v3533 = vmul.f32 %v2785, %v1252
      %3534 = vset.pattern.permute.xlu0 3
      %3535 = vperm.xlu0 %3534, %v2786
      %v3536 = vpop.permute.xlu0 %3535
      %3538 = vset.pattern.permute.xlu0 3
      %3539 = vperm.xlu0 %3538, %v2787
      %v3540 = vpop.permute.xlu0 %3539
      %3542 = vset.pattern.permute.xlu0 3
      %3543 = vperm.xlu0 %3542, %v2788
      %v3544 = vpop.permute.xlu0 %3543
      %3546 = vset.pattern.permute.xlu0 3
      %3547 = vperm.xlu0 %3546, %v2789
      %v3548 = vpop.permute.xlu0 %3547
      %3550 = vset.pattern.permute.xlu0 3
      %3551 = vperm.xlu0 %3550, %v2790
      %v3552 = vpop.permute.xlu0 %3551
      %3554 = vset.pattern.permute.xlu0 3
      %3555 = vperm.xlu0 %3554, %v2791
      %v3556 = vpop.permute.xlu0 %3555
      %3558 = vset.pattern.permute.xlu0 3
      %3559 = vperm.xlu0 %3558, %v2792
      %v3560 = vpop.permute.xlu0 %3559
      %3562 = vset.pattern.permute.xlu0 3
      %3563 = vperm.xlu0 %3562, %v2793
      %v3564 = vpop.permute.xlu0 %3563
      %3566 = vset.pattern.permute.xlu0 3
      %3567 = vperm.xlu0 %3566, %v2794
      %v3568 = vpop.permute.xlu0 %3567
      %3570 = vset.pattern.permute.xlu0 3
      %3571 = vperm.xlu0 %3570, %v2795
      %v3572 = vpop.permute.xlu0 %3571
      %3574 = vset.pattern.permute.xlu0 3
      %3575 = vperm.xlu0 %3574, %v2796
      %v3576 = vpop.permute.xlu0 %3575
      %v3578 = vmul.f32 %v3501, %v3536
      %v3579 = vmul.f32 %v3502, %v3536
      %v3580 = vmul.f32 %v3503, %v3536
      %v3581 = vmul.f32 %v3504, %v3540
      %v3582 = vmul.f32 %v3505, %v3540
      %v3583 = vmul.f32 %v3506, %v3540
      %v3584 = vmul.f32 %v3507, %v3544
      %v3585 = vmul.f32 %v3508, %v3544
      %v3586 = vmul.f32 %v3509, %v3544
      %v3587 = vmul.f32 %v3510, %v3548
      %v3588 = vmul.f32 %v3511, %v3548
      %v3589 = vmul.f32 %v3512, %v3548
      %v3590 = vmul.f32 %v3513, %v3552
      %v3591 = vmul.f32 %v3514, %v3552
      %v3592 = vmul.f32 %v3515, %v3552
      %v3593 = vmul.f32 %v3516, %v3556
      %v3594 = vmul.f32 %v3517, %v3556
      %v3595 = vmul.f32 %v3518, %v3556
      %v3596 = vmul.f32 %v3519, %v3560
      %v3597 = vmul.f32 %v3520, %v3560
      %v3598 = vmul.f32 %v3521, %v3560
      %v3599 = vmul.f32 %v3522, %v3564
      %v3600 = vmul.f32 %v3523, %v3564
      %v3601 = vmul.f32 %v3524, %v3564
      %v3602 = vmul.f32 %v3525, %v3568
      %v3603 = vmul.f32 %v3526, %v3568
      %v3604 = vmul.f32 %v3527, %v3568
      %v3605 = vmul.f32 %v3528, %v3572
      %v3606 = vmul.f32 %v3529, %v3572
      %v3607 = vmul.f32 %v3530, %v3572
      %v3608 = vmul.f32 %v3531, %v3576
      %v3609 = vmul.f32 %v3532, %v3576
      %v3610 = vmul.f32 %v3533, %v3576
      %3644 = vrot.lane.b32.xlu0 %v3578, 112
      %v3645 = vpop.permute.xlu0 %3644
      %3646 = vrot.lane.b32.xlu0 %v3579, 112
      %v3647 = vpop.permute.xlu0 %3646
      %3648 = vrot.lane.b32.xlu0 %v3580, 112
      %v3649 = vpop.permute.xlu0 %3648
      %3650 = vrot.lane.b32.xlu0 %v3581, 112
      %v3651 = vpop.permute.xlu0 %3650
      %3652 = vrot.lane.b32.xlu0 %v3582, 112
      %v3653 = vpop.permute.xlu0 %3652
      %3654 = vrot.lane.b32.xlu0 %v3583, 112
      %v3655 = vpop.permute.xlu0 %3654
      %3656 = vrot.lane.b32.xlu0 %v3584, 112
      %v3657 = vpop.permute.xlu0 %3656
      %3658 = vrot.lane.b32.xlu0 %v3585, 112
      %v3659 = vpop.permute.xlu0 %3658
      %3660 = vrot.lane.b32.xlu0 %v3586, 112
      %v3661 = vpop.permute.xlu0 %3660
      %3662 = vrot.lane.b32.xlu0 %v3587, 112
      %v3663 = vpop.permute.xlu0 %3662
      %3664 = vrot.lane.b32.xlu0 %v3588, 112
      %v3665 = vpop.permute.xlu0 %3664
      %3666 = vrot.lane.b32.xlu0 %v3589, 112
      %v3667 = vpop.permute.xlu0 %3666
      %3668 = vrot.lane.b32.xlu0 %v3590, 112
      %v3669 = vpop.permute.xlu0 %3668
      %3670 = vrot.lane.b32.xlu0 %v3591, 112
      %v3671 = vpop.permute.xlu0 %3670
      %3672 = vrot.lane.b32.xlu0 %v3592, 112
      %v3673 = vpop.permute.xlu0 %3672
      %3674 = vrot.lane.b32.xlu0 %v3593, 112
      %v3675 = vpop.permute.xlu0 %3674
      %3676 = vrot.lane.b32.xlu0 %v3594, 112
      %v3677 = vpop.permute.xlu0 %3676
      %3678 = vrot.lane.b32.xlu0 %v3595, 112
      %v3679 = vpop.permute.xlu0 %3678
      %3680 = vrot.lane.b32.xlu0 %v3596, 112
      %v3681 = vpop.permute.xlu0 %3680
      %3682 = vrot.lane.b32.xlu0 %v3597, 112
      %v3683 = vpop.permute.xlu0 %3682
      %3684 = vrot.lane.b32.xlu0 %v3598, 112
      %v3685 = vpop.permute.xlu0 %3684
      %3686 = vrot.lane.b32.xlu0 %v3599, 112
      %v3687 = vpop.permute.xlu0 %3686
      %3688 = vrot.lane.b32.xlu0 %v3600, 112
      %v3689 = vpop.permute.xlu0 %3688
      %3690 = vrot.lane.b32.xlu0 %v3601, 112
      %v3691 = vpop.permute.xlu0 %3690
      %3692 = vrot.lane.b32.xlu0 %v3602, 112
      %v3693 = vpop.permute.xlu0 %3692
      %3694 = vrot.lane.b32.xlu0 %v3603, 112
      %v3695 = vpop.permute.xlu0 %3694
      %3696 = vrot.lane.b32.xlu0 %v3604, 112
      %v3697 = vpop.permute.xlu0 %3696
      %3698 = vrot.lane.b32.xlu0 %v3605, 112
      %v3699 = vpop.permute.xlu0 %3698
      %3700 = vrot.lane.b32.xlu0 %v3606, 112
      %v3701 = vpop.permute.xlu0 %3700
      %3702 = vrot.lane.b32.xlu0 %v3607, 112
      %v3703 = vpop.permute.xlu0 %3702
      %3704 = vrot.lane.b32.xlu0 %v3608, 112
      %v3705 = vpop.permute.xlu0 %3704
      %3706 = vrot.lane.b32.xlu0 %v3609, 112
      %v3707 = vpop.permute.xlu0 %3706
      %3708 = vrot.lane.b32.xlu0 %v3610, 112
      %v3709 = vpop.permute.xlu0 %3708
      %v3710 = vsel %vm1467, %v3645, %v3647
      %v3711 = vsel %vm1467, %v3647, %v3649
      %v3712 = vsel %vm1467, %v3651, %v3653
      %v3713 = vsel %vm1467, %v3653, %v3655
      %v3714 = vsel %vm1467, %v3657, %v3659
      %v3715 = vsel %vm1467, %v3659, %v3661
      %v3716 = vsel %vm1467, %v3663, %v3665
      %v3717 = vsel %vm1467, %v3665, %v3667
      %v3718 = vsel %vm1467, %v3669, %v3671
      %v3719 = vsel %vm1467, %v3671, %v3673
      %v3720 = vsel %vm1467, %v3675, %v3677
      %v3721 = vsel %vm1467, %v3677, %v3679
      %v3722 = vsel %vm1467, %v3681, %v3683
      %v3723 = vsel %vm1467, %v3683, %v3685
      %v3724 = vsel %vm1467, %v3687, %v3689
      %v3725 = vsel %vm1467, %v3689, %v3691
      %v3726 = vsel %vm1467, %v3693, %v3695
      %v3727 = vsel %vm1467, %v3695, %v3697
      %v3728 = vsel %vm1467, %v3699, %v3701
      %v3729 = vsel %vm1467, %v3701, %v3703
      %v3730 = vsel %vm1467, %v3705, %v3707
      %v3731 = vsel %vm1467, %v3707, %v3709
      %v3754 = vadd.f32 %v3479, %v3710
      %v3755 = vadd.f32 %v3480, %v3711
      %v3756 = vadd.f32 %v3481, %v3712
      %v3757 = vadd.f32 %v3482, %v3713
      %v3758 = vadd.f32 %v3483, %v3714
      %v3759 = vadd.f32 %v3484, %v3715
      %v3760 = vadd.f32 %v3485, %v3716
      %v3761 = vadd.f32 %v3486, %v3717
      %v3762 = vadd.f32 %v3487, %v3718
      %v3763 = vadd.f32 %v3488, %v3719
      %v3764 = vadd.f32 %v3489, %v3720
      %v3765 = vadd.f32 %v3490, %v3721
      %v3766 = vadd.f32 %v3491, %v3722
      %v3767 = vadd.f32 %v3492, %v3723
      %v3768 = vadd.f32 %v3493, %v3724
      %v3769 = vadd.f32 %v3494, %v3725
      %v3770 = vadd.f32 %v3495, %v3726
      %v3771 = vadd.f32 %v3496, %v3727
      %v3772 = vadd.f32 %v3497, %v3728
      %v3773 = vadd.f32 %v3498, %v3729
      %v3774 = vadd.f32 %v3499, %v3730
      %v3775 = vadd.f32 %v3500, %v3731
      %v3776 = vmul.f32 %v2764, %v1535
      %v3777 = vmul.f32 %v2720, %v1539
      %v3778 = vmul.f32 %v2775, %v1537
      %v3779 = vmul.f32 %v2765, %v1535
      %v3780 = vmul.f32 %v2721, %v1539
      %v3781 = vmul.f32 %v2776, %v1537
      %v3782 = vmul.f32 %v2766, %v1535
      %v3783 = vmul.f32 %v2722, %v1539
      %v3784 = vmul.f32 %v2777, %v1537
      %v3785 = vmul.f32 %v2767, %v1535
      %v3786 = vmul.f32 %v2723, %v1539
      %v3787 = vmul.f32 %v2778, %v1537
      %v3788 = vmul.f32 %v2768, %v1535
      %v3789 = vmul.f32 %v2724, %v1539
      %v3790 = vmul.f32 %v2779, %v1537
      %v3791 = vmul.f32 %v2769, %v1535
      %v3792 = vmul.f32 %v2725, %v1539
      %v3793 = vmul.f32 %v2780, %v1537
      %v3794 = vmul.f32 %v2770, %v1535
      %v3795 = vmul.f32 %v2726, %v1539
      %v3796 = vmul.f32 %v2781, %v1537
      %v3797 = vmul.f32 %v2771, %v1535
      %v3798 = vmul.f32 %v2727, %v1539
      %v3799 = vmul.f32 %v2782, %v1537
      %v3800 = vmul.f32 %v2772, %v1535
      %v3801 = vmul.f32 %v2728, %v1539
      %v3802 = vmul.f32 %v2783, %v1537
      %v3803 = vmul.f32 %v2773, %v1535
      %v3804 = vmul.f32 %v2729, %v1539
      %v3805 = vmul.f32 %v2784, %v1537
      %v3806 = vmul.f32 %v2774, %v1535
      %v3807 = vmul.f32 %v2730, %v1539
      %v3808 = vmul.f32 %v2785, %v1537
      %3809 = vset.pattern.permute.xlu0 5
      %3810 = vperm.xlu0 %3809, %v2786
      %v3811 = vpop.permute.xlu0 %3810
      %3813 = vset.pattern.permute.xlu0 5
      %3814 = vperm.xlu0 %3813, %v2787
      %v3815 = vpop.permute.xlu0 %3814
      %3817 = vset.pattern.permute.xlu0 5
      %3818 = vperm.xlu0 %3817, %v2788
      %v3819 = vpop.permute.xlu0 %3818
      %3821 = vset.pattern.permute.xlu0 5
      %3822 = vperm.xlu0 %3821, %v2789
      %v3823 = vpop.permute.xlu0 %3822
      %3825 = vset.pattern.permute.xlu0 5
      %3826 = vperm.xlu0 %3825, %v2790
      %v3827 = vpop.permute.xlu0 %3826
      %3829 = vset.pattern.permute.xlu0 5
      %3830 = vperm.xlu0 %3829, %v2791
      %v3831 = vpop.permute.xlu0 %3830
      %3833 = vset.pattern.permute.xlu0 5
      %3834 = vperm.xlu0 %3833, %v2792
      %v3835 = vpop.permute.xlu0 %3834
      %3837 = vset.pattern.permute.xlu0 5
      %3838 = vperm.xlu0 %3837, %v2793
      %v3839 = vpop.permute.xlu0 %3838
      %3841 = vset.pattern.permute.xlu0 5
      %3842 = vperm.xlu0 %3841, %v2794
      %v3843 = vpop.permute.xlu0 %3842
      %3845 = vset.pattern.permute.xlu0 5
      %3846 = vperm.xlu0 %3845, %v2795
      %v3847 = vpop.permute.xlu0 %3846
      %3849 = vset.pattern.permute.xlu0 5
      %3850 = vperm.xlu0 %3849, %v2796
      %v3851 = vpop.permute.xlu0 %3850
      %v3853 = vmul.f32 %v3776, %v3811
      %v3854 = vmul.f32 %v3777, %v3811
      %v3855 = vmul.f32 %v3778, %v3811
      %v3856 = vmul.f32 %v3779, %v3815
      %v3857 = vmul.f32 %v3780, %v3815
      %v3858 = vmul.f32 %v3781, %v3815
      %v3859 = vmul.f32 %v3782, %v3819
      %v3860 = vmul.f32 %v3783, %v3819
      %v3861 = vmul.f32 %v3784, %v3819
      %v3862 = vmul.f32 %v3785, %v3823
      %v3863 = vmul.f32 %v3786, %v3823
      %v3864 = vmul.f32 %v3787, %v3823
      %v3865 = vmul.f32 %v3788, %v3827
      %v3866 = vmul.f32 %v3789, %v3827
      %v3867 = vmul.f32 %v3790, %v3827
      %v3868 = vmul.f32 %v3791, %v3831
      %v3869 = vmul.f32 %v3792, %v3831
      %v3870 = vmul.f32 %v3793, %v3831
      %v3871 = vmul.f32 %v3794, %v3835
      %v3872 = vmul.f32 %v3795, %v3835
      %v3873 = vmul.f32 %v3796, %v3835
      %v3874 = vmul.f32 %v3797, %v3839
      %v3875 = vmul.f32 %v3798, %v3839
      %v3876 = vmul.f32 %v3799, %v3839
      %v3877 = vmul.f32 %v3800, %v3843
      %v3878 = vmul.f32 %v3801, %v3843
      %v3879 = vmul.f32 %v3802, %v3843
      %v3880 = vmul.f32 %v3803, %v3847
      %v3881 = vmul.f32 %v3804, %v3847
      %v3882 = vmul.f32 %v3805, %v3847
      %v3883 = vmul.f32 %v3806, %v3851
      %v3884 = vmul.f32 %v3807, %v3851
      %v3885 = vmul.f32 %v3808, %v3851
      %3919 = vrot.lane.b32.xlu0 %v3853, 110
      %v3920 = vpop.permute.xlu0 %3919
      %3921 = vrot.lane.b32.xlu0 %v3854, 110
      %v3922 = vpop.permute.xlu0 %3921
      %3923 = vrot.lane.b32.xlu0 %v3855, 110
      %v3924 = vpop.permute.xlu0 %3923
      %3925 = vrot.lane.b32.xlu0 %v3856, 110
      %v3926 = vpop.permute.xlu0 %3925
      %3927 = vrot.lane.b32.xlu0 %v3857, 110
      %v3928 = vpop.permute.xlu0 %3927
      %3929 = vrot.lane.b32.xlu0 %v3858, 110
      %v3930 = vpop.permute.xlu0 %3929
      %3931 = vrot.lane.b32.xlu0 %v3859, 110
      %v3932 = vpop.permute.xlu0 %3931
      %3933 = vrot.lane.b32.xlu0 %v3860, 110
      %v3934 = vpop.permute.xlu0 %3933
      %3935 = vrot.lane.b32.xlu0 %v3861, 110
      %v3936 = vpop.permute.xlu0 %3935
      %3937 = vrot.lane.b32.xlu0 %v3862, 110
      %v3938 = vpop.permute.xlu0 %3937
      %3939 = vrot.lane.b32.xlu0 %v3863, 110
      %v3940 = vpop.permute.xlu0 %3939
      %3941 = vrot.lane.b32.xlu0 %v3864, 110
      %v3942 = vpop.permute.xlu0 %3941
      %3943 = vrot.lane.b32.xlu0 %v3865, 110
      %v3944 = vpop.permute.xlu0 %3943
      %3945 = vrot.lane.b32.xlu0 %v3866, 110
      %v3946 = vpop.permute.xlu0 %3945
      %3947 = vrot.lane.b32.xlu0 %v3867, 110
      %v3948 = vpop.permute.xlu0 %3947
      %3949 = vrot.lane.b32.xlu0 %v3868, 110
      %v3950 = vpop.permute.xlu0 %3949
      %3951 = vrot.lane.b32.xlu0 %v3869, 110
      %v3952 = vpop.permute.xlu0 %3951
      %3953 = vrot.lane.b32.xlu0 %v3870, 110
      %v3954 = vpop.permute.xlu0 %3953
      %3955 = vrot.lane.b32.xlu0 %v3871, 110
      %v3956 = vpop.permute.xlu0 %3955
      %3957 = vrot.lane.b32.xlu0 %v3872, 110
      %v3958 = vpop.permute.xlu0 %3957
      %3959 = vrot.lane.b32.xlu0 %v3873, 110
      %v3960 = vpop.permute.xlu0 %3959
      %3961 = vrot.lane.b32.xlu0 %v3874, 110
      %v3962 = vpop.permute.xlu0 %3961
      %3963 = vrot.lane.b32.xlu0 %v3875, 110
      %v3964 = vpop.permute.xlu0 %3963
      %3965 = vrot.lane.b32.xlu0 %v3876, 110
      %v3966 = vpop.permute.xlu0 %3965
      %3967 = vrot.lane.b32.xlu0 %v3877, 110
      %v3968 = vpop.permute.xlu0 %3967
      %3969 = vrot.lane.b32.xlu0 %v3878, 110
      %v3970 = vpop.permute.xlu0 %3969
      %3971 = vrot.lane.b32.xlu0 %v3879, 110
      %v3972 = vpop.permute.xlu0 %3971
      %3973 = vrot.lane.b32.xlu0 %v3880, 110
      %v3974 = vpop.permute.xlu0 %3973
      %3975 = vrot.lane.b32.xlu0 %v3881, 110
      %v3976 = vpop.permute.xlu0 %3975
      %3977 = vrot.lane.b32.xlu0 %v3882, 110
      %v3978 = vpop.permute.xlu0 %3977
      %3979 = vrot.lane.b32.xlu0 %v3883, 110
      %v3980 = vpop.permute.xlu0 %3979
      %3981 = vrot.lane.b32.xlu0 %v3884, 110
      %v3982 = vpop.permute.xlu0 %3981
      %3983 = vrot.lane.b32.xlu0 %v3885, 110
      %v3984 = vpop.permute.xlu0 %3983
      %v3985 = vsel %vm1752, %v3920, %v3922
      %v3986 = vsel %vm1752, %v3922, %v3924
      %v3987 = vsel %vm1752, %v3926, %v3928
      %v3988 = vsel %vm1752, %v3928, %v3930
      %v3989 = vsel %vm1752, %v3932, %v3934
      %v3990 = vsel %vm1752, %v3934, %v3936
      %v3991 = vsel %vm1752, %v3938, %v3940
      %v3992 = vsel %vm1752, %v3940, %v3942
      %v3993 = vsel %vm1752, %v3944, %v3946
      %v3994 = vsel %vm1752, %v3946, %v3948
      %v3995 = vsel %vm1752, %v3950, %v3952
      %v3996 = vsel %vm1752, %v3952, %v3954
      %v3997 = vsel %vm1752, %v3956, %v3958
      %v3998 = vsel %vm1752, %v3958, %v3960
      %v3999 = vsel %vm1752, %v3962, %v3964
      %v4000 = vsel %vm1752, %v3964, %v3966
      %v4001 = vsel %vm1752, %v3968, %v3970
      %v4002 = vsel %vm1752, %v3970, %v3972
      %v4003 = vsel %vm1752, %v3974, %v3976
      %v4004 = vsel %vm1752, %v3976, %v3978
      %v4005 = vsel %vm1752, %v3980, %v3982
      %v4006 = vsel %vm1752, %v3982, %v3984
      %v4029 = vadd.f32 %v3754, %v3985
      %v4030 = vadd.f32 %v3755, %v3986
      %v4031 = vadd.f32 %v3756, %v3987
      %v4032 = vadd.f32 %v3757, %v3988
      %v4033 = vadd.f32 %v3758, %v3989
      %v4034 = vadd.f32 %v3759, %v3990
      %v4035 = vadd.f32 %v3760, %v3991
      %v4036 = vadd.f32 %v3761, %v3992
      %v4037 = vadd.f32 %v3762, %v3993
      %v4038 = vadd.f32 %v3763, %v3994
      %v4039 = vadd.f32 %v3764, %v3995
      %v4040 = vadd.f32 %v3765, %v3996
      %v4041 = vadd.f32 %v3766, %v3997
      %v4042 = vadd.f32 %v3767, %v3998
      %v4043 = vadd.f32 %v3768, %v3999
      %v4044 = vadd.f32 %v3769, %v4000
      %v4045 = vadd.f32 %v3770, %v4001
      %v4046 = vadd.f32 %v3771, %v4002
      %v4047 = vadd.f32 %v3772, %v4003
      %v4048 = vadd.f32 %v3773, %v4004
      %v4049 = vadd.f32 %v3774, %v4005
      %v4050 = vadd.f32 %v3775, %v4006
      %v4051 = vmul.f32 %v2764, %v1820
      %v4052 = vmul.f32 %v2720, %v1824
      %v4053 = vmul.f32 %v2775, %v1822
      %v4054 = vmul.f32 %v2765, %v1820
      %v4055 = vmul.f32 %v2721, %v1824
      %v4056 = vmul.f32 %v2776, %v1822
      %v4057 = vmul.f32 %v2766, %v1820
      %v4058 = vmul.f32 %v2722, %v1824
      %v4059 = vmul.f32 %v2777, %v1822
      %v4060 = vmul.f32 %v2767, %v1820
      %v4061 = vmul.f32 %v2723, %v1824
      %v4062 = vmul.f32 %v2778, %v1822
      %v4063 = vmul.f32 %v2768, %v1820
      %v4064 = vmul.f32 %v2724, %v1824
      %v4065 = vmul.f32 %v2779, %v1822
      %v4066 = vmul.f32 %v2769, %v1820
      %v4067 = vmul.f32 %v2725, %v1824
      %v4068 = vmul.f32 %v2780, %v1822
      %v4069 = vmul.f32 %v2770, %v1820
      %v4070 = vmul.f32 %v2726, %v1824
      %v4071 = vmul.f32 %v2781, %v1822
      %v4072 = vmul.f32 %v2771, %v1820
      %v4073 = vmul.f32 %v2727, %v1824
      %v4074 = vmul.f32 %v2782, %v1822
      %v4075 = vmul.f32 %v2772, %v1820
      %v4076 = vmul.f32 %v2728, %v1824
      %v4077 = vmul.f32 %v2783, %v1822
      %v4078 = vmul.f32 %v2773, %v1820
      %v4079 = vmul.f32 %v2729, %v1824
      %v4080 = vmul.f32 %v2784, %v1822
      %v4081 = vmul.f32 %v2774, %v1820
      %v4082 = vmul.f32 %v2730, %v1824
      %v4083 = vmul.f32 %v2785, %v1822
      %4084 = vset.pattern.permute.xlu0 6
      %4085 = vperm.xlu0 %4084, %v2786
      %v4086 = vpop.permute.xlu0 %4085
      %4088 = vset.pattern.permute.xlu0 6
      %4089 = vperm.xlu0 %4088, %v2787
      %v4090 = vpop.permute.xlu0 %4089
      %4092 = vset.pattern.permute.xlu0 6
      %4093 = vperm.xlu0 %4092, %v2788
      %v4094 = vpop.permute.xlu0 %4093
      %4096 = vset.pattern.permute.xlu0 6
      %4097 = vperm.xlu0 %4096, %v2789
      %v4098 = vpop.permute.xlu0 %4097
      %4100 = vset.pattern.permute.xlu0 6
      %4101 = vperm.xlu0 %4100, %v2790
      %v4102 = vpop.permute.xlu0 %4101
      %4104 = vset.pattern.permute.xlu0 6
      %4105 = vperm.xlu0 %4104, %v2791
      %v4106 = vpop.permute.xlu0 %4105
      %4108 = vset.pattern.permute.xlu0 6
      %4109 = vperm.xlu0 %4108, %v2792
      %v4110 = vpop.permute.xlu0 %4109
      %4112 = vset.pattern.permute.xlu0 6
      %4113 = vperm.xlu0 %4112, %v2793
      %v4114 = vpop.permute.xlu0 %4113
      %4116 = vset.pattern.permute.xlu0 6
      %4117 = vperm.xlu0 %4116, %v2794
      %v4118 = vpop.permute.xlu0 %4117
      %4120 = vset.pattern.permute.xlu0 6
      %4121 = vperm.xlu0 %4120, %v2795
      %v4122 = vpop.permute.xlu0 %4121
      %4124 = vset.pattern.permute.xlu0 6
      %4125 = vperm.xlu0 %4124, %v2796
      %v4126 = vpop.permute.xlu0 %4125
      %v4128 = vmul.f32 %v4051, %v4086
      %v4129 = vmul.f32 %v4052, %v4086
      %v4130 = vmul.f32 %v4053, %v4086
      %v4131 = vmul.f32 %v4054, %v4090
      %v4132 = vmul.f32 %v4055, %v4090
      %v4133 = vmul.f32 %v4056, %v4090
      %v4134 = vmul.f32 %v4057, %v4094
      %v4135 = vmul.f32 %v4058, %v4094
      %v4136 = vmul.f32 %v4059, %v4094
      %v4137 = vmul.f32 %v4060, %v4098
      %v4138 = vmul.f32 %v4061, %v4098
      %v4139 = vmul.f32 %v4062, %v4098
      %v4140 = vmul.f32 %v4063, %v4102
      %v4141 = vmul.f32 %v4064, %v4102
      %v4142 = vmul.f32 %v4065, %v4102
      %v4143 = vmul.f32 %v4066, %v4106
      %v4144 = vmul.f32 %v4067, %v4106
      %v4145 = vmul.f32 %v4068, %v4106
      %v4146 = vmul.f32 %v4069, %v4110
      %v4147 = vmul.f32 %v4070, %v4110
      %v4148 = vmul.f32 %v4071, %v4110
      %v4149 = vmul.f32 %v4072, %v4114
      %v4150 = vmul.f32 %v4073, %v4114
      %v4151 = vmul.f32 %v4074, %v4114
      %v4152 = vmul.f32 %v4075, %v4118
      %v4153 = vmul.f32 %v4076, %v4118
      %v4154 = vmul.f32 %v4077, %v4118
      %v4155 = vmul.f32 %v4078, %v4122
      %v4156 = vmul.f32 %v4079, %v4122
      %v4157 = vmul.f32 %v4080, %v4122
      %v4158 = vmul.f32 %v4081, %v4126
      %v4159 = vmul.f32 %v4082, %v4126
      %v4160 = vmul.f32 %v4083, %v4126
      %4194 = vrot.lane.b32.xlu0 %v4128, 96
      %v4195 = vpop.permute.xlu0 %4194
      %4196 = vrot.lane.b32.xlu0 %v4129, 96
      %v4197 = vpop.permute.xlu0 %4196
      %4198 = vrot.lane.b32.xlu0 %v4130, 96
      %v4199 = vpop.permute.xlu0 %4198
      %4200 = vrot.lane.b32.xlu0 %v4131, 96
      %v4201 = vpop.permute.xlu0 %4200
      %4202 = vrot.lane.b32.xlu0 %v4132, 96
      %v4203 = vpop.permute.xlu0 %4202
      %4204 = vrot.lane.b32.xlu0 %v4133, 96
      %v4205 = vpop.permute.xlu0 %4204
      %4206 = vrot.lane.b32.xlu0 %v4134, 96
      %v4207 = vpop.permute.xlu0 %4206
      %4208 = vrot.lane.b32.xlu0 %v4135, 96
      %v4209 = vpop.permute.xlu0 %4208
      %4210 = vrot.lane.b32.xlu0 %v4136, 96
      %v4211 = vpop.permute.xlu0 %4210
      %4212 = vrot.lane.b32.xlu0 %v4137, 96
      %v4213 = vpop.permute.xlu0 %4212
      %4214 = vrot.lane.b32.xlu0 %v4138, 96
      %v4215 = vpop.permute.xlu0 %4214
      %4216 = vrot.lane.b32.xlu0 %v4139, 96
      %v4217 = vpop.permute.xlu0 %4216
      %4218 = vrot.lane.b32.xlu0 %v4140, 96
      %v4219 = vpop.permute.xlu0 %4218
      %4220 = vrot.lane.b32.xlu0 %v4141, 96
      %v4221 = vpop.permute.xlu0 %4220
      %4222 = vrot.lane.b32.xlu0 %v4142, 96
      %v4223 = vpop.permute.xlu0 %4222
      %4224 = vrot.lane.b32.xlu0 %v4143, 96
      %v4225 = vpop.permute.xlu0 %4224
      %4226 = vrot.lane.b32.xlu0 %v4144, 96
      %v4227 = vpop.permute.xlu0 %4226
      %4228 = vrot.lane.b32.xlu0 %v4145, 96
      %v4229 = vpop.permute.xlu0 %4228
      %4230 = vrot.lane.b32.xlu0 %v4146, 96
      %v4231 = vpop.permute.xlu0 %4230
      %4232 = vrot.lane.b32.xlu0 %v4147, 96
      %v4233 = vpop.permute.xlu0 %4232
      %4234 = vrot.lane.b32.xlu0 %v4148, 96
      %v4235 = vpop.permute.xlu0 %4234
      %4236 = vrot.lane.b32.xlu0 %v4149, 96
      %v4237 = vpop.permute.xlu0 %4236
      %4238 = vrot.lane.b32.xlu0 %v4150, 96
      %v4239 = vpop.permute.xlu0 %4238
      %4240 = vrot.lane.b32.xlu0 %v4151, 96
      %v4241 = vpop.permute.xlu0 %4240
      %4242 = vrot.lane.b32.xlu0 %v4152, 96
      %v4243 = vpop.permute.xlu0 %4242
      %4244 = vrot.lane.b32.xlu0 %v4153, 96
      %v4245 = vpop.permute.xlu0 %4244
      %4246 = vrot.lane.b32.xlu0 %v4154, 96
      %v4247 = vpop.permute.xlu0 %4246
      %4248 = vrot.lane.b32.xlu0 %v4155, 96
      %v4249 = vpop.permute.xlu0 %4248
      %4250 = vrot.lane.b32.xlu0 %v4156, 96
      %v4251 = vpop.permute.xlu0 %4250
      %4252 = vrot.lane.b32.xlu0 %v4157, 96
      %v4253 = vpop.permute.xlu0 %4252
      %4254 = vrot.lane.b32.xlu0 %v4158, 96
      %v4255 = vpop.permute.xlu0 %4254
      %4256 = vrot.lane.b32.xlu0 %v4159, 96
      %v4257 = vpop.permute.xlu0 %4256
      %4258 = vrot.lane.b32.xlu0 %v4160, 96
      %v4259 = vpop.permute.xlu0 %4258
      %v4260 = vsel %vm2037, %v4195, %v4197
      %v4261 = vsel %vm2037, %v4197, %v4199
      %v4262 = vsel %vm2037, %v4201, %v4203
      %v4263 = vsel %vm2037, %v4203, %v4205
      %v4264 = vsel %vm2037, %v4207, %v4209
      %v4265 = vsel %vm2037, %v4209, %v4211
      %v4266 = vsel %vm2037, %v4213, %v4215
      %v4267 = vsel %vm2037, %v4215, %v4217
      %v4268 = vsel %vm2037, %v4219, %v4221
      %v4269 = vsel %vm2037, %v4221, %v4223
      %v4270 = vsel %vm2037, %v4225, %v4227
      %v4271 = vsel %vm2037, %v4227, %v4229
      %v4272 = vsel %vm2037, %v4231, %v4233
      %v4273 = vsel %vm2037, %v4233, %v4235
      %v4274 = vsel %vm2037, %v4237, %v4239
      %v4275 = vsel %vm2037, %v4239, %v4241
      %v4276 = vsel %vm2037, %v4243, %v4245
      %v4277 = vsel %vm2037, %v4245, %v4247
      %v4278 = vsel %vm2037, %v4249, %v4251
      %v4279 = vsel %vm2037, %v4251, %v4253
      %v4280 = vsel %vm2037, %v4255, %v4257
      %v4281 = vsel %vm2037, %v4257, %v4259
      %v4304 = vadd.f32 %v4029, %v4260
      %v4305 = vadd.f32 %v4030, %v4261
      %v4306 = vadd.f32 %v4031, %v4262
      %v4307 = vadd.f32 %v4032, %v4263
      %v4308 = vadd.f32 %v4033, %v4264
      %v4309 = vadd.f32 %v4034, %v4265
      %v4310 = vadd.f32 %v4035, %v4266
      %v4311 = vadd.f32 %v4036, %v4267
      %v4312 = vadd.f32 %v4037, %v4268
      %v4313 = vadd.f32 %v4038, %v4269
      %v4314 = vadd.f32 %v4039, %v4270
      %v4315 = vadd.f32 %v4040, %v4271
      %v4316 = vadd.f32 %v4041, %v4272
      %v4317 = vadd.f32 %v4042, %v4273
      %v4318 = vadd.f32 %v4043, %v4274
      %v4319 = vadd.f32 %v4044, %v4275
      %v4320 = vadd.f32 %v4045, %v4276
      %v4321 = vadd.f32 %v4046, %v4277
      %v4322 = vadd.f32 %v4047, %v4278
      %v4323 = vadd.f32 %v4048, %v4279
      %v4324 = vadd.f32 %v4049, %v4280
      %v4325 = vadd.f32 %v4050, %v4281
      %4326 = vset.pattern.permute.xlu0 7
      %4327 = vperm.xlu0 %4326, %v2786
      %v4328 = vpop.permute.xlu0 %4327
      %4330 = vset.pattern.permute.xlu0 7
      %4331 = vperm.xlu0 %4330, %v2787
      %v4332 = vpop.permute.xlu0 %4331
      %4334 = vset.pattern.permute.xlu0 7
      %4335 = vperm.xlu0 %4334, %v2788
      %v4336 = vpop.permute.xlu0 %4335
      %4338 = vset.pattern.permute.xlu0 7
      %4339 = vperm.xlu0 %4338, %v2789
      %v4340 = vpop.permute.xlu0 %4339
      %4342 = vset.pattern.permute.xlu0 7
      %4343 = vperm.xlu0 %4342, %v2790
      %v4344 = vpop.permute.xlu0 %4343
      %4346 = vset.pattern.permute.xlu0 7
      %4347 = vperm.xlu0 %4346, %v2791
      %v4348 = vpop.permute.xlu0 %4347
      %4350 = vset.pattern.permute.xlu0 7
      %4351 = vperm.xlu0 %4350, %v2792
      %v4352 = vpop.permute.xlu0 %4351
      %4354 = vset.pattern.permute.xlu0 7
      %4355 = vperm.xlu0 %4354, %v2793
      %v4356 = vpop.permute.xlu0 %4355
      %4358 = vset.pattern.permute.xlu0 7
      %4359 = vperm.xlu0 %4358, %v2794
      %v4360 = vpop.permute.xlu0 %4359
      %4362 = vset.pattern.permute.xlu0 7
      %4363 = vperm.xlu0 %4362, %v2795
      %v4364 = vpop.permute.xlu0 %4363
      %4366 = vset.pattern.permute.xlu0 7
      %4367 = vperm.xlu0 %4366, %v2796
      %v4368 = vpop.permute.xlu0 %4367
      %v4370 = vmul.f32 %v2764, %v4328
      %v4371 = vmul.f32 %v2720, %v4328
      %v4372 = vmul.f32 %v2775, %v4328
      %v4373 = vmul.f32 %v2765, %v4332
      %v4374 = vmul.f32 %v2721, %v4332
      %v4375 = vmul.f32 %v2776, %v4332
      %v4376 = vmul.f32 %v2766, %v4336
      %v4377 = vmul.f32 %v2722, %v4336
      %v4378 = vmul.f32 %v2777, %v4336
      %v4379 = vmul.f32 %v2767, %v4340
      %v4380 = vmul.f32 %v2723, %v4340
      %v4381 = vmul.f32 %v2778, %v4340
      %v4382 = vmul.f32 %v2768, %v4344
      %v4383 = vmul.f32 %v2724, %v4344
      %v4384 = vmul.f32 %v2779, %v4344
      %v4385 = vmul.f32 %v2769, %v4348
      %v4386 = vmul.f32 %v2725, %v4348
      %v4387 = vmul.f32 %v2780, %v4348
      %v4388 = vmul.f32 %v2770, %v4352
      %v4389 = vmul.f32 %v2726, %v4352
      %v4390 = vmul.f32 %v2781, %v4352
      %v4391 = vmul.f32 %v2771, %v4356
      %v4392 = vmul.f32 %v2727, %v4356
      %v4393 = vmul.f32 %v2782, %v4356
      %v4394 = vmul.f32 %v2772, %v4360
      %v4395 = vmul.f32 %v2728, %v4360
      %v4396 = vmul.f32 %v2783, %v4360
      %v4397 = vmul.f32 %v2773, %v4364
      %v4398 = vmul.f32 %v2729, %v4364
      %v4399 = vmul.f32 %v2784, %v4364
      %v4400 = vmul.f32 %v2774, %v4368
      %v4401 = vmul.f32 %v2730, %v4368
      %v4402 = vmul.f32 %v2785, %v4368
      %4436 = vrot.lane.b32.xlu0 %v4370, 95
      %v4437 = vpop.permute.xlu0 %4436
      %4438 = vrot.lane.b32.xlu0 %v4371, 95
      %v4439 = vpop.permute.xlu0 %4438
      %4440 = vrot.lane.b32.xlu0 %v4372, 95
      %v4441 = vpop.permute.xlu0 %4440
      %4442 = vrot.lane.b32.xlu0 %v4373, 95
      %v4443 = vpop.permute.xlu0 %4442
      %4444 = vrot.lane.b32.xlu0 %v4374, 95
      %v4445 = vpop.permute.xlu0 %4444
      %4446 = vrot.lane.b32.xlu0 %v4375, 95
      %v4447 = vpop.permute.xlu0 %4446
      %4448 = vrot.lane.b32.xlu0 %v4376, 95
      %v4449 = vpop.permute.xlu0 %4448
      %4450 = vrot.lane.b32.xlu0 %v4377, 95
      %v4451 = vpop.permute.xlu0 %4450
      %4452 = vrot.lane.b32.xlu0 %v4378, 95
      %v4453 = vpop.permute.xlu0 %4452
      %4454 = vrot.lane.b32.xlu0 %v4379, 95
      %v4455 = vpop.permute.xlu0 %4454
      %4456 = vrot.lane.b32.xlu0 %v4380, 95
      %v4457 = vpop.permute.xlu0 %4456
      %4458 = vrot.lane.b32.xlu0 %v4381, 95
      %v4459 = vpop.permute.xlu0 %4458
      %4460 = vrot.lane.b32.xlu0 %v4382, 95
      %v4461 = vpop.permute.xlu0 %4460
      %4462 = vrot.lane.b32.xlu0 %v4383, 95
      %v4463 = vpop.permute.xlu0 %4462
      %4464 = vrot.lane.b32.xlu0 %v4384, 95
      %v4465 = vpop.permute.xlu0 %4464
      %4466 = vrot.lane.b32.xlu0 %v4385, 95
      %v4467 = vpop.permute.xlu0 %4466
      %4468 = vrot.lane.b32.xlu0 %v4386, 95
      %v4469 = vpop.permute.xlu0 %4468
      %4470 = vrot.lane.b32.xlu0 %v4387, 95
      %v4471 = vpop.permute.xlu0 %4470
      %4472 = vrot.lane.b32.xlu0 %v4388, 95
      %v4473 = vpop.permute.xlu0 %4472
      %4474 = vrot.lane.b32.xlu0 %v4389, 95
      %v4475 = vpop.permute.xlu0 %4474
      %4476 = vrot.lane.b32.xlu0 %v4390, 95
      %v4477 = vpop.permute.xlu0 %4476
      %4478 = vrot.lane.b32.xlu0 %v4391, 95
      %v4479 = vpop.permute.xlu0 %4478
      %4480 = vrot.lane.b32.xlu0 %v4392, 95
      %v4481 = vpop.permute.xlu0 %4480
      %4482 = vrot.lane.b32.xlu0 %v4393, 95
      %v4483 = vpop.permute.xlu0 %4482
      %4484 = vrot.lane.b32.xlu0 %v4394, 95
      %v4485 = vpop.permute.xlu0 %4484
      %4486 = vrot.lane.b32.xlu0 %v4395, 95
      %v4487 = vpop.permute.xlu0 %4486
      %4488 = vrot.lane.b32.xlu0 %v4396, 95
      %v4489 = vpop.permute.xlu0 %4488
      %4490 = vrot.lane.b32.xlu0 %v4397, 95
      %v4491 = vpop.permute.xlu0 %4490
      %4492 = vrot.lane.b32.xlu0 %v4398, 95
      %v4493 = vpop.permute.xlu0 %4492
      %4494 = vrot.lane.b32.xlu0 %v4399, 95
      %v4495 = vpop.permute.xlu0 %4494
      %4496 = vrot.lane.b32.xlu0 %v4400, 95
      %v4497 = vpop.permute.xlu0 %4496
      %4498 = vrot.lane.b32.xlu0 %v4401, 95
      %v4499 = vpop.permute.xlu0 %4498
      %4500 = vrot.lane.b32.xlu0 %v4402, 95
      %v4501 = vpop.permute.xlu0 %4500
      %v4502 = vsel %vm2280, %v4437, %v4439
      %v4503 = vsel %vm2280, %v4439, %v4441
      %v4504 = vsel %vm2280, %v4443, %v4445
      %v4505 = vsel %vm2280, %v4445, %v4447
      %v4506 = vsel %vm2280, %v4449, %v4451
      %v4507 = vsel %vm2280, %v4451, %v4453
      %v4508 = vsel %vm2280, %v4455, %v4457
      %v4509 = vsel %vm2280, %v4457, %v4459
      %v4510 = vsel %vm2280, %v4461, %v4463
      %v4511 = vsel %vm2280, %v4463, %v4465
      %v4512 = vsel %vm2280, %v4467, %v4469
      %v4513 = vsel %vm2280, %v4469, %v4471
      %v4514 = vsel %vm2280, %v4473, %v4475
      %v4515 = vsel %vm2280, %v4475, %v4477
      %v4516 = vsel %vm2280, %v4479, %v4481
      %v4517 = vsel %vm2280, %v4481, %v4483
      %v4518 = vsel %vm2280, %v4485, %v4487
      %v4519 = vsel %vm2280, %v4487, %v4489
      %v4520 = vsel %vm2280, %v4491, %v4493
      %v4521 = vsel %vm2280, %v4493, %v4495
      %v4522 = vsel %vm2280, %v4497, %v4499
      %v4523 = vsel %vm2280, %v4499, %v4501
      %v4546 = vadd.f32 %v4304, %v4502
      %v4547 = vadd.f32 %v4305, %v4503
      %v4548 = vadd.f32 %v4306, %v4504
      %v4549 = vadd.f32 %v4307, %v4505
      %v4550 = vadd.f32 %v4308, %v4506
      %v4551 = vadd.f32 %v4309, %v4507
      %v4552 = vadd.f32 %v4310, %v4508
      %v4553 = vadd.f32 %v4311, %v4509
      %v4554 = vadd.f32 %v4312, %v4510
      %v4555 = vadd.f32 %v4313, %v4511
      %v4556 = vadd.f32 %v4314, %v4512
      %v4557 = vadd.f32 %v4315, %v4513
      %v4558 = vadd.f32 %v4316, %v4514
      %v4559 = vadd.f32 %v4317, %v4515
      %v4560 = vadd.f32 %v4318, %v4516
      %v4561 = vadd.f32 %v4319, %v4517
      %v4562 = vadd.f32 %v4320, %v4518
      %v4563 = vadd.f32 %v4321, %v4519
      %v4564 = vadd.f32 %v4322, %v4520
      %v4565 = vadd.f32 %v4323, %v4521
      %v4566 = vadd.f32 %v4324, %v4522
      %v4567 = vadd.f32 %v4325, %v4523
      %v4568 = vmul.f32 %v2764, %v2348
      %v4569 = vmul.f32 %v2720, %v2352
      %v4570 = vmul.f32 %v2775, %v2350
      %v4571 = vmul.f32 %v2765, %v2348
      %v4572 = vmul.f32 %v2721, %v2352
      %v4573 = vmul.f32 %v2776, %v2350
      %v4574 = vmul.f32 %v2766, %v2348
      %v4575 = vmul.f32 %v2722, %v2352
      %v4576 = vmul.f32 %v2777, %v2350
      %v4577 = vmul.f32 %v2767, %v2348
      %v4578 = vmul.f32 %v2723, %v2352
      %v4579 = vmul.f32 %v2778, %v2350
      %v4580 = vmul.f32 %v2768, %v2348
      %v4581 = vmul.f32 %v2724, %v2352
      %v4582 = vmul.f32 %v2779, %v2350
      %v4583 = vmul.f32 %v2769, %v2348
      %v4584 = vmul.f32 %v2725, %v2352
      %v4585 = vmul.f32 %v2780, %v2350
      %v4586 = vmul.f32 %v2770, %v2348
      %v4587 = vmul.f32 %v2726, %v2352
      %v4588 = vmul.f32 %v2781, %v2350
      %v4589 = vmul.f32 %v2771, %v2348
      %v4590 = vmul.f32 %v2727, %v2352
      %v4591 = vmul.f32 %v2782, %v2350
      %v4592 = vmul.f32 %v2772, %v2348
      %v4593 = vmul.f32 %v2728, %v2352
      %v4594 = vmul.f32 %v2783, %v2350
      %v4595 = vmul.f32 %v2773, %v2348
      %v4596 = vmul.f32 %v2729, %v2352
      %v4597 = vmul.f32 %v2784, %v2350
      %v4598 = vmul.f32 %v2774, %v2348
      %v4599 = vmul.f32 %v2730, %v2352
      %v4600 = vmul.f32 %v2785, %v2350
      %4601 = vset.pattern.permute.xlu0 8
      %4602 = vperm.xlu0 %4601, %v2786
      %v4603 = vpop.permute.xlu0 %4602
      %4605 = vset.pattern.permute.xlu0 8
      %4606 = vperm.xlu0 %4605, %v2787
      %v4607 = vpop.permute.xlu0 %4606
      %4609 = vset.pattern.permute.xlu0 8
      %4610 = vperm.xlu0 %4609, %v2788
      %v4611 = vpop.permute.xlu0 %4610
      %4613 = vset.pattern.permute.xlu0 8
      %4614 = vperm.xlu0 %4613, %v2789
      %v4615 = vpop.permute.xlu0 %4614
      %4617 = vset.pattern.permute.xlu0 8
      %4618 = vperm.xlu0 %4617, %v2790
      %v4619 = vpop.permute.xlu0 %4618
      %4621 = vset.pattern.permute.xlu0 8
      %4622 = vperm.xlu0 %4621, %v2791
      %v4623 = vpop.permute.xlu0 %4622
      %4625 = vset.pattern.permute.xlu0 8
      %4626 = vperm.xlu0 %4625, %v2792
      %v4627 = vpop.permute.xlu0 %4626
      %4629 = vset.pattern.permute.xlu0 8
      %4630 = vperm.xlu0 %4629, %v2793
      %v4631 = vpop.permute.xlu0 %4630
      %4633 = vset.pattern.permute.xlu0 8
      %4634 = vperm.xlu0 %4633, %v2794
      %v4635 = vpop.permute.xlu0 %4634
      %4637 = vset.pattern.permute.xlu0 8
      %4638 = vperm.xlu0 %4637, %v2795
      %v4639 = vpop.permute.xlu0 %4638
      %4641 = vset.pattern.permute.xlu0 8
      %4642 = vperm.xlu0 %4641, %v2796
      %v4643 = vpop.permute.xlu0 %4642
      %v4645 = vmul.f32 %v4568, %v4603
      %v4646 = vmul.f32 %v4569, %v4603
      %v4647 = vmul.f32 %v4570, %v4603
      %v4648 = vmul.f32 %v4571, %v4607
      %v4649 = vmul.f32 %v4572, %v4607
      %v4650 = vmul.f32 %v4573, %v4607
      %v4651 = vmul.f32 %v4574, %v4611
      %v4652 = vmul.f32 %v4575, %v4611
      %v4653 = vmul.f32 %v4576, %v4611
      %v4654 = vmul.f32 %v4577, %v4615
      %v4655 = vmul.f32 %v4578, %v4615
      %v4656 = vmul.f32 %v4579, %v4615
      %v4657 = vmul.f32 %v4580, %v4619
      %v4658 = vmul.f32 %v4581, %v4619
      %v4659 = vmul.f32 %v4582, %v4619
      %v4660 = vmul.f32 %v4583, %v4623
      %v4661 = vmul.f32 %v4584, %v4623
      %v4662 = vmul.f32 %v4585, %v4623
      %v4663 = vmul.f32 %v4586, %v4627
      %v4664 = vmul.f32 %v4587, %v4627
      %v4665 = vmul.f32 %v4588, %v4627
      %v4666 = vmul.f32 %v4589, %v4631
      %v4667 = vmul.f32 %v4590, %v4631
      %v4668 = vmul.f32 %v4591, %v4631
      %v4669 = vmul.f32 %v4592, %v4635
      %v4670 = vmul.f32 %v4593, %v4635
      %v4671 = vmul.f32 %v4594, %v4635
      %v4672 = vmul.f32 %v4595, %v4639
      %v4673 = vmul.f32 %v4596, %v4639
      %v4674 = vmul.f32 %v4597, %v4639
      %v4675 = vmul.f32 %v4598, %v4643
      %v4676 = vmul.f32 %v4599, %v4643
      %v4677 = vmul.f32 %v4600, %v4643
      %4711 = vrot.lane.b32.xlu0 %v4645, 94
      %v4712 = vpop.permute.xlu0 %4711
      %4713 = vrot.lane.b32.xlu0 %v4646, 94
      %v4714 = vpop.permute.xlu0 %4713
      %4715 = vrot.lane.b32.xlu0 %v4647, 94
      %v4716 = vpop.permute.xlu0 %4715
      %4717 = vrot.lane.b32.xlu0 %v4648, 94
      %v4718 = vpop.permute.xlu0 %4717
      %4719 = vrot.lane.b32.xlu0 %v4649, 94
      %v4720 = vpop.permute.xlu0 %4719
      %4721 = vrot.lane.b32.xlu0 %v4650, 94
      %v4722 = vpop.permute.xlu0 %4721
      %4723 = vrot.lane.b32.xlu0 %v4651, 94
      %v4724 = vpop.permute.xlu0 %4723
      %4725 = vrot.lane.b32.xlu0 %v4652, 94
      %v4726 = vpop.permute.xlu0 %4725
      %4727 = vrot.lane.b32.xlu0 %v4653, 94
      %v4728 = vpop.permute.xlu0 %4727
      %4729 = vrot.lane.b32.xlu0 %v4654, 94
      %v4730 = vpop.permute.xlu0 %4729
      %4731 = vrot.lane.b32.xlu0 %v4655, 94
      %v4732 = vpop.permute.xlu0 %4731
      %4733 = vrot.lane.b32.xlu0 %v4656, 94
      %v4734 = vpop.permute.xlu0 %4733
      %4735 = vrot.lane.b32.xlu0 %v4657, 94
      %v4736 = vpop.permute.xlu0 %4735
      %4737 = vrot.lane.b32.xlu0 %v4658, 94
      %v4738 = vpop.permute.xlu0 %4737
      %4739 = vrot.lane.b32.xlu0 %v4659, 94
      %v4740 = vpop.permute.xlu0 %4739
      %4741 = vrot.lane.b32.xlu0 %v4660, 94
      %v4742 = vpop.permute.xlu0 %4741
      %4743 = vrot.lane.b32.xlu0 %v4661, 94
      %v4744 = vpop.permute.xlu0 %4743
      %4745 = vrot.lane.b32.xlu0 %v4662, 94
      %v4746 = vpop.permute.xlu0 %4745
      %4747 = vrot.lane.b32.xlu0 %v4663, 94
      %v4748 = vpop.permute.xlu0 %4747
      %4749 = vrot.lane.b32.xlu0 %v4664, 94
      %v4750 = vpop.permute.xlu0 %4749
      %4751 = vrot.lane.b32.xlu0 %v4665, 94
      %v4752 = vpop.permute.xlu0 %4751
      %4753 = vrot.lane.b32.xlu0 %v4666, 94
      %v4754 = vpop.permute.xlu0 %4753
      %4755 = vrot.lane.b32.xlu0 %v4667, 94
      %v4756 = vpop.permute.xlu0 %4755
      %4757 = vrot.lane.b32.xlu0 %v4668, 94
      %v4758 = vpop.permute.xlu0 %4757
      %4759 = vrot.lane.b32.xlu0 %v4669, 94
      %v4760 = vpop.permute.xlu0 %4759
      %4761 = vrot.lane.b32.xlu0 %v4670, 94
      %v4762 = vpop.permute.xlu0 %4761
      %4763 = vrot.lane.b32.xlu0 %v4671, 94
      %v4764 = vpop.permute.xlu0 %4763
      %4765 = vrot.lane.b32.xlu0 %v4672, 94
      %v4766 = vpop.permute.xlu0 %4765
      %4767 = vrot.lane.b32.xlu0 %v4673, 94
      %v4768 = vpop.permute.xlu0 %4767
      %4769 = vrot.lane.b32.xlu0 %v4674, 94
      %v4770 = vpop.permute.xlu0 %4769
      %4771 = vrot.lane.b32.xlu0 %v4675, 94
      %v4772 = vpop.permute.xlu0 %4771
      %4773 = vrot.lane.b32.xlu0 %v4676, 94
      %v4774 = vpop.permute.xlu0 %4773
      %4775 = vrot.lane.b32.xlu0 %v4677, 94
      %v4776 = vpop.permute.xlu0 %4775
      %v4777 = vsel %vm2565, %v4712, %v4714
      %v4778 = vsel %vm2565, %v4714, %v4716
      %v4779 = vsel %vm2565, %v4718, %v4720
      %v4780 = vsel %vm2565, %v4720, %v4722
      %v4781 = vsel %vm2565, %v4724, %v4726
      %v4782 = vsel %vm2565, %v4726, %v4728
      %v4783 = vsel %vm2565, %v4730, %v4732
      %v4784 = vsel %vm2565, %v4732, %v4734
      %v4785 = vsel %vm2565, %v4736, %v4738
      %v4786 = vsel %vm2565, %v4738, %v4740
      %v4787 = vsel %vm2565, %v4742, %v4744
      %v4788 = vsel %vm2565, %v4744, %v4746
      %v4789 = vsel %vm2565, %v4748, %v4750
      %v4790 = vsel %vm2565, %v4750, %v4752
      %v4791 = vsel %vm2565, %v4754, %v4756
      %v4792 = vsel %vm2565, %v4756, %v4758
      %v4793 = vsel %vm2565, %v4760, %v4762
      %v4794 = vsel %vm2565, %v4762, %v4764
      %v4795 = vsel %vm2565, %v4766, %v4768
      %v4796 = vsel %vm2565, %v4768, %v4770
      %v4797 = vsel %vm2565, %v4772, %v4774
      %v4798 = vsel %vm2565, %v4774, %v4776
      %v4821 = vadd.f32 %v4546, %v4777
      %v4822 = vadd.f32 %v4547, %v4778
      %v4823 = vadd.f32 %v4548, %v4779
      %v4824 = vadd.f32 %v4549, %v4780
      %v4825 = vadd.f32 %v4550, %v4781
      %v4826 = vadd.f32 %v4551, %v4782
      %v4827 = vadd.f32 %v4552, %v4783
      %v4828 = vadd.f32 %v4553, %v4784
      %v4829 = vadd.f32 %v4554, %v4785
      %v4830 = vadd.f32 %v4555, %v4786
      %v4831 = vadd.f32 %v4556, %v4787
      %v4832 = vadd.f32 %v4557, %v4788
      %v4833 = vadd.f32 %v4558, %v4789
      %v4834 = vadd.f32 %v4559, %v4790
      %v4835 = vadd.f32 %v4560, %v4791
      %v4836 = vadd.f32 %v4561, %v4792
      %v4837 = vadd.f32 %v4562, %v4793
      %v4838 = vadd.f32 %v4563, %v4794
      %v4839 = vadd.f32 %v4564, %v4795
      %v4840 = vadd.f32 %v4565, %v4796
      %v4841 = vadd.f32 %v4566, %v4797
      %v4842 = vadd.f32 %v4567, %v4798
      %v4843 = vmul.f32 %v2610, 0.5
      %v4844 = vmul.f32 %v2611, 0.5
      %v4845 = vmul.f32 %v2612, 0.5
      %v4846 = vmul.f32 %v2613, 0.5
      %v4847 = vmul.f32 %v2614, 0.5
      %v4848 = vmul.f32 %v2615, 0.5
      %v4849 = vmul.f32 %v2616, 0.5
      %v4850 = vmul.f32 %v2617, 0.5
      %v4851 = vmul.f32 %v2618, 0.5
      %v4852 = vmul.f32 %v2619, 0.5
      %v4853 = vmul.f32 %v2620, 0.5
      %v4854 = vmul.f32 %v2621, 0.5
      %v4855 = vmul.f32 %v2622, 0.5
      %v4856 = vmul.f32 %v2623, 0.5
      %v4857 = vmul.f32 %v2624, 0.5
      %v4858 = vmul.f32 %v2625, 0.5
      %v4859 = vmul.f32 %v2626, 0.5
      %v4860 = vmul.f32 %v2627, 0.5
      %v4861 = vmul.f32 %v2628, 0.5
      %v4862 = vmul.f32 %v2629, 0.5
      %v4863 = vmul.f32 %v2630, 0.5
      %v4864 = vmul.f32 %v2631, 0.5
      %v4865 = vmul.f32 %v2610, 0.70710677
      %v4866 = vmul.f32 %v2611, 0.70710677
      %v4867 = vmul.f32 %v2612, 0.70710677
      %v4868 = vmul.f32 %v2613, 0.70710677
      %v4869 = vmul.f32 %v2614, 0.70710677
      %v4870 = vmul.f32 %v2615, 0.70710677
      %v4871 = vmul.f32 %v2616, 0.70710677
      %v4872 = vmul.f32 %v2617, 0.70710677
      %v4873 = vmul.f32 %v2618, 0.70710677
      %v4874 = vmul.f32 %v2619, 0.70710677
      %v4875 = vmul.f32 %v2620, 0.70710677
      %v4876 = vmul.f32 %v2621, 0.70710677
      %v4877 = vmul.f32 %v2622, 0.70710677
      %v4878 = vmul.f32 %v2623, 0.70710677
      %v4879 = vmul.f32 %v2624, 0.70710677
      %v4880 = vmul.f32 %v2625, 0.70710677
      %v4881 = vmul.f32 %v2626, 0.70710677
      %v4882 = vmul.f32 %v2627, 0.70710677
      %v4883 = vmul.f32 %v2628, 0.70710677
      %v4884 = vmul.f32 %v2629, 0.70710677
      %v4885 = vmul.f32 %v2630, 0.70710677
      %v4886 = vmul.f32 %v2631, 0.70710677
      %v4887 = verf.f32.pop %v4865
      %v4888 = verf.f32.pop %v4866
      %v4889 = verf.f32.pop %v4867
      %v4890 = verf.f32.pop %v4868
      %v4891 = verf.f32.pop %v4869
      %v4892 = verf.f32.pop %v4870
      %v4893 = verf.f32.pop %v4871
      %v4894 = verf.f32.pop %v4872
      %v4895 = verf.f32.pop %v4873
      %v4896 = verf.f32.pop %v4874
      %v4897 = verf.f32.pop %v4875
      %v4898 = verf.f32.pop %v4876
      %v4899 = verf.f32.pop %v4877
      %v4900 = verf.f32.pop %v4878
      %v4901 = verf.f32.pop %v4879
      %v4902 = verf.f32.pop %v4880
      %v4903 = verf.f32.pop %v4881
      %v4904 = verf.f32.pop %v4882
      %v4905 = verf.f32.pop %v4883
      %v4906 = verf.f32.pop %v4884
      %v4907 = verf.f32.pop %v4885
      %v4908 = verf.f32.pop %v4886
      %v4909 = vadd.f32 %v4887, 1.0
      %v4910 = vadd.f32 %v4888, 1.0
      %v4911 = vadd.f32 %v4889, 1.0
      %v4912 = vadd.f32 %v4890, 1.0
      %v4913 = vadd.f32 %v4891, 1.0
      %v4914 = vadd.f32 %v4892, 1.0
      %v4915 = vadd.f32 %v4893, 1.0
      %v4916 = vadd.f32 %v4894, 1.0
      %v4917 = vadd.f32 %v4895, 1.0
      %v4918 = vadd.f32 %v4896, 1.0
      %v4919 = vadd.f32 %v4897, 1.0
      %v4920 = vadd.f32 %v4898, 1.0
      %v4921 = vadd.f32 %v4899, 1.0
      %v4922 = vadd.f32 %v4900, 1.0
      %v4923 = vadd.f32 %v4901, 1.0
      %v4924 = vadd.f32 %v4902, 1.0
      %v4925 = vadd.f32 %v4903, 1.0
      %v4926 = vadd.f32 %v4904, 1.0
      %v4927 = vadd.f32 %v4905, 1.0
      %v4928 = vadd.f32 %v4906, 1.0
      %v4929 = vadd.f32 %v4907, 1.0
      %v4930 = vadd.f32 %v4908, 1.0
      %v4931 = vmul.f32 %v4843, %v4909
      %v4932 = vmul.f32 %v4844, %v4910
      %v4933 = vmul.f32 %v4845, %v4911
      %v4934 = vmul.f32 %v4846, %v4912
      %v4935 = vmul.f32 %v4847, %v4913
      %v4936 = vmul.f32 %v4848, %v4914
      %v4937 = vmul.f32 %v4849, %v4915
      %v4938 = vmul.f32 %v4850, %v4916
      %v4939 = vmul.f32 %v4851, %v4917
      %v4940 = vmul.f32 %v4852, %v4918
      %v4941 = vmul.f32 %v4853, %v4919
      %v4942 = vmul.f32 %v4854, %v4920
      %v4943 = vmul.f32 %v4855, %v4921
      %v4944 = vmul.f32 %v4856, %v4922
      %v4945 = vmul.f32 %v4857, %v4923
      %v4946 = vmul.f32 %v4858, %v4924
      %v4947 = vmul.f32 %v4859, %v4925
      %v4948 = vmul.f32 %v4860, %v4926
      %v4949 = vmul.f32 %v4861, %v4927
      %v4950 = vmul.f32 %v4862, %v4928
      %v4951 = vmul.f32 %v4863, %v4929
      %v4952 = vmul.f32 %v4864, %v4930
      %v4953 = vmul.f32 %v4931, %v4821
      %v4954 = vmul.f32 %v4932, %v4822
      %v4955 = vmul.f32 %v4933, %v4823
      %v4956 = vmul.f32 %v4934, %v4824
      %v4957 = vmul.f32 %v4935, %v4825
      %v4958 = vmul.f32 %v4936, %v4826
      %v4959 = vmul.f32 %v4937, %v4827
      %v4960 = vmul.f32 %v4938, %v4828
      %v4961 = vmul.f32 %v4939, %v4829
      %v4962 = vmul.f32 %v4940, %v4830
      %v4963 = vmul.f32 %v4941, %v4831
      %v4964 = vmul.f32 %v4942, %v4832
      %v4965 = vmul.f32 %v4943, %v4833
      %v4966 = vmul.f32 %v4944, %v4834
      %v4967 = vmul.f32 %v4945, %v4835
      %v4968 = vmul.f32 %v4946, %v4836
      %v4969 = vmul.f32 %v4947, %v4837
      %v4970 = vmul.f32 %v4948, %v4838
      %v4971 = vmul.f32 %v4949, %v4839
      %v4972 = vmul.f32 %v4950, %v4840
      %v4973 = vmul.f32 %v4951, %v4841
      %v4974 = vmul.f32 %v4952, %v4842
      %v4975 = vld [vmem:[%s340] sm:$0xff]
      %v4976 = vld [vmem:[%s340 + $0x8] sm:$0xff]
      %v4977 = vld [vmem:[%s340 + $0x10] sm:$0xff]
      %v4978 = vld [vmem:[%s340 + $0x18] sm:$0xff]
      %v4979 = vld [vmem:[%s340 + $0x20] sm:$0xff]
      %v4980 = vld [vmem:[%s340 + $0x28] sm:$0xff]
      %v4981 = vld [vmem:[%s340 + $0x30] sm:$0xff]
      %v4982 = vld [vmem:[%s340 + $0x38] sm:$0xff]
      %v4983 = vld [vmem:[%s5] sm:$0xff]
      %v4984 = vld [vmem:[%s5 + $0x8] sm:$0xff]
      %v4985 = vld [vmem:[%s5 + $0x10] sm:$0xff]
      %v4986 = vld [vmem:[%s5 + $0x18] sm:$0xff]
      %vm4987 = vcmask 695296
      %v4989 = vsel %vm4987, %v4983, 0
      %v4992 = vsel %vm4987, %v4984, 0
      %v4995 = vsel %vm4987, %v4985, 0
      %v4998 = vsel %vm4987, %v4986, 0
      %vm5000 = vcmask 1044480
      %v5002 = vsel %vm5000, %v4973, 0
      %v5005 = vsel %vm5000, %v4974, 0
      %5007 = vmatprep.subr.mxu0 0.0
      %5008 = vmatpush1.msra.mxu0 0.0
      %5009 = vmatprep.subr.mxu0 0.0
      %5010 = vmatpush1.msra.mxu0 0.0
      %5011 = vmatprep.subr.mxu0 0.0
      %5012 = vmatpush1.msra.mxu0 0.0
      %5013 = vmatprep.subr.mxu0 0.0
      %5014 = vmatpush1.msra.mxu0 0.0
      %5015 = vmatprep.subr.mxu0 0.0
      %5016 = vmatpush1.msra.mxu0 0.0
      %5017 = vmatprep.subr.mxu0 %v5005
      %5018 = vmatpush1.msra.mxu0 %v5002
      %5019 = vmatprep.subr.mxu0 %v4972
      %5020 = vmatpush1.msra.mxu0 %v4971
      %5021 = vmatprep.subr.mxu0 %v4970
      %5022 = vmatpush1.msra.mxu0 %v4969
      %5023 = vmatprep.subr.mxu0 %v4968
      %5024 = vmatpush1.msra.mxu0 %v4967
      %5025 = vmatprep.subr.mxu0 %v4966
      %5026 = vmatpush1.msra.mxu0 %v4965
      %5027 = vmatprep.subr.mxu0 %v4964
      %5028 = vmatpush1.msra.mxu0 %v4963
      %5029 = vmatprep.subr.mxu0 %v4962
      %5030 = vmatpush1.msra.mxu0 %v4961
      %5031 = vmatprep.subr.mxu0 %v4960
      %5032 = vmatpush1.msra.mxu0 %v4959
      %5033 = vmatprep.subr.mxu0 %v4958
      %5034 = vmatpush1.msra.mxu0 %v4957
      %5035 = vmatprep.subr.mxu0 %v4956
      %5036 = vmatpush1.msra.mxu0 %v4955
      %5037 = vmatprep.subr.mxu0 %v4954
      %5038 = vmatpush1.msra.mxu0 %v4953
      %5039 = vmatprep.subr.mxu0 0.0
      %5040 = vmatpush2.msra.mxu0 0.0
      %5041 = vmatprep.subr.mxu0 0.0
      %5042 = vmatpush2.msra.mxu0 0.0
      %5043 = vmatprep.subr.mxu0 0.0
      %5044 = vmatpush2.msra.mxu0 0.0
      %5045 = vmatprep.subr.mxu0 0.0
      %5046 = vmatpush2.msra.mxu0 0.0
      %5047 = vmatprep.subr.mxu0 0.0
      %5048 = vmatpush2.msra.mxu0 0.0
      %5049 = vmatprep.subr.mxu0 0.0
      %5050 = vmatpush2.msra.mxu0 0.0
      %5051 = vmatprep.subr.mxu0 0.0
      %5052 = vmatpush2.msra.mxu0 0.0
      %5053 = vmatprep.subr.mxu0 0.0
      %5054 = vmatpush2.msra.mxu0 0.0
      %5055 = vmatprep.subr.mxu0 0.0
      %5056 = vmatpush2.msra.mxu0 0.0
      %5057 = vmatprep.subr.mxu0 0.0
      %5058 = vmatpush2.msra.mxu0 0.0
      %5059 = vmatprep.subr.mxu0 0.0
      %5060 = vmatpush2.msra.mxu0 0.0
      %5061 = vmatprep.subr.mxu0 0.0
      %5062 = vmatpush2.msra.mxu0 0.0
      %5063 = vmatprep.subr.mxu0 0.0
      %5064 = vmatpush2.msra.mxu0 0.0
      %5065 = vmatprep.subr.mxu0 0.0
      %5066 = vmatpush2.msra.mxu0 0.0
      %5067 = vmatprep.subr.mxu0 0.0
      %5068 = vmatpush2.msra.mxu0 0.0
      %5069 = vmatprep.subr.mxu0 0.0
      %5070 = vmatpush2.msra.mxu0 0.0
      %5071 = vmatprep.mubr.f32.mxu0 0.0
      %5072 = vmatmul.mubr.f32.gmra.mxu0 %v4989
      %v5073 = vpop.f32.mrf.mxu0
      %v5074 = vadd.f32 0.0, %v5073
      %v5075 = vpop.f32.mrf.mxu0
      %v5076 = vadd.f32 0.0, %v5075
      %5077 = vmatprep.mubr.f32.mxu0 0.0
      %5078 = vmatmul.mubr.f32.gmra.mxu0 %v4992
      %v5079 = vpop.f32.mrf.mxu0
      %v5080 = vadd.f32 0.0, %v5079
      %v5081 = vpop.f32.mrf.mxu0
      %v5082 = vadd.f32 0.0, %v5081
      %5083 = vmatprep.mubr.f32.mxu0 0.0
      %5084 = vmatmul.mubr.f32.gmra.mxu0 %v4995
      %v5085 = vpop.f32.mrf.mxu0
      %v5086 = vadd.f32 0.0, %v5085
      %v5087 = vpop.f32.mrf.mxu0
      %v5088 = vadd.f32 0.0, %v5087
      %5089 = vmatprep.mubr.f32.mxu0 0.0
      %5090 = vmatmul.mubr.f32.gmra.mxu0 %v4998
      %v5091 = vpop.f32.mrf.mxu0
      %v5092 = vadd.f32 0.0, %v5091
      %v5093 = vpop.f32.mrf.mxu0
      %v5094 = vadd.f32 0.0, %v5093
      %5095 = vdwg.mxu0
      %v5096 = vadd.f32 %v4975, %v5074
      %v5097 = vadd.f32 %v4976, %v5076
      %v5098 = vadd.f32 %v4977, %v5080
      %v5099 = vadd.f32 %v4978, %v5082
      %v5100 = vadd.f32 %v4979, %v5086
      %v5101 = vadd.f32 %v4980, %v5088
      %v5102 = vadd.f32 %v4981, %v5092
      %v5103 = vadd.f32 %v4982, %v5094
      %5104 = vst [vmem:[%s345] sm:$0xff] %v5096
      %5105 = vst [vmem:[%s345 + $0x8] sm:$0xff] %v5097
      %5106 = vst [vmem:[%s345 + $0x10] sm:$0xff] %v5098
      %5107 = vst [vmem:[%s345 + $0x18] sm:$0xff] %v5099
      %5108 = vst [vmem:[%s345 + $0x20] sm:$0xff] %v5100
      %5109 = vst [vmem:[%s345 + $0x28] sm:$0xff] %v5101
      %5110 = vst [vmem:[%s345 + $0x30] sm:$0xff] %v5102
      %5111 = vst [vmem:[%s345 + $0x38] sm:$0xff] %v5103
      %p5112 = scmp.lt.s32.totalorder %s19, 1
      %s5113 = scalar_select %p5112, %s19, 1
      %s5114 = smul.addr %s5113, 8
      %s5115 = smul.addr %s5114, 8
      %s5116 = scalar_lea.vmem %s8, %s5115
      // Predicated region
      $region53: #{trans10_forward.46} parent=51 // pred_check
        %p5117 = pneg %p220
      $region54: #{trans10_forward.46} parent=51 // pred_check_branch
        %5119 = sbr.rel (%p5117) target = $region56
      $region55: #{trans10_forward.46} parent=51 // pred_region
        _
      $region56: #{trans10_forward.46} parent=51 // pred_fallthru
        _
    $region52: #{trans10_forward.46} parent=5 // pred_fallthru
      _
    %p5120 = scmp.le.s32.totalorder 2, %s14
    // Predicated region
    $region57: #{trans10_forward.46} parent=5 // pred_check
      %p5121 = pneg %p5120
    $region58: #{trans10_forward.46} parent=5 // pred_check_branch
      %5123 = sbr.rel (%p5121) target = $region60
    $region59: #{trans10_forward.46} parent=5 // pred_region
      %s5124 = ssub.s32 %s14, 2
      // Predicated region
      $region61: #{trans10_forward.46} parent=59 // pred_check
        %p5125 = pneg %p226
      $region62: #{trans10_forward.46} parent=59 // pred_check_branch
        %5127 = sbr.rel (%p5125) target = $region64
      $region63: #{trans10_forward.46} parent=59 // pred_region
        %p5128 = scmp.lt.s32.totalorder %s20, 1
        %s5129 = scalar_select %p5128, %s20, 1
        %s5130 = smul.addr %s5129, 8
        %s5131 = smul.addr %s5130, 8
        %s5132 = scalar_lea.vmem %s8, %s5131
      $region64: #{trans10_forward.46} parent=59 // pred_fallthru
        _
    $region60: #{trans10_forward.46} parent=5 // pred_fallthru
      _
  $region6: #{trans10_forward.46} parent=0 // loop_footer
    %s18 = sadd.s32 1, %s14
  $region7: #{trans10_forward.46} parent=0 // loop_footer_branch
    %13 = sbr.rel target = $region3
  $region8: #{trans10_forward.46} parent=0 // loop_exit
    _

</llo_original>
